<compile_context>
chip_gen: v7x
topology: tpu7x:2x2x1
jax: 0.10.0
libtpu: 0.0.40
codegen_flags: <defaults>
</compile_context>

<pallas_src>
import jax
import jax.numpy as jnp
import numpy as np
from jax.experimental import pallas as pl
from jax.experimental.pallas import tpu as pltpu


# ---------------------------------------------------------------------------
# Model configuration (small, deterministic, consistent with the module)
# ---------------------------------------------------------------------------
BYTE_LEN = 5                      # configs.byte_len
EMBED_DIM = 32
OUTPUT_DIM = 128
HIGHWAY_LAYERS = 2
FILTERS = [(1, 64), (2, 128), (3, 192)] + [(i, 256) for i in range(4, BYTE_LEN)]
LAST_DIM = sum(oc for _, oc in FILTERS)          # 640 = 5 * 128 (lane aligned)

N_POS = [BYTE_LEN - w + 1 for w, _ in FILTERS]   # valid conv positions per filter
MAX_POS = max(N_POS)                             # 5 (width-1 filter)
CH_OFF = [int(v) for v in np.cumsum([0] + [oc for _, oc in FILTERS[:-1]])]
CONV_COLS = MAX_POS * LAST_DIM                   # 3200, position-major layout

B, T = 2, 8


def _round_up(v, m):
    return (v + m - 1) // m * m


# ---------------------------------------------------------------------------
# Kernel
# ---------------------------------------------------------------------------
def _make_kernel(n_hw, d, max_pos):
    def kernel(x_ref, wconv_ref, bconv_ref, *refs):
        # refs layout: [w_hw0, b_hw0, w_hw1, b_hw1, ..., w_proj, b_proj, out]
        hw_refs = refs[:2 * n_hw]
        wproj_ref, bproj_ref, out_ref = refs[2 * n_hw:]

        # --- Conv stage: one fused bf16 matmul (all filters/taps/positions) ---
        y = jnp.dot(x_ref[...], wconv_ref[...],
                    preferred_element_type=jnp.float32)   # (tile_n, MAX_POS*D) f32

        # Position-major layout: slice p holds every filter's output at conv
        # position p (invalid positions were packed as duplicates of a valid
        # position), so max over the 5 aligned 640-wide slices == max over the
        # valid positions.  No concatenate, no mask.
        m = y[:, :d]
        for p in range(1, max_pos):
            m = jnp.maximum(m, y[:, p * d:(p + 1) * d])
        # conv bias hoisted out of the position max: max(x + b) == max(x) + b
        h = jnp.maximum(m + bconv_ref[...], 0.0)           # relu, (tile_n, D) f32

        # --- Highway layers: fused proj|gate matmul, bf16 operands, f32 acc ---
        for li in range(n_hw):
            w_hw, b_hw = hw_refs[2 * li], hw_refs[2 * li + 1]
            yh = jnp.dot(h.astype(jnp.bfloat16), w_hw[...],
                         preferred_element_type=jnp.float32) + b_hw[...]
            proj = jnp.maximum(yh[:, :d], 0.0)             # relu(proj); slice aligned at 640
            gate = jax.nn.sigmoid(yh[:, d:])
            h = gate * h + (1.0 - gate) * proj

        # --- Output projection ---
        out = jnp.dot(h.astype(jnp.bfloat16), wproj_ref[...],
                      preferred_element_type=jnp.float32) + bproj_ref[...]
        out_ref[...] = out.astype(out_ref.dtype)

    return kernel


# ---------------------------------------------------------------------------
# Parameter preparation: im2col-fuse conv weights (position-major) + bf16 cast
# ---------------------------------------------------------------------------
def prepare_params(conv_ws, conv_bs, hw_ws, hw_bs, proj_w, proj_b):
    L, E, D = BYTE_LEN, EMBED_DIM, LAST_DIM
    f32, bf16 = jnp.float32, jnp.bfloat16

    # Fused, position-major conv weight:
    #   W[(sp+k)*E + c, p*D + CH_OFF[fi] + o] = Wc[k, c, o], sp = min(p, npos-1)
    # Positions p >= npos (filter too wide to slide there) reuse the last valid
    # position's weights, so a plain position-max in the kernel stays exact.
    w_conv = jnp.zeros((L * E, CONV_COLS), bf16)
    for fi, ((w, oc), Wc) in enumerate(zip(FILTERS, conv_ws)):
        Wcb = Wc.astype(bf16)
        npos = N_POS[fi]
        for p in range(MAX_POS):
            sp = min(p, npos - 1)
            col = p * D + CH_OFF[fi]
            for k in range(w):
                w_conv = w_conv.at[(sp + k) * E:(sp + k + 1) * E,
                                   col:col + oc].set(Wcb[k])

    b_conv = jnp.concatenate(list(conv_bs), axis=-1).astype(f32)     # (1, D)

    # Highway: keep the fused proj|gate layout (D, 2D); no padding needed since
    # D = 640 is already a multiple of 128.
    hw_flat = []
    for Wh, bh in zip(hw_ws, hw_bs):
        hw_flat += [Wh.astype(bf16), bh.astype(f32)]

    w_proj = proj_w.astype(bf16)                                     # (D, OUT)
    b_proj = proj_b.astype(f32)                                      # (1, OUT)
    return w_conv, b_conv, hw_flat, w_proj, b_proj


# ---------------------------------------------------------------------------
# Wrapper
# ---------------------------------------------------------------------------
def _pick_tile_n():
    # 256 matches the 256x256 MXU on v6e/v7x; v5e's MXUs are 128-row -> 128.
    try:
        kind = jax.devices()[0].device_kind.lower()
    except Exception:
        kind = ""
    return 128 if "v5" in kind else 256


@jax.jit
def byte_combine_cnn(features, params):
    w_conv, b_conv, hw_flat, w_proj, b_proj = params
    Bsz, Tsz, L, E = features.shape
    n = Bsz * Tsz
    x = features.astype(jnp.bfloat16).reshape(n, L * E)   # (N, byte_len*emb_dim)

    # Whole (tiny) token batch in one grid step; MXU-sized row tiles otherwise.
    if n <= 256:
        tile_n, n_pad = n, n
    else:
        tile_n = _pick_tile_n()
        n_pad = _round_up(n, tile_n)
        if n_pad != n:
            x = jnp.pad(x, ((0, n_pad - n), (0, 0)))      # extra rows sliced off below
    grid = (n_pad // tile_n,)

    kernel = _make_kernel(HIGHWAY_LAYERS, LAST_DIM, MAX_POS)

    # Weights/biases never change across the grid: place them whole in VMEM
    # (loaded once, single-buffered) instead of per-step double-buffering.
    wspec = pl.BlockSpec(memory_space=pltpu.MemorySpace.VMEM)
    in_specs = [pl.BlockSpec((tile_n, L * E), lambda i: (i, 0))]
    in_specs += [wspec] * (2 + len(hw_flat) + 2)

    all_ins = [x, w_conv, b_conv, *hw_flat, w_proj, b_proj]
    bytes_accessed = int(sum(a.size * a.dtype.itemsize for a in all_ins)
                         + n_pad * OUTPUT_DIM * 4)
    flops = 2 * n_pad * (L * E * CONV_COLS
                         + 2 * HIGHWAY_LAYERS * LAST_DIM * LAST_DIM
                         + LAST_DIM * OUTPUT_DIM)

    out = pl.pallas_call(
        kernel,
        out_shape=jax.ShapeDtypeStruct((n_pad, OUTPUT_DIM), jnp.float32),
        grid_spec=pltpu.PrefetchScalarGridSpec(
            num_scalar_prefetch=0,
            grid=grid,
            in_specs=in_specs,
            out_specs=pl.BlockSpec((tile_n, OUTPUT_DIM), lambda i: (i, 0)),
        ),
        compiler_params=pltpu.CompilerParams(
            # Don't megacore-shard a 1-step grid (would duplicate the whole-VMEM
            # weight residency per TensorCore for nothing); shard real tile counts.
            dimension_semantics=(("arbitrary",) if grid[0] == 1 else ("parallel",)),
            # 48 MiB: safe on v7x (64 MiB/TC), plenty of slack on v5e/v6e.
            vmem_limit_bytes=48 * 1024 * 1024,
        ),
        cost_estimate=pl.CostEstimate(
            flops=int(flops),
            transcendentals=int(n_pad * LAST_DIM * HIGHWAY_LAYERS),
            bytes_accessed=bytes_accessed),
    )(x, w_conv, b_conv, *hw_flat, w_proj, b_proj)

    return out[:n].reshape(Bsz, Tsz, OUTPUT_DIM)


# ---------------------------------------------------------------------------
# Pure-JAX reference (mirrors the PyTorch forward; same precision recipe as the
# kernel: bf16 matmul operands, f32 accumulation, in the unfused form).
# ---------------------------------------------------------------------------
def reference(features, conv_ws, conv_bs, hw_ws, hw_bs, proj_w, proj_b):
    Bsz, Tsz, L, E = features.shape
    x = features.astype(jnp.bfloat16).reshape(-1, L, E)
    feats = []
    for (w, oc), W, bias in zip(FILTERS, conv_ws, conv_bs):
        Wb = W.astype(jnp.bfloat16)
        pos = []
        for p in range(L - w + 1):
            acc = jnp.zeros((x.shape[0], oc), jnp.float32)
            for k in range(w):
                acc = acc + jnp.dot(x[:, p + k, :], Wb[k],
                                    preferred_element_type=jnp.float32)
            pos.append(acc)
        m = jnp.max(jnp.stack(pos, axis=-1), axis=-1) + bias   # max over positions, then bias
        feats.append(jax.nn.relu(m))                           # relu after max
    h = jnp.concatenate(feats, axis=-1)
    for Wh, bh in zip(hw_ws, hw_bs):
        y = jnp.dot(h.astype(jnp.bfloat16), Wh.astype(jnp.bfloat16),
                    preferred_element_type=jnp.float32) + bh
        proj_x = jax.nn.relu(y[:, :LAST_DIM])
        gate = jax.nn.sigmoid(y[:, LAST_DIM:])
        h = gate * h + (1.0 - gate) * proj_x
    out = jnp.dot(h.astype(jnp.bfloat16), proj_w.astype(jnp.bfloat16),
                  preferred_element_type=jnp.float32) + proj_b
    return out.reshape(Bsz, Tsz, OUTPUT_DIM)


# ---------------------------------------------------------------------------
# Deterministic parameter construction (synthetic, matches __init__ shapes)
# ---------------------------------------------------------------------------
def build_params(key):
    keys = jax.random.split(key, 4 + 2 * len(FILTERS) + HIGHWAY_LAYERS)
    ki = iter(range(len(keys)))

    conv_ws, conv_bs = [], []
    for (w, oc) in FILTERS:
        fan_in = EMBED_DIM * w
        scale = (1.0 / fan_in) ** 0.5
        Wc = jax.random.normal(keys[next(ki)], (w, EMBED_DIM, oc),
                               jnp.float32) * scale
        bc = jax.random.normal(keys[next(ki)], (1, oc), jnp.float32) * scale
        conv_ws.append(Wc)
        conv_bs.append(bc)

    hw_ws, hw_bs = [], []
    xavier_std = (2.0 / (LAST_DIM + 2 * LAST_DIM)) ** 0.5
    for _ in range(HIGHWAY_LAYERS):
        Wh = jax.random.normal(keys[next(ki)], (LAST_DIM, 2 * LAST_DIM),
                               jnp.float32) * xavier_std
        # Highway.reset_parameters: bias[:input_dim]=0 (proj), bias[input_dim:]=1 (gate)
        bh = jnp.concatenate(
            [jnp.zeros((1, LAST_DIM), jnp.float32),
             jnp.ones((1, LAST_DIM), jnp.float32)], axis=-1)
        hw_ws.append(Wh)
        hw_bs.append(bh)

    pscale = (1.0 / LAST_DIM) ** 0.5
    proj_w = jax.random.normal(keys[next(ki)], (LAST_DIM, OUTPUT_DIM),
                               jnp.float32) * pscale
    proj_b = jax.random.normal(keys[next(ki)], (1, OUTPUT_DIM),
                               jnp.float32) * pscale
    return conv_ws, conv_bs, hw_ws, hw_bs, proj_w, proj_b


if __name__ == "__main__":
    key = jax.random.PRNGKey(0)
    k_feat, k_param = jax.random.split(key)

    features = jax.random.normal(k_feat, (B, T, BYTE_LEN, EMBED_DIM),
                                 jnp.float32)
    conv_ws, conv_bs, hw_ws, hw_bs, proj_w, proj_b = build_params(k_param)

    params = prepare_params(conv_ws, conv_bs, hw_ws, hw_bs, proj_w, proj_b)
    out = byte_combine_cnn(features, params)
    out = jax.block_until_ready(out)

    ref = reference(features, conv_ws, conv_bs, hw_ws, hw_bs, proj_w, proj_b)
    assert out.shape == (B, T, OUTPUT_DIM), out.shape
    assert jnp.allclose(out, ref, rtol=2e-3, atol=2e-3), (
        float(jnp.max(jnp.abs(out - ref))))

    print("KERNEL_OK")
</pallas_src>

<mosaic_0001>
module attributes {stable_mosaic.version = 11 : i64} {
  func.func @kernel(%arg0: i32, %arg1: memref<16x160xbf16, #tpu.memory_space<vmem>>, %arg2: memref<160x3200xbf16, #tpu.memory_space<vmem>>, %arg3: memref<1x640xf32, #tpu.memory_space<vmem>>, %arg4: memref<640x1280xbf16, #tpu.memory_space<vmem>>, %arg5: memref<1x1280xf32, #tpu.memory_space<vmem>>, %arg6: memref<640x1280xbf16, #tpu.memory_space<vmem>>, %arg7: memref<1x1280xf32, #tpu.memory_space<vmem>>, %arg8: memref<640x128xbf16, #tpu.memory_space<vmem>>, %arg9: memref<1x128xf32, #tpu.memory_space<vmem>>, %arg10: memref<16x128xf32, #tpu.memory_space<vmem>>) attributes {dimension_semantics = [#tpu.dimension_semantics<arbitrary>], iteration_bounds = array<i64: 1>, scalar_prefetch = 0 : i64, scratch_operands = 0 : i64, tpu.core_type = #tpu.core_type<tc>, window_params = [{transform_indices = @transform_0, window_bounds = array<i64: 16, 160>}, {pipeline_mode = #tpu.pipeline_mode<synchronous>, transform_indices = @transform_1, window_bounds = array<i64: 160, 3200>}, {pipeline_mode = #tpu.pipeline_mode<synchronous>, transform_indices = @transform_2, window_bounds = array<i64: 1, 640>}, {pipeline_mode = #tpu.pipeline_mode<synchronous>, transform_indices = @transform_3, window_bounds = array<i64: 640, 1280>}, {pipeline_mode = #tpu.pipeline_mode<synchronous>, transform_indices = @transform_4, window_bounds = array<i64: 1, 1280>}, {pipeline_mode = #tpu.pipeline_mode<synchronous>, transform_indices = @transform_5, window_bounds = array<i64: 640, 1280>}, {pipeline_mode = #tpu.pipeline_mode<synchronous>, transform_indices = @transform_6, window_bounds = array<i64: 1, 1280>}, {pipeline_mode = #tpu.pipeline_mode<synchronous>, transform_indices = @transform_7, window_bounds = array<i64: 640, 128>}, {pipeline_mode = #tpu.pipeline_mode<synchronous>, transform_indices = @transform_8, window_bounds = array<i64: 1, 128>}, {transform_indices = @transform_9, window_bounds = array<i64: 16, 128>}]} {
    %c0 = arith.constant 0 : index
    %c0_0 = arith.constant 0 : index
    %0 = vector.load %arg1[%c0, %c0_0] : memref<16x160xbf16, #tpu.memory_space<vmem>>, vector<16x160xbf16>
    %c0_1 = arith.constant 0 : index
    %c0_2 = arith.constant 0 : index
    %1 = vector.load %arg2[%c0_1, %c0_2] : memref<160x3200xbf16, #tpu.memory_space<vmem>>, vector<160x3200xbf16>
    %cst = arith.constant dense<0.000000e+00> : vector<16x3200xf32>
    %2 = tpu.matmul %0, %1, %cst {dimension_numbers = #tpu.dot_dimension_numbers<[1], [0], [0], [1], [0, 0, 1, 1], [], []>} : vector<16x160xbf16>, vector<160x3200xbf16>, vector<16x3200xf32> -> vector<16x3200xf32>
    %3 = vector.extract_strided_slice %2 {offsets = [0, 0], sizes = [16, 640], strides = [1, 1]} : vector<16x3200xf32> to vector<16x640xf32>
    %4 = vector.extract_strided_slice %2 {offsets = [0, 640], sizes = [16, 640], strides = [1, 1]} : vector<16x3200xf32> to vector<16x640xf32>
    %5 = arith.maximumf %3, %4 : vector<16x640xf32>
    %6 = vector.extract_strided_slice %2 {offsets = [0, 1280], sizes = [16, 640], strides = [1, 1]} : vector<16x3200xf32> to vector<16x640xf32>
    %7 = arith.maximumf %5, %6 : vector<16x640xf32>
    %8 = vector.extract_strided_slice %2 {offsets = [0, 1920], sizes = [16, 640], strides = [1, 1]} : vector<16x3200xf32> to vector<16x640xf32>
    %9 = arith.maximumf %7, %8 : vector<16x640xf32>
    %10 = vector.extract_strided_slice %2 {offsets = [0, 2560], sizes = [16, 640], strides = [1, 1]} : vector<16x3200xf32> to vector<16x640xf32>
    %11 = arith.maximumf %9, %10 : vector<16x640xf32>
    %c0_3 = arith.constant 0 : index
    %c0_4 = arith.constant 0 : index
    %12 = vector.load %arg3[%c0_3, %c0_4] : memref<1x640xf32, #tpu.memory_space<vmem>>, vector<1x640xf32>
    %13 = vector.broadcast %12 : vector<1x640xf32> to vector<16x640xf32>
    %14 = arith.addf %11, %13 : vector<16x640xf32>
    %cst_5 = arith.constant 0.000000e+00 : f32
    %15 = vector.broadcast %cst_5 : f32 to vector<16x640xf32>
    %16 = arith.maximumf %14, %15 : vector<16x640xf32>
    %17 = arith.truncf %16 : vector<16x640xf32> to vector<16x640xbf16>
    %c0_6 = arith.constant 0 : index
    %c0_7 = arith.constant 0 : index
    %18 = vector.load %arg4[%c0_6, %c0_7] : memref<640x1280xbf16, #tpu.memory_space<vmem>>, vector<640x1280xbf16>
    %cst_8 = arith.constant dense<0.000000e+00> : vector<16x1280xf32>
    %19 = tpu.matmul %17, %18, %cst_8 {dimension_numbers = #tpu.dot_dimension_numbers<[1], [0], [0], [1], [0, 0, 1, 1], [], []>} : vector<16x640xbf16>, vector<640x1280xbf16>, vector<16x1280xf32> -> vector<16x1280xf32>
    %c0_9 = arith.constant 0 : index
    %c0_10 = arith.constant 0 : index
    %20 = vector.load %arg5[%c0_9, %c0_10] : memref<1x1280xf32, #tpu.memory_space<vmem>>, vector<1x1280xf32>
    %21 = vector.broadcast %20 : vector<1x1280xf32> to vector<16x1280xf32>
    %22 = arith.addf %19, %21 : vector<16x1280xf32>
    %23 = vector.extract_strided_slice %22 {offsets = [0, 0], sizes = [16, 640], strides = [1, 1]} : vector<16x1280xf32> to vector<16x640xf32>
    %cst_11 = arith.constant 0.000000e+00 : f32
    %24 = vector.broadcast %cst_11 : f32 to vector<16x640xf32>
    %25 = arith.maximumf %23, %24 : vector<16x640xf32>
    %26 = vector.extract_strided_slice %22 {offsets = [0, 640], sizes = [16, 640], strides = [1, 1]} : vector<16x1280xf32> to vector<16x640xf32>
    %27 = arith.negf %26 : vector<16x640xf32>
    %28 = math.exp %27 : vector<16x640xf32>
    %cst_12 = arith.constant 1.000000e+00 : f32
    %29 = vector.broadcast %cst_12 : f32 to vector<16x640xf32>
    %30 = arith.addf %29, %28 : vector<16x640xf32>
    %31 = arith.divf %29, %30 : vector<16x640xf32>
    %32 = arith.mulf %31, %16 : vector<16x640xf32>
    %cst_13 = arith.constant 1.000000e+00 : f32
    %33 = vector.broadcast %cst_13 : f32 to vector<16x640xf32>
    %34 = arith.subf %33, %31 : vector<16x640xf32>
    %35 = arith.mulf %34, %25 : vector<16x640xf32>
    %36 = arith.addf %32, %35 : vector<16x640xf32>
    %37 = arith.truncf %36 : vector<16x640xf32> to vector<16x640xbf16>
    %c0_14 = arith.constant 0 : index
    %c0_15 = arith.constant 0 : index
    %38 = vector.load %arg6[%c0_14, %c0_15] : memref<640x1280xbf16, #tpu.memory_space<vmem>>, vector<640x1280xbf16>
    %cst_16 = arith.constant dense<0.000000e+00> : vector<16x1280xf32>
    %39 = tpu.matmul %37, %38, %cst_16 {dimension_numbers = #tpu.dot_dimension_numbers<[1], [0], [0], [1], [0, 0, 1, 1], [], []>} : vector<16x640xbf16>, vector<640x1280xbf16>, vector<16x1280xf32> -> vector<16x1280xf32>
    %c0_17 = arith.constant 0 : index
    %c0_18 = arith.constant 0 : index
    %40 = vector.load %arg7[%c0_17, %c0_18] : memref<1x1280xf32, #tpu.memory_space<vmem>>, vector<1x1280xf32>
    %41 = vector.broadcast %40 : vector<1x1280xf32> to vector<16x1280xf32>
    %42 = arith.addf %39, %41 : vector<16x1280xf32>
    %43 = vector.extract_strided_slice %42 {offsets = [0, 0], sizes = [16, 640], strides = [1, 1]} : vector<16x1280xf32> to vector<16x640xf32>
    %cst_19 = arith.constant 0.000000e+00 : f32
    %44 = vector.broadcast %cst_19 : f32 to vector<16x640xf32>
    %45 = arith.maximumf %43, %44 : vector<16x640xf32>
    %46 = vector.extract_strided_slice %42 {offsets = [0, 640], sizes = [16, 640], strides = [1, 1]} : vector<16x1280xf32> to vector<16x640xf32>
    %47 = arith.negf %46 : vector<16x640xf32>
    %48 = math.exp %47 : vector<16x640xf32>
    %cst_20 = arith.constant 1.000000e+00 : f32
    %49 = vector.broadcast %cst_20 : f32 to vector<16x640xf32>
    %50 = arith.addf %49, %48 : vector<16x640xf32>
    %51 = arith.divf %49, %50 : vector<16x640xf32>
    %52 = arith.mulf %51, %36 : vector<16x640xf32>
    %cst_21 = arith.constant 1.000000e+00 : f32
    %53 = vector.broadcast %cst_21 : f32 to vector<16x640xf32>
    %54 = arith.subf %53, %51 : vector<16x640xf32>
    %55 = arith.mulf %54, %45 : vector<16x640xf32>
    %56 = arith.addf %52, %55 : vector<16x640xf32>
    %57 = arith.truncf %56 : vector<16x640xf32> to vector<16x640xbf16>
    %c0_22 = arith.constant 0 : index
    %c0_23 = arith.constant 0 : index
    %58 = vector.load %arg8[%c0_22, %c0_23] : memref<640x128xbf16, #tpu.memory_space<vmem>>, vector<640x128xbf16>
    %cst_24 = arith.constant dense<0.000000e+00> : vector<16x128xf32>
    %59 = tpu.matmul %57, %58, %cst_24 {dimension_numbers = #tpu.dot_dimension_numbers<[1], [0], [0], [1], [0, 0, 1, 1], [], []>} : vector<16x640xbf16>, vector<640x128xbf16>, vector<16x128xf32> -> vector<16x128xf32>
    %c0_25 = arith.constant 0 : index
    %c0_26 = arith.constant 0 : index
    %60 = vector.load %arg9[%c0_25, %c0_26] : memref<1x128xf32, #tpu.memory_space<vmem>>, vector<1x128xf32>
    %61 = vector.broadcast %60 : vector<1x128xf32> to vector<16x128xf32>
    %62 = arith.addf %59, %61 : vector<16x128xf32>
    %c0_27 = arith.constant 0 : index
    %c0_28 = arith.constant 0 : index
    %63 = vector.load %arg10[%c0_27, %c0_28] : memref<16x128xf32, #tpu.memory_space<vmem>>, vector<16x128xf32>
    tpu.vector_store %arg10[%c0_27, %c0_28], %62 {strides = array<i32>} : memref<16x128xf32, #tpu.memory_space<vmem>>, vector<16x128xf32>,
    return
  }
  func.func @transform_0(%arg0: i32) -> (i32, i32) {
    %c0_i32 = arith.constant 0 : i32
    %c0_i32_0 = arith.constant 0 : i32
    return %arg0, %c0_i32 : i32, i32
  }
  func.func @transform_1(%arg0: i32) -> (i32, i32) {
    %c0_i32 = arith.constant 0 : i32
    %c0_i32_0 = arith.constant 0 : i32
    %c0_i32_1 = arith.constant 0 : i32
    return %c0_i32, %c0_i32_0 : i32, i32
  }
  func.func @transform_2(%arg0: i32) -> (i32, i32) {
    %c0_i32 = arith.constant 0 : i32
    %c0_i32_0 = arith.constant 0 : i32
    %c0_i32_1 = arith.constant 0 : i32
    return %c0_i32, %c0_i32_0 : i32, i32
  }
  func.func @transform_3(%arg0: i32) -> (i32, i32) {
    %c0_i32 = arith.constant 0 : i32
    %c0_i32_0 = arith.constant 0 : i32
    %c0_i32_1 = arith.constant 0 : i32
    return %c0_i32, %c0_i32_0 : i32, i32
  }
  func.func @transform_4(%arg0: i32) -> (i32, i32) {
    %c0_i32 = arith.constant 0 : i32
    %c0_i32_0 = arith.constant 0 : i32
    %c0_i32_1 = arith.constant 0 : i32
    return %c0_i32, %c0_i32_0 : i32, i32
  }
  func.func @transform_5(%arg0: i32) -> (i32, i32) {
    %c0_i32 = arith.constant 0 : i32
    %c0_i32_0 = arith.constant 0 : i32
    %c0_i32_1 = arith.constant 0 : i32
    return %c0_i32, %c0_i32_0 : i32, i32
  }
  func.func @transform_6(%arg0: i32) -> (i32, i32) {
    %c0_i32 = arith.constant 0 : i32
    %c0_i32_0 = arith.constant 0 : i32
    %c0_i32_1 = arith.constant 0 : i32
    return %c0_i32, %c0_i32_0 : i32, i32
  }
  func.func @transform_7(%arg0: i32) -> (i32, i32) {
    %c0_i32 = arith.constant 0 : i32
    %c0_i32_0 = arith.constant 0 : i32
    %c0_i32_1 = arith.constant 0 : i32
    return %c0_i32, %c0_i32_0 : i32, i32
  }
  func.func @transform_8(%arg0: i32) -> (i32, i32) {
    %c0_i32 = arith.constant 0 : i32
    %c0_i32_0 = arith.constant 0 : i32
    %c0_i32_1 = arith.constant 0 : i32
    return %c0_i32, %c0_i32_0 : i32, i32
  }
  func.func @transform_9(%arg0: i32) -> (i32, i32) {
    %c0_i32 = arith.constant 0 : i32
    %c0_i32_0 = arith.constant 0 : i32
    return %arg0, %c0_i32 : i32, i32
  }
}

</mosaic_0001>

<llo_original>
// kernel: byte_combine_cnn.1
$region0: #{byte_combine_cnn.1}
  #allocation0 [shape = 'u32[]', space=smem, size = 0x4, offset = 0x4, fixed_abs, tag = 'smem constant byte address 0x4 - core index']
  #allocation1 [shape = 'u32[144,128]{1,0:T(1,128)}', space=vmem, size = 0x12000, scoped, tag = 'internal scratch']
  %s0 = inlined_call_operand.vmem [shape: bf16[16,160], index: 0, kind: input, shape index: {}]
  %s1 = inlined_call_operand.hbm [shape: bf16[160,3200], index: 1, kind: input, shape index: {}]
  %s2 = inlined_call_operand.hbm [shape: f32[1,640], index: 2, kind: input, shape index: {}]
  %s3 = inlined_call_operand.hbm [shape: bf16[640,1280], index: 3, kind: input, shape index: {}]
  %s4 = inlined_call_operand.hbm [shape: f32[1,1280], index: 4, kind: input, shape index: {}]
  %s5 = inlined_call_operand.hbm [shape: bf16[640,1280], index: 5, kind: input, shape index: {}]
  %s6 = inlined_call_operand.hbm [shape: f32[1,1280], index: 6, kind: input, shape index: {}]
  %s7 = inlined_call_operand.hbm [shape: bf16[640,128], index: 7, kind: input, shape index: {}]
  %s8 = inlined_call_operand.hbm [shape: f32[1,128], index: 8, kind: input, shape index: {}]
  %s9 = inlined_call_operand.hbm [shape: f32[16,128], index: 9, kind: output, shape index: {}]
  %s10 = sld [smem:[#allocation0]]
  $region78: #{byte_combine_cnn.1} parent=0
    _
  %s12 = ssub.s32 1, %s10
  %s13 = scalar_select 0, %s12, %s10
  $region1: #{byte_combine_cnn.1} parent=0
    #allocation2 [shape = 'u8[1024000]{0}', space=vmem, size = 0xfa000, scoped, tag = 'input window, operand 1, single buffered']
    #allocation3 [shape = 's32[1]{0}', space=sflag, size = 0x4, scoped, tag = 'scoped memory for byte_combine_cnn.1']
    #allocation4 [shape = 's32[1]{0}', space=sflag, size = 0x4, scoped, tag = 'scoped memory for byte_combine_cnn.1']
    #allocation5 [shape = 'u8[2560]{0}', space=vmem, size = 0xc00, scoped, tag = 'input window, operand 2, single buffered']
    #allocation6 [shape = 's32[1]{0}', space=sflag, size = 0x4, scoped, tag = 'scoped memory for byte_combine_cnn.1']
    #allocation7 [shape = 'u8[1638400]{0}', space=vmem, size = 0x190000, scoped, tag = 'input window, operand 3, single buffered']
    #allocation8 [shape = 'u8[5120]{0}', space=vmem, size = 0x1400, scoped, tag = 'input window, operand 4, single buffered']
    #allocation9 [shape = 's32[1]{0}', space=sflag, size = 0x4, scoped, tag = 'scoped memory for byte_combine_cnn.1']
    #allocation10 [shape = 'u8[1638400]{0}', space=vmem, size = 0x190000, scoped, tag = 'input window, operand 5, single buffered']
    #allocation11 [shape = 'u8[5120]{0}', space=vmem, size = 0x1400, scoped, tag = 'input window, operand 6, single buffered']
    #allocation12 [shape = 's32[1]{0}', space=sflag, size = 0x4, scoped, tag = 'scoped memory for byte_combine_cnn.1']
    #allocation13 [shape = 'u8[163840]{0}', space=vmem, size = 0x28000, scoped, tag = 'input window, operand 7, single buffered']
    #allocation14 [shape = 'u8[512]{0}', space=vmem, size = 0x400, scoped, tag = 'input window, operand 8, single buffered']
    #allocation15 [shape = 's32[1]{0}', space=sflag, size = 0x4, scoped, tag = 'scoped memory for byte_combine_cnn.1']
    #allocation16 [shape = 'u8[8192]{0}', space=vmem, size = 0x2000, scoped, tag = 'output window, operand 0, single buffered']
    %14 = vsyncpa [#allocation3], 0
    %15 = vsyncpa [#allocation6], 0
    %16 = vsyncpa [#allocation9], 0
    %17 = vsyncpa [#allocation12], 0
    %18 = vsyncpa [#allocation15], 0
    %19 = vsyncpa [#allocation4], 0
    // Predicated region
    $region2: #{byte_combine_cnn.1} parent=1 // pred_check
      _
    $region3: #{byte_combine_cnn.1} parent=1 // pred_check_branch
      %21 = sbr.rel (0) target = $region5
    $region4: #{byte_combine_cnn.1} parent=1 // pred_region
      _
    $region5: #{byte_combine_cnn.1} parent=1 // pred_fallthru
      _
    // Predicated region
    $region6: #{byte_combine_cnn.1} parent=1 // pred_check
      _
    $region7: #{byte_combine_cnn.1} parent=1 // pred_check_branch
      %23 = sbr.rel (0) target = $region9
    $region8: #{byte_combine_cnn.1} parent=1 // pred_region
      %s25 = ssub.s32 32000, 32000
      %26 = vsyncadd [#allocation3], %s25
      %s27 = sshll.u32 [#allocation2], 4
      %s28 = int_to_ptr.vmem [resolvable:$true] %s27
      %33 = dma.hbm_to_vmem [thread:$0]  %s1, 32000, %s28, [#allocation3], 1600, 1600, 100
    $region9: #{byte_combine_cnn.1} parent=1 // pred_fallthru
      _
    // Predicated region
    $region10: #{byte_combine_cnn.1} parent=1 // pred_check
      _
    $region11: #{byte_combine_cnn.1} parent=1 // pred_check_branch
      %35 = sbr.rel (0) target = $region13
    $region12: #{byte_combine_cnn.1} parent=1 // pred_region
      %s37 = ssub.s32 80, 80
      %38 = vsyncadd [#allocation6], %s37
      %s40 = sshll.u32 [#allocation5], 4
      %s41 = int_to_ptr.vmem [resolvable:$true] %s40
      %43 = dma.hbm_to_vmem [thread:$0]  %s2, 80, %s41, [#allocation6]
    $region13: #{byte_combine_cnn.1} parent=1 // pred_fallthru
      _
    // Predicated region
    $region14: #{byte_combine_cnn.1} parent=1 // pred_check
      _
    $region15: #{byte_combine_cnn.1} parent=1 // pred_check_branch
      %45 = sbr.rel (0) target = $region17
    $region16: #{byte_combine_cnn.1} parent=1 // pred_region
      %s47 = ssub.s32 51200, 51200
      %48 = vsyncadd [#allocation6], %s47
      %s49 = sshll.u32 [#allocation7], 4
      %s50 = int_to_ptr.vmem [resolvable:$true] %s49
      %55 = dma.hbm_to_vmem [thread:$0]  %s3, 51200, %s50, [#allocation6], 640, 640, 40
    $region17: #{byte_combine_cnn.1} parent=1 // pred_fallthru
      _
    // Predicated region
    $region18: #{byte_combine_cnn.1} parent=1 // pred_check
      _
    $region19: #{byte_combine_cnn.1} parent=1 // pred_check_branch
      %57 = sbr.rel (0) target = $region21
    $region20: #{byte_combine_cnn.1} parent=1 // pred_region
      %s59 = ssub.s32 160, 160
      %60 = vsyncadd [#allocation9], %s59
      %s62 = sshll.u32 [#allocation8], 4
      %s63 = int_to_ptr.vmem [resolvable:$true] %s62
      %65 = dma.hbm_to_vmem [thread:$0]  %s4, 160, %s63, [#allocation9]
    $region21: #{byte_combine_cnn.1} parent=1 // pred_fallthru
      _
    // Predicated region
    $region22: #{byte_combine_cnn.1} parent=1 // pred_check
      _
    $region23: #{byte_combine_cnn.1} parent=1 // pred_check_branch
      %67 = sbr.rel (0) target = $region25
    $region24: #{byte_combine_cnn.1} parent=1 // pred_region
      %s69 = ssub.s32 51200, 51200
      %70 = vsyncadd [#allocation9], %s69
      %s71 = sshll.u32 [#allocation10], 4
      %s72 = int_to_ptr.vmem [resolvable:$true] %s71
      %77 = dma.hbm_to_vmem [thread:$0]  %s5, 51200, %s72, [#allocation9], 640, 640, 40
    $region25: #{byte_combine_cnn.1} parent=1 // pred_fallthru
      _
    // Predicated region
    $region26: #{byte_combine_cnn.1} parent=1 // pred_check
      _
    $region27: #{byte_combine_cnn.1} parent=1 // pred_check_branch
      %79 = sbr.rel (0) target = $region29
    $region28: #{byte_combine_cnn.1} parent=1 // pred_region
      %s81 = ssub.s32 160, 160
      %82 = vsyncadd [#allocation12], %s81
      %s84 = sshll.u32 [#allocation11], 4
      %s85 = int_to_ptr.vmem [resolvable:$true] %s84
      %87 = dma.hbm_to_vmem [thread:$0]  %s6, 160, %s85, [#allocation12]
    $region29: #{byte_combine_cnn.1} parent=1 // pred_fallthru
      _
    // Predicated region
    $region30: #{byte_combine_cnn.1} parent=1 // pred_check
      _
    $region31: #{byte_combine_cnn.1} parent=1 // pred_check_branch
      %89 = sbr.rel (0) target = $region33
    $region32: #{byte_combine_cnn.1} parent=1 // pred_region
      %s91 = ssub.s32 5120, 5120
      %92 = vsyncadd [#allocation12], %s91
      %s93 = sshll.u32 [#allocation13], 4
      %s94 = int_to_ptr.vmem [resolvable:$true] %s93
      %99 = dma.hbm_to_vmem [thread:$0]  %s7, 5120, %s94, [#allocation12], 64, 64, 4
    $region33: #{byte_combine_cnn.1} parent=1 // pred_fallthru
      _
    // Predicated region
    $region34: #{byte_combine_cnn.1} parent=1 // pred_check
      _
    $region35: #{byte_combine_cnn.1} parent=1 // pred_check_branch
      %101 = sbr.rel (0) target = $region37
    $region36: #{byte_combine_cnn.1} parent=1 // pred_region
      %s103 = ssub.s32 16, 16
      %104 = vsyncadd [#allocation15], %s103
      %s106 = sshll.u32 [#allocation14], 4
      %s107 = int_to_ptr.vmem [resolvable:$true] %s106
      %109 = dma.hbm_to_vmem [thread:$0]  %s8, 16, %s107, [#allocation15]
    $region37: #{byte_combine_cnn.1} parent=1 // pred_fallthru
      _
    // Predicated region
    $region38: #{byte_combine_cnn.1} parent=1 // pred_check
      _
    $region39: #{byte_combine_cnn.1} parent=1 // pred_check_branch
      %111 = sbr.rel (0) target = $region41
    $region40: #{byte_combine_cnn.1} parent=1 // pred_region
      %112 = dma.done [#allocation3], 32000
    $region41: #{byte_combine_cnn.1} parent=1 // pred_fallthru
      _
    // Predicated region
    $region42: #{byte_combine_cnn.1} parent=1 // pred_check
      _
    $region43: #{byte_combine_cnn.1} parent=1 // pred_check_branch
      %114 = sbr.rel (0) target = $region45
    $region44: #{byte_combine_cnn.1} parent=1 // pred_region
      %115 = dma.done [#allocation6], 80
    $region45: #{byte_combine_cnn.1} parent=1 // pred_fallthru
      _
    // Predicated region
    $region46: #{byte_combine_cnn.1} parent=1 // pred_check
      _
    $region47: #{byte_combine_cnn.1} parent=1 // pred_check_branch
      %117 = sbr.rel (0) target = $region49
    $region48: #{byte_combine_cnn.1} parent=1 // pred_region
      %118 = dma.done [#allocation6], 51200
    $region49: #{byte_combine_cnn.1} parent=1 // pred_fallthru
      _
    // Predicated region
    $region50: #{byte_combine_cnn.1} parent=1 // pred_check
      _
    $region51: #{byte_combine_cnn.1} parent=1 // pred_check_branch
      %120 = sbr.rel (0) target = $region53
    $region52: #{byte_combine_cnn.1} parent=1 // pred_region
      %121 = dma.done [#allocation9], 160
    $region53: #{byte_combine_cnn.1} parent=1 // pred_fallthru
      _
    // Predicated region
    $region54: #{byte_combine_cnn.1} parent=1 // pred_check
      _
    $region55: #{byte_combine_cnn.1} parent=1 // pred_check_branch
      %123 = sbr.rel (0) target = $region57
    $region56: #{byte_combine_cnn.1} parent=1 // pred_region
      %124 = dma.done [#allocation9], 51200
    $region57: #{byte_combine_cnn.1} parent=1 // pred_fallthru
      _
    // Predicated region
    $region58: #{byte_combine_cnn.1} parent=1 // pred_check
      _
    $region59: #{byte_combine_cnn.1} parent=1 // pred_check_branch
      %126 = sbr.rel (0) target = $region61
    $region60: #{byte_combine_cnn.1} parent=1 // pred_region
      %127 = dma.done [#allocation12], 160
    $region61: #{byte_combine_cnn.1} parent=1 // pred_fallthru
      _
    // Predicated region
    $region62: #{byte_combine_cnn.1} parent=1 // pred_check
      _
    $region63: #{byte_combine_cnn.1} parent=1 // pred_check_branch
      %129 = sbr.rel (0) target = $region65
    $region64: #{byte_combine_cnn.1} parent=1 // pred_region
      %130 = dma.done [#allocation12], 5120
    $region65: #{byte_combine_cnn.1} parent=1 // pred_fallthru
      _
    // Predicated region
    $region66: #{byte_combine_cnn.1} parent=1 // pred_check
      _
    $region67: #{byte_combine_cnn.1} parent=1 // pred_check_branch
      %132 = sbr.rel (0) target = $region69
    $region68: #{byte_combine_cnn.1} parent=1 // pred_region
      %133 = dma.done [#allocation15], 16
    $region69: #{byte_combine_cnn.1} parent=1 // pred_fallthru
      _
    %v135 = vld [vmem:[%s0] sm:$0xff]
    %v136 = vld [vmem:[%s0 + $0x8] sm:$0xff]
    %v137 = vld [vmem:[#allocation2] sm:$0xff]
    %v138 = vld [vmem:[#allocation2 + $0x8] sm:$0xff]
    %v139 = vld [vmem:[#allocation2 + $0x10] sm:$0xff]
    %v140 = vld [vmem:[#allocation2 + $0x18] sm:$0xff]
    %v141 = vld [vmem:[#allocation2 + $0x20] sm:$0xff]
    %v142 = vld [vmem:[#allocation2 + $0x28] sm:$0xff]
    %v143 = vld [vmem:[#allocation2 + $0x30] sm:$0xff]
    %v144 = vld [vmem:[#allocation2 + $0x38] sm:$0xff]
    %v145 = vld [vmem:[#allocation2 + $0x40] sm:$0xff]
    %v146 = vld [vmem:[#allocation2 + $0x48] sm:$0xff]
    %v147 = vld [vmem:[#allocation2 + $0x50] sm:$0xff]
    %v148 = vld [vmem:[#allocation2 + $0x58] sm:$0xff]
    %v149 = vld [vmem:[#allocation2 + $0x60] sm:$0xf]
    %v150 = vld [vmem:[#allocation2 + $0x64] sm:$0xff]
    %v151 = vld [vmem:[#allocation2 + $0x6c] sm:$0xff]
    %v152 = vld [vmem:[#allocation2 + $0x74] sm:$0xff]
    %v153 = vld [vmem:[#allocation2 + $0x7c] sm:$0xff]
    %v154 = vld [vmem:[#allocation2 + $0x84] sm:$0xff]
    %v155 = vld [vmem:[#allocation2 + $0x8c] sm:$0xff]
    %v156 = vld [vmem:[#allocation2 + $0x94] sm:$0xff]
    %v157 = vld [vmem:[#allocation2 + $0x9c] sm:$0xff]
    %v158 = vld [vmem:[#allocation2 + $0xa4] sm:$0xff]
    %v159 = vld [vmem:[#allocation2 + $0xac] sm:$0xff]
    %v160 = vld [vmem:[#allocation2 + $0xb4] sm:$0xff]
    %v161 = vld [vmem:[#allocation2 + $0xbc] sm:$0xff]
    %v162 = vld [vmem:[#allocation2 + $0xc4] sm:$0xf]
    %v163 = vld [vmem:[#allocation2 + $0xc8] sm:$0xff]
    %v164 = vld [vmem:[#allocation2 + $0xd0] sm:$0xff]
    %v165 = vld [vmem:[#allocation2 + $0xd8] sm:$0xff]
    %v166 = vld [vmem:[#allocation2 + $0xe0] sm:$0xff]
    %v167 = vld [vmem:[#allocation2 + $0xe8] sm:$0xff]
    %v168 = vld [vmem:[#allocation2 + $0xf0] sm:$0xff]
    %v169 = vld [vmem:[#allocation2 + $0xf8] sm:$0xff]
    %v170 = vld [vmem:[#allocation2 + $0x100] sm:$0xff]
    %v171 = vld [vmem:[#allocation2 + $0x108] sm:$0xff]
    %v172 = vld [vmem:[#allocation2 + $0x110] sm:$0xff]
    %v173 = vld [vmem:[#allocation2 + $0x118] sm:$0xff]
    %v174 = vld [vmem:[#allocation2 + $0x120] sm:$0xff]
    %v175 = vld [vmem:[#allocation2 + $0x128] sm:$0xf]
    %v176 = vld [vmem:[#allocation2 + $0x12c] sm:$0xff]
    %v177 = vld [vmem:[#allocation2 + $0x134] sm:$0xff]
    %v178 = vld [vmem:[#allocation2 + $0x13c] sm:$0xff]
    %v179 = vld [vmem:[#allocation2 + $0x144] sm:$0xff]
    %v180 = vld [vmem:[#allocation2 + $0x14c] sm:$0xff]
    %v181 = vld [vmem:[#allocation2 + $0x154] sm:$0xff]
    %v182 = vld [vmem:[#allocation2 + $0x15c] sm:$0xff]
    %v183 = vld [vmem:[#allocation2 + $0x164] sm:$0xff]
    %v184 = vld [vmem:[#allocation2 + $0x16c] sm:$0xff]
    %v185 = vld [vmem:[#allocation2 + $0x174] sm:$0xff]
    %v186 = vld [vmem:[#allocation2 + $0x17c] sm:$0xff]
    %v187 = vld [vmem:[#allocation2 + $0x184] sm:$0xff]
    %v188 = vld [vmem:[#allocation2 + $0x18c] sm:$0xf]
    %v189 = vld [vmem:[#allocation2 + $0x190] sm:$0xff]
    %v190 = vld [vmem:[#allocation2 + $0x198] sm:$0xff]
    %v191 = vld [vmem:[#allocation2 + $0x1a0] sm:$0xff]
    %v192 = vld [vmem:[#allocation2 + $0x1a8] sm:$0xff]
    %v193 = vld [vmem:[#allocation2 + $0x1b0] sm:$0xff]
    %v194 = vld [vmem:[#allocation2 + $0x1b8] sm:$0xff]
    %v195 = vld [vmem:[#allocation2 + $0x1c0] sm:$0xff]
    %v196 = vld [vmem:[#allocation2 + $0x1c8] sm:$0xff]
    %v197 = vld [vmem:[#allocation2 + $0x1d0] sm:$0xff]
    %v198 = vld [vmem:[#allocation2 + $0x1d8] sm:$0xff]
    %v199 = vld [vmem:[#allocation2 + $0x1e0] sm:$0xff]
    %v200 = vld [vmem:[#allocation2 + $0x1e8] sm:$0xff]
    %v201 = vld [vmem:[#allocation2 + $0x1f0] sm:$0xf]
    %v202 = vld [vmem:[#allocation2 + $0x1f4] sm:$0xff]
    %v203 = vld [vmem:[#allocation2 + $0x1fc] sm:$0xff]
    %v204 = vld [vmem:[#allocation2 + $0x204] sm:$0xff]
    %v205 = vld [vmem:[#allocation2 + $0x20c] sm:$0xff]
    %v206 = vld [vmem:[#allocation2 + $0x214] sm:$0xff]
    %v207 = vld [vmem:[#allocation2 + $0x21c] sm:$0xff]
    %v208 = vld [vmem:[#allocation2 + $0x224] sm:$0xff]
    %v209 = vld [vmem:[#allocation2 + $0x22c] sm:$0xff]
    %v210 = vld [vmem:[#allocation2 + $0x234] sm:$0xff]
    %v211 = vld [vmem:[#allocation2 + $0x23c] sm:$0xff]
    %v212 = vld [vmem:[#allocation2 + $0x244] sm:$0xff]
    %v213 = vld [vmem:[#allocation2 + $0x24c] sm:$0xff]
    %v214 = vld [vmem:[#allocation2 + $0x254] sm:$0xf]
    %v215 = vld [vmem:[#allocation2 + $0x258] sm:$0xff]
    %v216 = vld [vmem:[#allocation2 + $0x260] sm:$0xff]
    %v217 = vld [vmem:[#allocation2 + $0x268] sm:$0xff]
    %v218 = vld [vmem:[#allocation2 + $0x270] sm:$0xff]
    %v219 = vld [vmem:[#allocation2 + $0x278] sm:$0xff]
    %v220 = vld [vmem:[#allocation2 + $0x280] sm:$0xff]
    %v221 = vld [vmem:[#allocation2 + $0x288] sm:$0xff]
    %v222 = vld [vmem:[#allocation2 + $0x290] sm:$0xff]
    %v223 = vld [vmem:[#allocation2 + $0x298] sm:$0xff]
    %v224 = vld [vmem:[#allocation2 + $0x2a0] sm:$0xff]
    %v225 = vld [vmem:[#allocation2 + $0x2a8] sm:$0xff]
    %v226 = vld [vmem:[#allocation2 + $0x2b0] sm:$0xff]
    %v227 = vld [vmem:[#allocation2 + $0x2b8] sm:$0xf]
    %v228 = vld [vmem:[#allocation2 + $0x2bc] sm:$0xff]
    %v229 = vld [vmem:[#allocation2 + $0x2c4] sm:$0xff]
    %v230 = vld [vmem:[#allocation2 + $0x2cc] sm:$0xff]
    %v231 = vld [vmem:[#allocation2 + $0x2d4] sm:$0xff]
    %v232 = vld [vmem:[#allocation2 + $0x2dc] sm:$0xff]
    %v233 = vld [vmem:[#allocation2 + $0x2e4] sm:$0xff]
    %v234 = vld [vmem:[#allocation2 + $0x2ec] sm:$0xff]
    %v235 = vld [vmem:[#allocation2 + $0x2f4] sm:$0xff]
    %v236 = vld [vmem:[#allocation2 + $0x2fc] sm:$0xff]
    %v237 = vld [vmem:[#allocation2 + $0x304] sm:$0xff]
    %v238 = vld [vmem:[#allocation2 + $0x30c] sm:$0xff]
    %v239 = vld [vmem:[#allocation2 + $0x314] sm:$0xff]
    %v240 = vld [vmem:[#allocation2 + $0x31c] sm:$0xf]
    %v241 = vld [vmem:[#allocation2 + $0x320] sm:$0xff]
    %v242 = vld [vmem:[#allocation2 + $0x328] sm:$0xff]
    %v243 = vld [vmem:[#allocation2 + $0x330] sm:$0xff]
    %v244 = vld [vmem:[#allocation2 + $0x338] sm:$0xff]
    %v245 = vld [vmem:[#allocation2 + $0x340] sm:$0xff]
    %v246 = vld [vmem:[#allocation2 + $0x348] sm:$0xff]
    %v247 = vld [vmem:[#allocation2 + $0x350] sm:$0xff]
    %v248 = vld [vmem:[#allocation2 + $0x358] sm:$0xff]
    %v249 = vld [vmem:[#allocation2 + $0x360] sm:$0xff]
    %v250 = vld [vmem:[#allocation2 + $0x368] sm:$0xff]
    %v251 = vld [vmem:[#allocation2 + $0x370] sm:$0xff]
    %v252 = vld [vmem:[#allocation2 + $0x378] sm:$0xff]
    %v253 = vld [vmem:[#allocation2 + $0x380] sm:$0xf]
    %v254 = vld [vmem:[#allocation2 + $0x384] sm:$0xff]
    %v255 = vld [vmem:[#allocation2 + $0x38c] sm:$0xff]
    %v256 = vld [vmem:[#allocation2 + $0x394] sm:$0xff]
    %v257 = vld [vmem:[#allocation2 + $0x39c] sm:$0xff]
    %v258 = vld [vmem:[#allocation2 + $0x3a4] sm:$0xff]
    %v259 = vld [vmem:[#allocation2 + $0x3ac] sm:$0xff]
    %v260 = vld [vmem:[#allocation2 + $0x3b4] sm:$0xff]
    %v261 = vld [vmem:[#allocation2 + $0x3bc] sm:$0xff]
    %v262 = vld [vmem:[#allocation2 + $0x3c4] sm:$0xff]
    %v263 = vld [vmem:[#allocation2 + $0x3cc] sm:$0xff]
    %v264 = vld [vmem:[#allocation2 + $0x3d4] sm:$0xff]
    %v265 = vld [vmem:[#allocation2 + $0x3dc] sm:$0xff]
    %v266 = vld [vmem:[#allocation2 + $0x3e4] sm:$0xf]
    %v267 = vld [vmem:[#allocation2 + $0x3e8] sm:$0xff]
    %v268 = vld [vmem:[#allocation2 + $0x3f0] sm:$0xff]
    %v269 = vld [vmem:[#allocation2 + $0x3f8] sm:$0xff]
    %v270 = vld [vmem:[#allocation2 + $0x400] sm:$0xff]
    %v271 = vld [vmem:[#allocation2 + $0x408] sm:$0xff]
    %v272 = vld [vmem:[#allocation2 + $0x410] sm:$0xff]
    %v273 = vld [vmem:[#allocation2 + $0x418] sm:$0xff]
    %v274 = vld [vmem:[#allocation2 + $0x420] sm:$0xff]
    %v275 = vld [vmem:[#allocation2 + $0x428] sm:$0xff]
    %v276 = vld [vmem:[#allocation2 + $0x430] sm:$0xff]
    %v277 = vld [vmem:[#allocation2 + $0x438] sm:$0xff]
    %v278 = vld [vmem:[#allocation2 + $0x440] sm:$0xff]
    %v279 = vld [vmem:[#allocation2 + $0x448] sm:$0xf]
    %v280 = vld [vmem:[#allocation2 + $0x44c] sm:$0xff]
    %v281 = vld [vmem:[#allocation2 + $0x454] sm:$0xff]
    %v282 = vld [vmem:[#allocation2 + $0x45c] sm:$0xff]
    %v283 = vld [vmem:[#allocation2 + $0x464] sm:$0xff]
    %v284 = vld [vmem:[#allocation2 + $0x46c] sm:$0xff]
    %v285 = vld [vmem:[#allocation2 + $0x474] sm:$0xff]
    %v286 = vld [vmem:[#allocation2 + $0x47c] sm:$0xff]
    %v287 = vld [vmem:[#allocation2 + $0x484] sm:$0xff]
    %v288 = vld [vmem:[#allocation2 + $0x48c] sm:$0xff]
    %v289 = vld [vmem:[#allocation2 + $0x494] sm:$0xff]
    %v290 = vld [vmem:[#allocation2 + $0x49c] sm:$0xff]
    %v291 = vld [vmem:[#allocation2 + $0x4a4] sm:$0xff]
    %v292 = vld [vmem:[#allocation2 + $0x4ac] sm:$0xf]
    %v293 = vld [vmem:[#allocation2 + $0x4b0] sm:$0xff]
    %v294 = vld [vmem:[#allocation2 + $0x4b8] sm:$0xff]
    %v295 = vld [vmem:[#allocation2 + $0x4c0] sm:$0xff]
    %v296 = vld [vmem:[#allocation2 + $0x4c8] sm:$0xff]
    %v297 = vld [vmem:[#allocation2 + $0x4d0] sm:$0xff]
    %v298 = vld [vmem:[#allocation2 + $0x4d8] sm:$0xff]
    %v299 = vld [vmem:[#allocation2 + $0x4e0] sm:$0xff]
    %v300 = vld [vmem:[#allocation2 + $0x4e8] sm:$0xff]
    %v301 = vld [vmem:[#allocation2 + $0x4f0] sm:$0xff]
    %v302 = vld [vmem:[#allocation2 + $0x4f8] sm:$0xff]
    %v303 = vld [vmem:[#allocation2 + $0x500] sm:$0xff]
    %v304 = vld [vmem:[#allocation2 + $0x508] sm:$0xff]
    %v305 = vld [vmem:[#allocation2 + $0x510] sm:$0xf]
    %v306 = vld [vmem:[#allocation2 + $0x514] sm:$0xff]
    %v307 = vld [vmem:[#allocation2 + $0x51c] sm:$0xff]
    %v308 = vld [vmem:[#allocation2 + $0x524] sm:$0xff]
    %v309 = vld [vmem:[#allocation2 + $0x52c] sm:$0xff]
    %v310 = vld [vmem:[#allocation2 + $0x534] sm:$0xff]
    %v311 = vld [vmem:[#allocation2 + $0x53c] sm:$0xff]
    %v312 = vld [vmem:[#allocation2 + $0x544] sm:$0xff]
    %v313 = vld [vmem:[#allocation2 + $0x54c] sm:$0xff]
    %v314 = vld [vmem:[#allocation2 + $0x554] sm:$0xff]
    %v315 = vld [vmem:[#allocation2 + $0x55c] sm:$0xff]
    %v316 = vld [vmem:[#allocation2 + $0x564] sm:$0xff]
    %v317 = vld [vmem:[#allocation2 + $0x56c] sm:$0xff]
    %v318 = vld [vmem:[#allocation2 + $0x574] sm:$0xf]
    %v319 = vld [vmem:[#allocation2 + $0x578] sm:$0xff]
    %v320 = vld [vmem:[#allocation2 + $0x580] sm:$0xff]
    %v321 = vld [vmem:[#allocation2 + $0x588] sm:$0xff]
    %v322 = vld [vmem:[#allocation2 + $0x590] sm:$0xff]
    %v323 = vld [vmem:[#allocation2 + $0x598] sm:$0xff]
    %v324 = vld [vmem:[#allocation2 + $0x5a0] sm:$0xff]
    %v325 = vld [vmem:[#allocation2 + $0x5a8] sm:$0xff]
    %v326 = vld [vmem:[#allocation2 + $0x5b0] sm:$0xff]
    %v327 = vld [vmem:[#allocation2 + $0x5b8] sm:$0xff]
    %v328 = vld [vmem:[#allocation2 + $0x5c0] sm:$0xff]
    %v329 = vld [vmem:[#allocation2 + $0x5c8] sm:$0xff]
    %v330 = vld [vmem:[#allocation2 + $0x5d0] sm:$0xff]
    %v331 = vld [vmem:[#allocation2 + $0x5d8] sm:$0xf]
    %v332 = vld [vmem:[#allocation2 + $0x5dc] sm:$0xff]
    %v333 = vld [vmem:[#allocation2 + $0x5e4] sm:$0xff]
    %v334 = vld [vmem:[#allocation2 + $0x5ec] sm:$0xff]
    %v335 = vld [vmem:[#allocation2 + $0x5f4] sm:$0xff]
    %v336 = vld [vmem:[#allocation2 + $0x5fc] sm:$0xff]
    %v337 = vld [vmem:[#allocation2 + $0x604] sm:$0xff]
    %v338 = vld [vmem:[#allocation2 + $0x60c] sm:$0xff]
    %v339 = vld [vmem:[#allocation2 + $0x614] sm:$0xff]
    %v340 = vld [vmem:[#allocation2 + $0x61c] sm:$0xff]
    %v341 = vld [vmem:[#allocation2 + $0x624] sm:$0xff]
    %v342 = vld [vmem:[#allocation2 + $0x62c] sm:$0xff]
    %v343 = vld [vmem:[#allocation2 + $0x634] sm:$0xff]
    %v344 = vld [vmem:[#allocation2 + $0x63c] sm:$0xf]
    %v345 = vld [vmem:[#allocation2 + $0x640] sm:$0xff]
    %v346 = vld [vmem:[#allocation2 + $0x648] sm:$0xff]
    %v347 = vld [vmem:[#allocation2 + $0x650] sm:$0xff]
    %v348 = vld [vmem:[#allocation2 + $0x658] sm:$0xff]
    %v349 = vld [vmem:[#allocation2 + $0x660] sm:$0xff]
    %v350 = vld [vmem:[#allocation2 + $0x668] sm:$0xff]
    %v351 = vld [vmem:[#allocation2 + $0x670] sm:$0xff]
    %v352 = vld [vmem:[#allocation2 + $0x678] sm:$0xff]
    %v353 = vld [vmem:[#allocation2 + $0x680] sm:$0xff]
    %v354 = vld [vmem:[#allocation2 + $0x688] sm:$0xff]
    %v355 = vld [vmem:[#allocation2 + $0x690] sm:$0xff]
    %v356 = vld [vmem:[#allocation2 + $0x698] sm:$0xff]
    %v357 = vld [vmem:[#allocation2 + $0x6a0] sm:$0xf]
    %v358 = vld [vmem:[#allocation2 + $0x6a4] sm:$0xff]
    %v359 = vld [vmem:[#allocation2 + $0x6ac] sm:$0xff]
    %v360 = vld [vmem:[#allocation2 + $0x6b4] sm:$0xff]
    %v361 = vld [vmem:[#allocation2 + $0x6bc] sm:$0xff]
    %v362 = vld [vmem:[#allocation2 + $0x6c4] sm:$0xff]
    %v363 = vld [vmem:[#allocation2 + $0x6cc] sm:$0xff]
    %v364 = vld [vmem:[#allocation2 + $0x6d4] sm:$0xff]
    %v365 = vld [vmem:[#allocation2 + $0x6dc] sm:$0xff]
    %v366 = vld [vmem:[#allocation2 + $0x6e4] sm:$0xff]
    %v367 = vld [vmem:[#allocation2 + $0x6ec] sm:$0xff]
    %v368 = vld [vmem:[#allocation2 + $0x6f4] sm:$0xff]
    %v369 = vld [vmem:[#allocation2 + $0x6fc] sm:$0xff]
    %v370 = vld [vmem:[#allocation2 + $0x704] sm:$0xf]
    %v371 = vld [vmem:[#allocation2 + $0x708] sm:$0xff]
    %v372 = vld [vmem:[#allocation2 + $0x710] sm:$0xff]
    %v373 = vld [vmem:[#allocation2 + $0x718] sm:$0xff]
    %v374 = vld [vmem:[#allocation2 + $0x720] sm:$0xff]
    %v375 = vld [vmem:[#allocation2 + $0x728] sm:$0xff]
    %v376 = vld [vmem:[#allocation2 + $0x730] sm:$0xff]
    %v377 = vld [vmem:[#allocation2 + $0x738] sm:$0xff]
    %v378 = vld [vmem:[#allocation2 + $0x740] sm:$0xff]
    %v379 = vld [vmem:[#allocation2 + $0x748] sm:$0xff]
    %v380 = vld [vmem:[#allocation2 + $0x750] sm:$0xff]
    %v381 = vld [vmem:[#allocation2 + $0x758] sm:$0xff]
    %v382 = vld [vmem:[#allocation2 + $0x760] sm:$0xff]
    %v383 = vld [vmem:[#allocation2 + $0x768] sm:$0xf]
    %v384 = vld [vmem:[#allocation2 + $0x76c] sm:$0xff]
    %v385 = vld [vmem:[#allocation2 + $0x774] sm:$0xff]
    %v386 = vld [vmem:[#allocation2 + $0x77c] sm:$0xff]
    %v387 = vld [vmem:[#allocation2 + $0x784] sm:$0xff]
    %v388 = vld [vmem:[#allocation2 + $0x78c] sm:$0xff]
    %v389 = vld [vmem:[#allocation2 + $0x794] sm:$0xff]
    %v390 = vld [vmem:[#allocation2 + $0x79c] sm:$0xff]
    %v391 = vld [vmem:[#allocation2 + $0x7a4] sm:$0xff]
    %v392 = vld [vmem:[#allocation2 + $0x7ac] sm:$0xff]
    %v393 = vld [vmem:[#allocation2 + $0x7b4] sm:$0xff]
    %v394 = vld [vmem:[#allocation2 + $0x7bc] sm:$0xff]
    %v395 = vld [vmem:[#allocation2 + $0x7c4] sm:$0xff]
    %v396 = vld [vmem:[#allocation2 + $0x7cc] sm:$0xf]
    %v399 = vunpack.c.l.b16 %v135
    %v400 = vunpack.c.h.b16 %v135
    %v401 = vunpack.c.l.b16 %v136
    %v402 = vunpack.c.h.b16 %v136
    %v403 = vpack.c.b16 %v401, %v399
    %v404 = vpack.c.b16 %v402, %v400
    %v666 = vunpack.c.l.b16 %v137
    %v667 = vunpack.c.h.b16 %v137
    %v668 = vunpack.c.l.b16 %v138
    %v669 = vunpack.c.h.b16 %v138
    %v670 = vunpack.c.l.b16 %v139
    %v671 = vunpack.c.h.b16 %v139
    %v672 = vunpack.c.l.b16 %v140
    %v673 = vunpack.c.h.b16 %v140
    %v674 = vunpack.c.l.b16 %v141
    %v675 = vunpack.c.h.b16 %v141
    %v676 = vunpack.c.l.b16 %v142
    %v677 = vunpack.c.h.b16 %v142
    %v678 = vunpack.c.l.b16 %v143
    %v679 = vunpack.c.h.b16 %v143
    %v680 = vunpack.c.l.b16 %v144
    %v681 = vunpack.c.h.b16 %v144
    %v682 = vunpack.c.l.b16 %v145
    %v683 = vunpack.c.h.b16 %v145
    %v684 = vunpack.c.l.b16 %v146
    %v685 = vunpack.c.h.b16 %v146
    %v686 = vunpack.c.l.b16 %v147
    %v687 = vunpack.c.h.b16 %v147
    %v688 = vunpack.c.l.b16 %v148
    %v689 = vunpack.c.h.b16 %v148
    %v690 = vunpack.c.l.b16 %v149
    %v691 = vunpack.c.l.b16 %v150
    %v692 = vunpack.c.h.b16 %v150
    %v693 = vunpack.c.l.b16 %v151
    %v694 = vunpack.c.h.b16 %v151
    %v695 = vunpack.c.l.b16 %v152
    %v696 = vunpack.c.h.b16 %v152
    %v697 = vunpack.c.l.b16 %v153
    %v698 = vunpack.c.h.b16 %v153
    %v699 = vunpack.c.l.b16 %v154
    %v700 = vunpack.c.h.b16 %v154
    %v701 = vunpack.c.l.b16 %v155
    %v702 = vunpack.c.h.b16 %v155
    %v703 = vunpack.c.l.b16 %v156
    %v704 = vunpack.c.h.b16 %v156
    %v705 = vunpack.c.l.b16 %v157
    %v706 = vunpack.c.h.b16 %v157
    %v707 = vunpack.c.l.b16 %v158
    %v708 = vunpack.c.h.b16 %v158
    %v709 = vunpack.c.l.b16 %v159
    %v710 = vunpack.c.h.b16 %v159
    %v711 = vunpack.c.l.b16 %v160
    %v712 = vunpack.c.h.b16 %v160
    %v713 = vunpack.c.l.b16 %v161
    %v714 = vunpack.c.h.b16 %v161
    %v715 = vunpack.c.l.b16 %v162
    %v716 = vunpack.c.l.b16 %v163
    %v717 = vunpack.c.h.b16 %v163
    %v718 = vunpack.c.l.b16 %v164
    %v719 = vunpack.c.h.b16 %v164
    %v720 = vunpack.c.l.b16 %v165
    %v721 = vunpack.c.h.b16 %v165
    %v722 = vunpack.c.l.b16 %v166
    %v723 = vunpack.c.h.b16 %v166
    %v724 = vunpack.c.l.b16 %v167
    %v725 = vunpack.c.h.b16 %v167
    %v726 = vunpack.c.l.b16 %v168
    %v727 = vunpack.c.h.b16 %v168
    %v728 = vunpack.c.l.b16 %v169
    %v729 = vunpack.c.h.b16 %v169
    %v730 = vunpack.c.l.b16 %v170
    %v731 = vunpack.c.h.b16 %v170
    %v732 = vunpack.c.l.b16 %v171
    %v733 = vunpack.c.h.b16 %v171
    %v734 = vunpack.c.l.b16 %v172
    %v735 = vunpack.c.h.b16 %v172
    %v736 = vunpack.c.l.b16 %v173
    %v737 = vunpack.c.h.b16 %v173
    %v738 = vunpack.c.l.b16 %v174
    %v739 = vunpack.c.h.b16 %v174
    %v740 = vunpack.c.l.b16 %v175
    %v741 = vunpack.c.l.b16 %v176
    %v742 = vunpack.c.h.b16 %v176
    %v743 = vunpack.c.l.b16 %v177
    %v744 = vunpack.c.h.b16 %v177
    %v745 = vunpack.c.l.b16 %v178
    %v746 = vunpack.c.h.b16 %v178
    %v747 = vunpack.c.l.b16 %v179
    %v748 = vunpack.c.h.b16 %v179
    %v749 = vunpack.c.l.b16 %v180
    %v750 = vunpack.c.h.b16 %v180
    %v751 = vunpack.c.l.b16 %v181
    %v752 = vunpack.c.h.b16 %v181
    %v753 = vunpack.c.l.b16 %v182
    %v754 = vunpack.c.h.b16 %v182
    %v755 = vunpack.c.l.b16 %v183
    %v756 = vunpack.c.h.b16 %v183
    %v757 = vunpack.c.l.b16 %v184
    %v758 = vunpack.c.h.b16 %v184
    %v759 = vunpack.c.l.b16 %v185
    %v760 = vunpack.c.h.b16 %v185
    %v761 = vunpack.c.l.b16 %v186
    %v762 = vunpack.c.h.b16 %v186
    %v763 = vunpack.c.l.b16 %v187
    %v764 = vunpack.c.h.b16 %v187
    %v765 = vunpack.c.l.b16 %v188
    %v766 = vunpack.c.l.b16 %v189
    %v767 = vunpack.c.h.b16 %v189
    %v768 = vunpack.c.l.b16 %v190
    %v769 = vunpack.c.h.b16 %v190
    %v770 = vunpack.c.l.b16 %v191
    %v771 = vunpack.c.h.b16 %v191
    %v772 = vunpack.c.l.b16 %v192
    %v773 = vunpack.c.h.b16 %v192
    %v774 = vunpack.c.l.b16 %v193
    %v775 = vunpack.c.h.b16 %v193
    %v776 = vunpack.c.l.b16 %v194
    %v777 = vunpack.c.h.b16 %v194
    %v778 = vunpack.c.l.b16 %v195
    %v779 = vunpack.c.h.b16 %v195
    %v780 = vunpack.c.l.b16 %v196
    %v781 = vunpack.c.h.b16 %v196
    %v782 = vunpack.c.l.b16 %v197
    %v783 = vunpack.c.h.b16 %v197
    %v784 = vunpack.c.l.b16 %v198
    %v785 = vunpack.c.h.b16 %v198
    %v786 = vunpack.c.l.b16 %v199
    %v787 = vunpack.c.h.b16 %v199
    %v788 = vunpack.c.l.b16 %v200
    %v789 = vunpack.c.h.b16 %v200
    %v790 = vunpack.c.l.b16 %v201
    %v791 = vunpack.c.l.b16 %v202
    %v792 = vunpack.c.h.b16 %v202
    %v793 = vunpack.c.l.b16 %v203
    %v794 = vunpack.c.h.b16 %v203
    %v795 = vunpack.c.l.b16 %v204
    %v796 = vunpack.c.h.b16 %v204
    %v797 = vunpack.c.l.b16 %v205
    %v798 = vunpack.c.h.b16 %v205
    %v799 = vunpack.c.l.b16 %v206
    %v800 = vunpack.c.h.b16 %v206
    %v801 = vunpack.c.l.b16 %v207
    %v802 = vunpack.c.h.b16 %v207
    %v803 = vunpack.c.l.b16 %v208
    %v804 = vunpack.c.h.b16 %v208
    %v805 = vunpack.c.l.b16 %v209
    %v806 = vunpack.c.h.b16 %v209
    %v807 = vunpack.c.l.b16 %v210
    %v808 = vunpack.c.h.b16 %v210
    %v809 = vunpack.c.l.b16 %v211
    %v810 = vunpack.c.h.b16 %v211
    %v811 = vunpack.c.l.b16 %v212
    %v812 = vunpack.c.h.b16 %v212
    %v813 = vunpack.c.l.b16 %v213
    %v814 = vunpack.c.h.b16 %v213
    %v815 = vunpack.c.l.b16 %v214
    %v816 = vunpack.c.l.b16 %v215
    %v817 = vunpack.c.h.b16 %v215
    %v818 = vunpack.c.l.b16 %v216
    %v819 = vunpack.c.h.b16 %v216
    %v820 = vunpack.c.l.b16 %v217
    %v821 = vunpack.c.h.b16 %v217
    %v822 = vunpack.c.l.b16 %v218
    %v823 = vunpack.c.h.b16 %v218
    %v824 = vunpack.c.l.b16 %v219
    %v825 = vunpack.c.h.b16 %v219
    %v826 = vunpack.c.l.b16 %v220
    %v827 = vunpack.c.h.b16 %v220
    %v828 = vunpack.c.l.b16 %v221
    %v829 = vunpack.c.h.b16 %v221
    %v830 = vunpack.c.l.b16 %v222
    %v831 = vunpack.c.h.b16 %v222
    %v832 = vunpack.c.l.b16 %v223
    %v833 = vunpack.c.h.b16 %v223
    %v834 = vunpack.c.l.b16 %v224
    %v835 = vunpack.c.h.b16 %v224
    %v836 = vunpack.c.l.b16 %v225
    %v837 = vunpack.c.h.b16 %v225
    %v838 = vunpack.c.l.b16 %v226
    %v839 = vunpack.c.h.b16 %v226
    %v840 = vunpack.c.l.b16 %v227
    %v841 = vunpack.c.l.b16 %v228
    %v842 = vunpack.c.h.b16 %v228
    %v843 = vunpack.c.l.b16 %v229
    %v844 = vunpack.c.h.b16 %v229
    %v845 = vunpack.c.l.b16 %v230
    %v846 = vunpack.c.h.b16 %v230
    %v847 = vunpack.c.l.b16 %v231
    %v848 = vunpack.c.h.b16 %v231
    %v849 = vunpack.c.l.b16 %v232
    %v850 = vunpack.c.h.b16 %v232
    %v851 = vunpack.c.l.b16 %v233
    %v852 = vunpack.c.h.b16 %v233
    %v853 = vunpack.c.l.b16 %v234
    %v854 = vunpack.c.h.b16 %v234
    %v855 = vunpack.c.l.b16 %v235
    %v856 = vunpack.c.h.b16 %v235
    %v857 = vunpack.c.l.b16 %v236
    %v858 = vunpack.c.h.b16 %v236
    %v859 = vunpack.c.l.b16 %v237
    %v860 = vunpack.c.h.b16 %v237
    %v861 = vunpack.c.l.b16 %v238
    %v862 = vunpack.c.h.b16 %v238
    %v863 = vunpack.c.l.b16 %v239
    %v864 = vunpack.c.h.b16 %v239
    %v865 = vunpack.c.l.b16 %v240
    %v866 = vunpack.c.l.b16 %v241
    %v867 = vunpack.c.h.b16 %v241
    %v868 = vunpack.c.l.b16 %v242
    %v869 = vunpack.c.h.b16 %v242
    %v870 = vunpack.c.l.b16 %v243
    %v871 = vunpack.c.h.b16 %v243
    %v872 = vunpack.c.l.b16 %v244
    %v873 = vunpack.c.h.b16 %v244
    %v874 = vunpack.c.l.b16 %v245
    %v875 = vunpack.c.h.b16 %v245
    %v876 = vunpack.c.l.b16 %v246
    %v877 = vunpack.c.h.b16 %v246
    %v878 = vunpack.c.l.b16 %v247
    %v879 = vunpack.c.h.b16 %v247
    %v880 = vunpack.c.l.b16 %v248
    %v881 = vunpack.c.h.b16 %v248
    %v882 = vunpack.c.l.b16 %v249
    %v883 = vunpack.c.h.b16 %v249
    %v884 = vunpack.c.l.b16 %v250
    %v885 = vunpack.c.h.b16 %v250
    %v886 = vunpack.c.l.b16 %v251
    %v887 = vunpack.c.h.b16 %v251
    %v888 = vunpack.c.l.b16 %v252
    %v889 = vunpack.c.h.b16 %v252
    %v890 = vunpack.c.l.b16 %v253
    %v891 = vunpack.c.l.b16 %v254
    %v892 = vunpack.c.h.b16 %v254
    %v893 = vunpack.c.l.b16 %v255
    %v894 = vunpack.c.h.b16 %v255
    %v895 = vunpack.c.l.b16 %v256
    %v896 = vunpack.c.h.b16 %v256
    %v897 = vunpack.c.l.b16 %v257
    %v898 = vunpack.c.h.b16 %v257
    %v899 = vunpack.c.l.b16 %v258
    %v900 = vunpack.c.h.b16 %v258
    %v901 = vunpack.c.l.b16 %v259
    %v902 = vunpack.c.h.b16 %v259
    %v903 = vunpack.c.l.b16 %v260
    %v904 = vunpack.c.h.b16 %v260
    %v905 = vunpack.c.l.b16 %v261
    %v906 = vunpack.c.h.b16 %v261
    %v907 = vunpack.c.l.b16 %v262
    %v908 = vunpack.c.h.b16 %v262
    %v909 = vunpack.c.l.b16 %v263
    %v910 = vunpack.c.h.b16 %v263
    %v911 = vunpack.c.l.b16 %v264
    %v912 = vunpack.c.h.b16 %v264
    %v913 = vunpack.c.l.b16 %v265
    %v914 = vunpack.c.h.b16 %v265
    %v915 = vunpack.c.l.b16 %v266
    %v916 = vunpack.c.l.b16 %v267
    %v917 = vunpack.c.h.b16 %v267
    %v918 = vunpack.c.l.b16 %v268
    %v919 = vunpack.c.h.b16 %v268
    %v920 = vunpack.c.l.b16 %v269
    %v921 = vunpack.c.h.b16 %v269
    %v922 = vunpack.c.l.b16 %v270
    %v923 = vunpack.c.h.b16 %v270
    %v924 = vunpack.c.l.b16 %v271
    %v925 = vunpack.c.h.b16 %v271
    %v926 = vunpack.c.l.b16 %v272
    %v927 = vunpack.c.h.b16 %v272
    %v928 = vunpack.c.l.b16 %v273
    %v929 = vunpack.c.h.b16 %v273
    %v930 = vunpack.c.l.b16 %v274
    %v931 = vunpack.c.h.b16 %v274
    %v932 = vunpack.c.l.b16 %v275
    %v933 = vunpack.c.h.b16 %v275
    %v934 = vunpack.c.l.b16 %v276
    %v935 = vunpack.c.h.b16 %v276
    %v936 = vunpack.c.l.b16 %v277
    %v937 = vunpack.c.h.b16 %v277
    %v938 = vunpack.c.l.b16 %v278
    %v939 = vunpack.c.h.b16 %v278
    %v940 = vunpack.c.l.b16 %v279
    %v941 = vunpack.c.l.b16 %v280
    %v942 = vunpack.c.h.b16 %v280
    %v943 = vunpack.c.l.b16 %v281
    %v944 = vunpack.c.h.b16 %v281
    %v945 = vunpack.c.l.b16 %v282
    %v946 = vunpack.c.h.b16 %v282
    %v947 = vunpack.c.l.b16 %v283
    %v948 = vunpack.c.h.b16 %v283
    %v949 = vunpack.c.l.b16 %v284
    %v950 = vunpack.c.h.b16 %v284
    %v951 = vunpack.c.l.b16 %v285
    %v952 = vunpack.c.h.b16 %v285
    %v953 = vunpack.c.l.b16 %v286
    %v954 = vunpack.c.h.b16 %v286
    %v955 = vunpack.c.l.b16 %v287
    %v956 = vunpack.c.h.b16 %v287
    %v957 = vunpack.c.l.b16 %v288
    %v958 = vunpack.c.h.b16 %v288
    %v959 = vunpack.c.l.b16 %v289
    %v960 = vunpack.c.h.b16 %v289
    %v961 = vunpack.c.l.b16 %v290
    %v962 = vunpack.c.h.b16 %v290
    %v963 = vunpack.c.l.b16 %v291
    %v964 = vunpack.c.h.b16 %v291
    %v965 = vunpack.c.l.b16 %v292
    %v966 = vunpack.c.l.b16 %v293
    %v967 = vunpack.c.h.b16 %v293
    %v968 = vunpack.c.l.b16 %v294
    %v969 = vunpack.c.h.b16 %v294
    %v970 = vunpack.c.l.b16 %v295
    %v971 = vunpack.c.h.b16 %v295
    %v972 = vunpack.c.l.b16 %v296
    %v973 = vunpack.c.h.b16 %v296
    %v974 = vunpack.c.l.b16 %v297
    %v975 = vunpack.c.h.b16 %v297
    %v976 = vunpack.c.l.b16 %v298
    %v977 = vunpack.c.h.b16 %v298
    %v978 = vunpack.c.l.b16 %v299
    %v979 = vunpack.c.h.b16 %v299
    %v980 = vunpack.c.l.b16 %v300
    %v981 = vunpack.c.h.b16 %v300
    %v982 = vunpack.c.l.b16 %v301
    %v983 = vunpack.c.h.b16 %v301
    %v984 = vunpack.c.l.b16 %v302
    %v985 = vunpack.c.h.b16 %v302
    %v986 = vunpack.c.l.b16 %v303
    %v987 = vunpack.c.h.b16 %v303
    %v988 = vunpack.c.l.b16 %v304
    %v989 = vunpack.c.h.b16 %v304
    %v990 = vunpack.c.l.b16 %v305
    %v991 = vunpack.c.l.b16 %v306
    %v992 = vunpack.c.h.b16 %v306
    %v993 = vunpack.c.l.b16 %v307
    %v994 = vunpack.c.h.b16 %v307
    %v995 = vunpack.c.l.b16 %v308
    %v996 = vunpack.c.h.b16 %v308
    %v997 = vunpack.c.l.b16 %v309
    %v998 = vunpack.c.h.b16 %v309
    %v999 = vunpack.c.l.b16 %v310
    %v1000 = vunpack.c.h.b16 %v310
    %v1001 = vunpack.c.l.b16 %v311
    %v1002 = vunpack.c.h.b16 %v311
    %v1003 = vunpack.c.l.b16 %v312
    %v1004 = vunpack.c.h.b16 %v312
    %v1005 = vunpack.c.l.b16 %v313
    %v1006 = vunpack.c.h.b16 %v313
    %v1007 = vunpack.c.l.b16 %v314
    %v1008 = vunpack.c.h.b16 %v314
    %v1009 = vunpack.c.l.b16 %v315
    %v1010 = vunpack.c.h.b16 %v315
    %v1011 = vunpack.c.l.b16 %v316
    %v1012 = vunpack.c.h.b16 %v316
    %v1013 = vunpack.c.l.b16 %v317
    %v1014 = vunpack.c.h.b16 %v317
    %v1015 = vunpack.c.l.b16 %v318
    %v1016 = vunpack.c.l.b16 %v319
    %v1017 = vunpack.c.h.b16 %v319
    %v1018 = vunpack.c.l.b16 %v320
    %v1019 = vunpack.c.h.b16 %v320
    %v1020 = vunpack.c.l.b16 %v321
    %v1021 = vunpack.c.h.b16 %v321
    %v1022 = vunpack.c.l.b16 %v322
    %v1023 = vunpack.c.h.b16 %v322
    %v1024 = vunpack.c.l.b16 %v323
    %v1025 = vunpack.c.h.b16 %v323
    %v1026 = vunpack.c.l.b16 %v324
    %v1027 = vunpack.c.h.b16 %v324
    %v1028 = vunpack.c.l.b16 %v325
    %v1029 = vunpack.c.h.b16 %v325
    %v1030 = vunpack.c.l.b16 %v326
    %v1031 = vunpack.c.h.b16 %v326
    %v1032 = vunpack.c.l.b16 %v327
    %v1033 = vunpack.c.h.b16 %v327
    %v1034 = vunpack.c.l.b16 %v328
    %v1035 = vunpack.c.h.b16 %v328
    %v1036 = vunpack.c.l.b16 %v329
    %v1037 = vunpack.c.h.b16 %v329
    %v1038 = vunpack.c.l.b16 %v330
    %v1039 = vunpack.c.h.b16 %v330
    %v1040 = vunpack.c.l.b16 %v331
    %v1041 = vunpack.c.l.b16 %v332
    %v1042 = vunpack.c.h.b16 %v332
    %v1043 = vunpack.c.l.b16 %v333
    %v1044 = vunpack.c.h.b16 %v333
    %v1045 = vunpack.c.l.b16 %v334
    %v1046 = vunpack.c.h.b16 %v334
    %v1047 = vunpack.c.l.b16 %v335
    %v1048 = vunpack.c.h.b16 %v335
    %v1049 = vunpack.c.l.b16 %v336
    %v1050 = vunpack.c.h.b16 %v336
    %v1051 = vunpack.c.l.b16 %v337
    %v1052 = vunpack.c.h.b16 %v337
    %v1053 = vunpack.c.l.b16 %v338
    %v1054 = vunpack.c.h.b16 %v338
    %v1055 = vunpack.c.l.b16 %v339
    %v1056 = vunpack.c.h.b16 %v339
    %v1057 = vunpack.c.l.b16 %v340
    %v1058 = vunpack.c.h.b16 %v340
    %v1059 = vunpack.c.l.b16 %v341
    %v1060 = vunpack.c.h.b16 %v341
    %v1061 = vunpack.c.l.b16 %v342
    %v1062 = vunpack.c.h.b16 %v342
    %v1063 = vunpack.c.l.b16 %v343
    %v1064 = vunpack.c.h.b16 %v343
    %v1065 = vunpack.c.l.b16 %v344
    %v1066 = vunpack.c.l.b16 %v345
    %v1067 = vunpack.c.h.b16 %v345
    %v1068 = vunpack.c.l.b16 %v346
    %v1069 = vunpack.c.h.b16 %v346
    %v1070 = vunpack.c.l.b16 %v347
    %v1071 = vunpack.c.h.b16 %v347
    %v1072 = vunpack.c.l.b16 %v348
    %v1073 = vunpack.c.h.b16 %v348
    %v1074 = vunpack.c.l.b16 %v349
    %v1075 = vunpack.c.h.b16 %v349
    %v1076 = vunpack.c.l.b16 %v350
    %v1077 = vunpack.c.h.b16 %v350
    %v1078 = vunpack.c.l.b16 %v351
    %v1079 = vunpack.c.h.b16 %v351
    %v1080 = vunpack.c.l.b16 %v352
    %v1081 = vunpack.c.h.b16 %v352
    %v1082 = vunpack.c.l.b16 %v353
    %v1083 = vunpack.c.h.b16 %v353
    %v1084 = vunpack.c.l.b16 %v354
    %v1085 = vunpack.c.h.b16 %v354
    %v1086 = vunpack.c.l.b16 %v355
    %v1087 = vunpack.c.h.b16 %v355
    %v1088 = vunpack.c.l.b16 %v356
    %v1089 = vunpack.c.h.b16 %v356
    %v1090 = vunpack.c.l.b16 %v357
    %v1091 = vunpack.c.l.b16 %v358
    %v1092 = vunpack.c.h.b16 %v358
    %v1093 = vunpack.c.l.b16 %v359
    %v1094 = vunpack.c.h.b16 %v359
    %v1095 = vunpack.c.l.b16 %v360
    %v1096 = vunpack.c.h.b16 %v360
    %v1097 = vunpack.c.l.b16 %v361
    %v1098 = vunpack.c.h.b16 %v361
    %v1099 = vunpack.c.l.b16 %v362
    %v1100 = vunpack.c.h.b16 %v362
    %v1101 = vunpack.c.l.b16 %v363
    %v1102 = vunpack.c.h.b16 %v363
    %v1103 = vunpack.c.l.b16 %v364
    %v1104 = vunpack.c.h.b16 %v364
    %v1105 = vunpack.c.l.b16 %v365
    %v1106 = vunpack.c.h.b16 %v365
    %v1107 = vunpack.c.l.b16 %v366
    %v1108 = vunpack.c.h.b16 %v366
    %v1109 = vunpack.c.l.b16 %v367
    %v1110 = vunpack.c.h.b16 %v367
    %v1111 = vunpack.c.l.b16 %v368
    %v1112 = vunpack.c.h.b16 %v368
    %v1113 = vunpack.c.l.b16 %v369
    %v1114 = vunpack.c.h.b16 %v369
    %v1115 = vunpack.c.l.b16 %v370
    %v1116 = vunpack.c.l.b16 %v371
    %v1117 = vunpack.c.h.b16 %v371
    %v1118 = vunpack.c.l.b16 %v372
    %v1119 = vunpack.c.h.b16 %v372
    %v1120 = vunpack.c.l.b16 %v373
    %v1121 = vunpack.c.h.b16 %v373
    %v1122 = vunpack.c.l.b16 %v374
    %v1123 = vunpack.c.h.b16 %v374
    %v1124 = vunpack.c.l.b16 %v375
    %v1125 = vunpack.c.h.b16 %v375
    %v1126 = vunpack.c.l.b16 %v376
    %v1127 = vunpack.c.h.b16 %v376
    %v1128 = vunpack.c.l.b16 %v377
    %v1129 = vunpack.c.h.b16 %v377
    %v1130 = vunpack.c.l.b16 %v378
    %v1131 = vunpack.c.h.b16 %v378
    %v1132 = vunpack.c.l.b16 %v379
    %v1133 = vunpack.c.h.b16 %v379
    %v1134 = vunpack.c.l.b16 %v380
    %v1135 = vunpack.c.h.b16 %v380
    %v1136 = vunpack.c.l.b16 %v381
    %v1137 = vunpack.c.h.b16 %v381
    %v1138 = vunpack.c.l.b16 %v382
    %v1139 = vunpack.c.h.b16 %v382
    %v1140 = vunpack.c.l.b16 %v383
    %v1141 = vunpack.c.l.b16 %v384
    %v1142 = vunpack.c.h.b16 %v384
    %v1143 = vunpack.c.l.b16 %v385
    %v1144 = vunpack.c.h.b16 %v385
    %v1145 = vunpack.c.l.b16 %v386
    %v1146 = vunpack.c.h.b16 %v386
    %v1147 = vunpack.c.l.b16 %v387
    %v1148 = vunpack.c.h.b16 %v387
    %v1149 = vunpack.c.l.b16 %v388
    %v1150 = vunpack.c.h.b16 %v388
    %v1151 = vunpack.c.l.b16 %v389
    %v1152 = vunpack.c.h.b16 %v389
    %v1153 = vunpack.c.l.b16 %v390
    %v1154 = vunpack.c.h.b16 %v390
    %v1155 = vunpack.c.l.b16 %v391
    %v1156 = vunpack.c.h.b16 %v391
    %v1157 = vunpack.c.l.b16 %v392
    %v1158 = vunpack.c.h.b16 %v392
    %v1159 = vunpack.c.l.b16 %v393
    %v1160 = vunpack.c.h.b16 %v393
    %v1161 = vunpack.c.l.b16 %v394
    %v1162 = vunpack.c.h.b16 %v394
    %v1163 = vunpack.c.l.b16 %v395
    %v1164 = vunpack.c.h.b16 %v395
    %v1165 = vunpack.c.l.b16 %v396
    %v1166 = vpack.c.b16 %v691, %v666
    %v1167 = vpack.c.b16 %v692, %v667
    %v1168 = vpack.c.b16 %v693, %v668
    %v1169 = vpack.c.b16 %v694, %v669
    %v1170 = vpack.c.b16 %v695, %v670
    %v1171 = vpack.c.b16 %v696, %v671
    %v1172 = vpack.c.b16 %v697, %v672
    %v1173 = vpack.c.b16 %v698, %v673
    %v1174 = vpack.c.b16 %v699, %v674
    %v1175 = vpack.c.b16 %v700, %v675
    %v1176 = vpack.c.b16 %v701, %v676
    %v1177 = vpack.c.b16 %v702, %v677
    %v1178 = vpack.c.b16 %v703, %v678
    %v1179 = vpack.c.b16 %v704, %v679
    %v1180 = vpack.c.b16 %v705, %v680
    %v1181 = vpack.c.b16 %v706, %v681
    %v1182 = vpack.c.b16 %v707, %v682
    %v1183 = vpack.c.b16 %v708, %v683
    %v1184 = vpack.c.b16 %v709, %v684
    %v1185 = vpack.c.b16 %v710, %v685
    %v1186 = vpack.c.b16 %v711, %v686
    %v1187 = vpack.c.b16 %v712, %v687
    %v1188 = vpack.c.b16 %v713, %v688
    %v1189 = vpack.c.b16 %v714, %v689
    %v1190 = vpack.c.b16 %v715, %v690
    %v1191 = vpack.c.b16 %v741, %v716
    %v1192 = vpack.c.b16 %v742, %v717
    %v1193 = vpack.c.b16 %v743, %v718
    %v1194 = vpack.c.b16 %v744, %v719
    %v1195 = vpack.c.b16 %v745, %v720
    %v1196 = vpack.c.b16 %v746, %v721
    %v1197 = vpack.c.b16 %v747, %v722
    %v1198 = vpack.c.b16 %v748, %v723
    %v1199 = vpack.c.b16 %v749, %v724
    %v1200 = vpack.c.b16 %v750, %v725
    %v1201 = vpack.c.b16 %v751, %v726
    %v1202 = vpack.c.b16 %v752, %v727
    %v1203 = vpack.c.b16 %v753, %v728
    %v1204 = vpack.c.b16 %v754, %v729
    %v1205 = vpack.c.b16 %v755, %v730
    %v1206 = vpack.c.b16 %v756, %v731
    %v1207 = vpack.c.b16 %v757, %v732
    %v1208 = vpack.c.b16 %v758, %v733
    %v1209 = vpack.c.b16 %v759, %v734
    %v1210 = vpack.c.b16 %v760, %v735
    %v1211 = vpack.c.b16 %v761, %v736
    %v1212 = vpack.c.b16 %v762, %v737
    %v1213 = vpack.c.b16 %v763, %v738
    %v1214 = vpack.c.b16 %v764, %v739
    %v1215 = vpack.c.b16 %v765, %v740
    %v1216 = vpack.c.b16 %v791, %v766
    %v1217 = vpack.c.b16 %v792, %v767
    %v1218 = vpack.c.b16 %v793, %v768
    %v1219 = vpack.c.b16 %v794, %v769
    %v1220 = vpack.c.b16 %v795, %v770
    %v1221 = vpack.c.b16 %v796, %v771
    %v1222 = vpack.c.b16 %v797, %v772
    %v1223 = vpack.c.b16 %v798, %v773
    %v1224 = vpack.c.b16 %v799, %v774
    %v1225 = vpack.c.b16 %v800, %v775
    %v1226 = vpack.c.b16 %v801, %v776
    %v1227 = vpack.c.b16 %v802, %v777
    %v1228 = vpack.c.b16 %v803, %v778
    %v1229 = vpack.c.b16 %v804, %v779
    %v1230 = vpack.c.b16 %v805, %v780
    %v1231 = vpack.c.b16 %v806, %v781
    %v1232 = vpack.c.b16 %v807, %v782
    %v1233 = vpack.c.b16 %v808, %v783
    %v1234 = vpack.c.b16 %v809, %v784
    %v1235 = vpack.c.b16 %v810, %v785
    %v1236 = vpack.c.b16 %v811, %v786
    %v1237 = vpack.c.b16 %v812, %v787
    %v1238 = vpack.c.b16 %v813, %v788
    %v1239 = vpack.c.b16 %v814, %v789
    %v1240 = vpack.c.b16 %v815, %v790
    %v1241 = vpack.c.b16 %v841, %v816
    %v1242 = vpack.c.b16 %v842, %v817
    %v1243 = vpack.c.b16 %v843, %v818
    %v1244 = vpack.c.b16 %v844, %v819
    %v1245 = vpack.c.b16 %v845, %v820
    %v1246 = vpack.c.b16 %v846, %v821
    %v1247 = vpack.c.b16 %v847, %v822
    %v1248 = vpack.c.b16 %v848, %v823
    %v1249 = vpack.c.b16 %v849, %v824
    %v1250 = vpack.c.b16 %v850, %v825
    %v1251 = vpack.c.b16 %v851, %v826
    %v1252 = vpack.c.b16 %v852, %v827
    %v1253 = vpack.c.b16 %v853, %v828
    %v1254 = vpack.c.b16 %v854, %v829
    %v1255 = vpack.c.b16 %v855, %v830
    %v1256 = vpack.c.b16 %v856, %v831
    %v1257 = vpack.c.b16 %v857, %v832
    %v1258 = vpack.c.b16 %v858, %v833
    %v1259 = vpack.c.b16 %v859, %v834
    %v1260 = vpack.c.b16 %v860, %v835
    %v1261 = vpack.c.b16 %v861, %v836
    %v1262 = vpack.c.b16 %v862, %v837
    %v1263 = vpack.c.b16 %v863, %v838
    %v1264 = vpack.c.b16 %v864, %v839
    %v1265 = vpack.c.b16 %v865, %v840
    %v1266 = vpack.c.b16 %v891, %v866
    %v1267 = vpack.c.b16 %v892, %v867
    %v1268 = vpack.c.b16 %v893, %v868
    %v1269 = vpack.c.b16 %v894, %v869
    %v1270 = vpack.c.b16 %v895, %v870
    %v1271 = vpack.c.b16 %v896, %v871
    %v1272 = vpack.c.b16 %v897, %v872
    %v1273 = vpack.c.b16 %v898, %v873
    %v1274 = vpack.c.b16 %v899, %v874
    %v1275 = vpack.c.b16 %v900, %v875
    %v1276 = vpack.c.b16 %v901, %v876
    %v1277 = vpack.c.b16 %v902, %v877
    %v1278 = vpack.c.b16 %v903, %v878
    %v1279 = vpack.c.b16 %v904, %v879
    %v1280 = vpack.c.b16 %v905, %v880
    %v1281 = vpack.c.b16 %v906, %v881
    %v1282 = vpack.c.b16 %v907, %v882
    %v1283 = vpack.c.b16 %v908, %v883
    %v1284 = vpack.c.b16 %v909, %v884
    %v1285 = vpack.c.b16 %v910, %v885
    %v1286 = vpack.c.b16 %v911, %v886
    %v1287 = vpack.c.b16 %v912, %v887
    %v1288 = vpack.c.b16 %v913, %v888
    %v1289 = vpack.c.b16 %v914, %v889
    %v1290 = vpack.c.b16 %v915, %v890
    %v1291 = vpack.c.b16 %v941, %v916
    %v1292 = vpack.c.b16 %v942, %v917
    %v1293 = vpack.c.b16 %v943, %v918
    %v1294 = vpack.c.b16 %v944, %v919
    %v1295 = vpack.c.b16 %v945, %v920
    %v1296 = vpack.c.b16 %v946, %v921
    %v1297 = vpack.c.b16 %v947, %v922
    %v1298 = vpack.c.b16 %v948, %v923
    %v1299 = vpack.c.b16 %v949, %v924
    %v1300 = vpack.c.b16 %v950, %v925
    %v1301 = vpack.c.b16 %v951, %v926
    %v1302 = vpack.c.b16 %v952, %v927
    %v1303 = vpack.c.b16 %v953, %v928
    %v1304 = vpack.c.b16 %v954, %v929
    %v1305 = vpack.c.b16 %v955, %v930
    %v1306 = vpack.c.b16 %v956, %v931
    %v1307 = vpack.c.b16 %v957, %v932
    %v1308 = vpack.c.b16 %v958, %v933
    %v1309 = vpack.c.b16 %v959, %v934
    %v1310 = vpack.c.b16 %v960, %v935
    %v1311 = vpack.c.b16 %v961, %v936
    %v1312 = vpack.c.b16 %v962, %v937
    %v1313 = vpack.c.b16 %v963, %v938
    %v1314 = vpack.c.b16 %v964, %v939
    %v1315 = vpack.c.b16 %v965, %v940
    %v1316 = vpack.c.b16 %v991, %v966
    %v1317 = vpack.c.b16 %v992, %v967
    %v1318 = vpack.c.b16 %v993, %v968
    %v1319 = vpack.c.b16 %v994, %v969
    %v1320 = vpack.c.b16 %v995, %v970
    %v1321 = vpack.c.b16 %v996, %v971
    %v1322 = vpack.c.b16 %v997, %v972
    %v1323 = vpack.c.b16 %v998, %v973
    %v1324 = vpack.c.b16 %v999, %v974
    %v1325 = vpack.c.b16 %v1000, %v975
    %v1326 = vpack.c.b16 %v1001, %v976
    %v1327 = vpack.c.b16 %v1002, %v977
    %v1328 = vpack.c.b16 %v1003, %v978
    %v1329 = vpack.c.b16 %v1004, %v979
    %v1330 = vpack.c.b16 %v1005, %v980
    %v1331 = vpack.c.b16 %v1006, %v981
    %v1332 = vpack.c.b16 %v1007, %v982
    %v1333 = vpack.c.b16 %v1008, %v983
    %v1334 = vpack.c.b16 %v1009, %v984
    %v1335 = vpack.c.b16 %v1010, %v985
    %v1336 = vpack.c.b16 %v1011, %v986
    %v1337 = vpack.c.b16 %v1012, %v987
    %v1338 = vpack.c.b16 %v1013, %v988
    %v1339 = vpack.c.b16 %v1014, %v989
    %v1340 = vpack.c.b16 %v1015, %v990
    %v1341 = vpack.c.b16 %v1041, %v1016
    %v1342 = vpack.c.b16 %v1042, %v1017
    %v1343 = vpack.c.b16 %v1043, %v1018
    %v1344 = vpack.c.b16 %v1044, %v1019
    %v1345 = vpack.c.b16 %v1045, %v1020
    %v1346 = vpack.c.b16 %v1046, %v1021
    %v1347 = vpack.c.b16 %v1047, %v1022
    %v1348 = vpack.c.b16 %v1048, %v1023
    %v1349 = vpack.c.b16 %v1049, %v1024
    %v1350 = vpack.c.b16 %v1050, %v1025
    %v1351 = vpack.c.b16 %v1051, %v1026
    %v1352 = vpack.c.b16 %v1052, %v1027
    %v1353 = vpack.c.b16 %v1053, %v1028
    %v1354 = vpack.c.b16 %v1054, %v1029
    %v1355 = vpack.c.b16 %v1055, %v1030
    %v1356 = vpack.c.b16 %v1056, %v1031
    %v1357 = vpack.c.b16 %v1057, %v1032
    %v1358 = vpack.c.b16 %v1058, %v1033
    %v1359 = vpack.c.b16 %v1059, %v1034
    %v1360 = vpack.c.b16 %v1060, %v1035
    %v1361 = vpack.c.b16 %v1061, %v1036
    %v1362 = vpack.c.b16 %v1062, %v1037
    %v1363 = vpack.c.b16 %v1063, %v1038
    %v1364 = vpack.c.b16 %v1064, %v1039
    %v1365 = vpack.c.b16 %v1065, %v1040
    %v1366 = vpack.c.b16 %v1091, %v1066
    %v1367 = vpack.c.b16 %v1092, %v1067
    %v1368 = vpack.c.b16 %v1093, %v1068
    %v1369 = vpack.c.b16 %v1094, %v1069
    %v1370 = vpack.c.b16 %v1095, %v1070
    %v1371 = vpack.c.b16 %v1096, %v1071
    %v1372 = vpack.c.b16 %v1097, %v1072
    %v1373 = vpack.c.b16 %v1098, %v1073
    %v1374 = vpack.c.b16 %v1099, %v1074
    %v1375 = vpack.c.b16 %v1100, %v1075
    %v1376 = vpack.c.b16 %v1101, %v1076
    %v1377 = vpack.c.b16 %v1102, %v1077
    %v1378 = vpack.c.b16 %v1103, %v1078
    %v1379 = vpack.c.b16 %v1104, %v1079
    %v1380 = vpack.c.b16 %v1105, %v1080
    %v1381 = vpack.c.b16 %v1106, %v1081
    %v1382 = vpack.c.b16 %v1107, %v1082
    %v1383 = vpack.c.b16 %v1108, %v1083
    %v1384 = vpack.c.b16 %v1109, %v1084
    %v1385 = vpack.c.b16 %v1110, %v1085
    %v1386 = vpack.c.b16 %v1111, %v1086
    %v1387 = vpack.c.b16 %v1112, %v1087
    %v1388 = vpack.c.b16 %v1113, %v1088
    %v1389 = vpack.c.b16 %v1114, %v1089
    %v1390 = vpack.c.b16 %v1115, %v1090
    %v1391 = vpack.c.b16 %v1141, %v1116
    %v1392 = vpack.c.b16 %v1142, %v1117
    %v1393 = vpack.c.b16 %v1143, %v1118
    %v1394 = vpack.c.b16 %v1144, %v1119
    %v1395 = vpack.c.b16 %v1145, %v1120
    %v1396 = vpack.c.b16 %v1146, %v1121
    %v1397 = vpack.c.b16 %v1147, %v1122
    %v1398 = vpack.c.b16 %v1148, %v1123
    %v1399 = vpack.c.b16 %v1149, %v1124
    %v1400 = vpack.c.b16 %v1150, %v1125
    %v1401 = vpack.c.b16 %v1151, %v1126
    %v1402 = vpack.c.b16 %v1152, %v1127
    %v1403 = vpack.c.b16 %v1153, %v1128
    %v1404 = vpack.c.b16 %v1154, %v1129
    %v1405 = vpack.c.b16 %v1155, %v1130
    %v1406 = vpack.c.b16 %v1156, %v1131
    %v1407 = vpack.c.b16 %v1157, %v1132
    %v1408 = vpack.c.b16 %v1158, %v1133
    %v1409 = vpack.c.b16 %v1159, %v1134
    %v1410 = vpack.c.b16 %v1160, %v1135
    %v1411 = vpack.c.b16 %v1161, %v1136
    %v1412 = vpack.c.b16 %v1162, %v1137
    %v1413 = vpack.c.b16 %v1163, %v1138
    %v1414 = vpack.c.b16 %v1164, %v1139
    %v1415 = vpack.c.b16 %v1165, %v1140
    %vm1666 = vcmask 261120
    %v1668 = vsel %vm1666, %v404, 0
    %1670 = vmatprep.subr.bf16.mxu0 %v1167
    %1671 = vmatpush1.bf16.msra.mxu0 %v1166
    %1672 = vmatprep.subr.bf16.mxu0 %v1192
    %1673 = vmatpush1.bf16.msra.mxu0 %v1191
    %1674 = vmatprep.subr.bf16.mxu0 %v1217
    %1675 = vmatpush1.bf16.msra.mxu0 %v1216
    %1676 = vmatprep.subr.bf16.mxu0 %v1242
    %1677 = vmatpush1.bf16.msra.mxu0 %v1241
    %1678 = vmatprep.subr.bf16.mxu0 %v1267
    %1679 = vmatpush1.bf16.msra.mxu0 %v1266
    %1680 = vmatprep.subr.bf16.mxu0 %v1292
    %1681 = vmatpush1.bf16.msra.mxu0 %v1291
    %1682 = vmatprep.subr.bf16.mxu0 %v1317
    %1683 = vmatpush1.bf16.msra.mxu0 %v1316
    %1684 = vmatprep.subr.bf16.mxu0 %v1342
    %1685 = vmatpush1.bf16.msra.mxu0 %v1341
    %1686 = vmatprep.subr.bf16.mxu0 %v1367
    %1687 = vmatpush1.bf16.msra.mxu0 %v1366
    %1688 = vmatprep.subr.bf16.mxu0 %v1392
    %1689 = vmatpush1.bf16.msra.mxu0 %v1391
    %1690 = vmatprep.subr.bf16.mxu0 0
    %1691 = vmatpush1.bf16.msra.mxu0 0
    %1692 = vmatprep.subr.bf16.mxu0 0
    %1693 = vmatpush1.bf16.msra.mxu0 0
    %1694 = vmatprep.subr.bf16.mxu0 0
    %1695 = vmatpush1.bf16.msra.mxu0 0
    %1696 = vmatprep.subr.bf16.mxu0 0
    %1697 = vmatpush1.bf16.msra.mxu0 0
    %1698 = vmatprep.subr.bf16.mxu0 0
    %1699 = vmatpush1.bf16.msra.mxu0 0
    %1700 = vmatprep.subr.bf16.mxu0 0
    %1701 = vmatpush1.bf16.msra.mxu0 0
    %1702 = vmatprep.mubr.bf16.mxu0 %v1668
    %1703 = vmatmul.mubr.bf16.gmra.mrb[0].mxu0 %v403
    %v1704 = vpop.f32.mrb[0].mxu0
    %v1705 = vadd.f32 0.0, %v1704
    %v1706 = vpop.f32.mrb[0].mxu0
    %v1707 = vadd.f32 0.0, %v1706
    %v1708 = vpop.f32.mrb[0].mxu0
    %v1709 = vadd.f32 0.0, %v1708
    %v1710 = vpop.f32.mrb[0].mxu0
    %v1711 = vadd.f32 0.0, %v1710
    %1712 = vdwg.mxu0
    %1713 = vmatprep.subr.bf16.mxu0 %v1169
    %1714 = vmatpush1.bf16.msra.mxu0 %v1168
    %1715 = vmatprep.subr.bf16.mxu0 %v1194
    %1716 = vmatpush1.bf16.msra.mxu0 %v1193
    %1717 = vmatprep.subr.bf16.mxu0 %v1219
    %1718 = vmatpush1.bf16.msra.mxu0 %v1218
    %1719 = vmatprep.subr.bf16.mxu0 %v1244
    %1720 = vmatpush1.bf16.msra.mxu0 %v1243
    %1721 = vmatprep.subr.bf16.mxu0 %v1269
    %1722 = vmatpush1.bf16.msra.mxu0 %v1268
    %1723 = vmatprep.subr.bf16.mxu0 %v1294
    %1724 = vmatpush1.bf16.msra.mxu0 %v1293
    %1725 = vmatprep.subr.bf16.mxu0 %v1319
    %1726 = vmatpush1.bf16.msra.mxu0 %v1318
    %1727 = vmatprep.subr.bf16.mxu0 %v1344
    %1728 = vmatpush1.bf16.msra.mxu0 %v1343
    %1729 = vmatprep.subr.bf16.mxu0 %v1369
    %1730 = vmatpush1.bf16.msra.mxu0 %v1368
    %1731 = vmatprep.subr.bf16.mxu0 %v1394
    %1732 = vmatpush1.bf16.msra.mxu0 %v1393
    %1733 = vmatprep.subr.bf16.mxu0 0
    %1734 = vmatpush1.bf16.msra.mxu0 0
    %1735 = vmatprep.subr.bf16.mxu0 0
    %1736 = vmatpush1.bf16.msra.mxu0 0
    %1737 = vmatprep.subr.bf16.mxu0 0
    %1738 = vmatpush1.bf16.msra.mxu0 0
    %1739 = vmatprep.subr.bf16.mxu0 0
    %1740 = vmatpush1.bf16.msra.mxu0 0
    %1741 = vmatprep.subr.bf16.mxu0 0
    %1742 = vmatpush1.bf16.msra.mxu0 0
    %1743 = vmatprep.subr.bf16.mxu0 0
    %1744 = vmatpush1.bf16.msra.mxu0 0
    %1745 = vmatprep.mubr.bf16.mxu0 %v1668
    %1746 = vmatmul.mubr.bf16.gmra.mrb[0].mxu0 %v403
    %v1747 = vpop.f32.mrb[0].mxu0
    %v1748 = vadd.f32 0.0, %v1747
    %v1749 = vpop.f32.mrb[0].mxu0
    %v1750 = vadd.f32 0.0, %v1749
    %v1751 = vpop.f32.mrb[0].mxu0
    %v1752 = vadd.f32 0.0, %v1751
    %v1753 = vpop.f32.mrb[0].mxu0
    %v1754 = vadd.f32 0.0, %v1753
    %1755 = vdwg.mxu0
    %1756 = vmatprep.subr.bf16.mxu0 %v1171
    %1757 = vmatpush1.bf16.msra.mxu0 %v1170
    %1758 = vmatprep.subr.bf16.mxu0 %v1196
    %1759 = vmatpush1.bf16.msra.mxu0 %v1195
    %1760 = vmatprep.subr.bf16.mxu0 %v1221
    %1761 = vmatpush1.bf16.msra.mxu0 %v1220
    %1762 = vmatprep.subr.bf16.mxu0 %v1246
    %1763 = vmatpush1.bf16.msra.mxu0 %v1245
    %1764 = vmatprep.subr.bf16.mxu0 %v1271
    %1765 = vmatpush1.bf16.msra.mxu0 %v1270
    %1766 = vmatprep.subr.bf16.mxu0 %v1296
    %1767 = vmatpush1.bf16.msra.mxu0 %v1295
    %1768 = vmatprep.subr.bf16.mxu0 %v1321
    %1769 = vmatpush1.bf16.msra.mxu0 %v1320
    %1770 = vmatprep.subr.bf16.mxu0 %v1346
    %1771 = vmatpush1.bf16.msra.mxu0 %v1345
    %1772 = vmatprep.subr.bf16.mxu0 %v1371
    %1773 = vmatpush1.bf16.msra.mxu0 %v1370
    %1774 = vmatprep.subr.bf16.mxu0 %v1396
    %1775 = vmatpush1.bf16.msra.mxu0 %v1395
    %1776 = vmatprep.subr.bf16.mxu0 0
    %1777 = vmatpush1.bf16.msra.mxu0 0
    %1778 = vmatprep.subr.bf16.mxu0 0
    %1779 = vmatpush1.bf16.msra.mxu0 0
    %1780 = vmatprep.subr.bf16.mxu0 0
    %1781 = vmatpush1.bf16.msra.mxu0 0
    %1782 = vmatprep.subr.bf16.mxu0 0
    %1783 = vmatpush1.bf16.msra.mxu0 0
    %1784 = vmatprep.subr.bf16.mxu0 0
    %1785 = vmatpush1.bf16.msra.mxu0 0
    %1786 = vmatprep.subr.bf16.mxu0 0
    %1787 = vmatpush1.bf16.msra.mxu0 0
    %1788 = vmatprep.mubr.bf16.mxu0 %v1668
    %1789 = vmatmul.mubr.bf16.gmra.mrb[0].mxu0 %v403
    %v1790 = vpop.f32.mrb[0].mxu0
    %v1791 = vadd.f32 0.0, %v1790
    %v1792 = vpop.f32.mrb[0].mxu0
    %v1793 = vadd.f32 0.0, %v1792
    %v1794 = vpop.f32.mrb[0].mxu0
    %v1795 = vadd.f32 0.0, %v1794
    %v1796 = vpop.f32.mrb[0].mxu0
    %v1797 = vadd.f32 0.0, %v1796
    %1798 = vdwg.mxu0
    %1799 = vmatprep.subr.bf16.mxu0 %v1173
    %1800 = vmatpush1.bf16.msra.mxu0 %v1172
    %1801 = vmatprep.subr.bf16.mxu0 %v1198
    %1802 = vmatpush1.bf16.msra.mxu0 %v1197
    %1803 = vmatprep.subr.bf16.mxu0 %v1223
    %1804 = vmatpush1.bf16.msra.mxu0 %v1222
    %1805 = vmatprep.subr.bf16.mxu0 %v1248
    %1806 = vmatpush1.bf16.msra.mxu0 %v1247
    %1807 = vmatprep.subr.bf16.mxu0 %v1273
    %1808 = vmatpush1.bf16.msra.mxu0 %v1272
    %1809 = vmatprep.subr.bf16.mxu0 %v1298
    %1810 = vmatpush1.bf16.msra.mxu0 %v1297
    %1811 = vmatprep.subr.bf16.mxu0 %v1323
    %1812 = vmatpush1.bf16.msra.mxu0 %v1322
    %1813 = vmatprep.subr.bf16.mxu0 %v1348
    %1814 = vmatpush1.bf16.msra.mxu0 %v1347
    %1815 = vmatprep.subr.bf16.mxu0 %v1373
    %1816 = vmatpush1.bf16.msra.mxu0 %v1372
    %1817 = vmatprep.subr.bf16.mxu0 %v1398
    %1818 = vmatpush1.bf16.msra.mxu0 %v1397
    %1819 = vmatprep.subr.bf16.mxu0 0
    %1820 = vmatpush1.bf16.msra.mxu0 0
    %1821 = vmatprep.subr.bf16.mxu0 0
    %1822 = vmatpush1.bf16.msra.mxu0 0
    %1823 = vmatprep.subr.bf16.mxu0 0
    %1824 = vmatpush1.bf16.msra.mxu0 0
    %1825 = vmatprep.subr.bf16.mxu0 0
    %1826 = vmatpush1.bf16.msra.mxu0 0
    %1827 = vmatprep.subr.bf16.mxu0 0
    %1828 = vmatpush1.bf16.msra.mxu0 0
    %1829 = vmatprep.subr.bf16.mxu0 0
    %1830 = vmatpush1.bf16.msra.mxu0 0
    %1831 = vmatprep.mubr.bf16.mxu0 %v1668
    %1832 = vmatmul.mubr.bf16.gmra.mrb[0].mxu0 %v403
    %v1833 = vpop.f32.mrb[0].mxu0
    %v1834 = vadd.f32 0.0, %v1833
    %v1835 = vpop.f32.mrb[0].mxu0
    %v1836 = vadd.f32 0.0, %v1835
    %v1837 = vpop.f32.mrb[0].mxu0
    %v1838 = vadd.f32 0.0, %v1837
    %v1839 = vpop.f32.mrb[0].mxu0
    %v1840 = vadd.f32 0.0, %v1839
    %1841 = vdwg.mxu0
    %1842 = vmatprep.subr.bf16.mxu0 %v1175
    %1843 = vmatpush1.bf16.msra.mxu0 %v1174
    %1844 = vmatprep.subr.bf16.mxu0 %v1200
    %1845 = vmatpush1.bf16.msra.mxu0 %v1199
    %1846 = vmatprep.subr.bf16.mxu0 %v1225
    %1847 = vmatpush1.bf16.msra.mxu0 %v1224
    %1848 = vmatprep.subr.bf16.mxu0 %v1250
    %1849 = vmatpush1.bf16.msra.mxu0 %v1249
    %1850 = vmatprep.subr.bf16.mxu0 %v1275
    %1851 = vmatpush1.bf16.msra.mxu0 %v1274
    %1852 = vmatprep.subr.bf16.mxu0 %v1300
    %1853 = vmatpush1.bf16.msra.mxu0 %v1299
    %1854 = vmatprep.subr.bf16.mxu0 %v1325
    %1855 = vmatpush1.bf16.msra.mxu0 %v1324
    %1856 = vmatprep.subr.bf16.mxu0 %v1350
    %1857 = vmatpush1.bf16.msra.mxu0 %v1349
    %1858 = vmatprep.subr.bf16.mxu0 %v1375
    %1859 = vmatpush1.bf16.msra.mxu0 %v1374
    %1860 = vmatprep.subr.bf16.mxu0 %v1400
    %1861 = vmatpush1.bf16.msra.mxu0 %v1399
    %1862 = vmatprep.subr.bf16.mxu0 0
    %1863 = vmatpush1.bf16.msra.mxu0 0
    %1864 = vmatprep.subr.bf16.mxu0 0
    %1865 = vmatpush1.bf16.msra.mxu0 0
    %1866 = vmatprep.subr.bf16.mxu0 0
    %1867 = vmatpush1.bf16.msra.mxu0 0
    %1868 = vmatprep.subr.bf16.mxu0 0
    %1869 = vmatpush1.bf16.msra.mxu0 0
    %1870 = vmatprep.subr.bf16.mxu0 0
    %1871 = vmatpush1.bf16.msra.mxu0 0
    %1872 = vmatprep.subr.bf16.mxu0 0
    %1873 = vmatpush1.bf16.msra.mxu0 0
    %1874 = vmatprep.mubr.bf16.mxu0 %v1668
    %1875 = vmatmul.mubr.bf16.gmra.mrb[0].mxu0 %v403
    %v1876 = vpop.f32.mrb[0].mxu0
    %v1877 = vadd.f32 0.0, %v1876
    %v1878 = vpop.f32.mrb[0].mxu0
    %v1879 = vadd.f32 0.0, %v1878
    %v1880 = vpop.f32.mrb[0].mxu0
    %v1881 = vadd.f32 0.0, %v1880
    %v1882 = vpop.f32.mrb[0].mxu0
    %v1883 = vadd.f32 0.0, %v1882
    %1884 = vdwg.mxu0
    %1885 = vmatprep.subr.bf16.mxu0 %v1177
    %1886 = vmatpush1.bf16.msra.mxu0 %v1176
    %1887 = vmatprep.subr.bf16.mxu0 %v1202
    %1888 = vmatpush1.bf16.msra.mxu0 %v1201
    %1889 = vmatprep.subr.bf16.mxu0 %v1227
    %1890 = vmatpush1.bf16.msra.mxu0 %v1226
    %1891 = vmatprep.subr.bf16.mxu0 %v1252
    %1892 = vmatpush1.bf16.msra.mxu0 %v1251
    %1893 = vmatprep.subr.bf16.mxu0 %v1277
    %1894 = vmatpush1.bf16.msra.mxu0 %v1276
    %1895 = vmatprep.subr.bf16.mxu0 %v1302
    %1896 = vmatpush1.bf16.msra.mxu0 %v1301
    %1897 = vmatprep.subr.bf16.mxu0 %v1327
    %1898 = vmatpush1.bf16.msra.mxu0 %v1326
    %1899 = vmatprep.subr.bf16.mxu0 %v1352
    %1900 = vmatpush1.bf16.msra.mxu0 %v1351
    %1901 = vmatprep.subr.bf16.mxu0 %v1377
    %1902 = vmatpush1.bf16.msra.mxu0 %v1376
    %1903 = vmatprep.subr.bf16.mxu0 %v1402
    %1904 = vmatpush1.bf16.msra.mxu0 %v1401
    %1905 = vmatprep.subr.bf16.mxu0 0
    %1906 = vmatpush1.bf16.msra.mxu0 0
    %1907 = vmatprep.subr.bf16.mxu0 0
    %1908 = vmatpush1.bf16.msra.mxu0 0
    %1909 = vmatprep.subr.bf16.mxu0 0
    %1910 = vmatpush1.bf16.msra.mxu0 0
    %1911 = vmatprep.subr.bf16.mxu0 0
    %1912 = vmatpush1.bf16.msra.mxu0 0
    %1913 = vmatprep.subr.bf16.mxu0 0
    %1914 = vmatpush1.bf16.msra.mxu0 0
    %1915 = vmatprep.subr.bf16.mxu0 0
    %1916 = vmatpush1.bf16.msra.mxu0 0
    %1917 = vmatprep.mubr.bf16.mxu0 %v1668
    %1918 = vmatmul.mubr.bf16.gmra.mrb[0].mxu0 %v403
    %v1919 = vpop.f32.mrb[0].mxu0
    %v1920 = vadd.f32 0.0, %v1919
    %v1921 = vpop.f32.mrb[0].mxu0
    %v1922 = vadd.f32 0.0, %v1921
    %v1923 = vpop.f32.mrb[0].mxu0
    %v1924 = vadd.f32 0.0, %v1923
    %v1925 = vpop.f32.mrb[0].mxu0
    %v1926 = vadd.f32 0.0, %v1925
    %1927 = vdwg.mxu0
    %1928 = vmatprep.subr.bf16.mxu0 %v1179
    %1929 = vmatpush1.bf16.msra.mxu0 %v1178
    %1930 = vmatprep.subr.bf16.mxu0 %v1204
    %1931 = vmatpush1.bf16.msra.mxu0 %v1203
    %1932 = vmatprep.subr.bf16.mxu0 %v1229
    %1933 = vmatpush1.bf16.msra.mxu0 %v1228
    %1934 = vmatprep.subr.bf16.mxu0 %v1254
    %1935 = vmatpush1.bf16.msra.mxu0 %v1253
    %1936 = vmatprep.subr.bf16.mxu0 %v1279
    %1937 = vmatpush1.bf16.msra.mxu0 %v1278
    %1938 = vmatprep.subr.bf16.mxu0 %v1304
    %1939 = vmatpush1.bf16.msra.mxu0 %v1303
    %1940 = vmatprep.subr.bf16.mxu0 %v1329
    %1941 = vmatpush1.bf16.msra.mxu0 %v1328
    %1942 = vmatprep.subr.bf16.mxu0 %v1354
    %1943 = vmatpush1.bf16.msra.mxu0 %v1353
    %1944 = vmatprep.subr.bf16.mxu0 %v1379
    %1945 = vmatpush1.bf16.msra.mxu0 %v1378
    %1946 = vmatprep.subr.bf16.mxu0 %v1404
    %1947 = vmatpush1.bf16.msra.mxu0 %v1403
    %1948 = vmatprep.subr.bf16.mxu0 0
    %1949 = vmatpush1.bf16.msra.mxu0 0
    %1950 = vmatprep.subr.bf16.mxu0 0
    %1951 = vmatpush1.bf16.msra.mxu0 0
    %1952 = vmatprep.subr.bf16.mxu0 0
    %1953 = vmatpush1.bf16.msra.mxu0 0
    %1954 = vmatprep.subr.bf16.mxu0 0
    %1955 = vmatpush1.bf16.msra.mxu0 0
    %1956 = vmatprep.subr.bf16.mxu0 0
    %1957 = vmatpush1.bf16.msra.mxu0 0
    %1958 = vmatprep.subr.bf16.mxu0 0
    %1959 = vmatpush1.bf16.msra.mxu0 0
    %1960 = vmatprep.mubr.bf16.mxu0 %v1668
    %1961 = vmatmul.mubr.bf16.gmra.mrb[0].mxu0 %v403
    %v1962 = vpop.f32.mrb[0].mxu0
    %v1963 = vadd.f32 0.0, %v1962
    %v1964 = vpop.f32.mrb[0].mxu0
    %v1965 = vadd.f32 0.0, %v1964
    %v1966 = vpop.f32.mrb[0].mxu0
    %v1967 = vadd.f32 0.0, %v1966
    %v1968 = vpop.f32.mrb[0].mxu0
    %v1969 = vadd.f32 0.0, %v1968
    %1970 = vdwg.mxu0
    %1971 = vmatprep.subr.bf16.mxu0 %v1181
    %1972 = vmatpush1.bf16.msra.mxu0 %v1180
    %1973 = vmatprep.subr.bf16.mxu0 %v1206
    %1974 = vmatpush1.bf16.msra.mxu0 %v1205
    %1975 = vmatprep.subr.bf16.mxu0 %v1231
    %1976 = vmatpush1.bf16.msra.mxu0 %v1230
    %1977 = vmatprep.subr.bf16.mxu0 %v1256
    %1978 = vmatpush1.bf16.msra.mxu0 %v1255
    %1979 = vmatprep.subr.bf16.mxu0 %v1281
    %1980 = vmatpush1.bf16.msra.mxu0 %v1280
    %1981 = vmatprep.subr.bf16.mxu0 %v1306
    %1982 = vmatpush1.bf16.msra.mxu0 %v1305
    %1983 = vmatprep.subr.bf16.mxu0 %v1331
    %1984 = vmatpush1.bf16.msra.mxu0 %v1330
    %1985 = vmatprep.subr.bf16.mxu0 %v1356
    %1986 = vmatpush1.bf16.msra.mxu0 %v1355
    %1987 = vmatprep.subr.bf16.mxu0 %v1381
    %1988 = vmatpush1.bf16.msra.mxu0 %v1380
    %1989 = vmatprep.subr.bf16.mxu0 %v1406
    %1990 = vmatpush1.bf16.msra.mxu0 %v1405
    %1991 = vmatprep.subr.bf16.mxu0 0
    %1992 = vmatpush1.bf16.msra.mxu0 0
    %1993 = vmatprep.subr.bf16.mxu0 0
    %1994 = vmatpush1.bf16.msra.mxu0 0
    %1995 = vmatprep.subr.bf16.mxu0 0
    %1996 = vmatpush1.bf16.msra.mxu0 0
    %1997 = vmatprep.subr.bf16.mxu0 0
    %1998 = vmatpush1.bf16.msra.mxu0 0
    %1999 = vmatprep.subr.bf16.mxu0 0
    %2000 = vmatpush1.bf16.msra.mxu0 0
    %2001 = vmatprep.subr.bf16.mxu0 0
    %2002 = vmatpush1.bf16.msra.mxu0 0
    %2003 = vmatprep.mubr.bf16.mxu0 %v1668
    %2004 = vmatmul.mubr.bf16.gmra.mrb[0].mxu0 %v403
    %v2005 = vpop.f32.mrb[0].mxu0
    %v2006 = vadd.f32 0.0, %v2005
    %v2007 = vpop.f32.mrb[0].mxu0
    %v2008 = vadd.f32 0.0, %v2007
    %v2009 = vpop.f32.mrb[0].mxu0
    %v2010 = vadd.f32 0.0, %v2009
    %v2011 = vpop.f32.mrb[0].mxu0
    %v2012 = vadd.f32 0.0, %v2011
    %2013 = vdwg.mxu0
    %2014 = vmatprep.subr.bf16.mxu0 %v1183
    %2015 = vmatpush1.bf16.msra.mxu0 %v1182
    %2016 = vmatprep.subr.bf16.mxu0 %v1208
    %2017 = vmatpush1.bf16.msra.mxu0 %v1207
    %2018 = vmatprep.subr.bf16.mxu0 %v1233
    %2019 = vmatpush1.bf16.msra.mxu0 %v1232
    %2020 = vmatprep.subr.bf16.mxu0 %v1258
    %2021 = vmatpush1.bf16.msra.mxu0 %v1257
    %2022 = vmatprep.subr.bf16.mxu0 %v1283
    %2023 = vmatpush1.bf16.msra.mxu0 %v1282
    %2024 = vmatprep.subr.bf16.mxu0 %v1308
    %2025 = vmatpush1.bf16.msra.mxu0 %v1307
    %2026 = vmatprep.subr.bf16.mxu0 %v1333
    %2027 = vmatpush1.bf16.msra.mxu0 %v1332
    %2028 = vmatprep.subr.bf16.mxu0 %v1358
    %2029 = vmatpush1.bf16.msra.mxu0 %v1357
    %2030 = vmatprep.subr.bf16.mxu0 %v1383
    %2031 = vmatpush1.bf16.msra.mxu0 %v1382
    %2032 = vmatprep.subr.bf16.mxu0 %v1408
    %2033 = vmatpush1.bf16.msra.mxu0 %v1407
    %2034 = vmatprep.subr.bf16.mxu0 0
    %2035 = vmatpush1.bf16.msra.mxu0 0
    %2036 = vmatprep.subr.bf16.mxu0 0
    %2037 = vmatpush1.bf16.msra.mxu0 0
    %2038 = vmatprep.subr.bf16.mxu0 0
    %2039 = vmatpush1.bf16.msra.mxu0 0
    %2040 = vmatprep.subr.bf16.mxu0 0
    %2041 = vmatpush1.bf16.msra.mxu0 0
    %2042 = vmatprep.subr.bf16.mxu0 0
    %2043 = vmatpush1.bf16.msra.mxu0 0
    %2044 = vmatprep.subr.bf16.mxu0 0
    %2045 = vmatpush1.bf16.msra.mxu0 0
    %2046 = vmatprep.mubr.bf16.mxu0 %v1668
    %2047 = vmatmul.mubr.bf16.gmra.mrb[0].mxu0 %v403
    %v2048 = vpop.f32.mrb[0].mxu0
    %v2049 = vadd.f32 0.0, %v2048
    %v2050 = vpop.f32.mrb[0].mxu0
    %v2051 = vadd.f32 0.0, %v2050
    %v2052 = vpop.f32.mrb[0].mxu0
    %v2053 = vadd.f32 0.0, %v2052
    %v2054 = vpop.f32.mrb[0].mxu0
    %v2055 = vadd.f32 0.0, %v2054
    %2056 = vdwg.mxu0
    %2057 = vmatprep.subr.bf16.mxu0 %v1185
    %2058 = vmatpush1.bf16.msra.mxu0 %v1184
    %2059 = vmatprep.subr.bf16.mxu0 %v1210
    %2060 = vmatpush1.bf16.msra.mxu0 %v1209
    %2061 = vmatprep.subr.bf16.mxu0 %v1235
    %2062 = vmatpush1.bf16.msra.mxu0 %v1234
    %2063 = vmatprep.subr.bf16.mxu0 %v1260
    %2064 = vmatpush1.bf16.msra.mxu0 %v1259
    %2065 = vmatprep.subr.bf16.mxu0 %v1285
    %2066 = vmatpush1.bf16.msra.mxu0 %v1284
    %2067 = vmatprep.subr.bf16.mxu0 %v1310
    %2068 = vmatpush1.bf16.msra.mxu0 %v1309
    %2069 = vmatprep.subr.bf16.mxu0 %v1335
    %2070 = vmatpush1.bf16.msra.mxu0 %v1334
    %2071 = vmatprep.subr.bf16.mxu0 %v1360
    %2072 = vmatpush1.bf16.msra.mxu0 %v1359
    %2073 = vmatprep.subr.bf16.mxu0 %v1385
    %2074 = vmatpush1.bf16.msra.mxu0 %v1384
    %2075 = vmatprep.subr.bf16.mxu0 %v1410
    %2076 = vmatpush1.bf16.msra.mxu0 %v1409
    %2077 = vmatprep.subr.bf16.mxu0 0
    %2078 = vmatpush1.bf16.msra.mxu0 0
    %2079 = vmatprep.subr.bf16.mxu0 0
    %2080 = vmatpush1.bf16.msra.mxu0 0
    %2081 = vmatprep.subr.bf16.mxu0 0
    %2082 = vmatpush1.bf16.msra.mxu0 0
    %2083 = vmatprep.subr.bf16.mxu0 0
    %2084 = vmatpush1.bf16.msra.mxu0 0
    %2085 = vmatprep.subr.bf16.mxu0 0
    %2086 = vmatpush1.bf16.msra.mxu0 0
    %2087 = vmatprep.subr.bf16.mxu0 0
    %2088 = vmatpush1.bf16.msra.mxu0 0
    %2089 = vmatprep.mubr.bf16.mxu0 %v1668
    %2090 = vmatmul.mubr.bf16.gmra.mrb[0].mxu0 %v403
    %v2091 = vpop.f32.mrb[0].mxu0
    %v2092 = vadd.f32 0.0, %v2091
    %v2093 = vpop.f32.mrb[0].mxu0
    %v2094 = vadd.f32 0.0, %v2093
    %v2095 = vpop.f32.mrb[0].mxu0
    %v2096 = vadd.f32 0.0, %v2095
    %v2097 = vpop.f32.mrb[0].mxu0
    %v2098 = vadd.f32 0.0, %v2097
    %2099 = vdwg.mxu0
    %2100 = vmatprep.subr.bf16.mxu0 %v1187
    %2101 = vmatpush1.bf16.msra.mxu0 %v1186
    %2102 = vmatprep.subr.bf16.mxu0 %v1212
    %2103 = vmatpush1.bf16.msra.mxu0 %v1211
    %2104 = vmatprep.subr.bf16.mxu0 %v1237
    %2105 = vmatpush1.bf16.msra.mxu0 %v1236
    %2106 = vmatprep.subr.bf16.mxu0 %v1262
    %2107 = vmatpush1.bf16.msra.mxu0 %v1261
    %2108 = vmatprep.subr.bf16.mxu0 %v1287
    %2109 = vmatpush1.bf16.msra.mxu0 %v1286
    %2110 = vmatprep.subr.bf16.mxu0 %v1312
    %2111 = vmatpush1.bf16.msra.mxu0 %v1311
    %2112 = vmatprep.subr.bf16.mxu0 %v1337
    %2113 = vmatpush1.bf16.msra.mxu0 %v1336
    %2114 = vmatprep.subr.bf16.mxu0 %v1362
    %2115 = vmatpush1.bf16.msra.mxu0 %v1361
    %2116 = vmatprep.subr.bf16.mxu0 %v1387
    %2117 = vmatpush1.bf16.msra.mxu0 %v1386
    %2118 = vmatprep.subr.bf16.mxu0 %v1412
    %2119 = vmatpush1.bf16.msra.mxu0 %v1411
    %2120 = vmatprep.subr.bf16.mxu0 0
    %2121 = vmatpush1.bf16.msra.mxu0 0
    %2122 = vmatprep.subr.bf16.mxu0 0
    %2123 = vmatpush1.bf16.msra.mxu0 0
    %2124 = vmatprep.subr.bf16.mxu0 0
    %2125 = vmatpush1.bf16.msra.mxu0 0
    %2126 = vmatprep.subr.bf16.mxu0 0
    %2127 = vmatpush1.bf16.msra.mxu0 0
    %2128 = vmatprep.subr.bf16.mxu0 0
    %2129 = vmatpush1.bf16.msra.mxu0 0
    %2130 = vmatprep.subr.bf16.mxu0 0
    %2131 = vmatpush1.bf16.msra.mxu0 0
    %2132 = vmatprep.mubr.bf16.mxu0 %v1668
    %2133 = vmatmul.mubr.bf16.gmra.mrb[0].mxu0 %v403
    %v2134 = vpop.f32.mrb[0].mxu0
    %v2135 = vadd.f32 0.0, %v2134
    %v2136 = vpop.f32.mrb[0].mxu0
    %v2137 = vadd.f32 0.0, %v2136
    %v2138 = vpop.f32.mrb[0].mxu0
    %v2139 = vadd.f32 0.0, %v2138
    %v2140 = vpop.f32.mrb[0].mxu0
    %v2141 = vadd.f32 0.0, %v2140
    %2142 = vdwg.mxu0
    %2143 = vmatprep.subr.bf16.mxu0 %v1189
    %2144 = vmatpush1.bf16.msra.mxu0 %v1188
    %2145 = vmatprep.subr.bf16.mxu0 %v1214
    %2146 = vmatpush1.bf16.msra.mxu0 %v1213
    %2147 = vmatprep.subr.bf16.mxu0 %v1239
    %2148 = vmatpush1.bf16.msra.mxu0 %v1238
    %2149 = vmatprep.subr.bf16.mxu0 %v1264
    %2150 = vmatpush1.bf16.msra.mxu0 %v1263
    %2151 = vmatprep.subr.bf16.mxu0 %v1289
    %2152 = vmatpush1.bf16.msra.mxu0 %v1288
    %2153 = vmatprep.subr.bf16.mxu0 %v1314
    %2154 = vmatpush1.bf16.msra.mxu0 %v1313
    %2155 = vmatprep.subr.bf16.mxu0 %v1339
    %2156 = vmatpush1.bf16.msra.mxu0 %v1338
    %2157 = vmatprep.subr.bf16.mxu0 %v1364
    %2158 = vmatpush1.bf16.msra.mxu0 %v1363
    %2159 = vmatprep.subr.bf16.mxu0 %v1389
    %2160 = vmatpush1.bf16.msra.mxu0 %v1388
    %2161 = vmatprep.subr.bf16.mxu0 %v1414
    %2162 = vmatpush1.bf16.msra.mxu0 %v1413
    %2163 = vmatprep.subr.bf16.mxu0 0
    %2164 = vmatpush1.bf16.msra.mxu0 0
    %2165 = vmatprep.subr.bf16.mxu0 0
    %2166 = vmatpush1.bf16.msra.mxu0 0
    %2167 = vmatprep.subr.bf16.mxu0 0
    %2168 = vmatpush1.bf16.msra.mxu0 0
    %2169 = vmatprep.subr.bf16.mxu0 0
    %2170 = vmatpush1.bf16.msra.mxu0 0
    %2171 = vmatprep.subr.bf16.mxu0 0
    %2172 = vmatpush1.bf16.msra.mxu0 0
    %2173 = vmatprep.subr.bf16.mxu0 0
    %2174 = vmatpush1.bf16.msra.mxu0 0
    %2175 = vmatprep.mubr.bf16.mxu0 %v1668
    %2176 = vmatmul.mubr.bf16.gmra.mrb[0].mxu0 %v403
    %v2177 = vpop.f32.mrb[0].mxu0
    %v2178 = vadd.f32 0.0, %v2177
    %v2179 = vpop.f32.mrb[0].mxu0
    %v2180 = vadd.f32 0.0, %v2179
    %v2181 = vpop.f32.mrb[0].mxu0
    %v2182 = vadd.f32 0.0, %v2181
    %v2183 = vpop.f32.mrb[0].mxu0
    %v2184 = vadd.f32 0.0, %v2183
    %2185 = vdwg.mxu0
    %2186 = vmatprep.subr.bf16.mxu0 0
    %2187 = vmatpush1.bf16.msra.mxu0 %v1190
    %2188 = vmatprep.subr.bf16.mxu0 0
    %2189 = vmatpush1.bf16.msra.mxu0 %v1215
    %2190 = vmatprep.subr.bf16.mxu0 0
    %2191 = vmatpush1.bf16.msra.mxu0 %v1240
    %2192 = vmatprep.subr.bf16.mxu0 0
    %2193 = vmatpush1.bf16.msra.mxu0 %v1265
    %2194 = vmatprep.subr.bf16.mxu0 0
    %2195 = vmatpush1.bf16.msra.mxu0 %v1290
    %2196 = vmatprep.subr.bf16.mxu0 0
    %2197 = vmatpush1.bf16.msra.mxu0 %v1315
    %2198 = vmatprep.subr.bf16.mxu0 0
    %2199 = vmatpush1.bf16.msra.mxu0 %v1340
    %2200 = vmatprep.subr.bf16.mxu0 0
    %2201 = vmatpush1.bf16.msra.mxu0 %v1365
    %2202 = vmatprep.subr.bf16.mxu0 0
    %2203 = vmatpush1.bf16.msra.mxu0 %v1390
    %2204 = vmatprep.subr.bf16.mxu0 0
    %2205 = vmatpush1.bf16.msra.mxu0 %v1415
    %2206 = vmatprep.subr.bf16.mxu0 0
    %2207 = vmatpush1.bf16.msra.mxu0 0
    %2208 = vmatprep.subr.bf16.mxu0 0
    %2209 = vmatpush1.bf16.msra.mxu0 0
    %2210 = vmatprep.subr.bf16.mxu0 0
    %2211 = vmatpush1.bf16.msra.mxu0 0
    %2212 = vmatprep.subr.bf16.mxu0 0
    %2213 = vmatpush1.bf16.msra.mxu0 0
    %2214 = vmatprep.subr.bf16.mxu0 0
    %2215 = vmatpush1.bf16.msra.mxu0 0
    %2216 = vmatprep.subr.bf16.mxu0 0
    %2217 = vmatpush1.bf16.msra.mxu0 0
    %2218 = vmatprep.mubr.bf16.mxu0 %v1668
    %2219 = vmatmul.mubr.bf16.gmra.mrb[0].mxu0 %v403
    %v2220 = vpop.f32.mrb[0].mxu0
    %v2221 = vadd.f32 0.0, %v2220
    %v2222 = vpop.f32.mrb[0].mxu0
    %v2223 = vpop.f32.mrb[0].mxu0
    %v2224 = vadd.f32 0.0, %v2223
    %v2225 = vpop.f32.mrb[0].mxu0
    %2226 = vdwg.mxu0
    %v2227 = vmax.f32 %v1705, %v1793
    %v2228 = vmax.f32 %v1707, %v1834
    %v2229 = vmax.f32 %v1748, %v1836
    %v2230 = vmax.f32 %v1750, %v1877
    %v2231 = vmax.f32 %v1791, %v1879
    %v2232 = vmax.f32 %v1709, %v1797
    %v2233 = vmax.f32 %v1711, %v1838
    %v2234 = vmax.f32 %v1752, %v1840
    %v2235 = vmax.f32 %v1754, %v1881
    %v2236 = vmax.f32 %v1795, %v1883
    %v2237 = vmax.f32 %v2227, %v1920
    %v2238 = vmax.f32 %v2228, %v1922
    %v2239 = vmax.f32 %v2229, %v1963
    %v2240 = vmax.f32 %v2230, %v1965
    %v2241 = vmax.f32 %v2231, %v2006
    %v2242 = vmax.f32 %v2232, %v1924
    %v2243 = vmax.f32 %v2233, %v1926
    %v2244 = vmax.f32 %v2234, %v1967
    %v2245 = vmax.f32 %v2235, %v1969
    %v2246 = vmax.f32 %v2236, %v2010
    %v2247 = vmax.f32 %v2237, %v2008
    %v2248 = vmax.f32 %v2238, %v2049
    %v2249 = vmax.f32 %v2239, %v2051
    %v2250 = vmax.f32 %v2240, %v2092
    %v2251 = vmax.f32 %v2241, %v2094
    %v2252 = vmax.f32 %v2242, %v2012
    %v2253 = vmax.f32 %v2243, %v2053
    %v2254 = vmax.f32 %v2244, %v2055
    %v2255 = vmax.f32 %v2245, %v2096
    %v2256 = vmax.f32 %v2246, %v2098
    %v2257 = vmax.f32 %v2247, %v2135
    %v2258 = vmax.f32 %v2248, %v2137
    %v2259 = vmax.f32 %v2249, %v2178
    %v2260 = vmax.f32 %v2250, %v2180
    %v2261 = vmax.f32 %v2251, %v2221
    %v2262 = vmax.f32 %v2252, %v2139
    %v2263 = vmax.f32 %v2253, %v2141
    %v2264 = vmax.f32 %v2254, %v2182
    %v2265 = vmax.f32 %v2255, %v2184
    %v2266 = vmax.f32 %v2256, %v2224
    %v2267 = vld [vmem:[#allocation5] sm:$0x1f]
    %v2269 = vlaneseq
    %v2270 = vshrl.u32 %v2269, 7
    %v2271 = vsub.s32 0, %v2270
    %v2272 = vrot.slane %v2267, %v2271
    %v2273 = vlaneseq
    %v2274 = vshrl.u32 %v2273, 7
    %v2275 = vsub.s32 1, %v2274
    %v2276 = vrot.slane %v2267, %v2275
    %v2277 = vlaneseq
    %v2278 = vshrl.u32 %v2277, 7
    %v2279 = vsub.s32 2, %v2278
    %v2280 = vrot.slane %v2267, %v2279
    %v2281 = vlaneseq
    %v2282 = vshrl.u32 %v2281, 7
    %v2283 = vsub.s32 3, %v2282
    %v2284 = vrot.slane %v2267, %v2283
    %v2285 = vlaneseq
    %v2286 = vshrl.u32 %v2285, 7
    %v2287 = vsub.s32 4, %v2286
    %v2288 = vrot.slane %v2267, %v2287
    %v2294 = vadd.f32 %v2257, %v2272
    %v2295 = vadd.f32 %v2258, %v2276
    %v2296 = vadd.f32 %v2259, %v2280
    %v2297 = vadd.f32 %v2260, %v2284
    %v2298 = vadd.f32 %v2261, %v2288
    %v2299 = vadd.f32 %v2262, %v2272
    %v2300 = vadd.f32 %v2263, %v2276
    %v2301 = vadd.f32 %v2264, %v2280
    %v2302 = vadd.f32 %v2265, %v2284
    %v2303 = vadd.f32 %v2266, %v2288
    %v2304 = vmax.f32 %v2294, 0.0
    %v2305 = vmax.f32 %v2295, 0.0
    %v2306 = vmax.f32 %v2296, 0.0
    %v2307 = vmax.f32 %v2297, 0.0
    %v2308 = vmax.f32 %v2298, 0.0
    %v2309 = vmax.f32 %v2299, 0.0
    %v2310 = vmax.f32 %v2300, 0.0
    %v2311 = vmax.f32 %v2301, 0.0
    %v2312 = vmax.f32 %v2302, 0.0
    %v2313 = vmax.f32 %v2303, 0.0
    %v2314 = vpack.c.bf16 %v2309, %v2304
    %v2315 = vpack.c.bf16 %v2310, %v2305
    %v2316 = vpack.c.bf16 %v2311, %v2306
    %v2317 = vpack.c.bf16 %v2312, %v2307
    %v2318 = vpack.c.bf16 %v2313, %v2308
    %v2319 = vld [vmem:[#allocation7] sm:$0xff]
    %v2320 = vld [vmem:[#allocation7 + $0x8] sm:$0xff]
    %v2321 = vld [vmem:[#allocation7 + $0x10] sm:$0xff]
    %v2322 = vld [vmem:[#allocation7 + $0x18] sm:$0xff]
    %v2323 = vld [vmem:[#allocation7 + $0x20] sm:$0xff]
    %v2324 = vld [vmem:[#allocation7 + $0x28] sm:$0xff]
    %v2325 = vld [vmem:[#allocation7 + $0x30] sm:$0xff]
    %v2326 = vld [vmem:[#allocation7 + $0x38] sm:$0xff]
    %v2327 = vld [vmem:[#allocation7 + $0x40] sm:$0xff]
    %v2328 = vld [vmem:[#allocation7 + $0x48] sm:$0xff]
    %v2329 = vld [vmem:[#allocation7 + $0x50] sm:$0xff]
    %v2330 = vld [vmem:[#allocation7 + $0x58] sm:$0xff]
    %v2331 = vld [vmem:[#allocation7 + $0x60] sm:$0xff]
    %v2332 = vld [vmem:[#allocation7 + $0x68] sm:$0xff]
    %v2333 = vld [vmem:[#allocation7 + $0x70] sm:$0xff]
    %v2334 = vld [vmem:[#allocation7 + $0x78] sm:$0xff]
    %v2335 = vld [vmem:[#allocation7 + $0x80] sm:$0xff]
    %v2336 = vld [vmem:[#allocation7 + $0x88] sm:$0xff]
    %v2337 = vld [vmem:[#allocation7 + $0x90] sm:$0xff]
    %v2338 = vld [vmem:[#allocation7 + $0x98] sm:$0xff]
    %v2339 = vld [vmem:[#allocation7 + $0xa0] sm:$0xff]
    %v2340 = vld [vmem:[#allocation7 + $0xa8] sm:$0xff]
    %v2341 = vld [vmem:[#allocation7 + $0xb0] sm:$0xff]
    %v2342 = vld [vmem:[#allocation7 + $0xb8] sm:$0xff]
    %v2343 = vld [vmem:[#allocation7 + $0xc0] sm:$0xff]
    %v2344 = vld [vmem:[#allocation7 + $0xc8] sm:$0xff]
    %v2345 = vld [vmem:[#allocation7 + $0xd0] sm:$0xff]
    %v2346 = vld [vmem:[#allocation7 + $0xd8] sm:$0xff]
    %v2347 = vld [vmem:[#allocation7 + $0xe0] sm:$0xff]
    %v2348 = vld [vmem:[#allocation7 + $0xe8] sm:$0xff]
    %v2349 = vld [vmem:[#allocation7 + $0xf0] sm:$0xff]
    %v2350 = vld [vmem:[#allocation7 + $0xf8] sm:$0xff]
    %v2351 = vld [vmem:[#allocation7 + $0x100] sm:$0xff]
    %v2352 = vld [vmem:[#allocation7 + $0x108] sm:$0xff]
    %v2353 = vld [vmem:[#allocation7 + $0x110] sm:$0xff]
    %v2354 = vld [vmem:[#allocation7 + $0x118] sm:$0xff]
    %v2355 = vld [vmem:[#allocation7 + $0x120] sm:$0xff]
    %v2356 = vld [vmem:[#allocation7 + $0x128] sm:$0xff]
    %v2357 = vld [vmem:[#allocation7 + $0x130] sm:$0xff]
    %v2358 = vld [vmem:[#allocation7 + $0x138] sm:$0xff]
    %v2359 = vld [vmem:[#allocation7 + $0x140] sm:$0xff]
    %v2360 = vld [vmem:[#allocation7 + $0x148] sm:$0xff]
    %v2361 = vld [vmem:[#allocation7 + $0x150] sm:$0xff]
    %v2362 = vld [vmem:[#allocation7 + $0x158] sm:$0xff]
    %v2363 = vld [vmem:[#allocation7 + $0x160] sm:$0xff]
    %v2364 = vld [vmem:[#allocation7 + $0x168] sm:$0xff]
    %v2365 = vld [vmem:[#allocation7 + $0x170] sm:$0xff]
    %v2366 = vld [vmem:[#allocation7 + $0x178] sm:$0xff]
    %v2367 = vld [vmem:[#allocation7 + $0x180] sm:$0xff]
    %v2368 = vld [vmem:[#allocation7 + $0x188] sm:$0xff]
    %v2369 = vld [vmem:[#allocation7 + $0x190] sm:$0xff]
    %v2370 = vld [vmem:[#allocation7 + $0x198] sm:$0xff]
    %v2371 = vld [vmem:[#allocation7 + $0x1a0] sm:$0xff]
    %v2372 = vld [vmem:[#allocation7 + $0x1a8] sm:$0xff]
    %v2373 = vld [vmem:[#allocation7 + $0x1b0] sm:$0xff]
    %v2374 = vld [vmem:[#allocation7 + $0x1b8] sm:$0xff]
    %v2375 = vld [vmem:[#allocation7 + $0x1c0] sm:$0xff]
    %v2376 = vld [vmem:[#allocation7 + $0x1c8] sm:$0xff]
    %v2377 = vld [vmem:[#allocation7 + $0x1d0] sm:$0xff]
    %v2378 = vld [vmem:[#allocation7 + $0x1d8] sm:$0xff]
    %v2379 = vld [vmem:[#allocation7 + $0x1e0] sm:$0xff]
    %v2380 = vld [vmem:[#allocation7 + $0x1e8] sm:$0xff]
    %v2381 = vld [vmem:[#allocation7 + $0x1f0] sm:$0xff]
    %v2382 = vld [vmem:[#allocation7 + $0x1f8] sm:$0xff]
    %v2383 = vld [vmem:[#allocation7 + $0x200] sm:$0xff]
    %v2384 = vld [vmem:[#allocation7 + $0x208] sm:$0xff]
    %v2385 = vld [vmem:[#allocation7 + $0x210] sm:$0xff]
    %v2386 = vld [vmem:[#allocation7 + $0x218] sm:$0xff]
    %v2387 = vld [vmem:[#allocation7 + $0x220] sm:$0xff]
    %v2388 = vld [vmem:[#allocation7 + $0x228] sm:$0xff]
    %v2389 = vld [vmem:[#allocation7 + $0x230] sm:$0xff]
    %v2390 = vld [vmem:[#allocation7 + $0x238] sm:$0xff]
    %v2391 = vld [vmem:[#allocation7 + $0x240] sm:$0xff]
    %v2392 = vld [vmem:[#allocation7 + $0x248] sm:$0xff]
    %v2393 = vld [vmem:[#allocation7 + $0x250] sm:$0xff]
    %v2394 = vld [vmem:[#allocation7 + $0x258] sm:$0xff]
    %v2395 = vld [vmem:[#allocation7 + $0x260] sm:$0xff]
    %v2396 = vld [vmem:[#allocation7 + $0x268] sm:$0xff]
    %v2397 = vld [vmem:[#allocation7 + $0x270] sm:$0xff]
    %v2398 = vld [vmem:[#allocation7 + $0x278] sm:$0xff]
    %v2399 = vld [vmem:[#allocation7 + $0x280] sm:$0xff]
    %v2400 = vld [vmem:[#allocation7 + $0x288] sm:$0xff]
    %v2401 = vld [vmem:[#allocation7 + $0x290] sm:$0xff]
    %v2402 = vld [vmem:[#allocation7 + $0x298] sm:$0xff]
    %v2403 = vld [vmem:[#allocation7 + $0x2a0] sm:$0xff]
    %v2404 = vld [vmem:[#allocation7 + $0x2a8] sm:$0xff]
    %v2405 = vld [vmem:[#allocation7 + $0x2b0] sm:$0xff]
    %v2406 = vld [vmem:[#allocation7 + $0x2b8] sm:$0xff]
    %v2407 = vld [vmem:[#allocation7 + $0x2c0] sm:$0xff]
    %v2408 = vld [vmem:[#allocation7 + $0x2c8] sm:$0xff]
    %v2409 = vld [vmem:[#allocation7 + $0x2d0] sm:$0xff]
    %v2410 = vld [vmem:[#allocation7 + $0x2d8] sm:$0xff]
    %v2411 = vld [vmem:[#allocation7 + $0x2e0] sm:$0xff]
    %v2412 = vld [vmem:[#allocation7 + $0x2e8] sm:$0xff]
    %v2413 = vld [vmem:[#allocation7 + $0x2f0] sm:$0xff]
    %v2414 = vld [vmem:[#allocation7 + $0x2f8] sm:$0xff]
    %v2415 = vld [vmem:[#allocation7 + $0x300] sm:$0xff]
    %v2416 = vld [vmem:[#allocation7 + $0x308] sm:$0xff]
    %v2417 = vld [vmem:[#allocation7 + $0x310] sm:$0xff]
    %v2418 = vld [vmem:[#allocation7 + $0x318] sm:$0xff]
    %v2419 = vld [vmem:[#allocation7 + $0x320] sm:$0xff]
    %v2420 = vld [vmem:[#allocation7 + $0x328] sm:$0xff]
    %v2421 = vld [vmem:[#allocation7 + $0x330] sm:$0xff]
    %v2422 = vld [vmem:[#allocation7 + $0x338] sm:$0xff]
    %v2423 = vld [vmem:[#allocation7 + $0x340] sm:$0xff]
    %v2424 = vld [vmem:[#allocation7 + $0x348] sm:$0xff]
    %v2425 = vld [vmem:[#allocation7 + $0x350] sm:$0xff]
    %v2426 = vld [vmem:[#allocation7 + $0x358] sm:$0xff]
    %v2427 = vld [vmem:[#allocation7 + $0x360] sm:$0xff]
    %v2428 = vld [vmem:[#allocation7 + $0x368] sm:$0xff]
    %v2429 = vld [vmem:[#allocation7 + $0x370] sm:$0xff]
    %v2430 = vld [vmem:[#allocation7 + $0x378] sm:$0xff]
    %v2431 = vld [vmem:[#allocation7 + $0x380] sm:$0xff]
    %v2432 = vld [vmem:[#allocation7 + $0x388] sm:$0xff]
    %v2433 = vld [vmem:[#allocation7 + $0x390] sm:$0xff]
    %v2434 = vld [vmem:[#allocation7 + $0x398] sm:$0xff]
    %v2435 = vld [vmem:[#allocation7 + $0x3a0] sm:$0xff]
    %v2436 = vld [vmem:[#allocation7 + $0x3a8] sm:$0xff]
    %v2437 = vld [vmem:[#allocation7 + $0x3b0] sm:$0xff]
    %v2438 = vld [vmem:[#allocation7 + $0x3b8] sm:$0xff]
    %v2439 = vld [vmem:[#allocation7 + $0x3c0] sm:$0xff]
    %v2440 = vld [vmem:[#allocation7 + $0x3c8] sm:$0xff]
    %v2441 = vld [vmem:[#allocation7 + $0x3d0] sm:$0xff]
    %v2442 = vld [vmem:[#allocation7 + $0x3d8] sm:$0xff]
    %v2443 = vld [vmem:[#allocation7 + $0x3e0] sm:$0xff]
    %v2444 = vld [vmem:[#allocation7 + $0x3e8] sm:$0xff]
    %v2445 = vld [vmem:[#allocation7 + $0x3f0] sm:$0xff]
    %v2446 = vld [vmem:[#allocation7 + $0x3f8] sm:$0xff]
    %v2447 = vld [vmem:[#allocation7 + $0x400] sm:$0xff]
    %v2448 = vld [vmem:[#allocation7 + $0x408] sm:$0xff]
    %v2449 = vld [vmem:[#allocation7 + $0x410] sm:$0xff]
    %v2450 = vld [vmem:[#allocation7 + $0x418] sm:$0xff]
    %v2451 = vld [vmem:[#allocation7 + $0x420] sm:$0xff]
    %v2452 = vld [vmem:[#allocation7 + $0x428] sm:$0xff]
    %v2453 = vld [vmem:[#allocation7 + $0x430] sm:$0xff]
    %v2454 = vld [vmem:[#allocation7 + $0x438] sm:$0xff]
    %v2455 = vld [vmem:[#allocation7 + $0x440] sm:$0xff]
    %v2456 = vld [vmem:[#allocation7 + $0x448] sm:$0xff]
    %v2457 = vld [vmem:[#allocation7 + $0x450] sm:$0xff]
    %v2458 = vld [vmem:[#allocation7 + $0x458] sm:$0xff]
    %v2459 = vld [vmem:[#allocation7 + $0x460] sm:$0xff]
    %v2460 = vld [vmem:[#allocation7 + $0x468] sm:$0xff]
    %v2461 = vld [vmem:[#allocation7 + $0x470] sm:$0xff]
    %v2462 = vld [vmem:[#allocation7 + $0x478] sm:$0xff]
    %v2463 = vld [vmem:[#allocation7 + $0x480] sm:$0xff]
    %v2464 = vld [vmem:[#allocation7 + $0x488] sm:$0xff]
    %v2465 = vld [vmem:[#allocation7 + $0x490] sm:$0xff]
    %v2466 = vld [vmem:[#allocation7 + $0x498] sm:$0xff]
    %v2467 = vld [vmem:[#allocation7 + $0x4a0] sm:$0xff]
    %v2468 = vld [vmem:[#allocation7 + $0x4a8] sm:$0xff]
    %v2469 = vld [vmem:[#allocation7 + $0x4b0] sm:$0xff]
    %v2470 = vld [vmem:[#allocation7 + $0x4b8] sm:$0xff]
    %v2471 = vld [vmem:[#allocation7 + $0x4c0] sm:$0xff]
    %v2472 = vld [vmem:[#allocation7 + $0x4c8] sm:$0xff]
    %v2473 = vld [vmem:[#allocation7 + $0x4d0] sm:$0xff]
    %v2474 = vld [vmem:[#allocation7 + $0x4d8] sm:$0xff]
    %v2475 = vld [vmem:[#allocation7 + $0x4e0] sm:$0xff]
    %v2476 = vld [vmem:[#allocation7 + $0x4e8] sm:$0xff]
    %v2477 = vld [vmem:[#allocation7 + $0x4f0] sm:$0xff]
    %v2478 = vld [vmem:[#allocation7 + $0x4f8] sm:$0xff]
    %v2479 = vld [vmem:[#allocation7 + $0x500] sm:$0xff]
    %v2480 = vld [vmem:[#allocation7 + $0x508] sm:$0xff]
    %v2481 = vld [vmem:[#allocation7 + $0x510] sm:$0xff]
    %v2482 = vld [vmem:[#allocation7 + $0x518] sm:$0xff]
    %v2483 = vld [vmem:[#allocation7 + $0x520] sm:$0xff]
    %v2484 = vld [vmem:[#allocation7 + $0x528] sm:$0xff]
    %v2485 = vld [vmem:[#allocation7 + $0x530] sm:$0xff]
    %v2486 = vld [vmem:[#allocation7 + $0x538] sm:$0xff]
    %v2487 = vld [vmem:[#allocation7 + $0x540] sm:$0xff]
    %v2488 = vld [vmem:[#allocation7 + $0x548] sm:$0xff]
    %v2489 = vld [vmem:[#allocation7 + $0x550] sm:$0xff]
    %v2490 = vld [vmem:[#allocation7 + $0x558] sm:$0xff]
    %v2491 = vld [vmem:[#allocation7 + $0x560] sm:$0xff]
    %v2492 = vld [vmem:[#allocation7 + $0x568] sm:$0xff]
    %v2493 = vld [vmem:[#allocation7 + $0x570] sm:$0xff]
    %v2494 = vld [vmem:[#allocation7 + $0x578] sm:$0xff]
    %v2495 = vld [vmem:[#allocation7 + $0x580] sm:$0xff]
    %v2496 = vld [vmem:[#allocation7 + $0x588] sm:$0xff]
    %v2497 = vld [vmem:[#allocation7 + $0x590] sm:$0xff]
    %v2498 = vld [vmem:[#allocation7 + $0x598] sm:$0xff]
    %v2499 = vld [vmem:[#allocation7 + $0x5a0] sm:$0xff]
    %v2500 = vld [vmem:[#allocation7 + $0x5a8] sm:$0xff]
    %v2501 = vld [vmem:[#allocation7 + $0x5b0] sm:$0xff]
    %v2502 = vld [vmem:[#allocation7 + $0x5b8] sm:$0xff]
    %v2503 = vld [vmem:[#allocation7 + $0x5c0] sm:$0xff]
    %v2504 = vld [vmem:[#allocation7 + $0x5c8] sm:$0xff]
    %v2505 = vld [vmem:[#allocation7 + $0x5d0] sm:$0xff]
    %v2506 = vld [vmem:[#allocation7 + $0x5d8] sm:$0xff]
    %v2507 = vld [vmem:[#allocation7 + $0x5e0] sm:$0xff]
    %v2508 = vld [vmem:[#allocation7 + $0x5e8] sm:$0xff]
    %v2509 = vld [vmem:[#allocation7 + $0x5f0] sm:$0xff]
    %v2510 = vld [vmem:[#allocation7 + $0x5f8] sm:$0xff]
    %v2511 = vld [vmem:[#allocation7 + $0x600] sm:$0xff]
    %v2512 = vld [vmem:[#allocation7 + $0x608] sm:$0xff]
    %v2513 = vld [vmem:[#allocation7 + $0x610] sm:$0xff]
    %v2514 = vld [vmem:[#allocation7 + $0x618] sm:$0xff]
    %v2515 = vld [vmem:[#allocation7 + $0x620] sm:$0xff]
    %v2516 = vld [vmem:[#allocation7 + $0x628] sm:$0xff]
    %v2517 = vld [vmem:[#allocation7 + $0x630] sm:$0xff]
    %v2518 = vld [vmem:[#allocation7 + $0x638] sm:$0xff]
    %v2519 = vld [vmem:[#allocation7 + $0x640] sm:$0xff]
    %v2520 = vld [vmem:[#allocation7 + $0x648] sm:$0xff]
    %v2521 = vld [vmem:[#allocation7 + $0x650] sm:$0xff]
    %v2522 = vld [vmem:[#allocation7 + $0x658] sm:$0xff]
    %v2523 = vld [vmem:[#allocation7 + $0x660] sm:$0xff]
    %v2524 = vld [vmem:[#allocation7 + $0x668] sm:$0xff]
    %v2525 = vld [vmem:[#allocation7 + $0x670] sm:$0xff]
    %v2526 = vld [vmem:[#allocation7 + $0x678] sm:$0xff]
    %v2527 = vld [vmem:[#allocation7 + $0x680] sm:$0xff]
    %v2528 = vld [vmem:[#allocation7 + $0x688] sm:$0xff]
    %v2529 = vld [vmem:[#allocation7 + $0x690] sm:$0xff]
    %v2530 = vld [vmem:[#allocation7 + $0x698] sm:$0xff]
    %v2531 = vld [vmem:[#allocation7 + $0x6a0] sm:$0xff]
    %v2532 = vld [vmem:[#allocation7 + $0x6a8] sm:$0xff]
    %v2533 = vld [vmem:[#allocation7 + $0x6b0] sm:$0xff]
    %v2534 = vld [vmem:[#allocation7 + $0x6b8] sm:$0xff]
    %v2535 = vld [vmem:[#allocation7 + $0x6c0] sm:$0xff]
    %v2536 = vld [vmem:[#allocation7 + $0x6c8] sm:$0xff]
    %v2537 = vld [vmem:[#allocation7 + $0x6d0] sm:$0xff]
    %v2538 = vld [vmem:[#allocation7 + $0x6d8] sm:$0xff]
    %v2539 = vld [vmem:[#allocation7 + $0x6e0] sm:$0xff]
    %v2540 = vld [vmem:[#allocation7 + $0x6e8] sm:$0xff]
    %v2541 = vld [vmem:[#allocation7 + $0x6f0] sm:$0xff]
    %v2542 = vld [vmem:[#allocation7 + $0x6f8] sm:$0xff]
    %v2543 = vld [vmem:[#allocation7 + $0x700] sm:$0xff]
    %v2544 = vld [vmem:[#allocation7 + $0x708] sm:$0xff]
    %v2545 = vld [vmem:[#allocation7 + $0x710] sm:$0xff]
    %v2546 = vld [vmem:[#allocation7 + $0x718] sm:$0xff]
    %v2547 = vld [vmem:[#allocation7 + $0x720] sm:$0xff]
    %v2548 = vld [vmem:[#allocation7 + $0x728] sm:$0xff]
    %v2549 = vld [vmem:[#allocation7 + $0x730] sm:$0xff]
    %v2550 = vld [vmem:[#allocation7 + $0x738] sm:$0xff]
    %v2551 = vld [vmem:[#allocation7 + $0x740] sm:$0xff]
    %v2552 = vld [vmem:[#allocation7 + $0x748] sm:$0xff]
    %v2553 = vld [vmem:[#allocation7 + $0x750] sm:$0xff]
    %v2554 = vld [vmem:[#allocation7 + $0x758] sm:$0xff]
    %v2555 = vld [vmem:[#allocation7 + $0x760] sm:$0xff]
    %v2556 = vld [vmem:[#allocation7 + $0x768] sm:$0xff]
    %v2557 = vld [vmem:[#allocation7 + $0x770] sm:$0xff]
    %v2558 = vld [vmem:[#allocation7 + $0x778] sm:$0xff]
    %v2559 = vld [vmem:[#allocation7 + $0x780] sm:$0xff]
    %v2560 = vld [vmem:[#allocation7 + $0x788] sm:$0xff]
    %v2561 = vld [vmem:[#allocation7 + $0x790] sm:$0xff]
    %v2562 = vld [vmem:[#allocation7 + $0x798] sm:$0xff]
    %v2563 = vld [vmem:[#allocation7 + $0x7a0] sm:$0xff]
    %v2564 = vld [vmem:[#allocation7 + $0x7a8] sm:$0xff]
    %v2565 = vld [vmem:[#allocation7 + $0x7b0] sm:$0xff]
    %v2566 = vld [vmem:[#allocation7 + $0x7b8] sm:$0xff]
    %v2567 = vld [vmem:[#allocation7 + $0x7c0] sm:$0xff]
    %v2568 = vld [vmem:[#allocation7 + $0x7c8] sm:$0xff]
    %v2569 = vld [vmem:[#allocation7 + $0x7d0] sm:$0xff]
    %v2570 = vld [vmem:[#allocation7 + $0x7d8] sm:$0xff]
    %v2571 = vld [vmem:[#allocation7 + $0x7e0] sm:$0xff]
    %v2572 = vld [vmem:[#allocation7 + $0x7e8] sm:$0xff]
    %v2573 = vld [vmem:[#allocation7 + $0x7f0] sm:$0xff]
    %v2574 = vld [vmem:[#allocation7 + $0x7f8] sm:$0xff]
    %v2575 = vld [vmem:[#allocation7 + $0x800] sm:$0xff]
    %v2576 = vld [vmem:[#allocation7 + $0x808] sm:$0xff]
    %v2577 = vld [vmem:[#allocation7 + $0x810] sm:$0xff]
    %v2578 = vld [vmem:[#allocation7 + $0x818] sm:$0xff]
    %v2579 = vld [vmem:[#allocation7 + $0x820] sm:$0xff]
    %v2580 = vld [vmem:[#allocation7 + $0x828] sm:$0xff]
    %v2581 = vld [vmem:[#allocation7 + $0x830] sm:$0xff]
    %v2582 = vld [vmem:[#allocation7 + $0x838] sm:$0xff]
    %v2583 = vld [vmem:[#allocation7 + $0x840] sm:$0xff]
    %v2584 = vld [vmem:[#allocation7 + $0x848] sm:$0xff]
    %v2585 = vld [vmem:[#allocation7 + $0x850] sm:$0xff]
    %v2586 = vld [vmem:[#allocation7 + $0x858] sm:$0xff]
    %v2587 = vld [vmem:[#allocation7 + $0x860] sm:$0xff]
    %v2588 = vld [vmem:[#allocation7 + $0x868] sm:$0xff]
    %v2589 = vld [vmem:[#allocation7 + $0x870] sm:$0xff]
    %v2590 = vld [vmem:[#allocation7 + $0x878] sm:$0xff]
    %v2591 = vld [vmem:[#allocation7 + $0x880] sm:$0xff]
    %v2592 = vld [vmem:[#allocation7 + $0x888] sm:$0xff]
    %v2593 = vld [vmem:[#allocation7 + $0x890] sm:$0xff]
    %v2594 = vld [vmem:[#allocation7 + $0x898] sm:$0xff]
    %v2595 = vld [vmem:[#allocation7 + $0x8a0] sm:$0xff]
    %v2596 = vld [vmem:[#allocation7 + $0x8a8] sm:$0xff]
    %v2597 = vld [vmem:[#allocation7 + $0x8b0] sm:$0xff]
    %v2598 = vld [vmem:[#allocation7 + $0x8b8] sm:$0xff]
    %v2599 = vld [vmem:[#allocation7 + $0x8c0] sm:$0xff]
    %v2600 = vld [vmem:[#allocation7 + $0x8c8] sm:$0xff]
    %v2601 = vld [vmem:[#allocation7 + $0x8d0] sm:$0xff]
    %v2602 = vld [vmem:[#allocation7 + $0x8d8] sm:$0xff]
    %v2603 = vld [vmem:[#allocation7 + $0x8e0] sm:$0xff]
    %v2604 = vld [vmem:[#allocation7 + $0x8e8] sm:$0xff]
    %v2605 = vld [vmem:[#allocation7 + $0x8f0] sm:$0xff]
    %v2606 = vld [vmem:[#allocation7 + $0x8f8] sm:$0xff]
    %v2607 = vld [vmem:[#allocation7 + $0x900] sm:$0xff]
    %v2608 = vld [vmem:[#allocation7 + $0x908] sm:$0xff]
    %v2609 = vld [vmem:[#allocation7 + $0x910] sm:$0xff]
    %v2610 = vld [vmem:[#allocation7 + $0x918] sm:$0xff]
    %v2611 = vld [vmem:[#allocation7 + $0x920] sm:$0xff]
    %v2612 = vld [vmem:[#allocation7 + $0x928] sm:$0xff]
    %v2613 = vld [vmem:[#allocation7 + $0x930] sm:$0xff]
    %v2614 = vld [vmem:[#allocation7 + $0x938] sm:$0xff]
    %v2615 = vld [vmem:[#allocation7 + $0x940] sm:$0xff]
    %v2616 = vld [vmem:[#allocation7 + $0x948] sm:$0xff]
    %v2617 = vld [vmem:[#allocation7 + $0x950] sm:$0xff]
    %v2618 = vld [vmem:[#allocation7 + $0x958] sm:$0xff]
    %v2619 = vld [vmem:[#allocation7 + $0x960] sm:$0xff]
    %v2620 = vld [vmem:[#allocation7 + $0x968] sm:$0xff]
    %v2621 = vld [vmem:[#allocation7 + $0x970] sm:$0xff]
    %v2622 = vld [vmem:[#allocation7 + $0x978] sm:$0xff]
    %v2623 = vld [vmem:[#allocation7 + $0x980] sm:$0xff]
    %v2624 = vld [vmem:[#allocation7 + $0x988] sm:$0xff]
    %v2625 = vld [vmem:[#allocation7 + $0x990] sm:$0xff]
    %v2626 = vld [vmem:[#allocation7 + $0x998] sm:$0xff]
    %v2627 = vld [vmem:[#allocation7 + $0x9a0] sm:$0xff]
    %v2628 = vld [vmem:[#allocation7 + $0x9a8] sm:$0xff]
    %v2629 = vld [vmem:[#allocation7 + $0x9b0] sm:$0xff]
    %v2630 = vld [vmem:[#allocation7 + $0x9b8] sm:$0xff]
    %v2631 = vld [vmem:[#allocation7 + $0x9c0] sm:$0xff]
    %v2632 = vld [vmem:[#allocation7 + $0x9c8] sm:$0xff]
    %v2633 = vld [vmem:[#allocation7 + $0x9d0] sm:$0xff]
    %v2634 = vld [vmem:[#allocation7 + $0x9d8] sm:$0xff]
    %v2635 = vld [vmem:[#allocation7 + $0x9e0] sm:$0xff]
    %v2636 = vld [vmem:[#allocation7 + $0x9e8] sm:$0xff]
    %v2637 = vld [vmem:[#allocation7 + $0x9f0] sm:$0xff]
    %v2638 = vld [vmem:[#allocation7 + $0x9f8] sm:$0xff]
    %v2639 = vld [vmem:[#allocation7 + $0xa00] sm:$0xff]
    %v2640 = vld [vmem:[#allocation7 + $0xa08] sm:$0xff]
    %v2641 = vld [vmem:[#allocation7 + $0xa10] sm:$0xff]
    %v2642 = vld [vmem:[#allocation7 + $0xa18] sm:$0xff]
    %v2643 = vld [vmem:[#allocation7 + $0xa20] sm:$0xff]
    %v2644 = vld [vmem:[#allocation7 + $0xa28] sm:$0xff]
    %v2645 = vld [vmem:[#allocation7 + $0xa30] sm:$0xff]
    %v2646 = vld [vmem:[#allocation7 + $0xa38] sm:$0xff]
    %v2647 = vld [vmem:[#allocation7 + $0xa40] sm:$0xff]
    %v2648 = vld [vmem:[#allocation7 + $0xa48] sm:$0xff]
    %v2649 = vld [vmem:[#allocation7 + $0xa50] sm:$0xff]
    %v2650 = vld [vmem:[#allocation7 + $0xa58] sm:$0xff]
    %v2651 = vld [vmem:[#allocation7 + $0xa60] sm:$0xff]
    %v2652 = vld [vmem:[#allocation7 + $0xa68] sm:$0xff]
    %v2653 = vld [vmem:[#allocation7 + $0xa70] sm:$0xff]
    %v2654 = vld [vmem:[#allocation7 + $0xa78] sm:$0xff]
    %v2655 = vld [vmem:[#allocation7 + $0xa80] sm:$0xff]
    %v2656 = vld [vmem:[#allocation7 + $0xa88] sm:$0xff]
    %v2657 = vld [vmem:[#allocation7 + $0xa90] sm:$0xff]
    %v2658 = vld [vmem:[#allocation7 + $0xa98] sm:$0xff]
    %v2659 = vld [vmem:[#allocation7 + $0xaa0] sm:$0xff]
    %v2660 = vld [vmem:[#allocation7 + $0xaa8] sm:$0xff]
    %v2661 = vld [vmem:[#allocation7 + $0xab0] sm:$0xff]
    %v2662 = vld [vmem:[#allocation7 + $0xab8] sm:$0xff]
    %v2663 = vld [vmem:[#allocation7 + $0xac0] sm:$0xff]
    %v2664 = vld [vmem:[#allocation7 + $0xac8] sm:$0xff]
    %v2665 = vld [vmem:[#allocation7 + $0xad0] sm:$0xff]
    %v2666 = vld [vmem:[#allocation7 + $0xad8] sm:$0xff]
    %v2667 = vld [vmem:[#allocation7 + $0xae0] sm:$0xff]
    %v2668 = vld [vmem:[#allocation7 + $0xae8] sm:$0xff]
    %v2669 = vld [vmem:[#allocation7 + $0xaf0] sm:$0xff]
    %v2670 = vld [vmem:[#allocation7 + $0xaf8] sm:$0xff]
    %v2671 = vld [vmem:[#allocation7 + $0xb00] sm:$0xff]
    %v2672 = vld [vmem:[#allocation7 + $0xb08] sm:$0xff]
    %v2673 = vld [vmem:[#allocation7 + $0xb10] sm:$0xff]
    %v2674 = vld [vmem:[#allocation7 + $0xb18] sm:$0xff]
    %v2675 = vld [vmem:[#allocation7 + $0xb20] sm:$0xff]
    %v2676 = vld [vmem:[#allocation7 + $0xb28] sm:$0xff]
    %v2677 = vld [vmem:[#allocation7 + $0xb30] sm:$0xff]
    %v2678 = vld [vmem:[#allocation7 + $0xb38] sm:$0xff]
    %v2679 = vld [vmem:[#allocation7 + $0xb40] sm:$0xff]
    %v2680 = vld [vmem:[#allocation7 + $0xb48] sm:$0xff]
    %v2681 = vld [vmem:[#allocation7 + $0xb50] sm:$0xff]
    %v2682 = vld [vmem:[#allocation7 + $0xb58] sm:$0xff]
    %v2683 = vld [vmem:[#allocation7 + $0xb60] sm:$0xff]
    %v2684 = vld [vmem:[#allocation7 + $0xb68] sm:$0xff]
    %v2685 = vld [vmem:[#allocation7 + $0xb70] sm:$0xff]
    %v2686 = vld [vmem:[#allocation7 + $0xb78] sm:$0xff]
    %v2687 = vld [vmem:[#allocation7 + $0xb80] sm:$0xff]
    %v2688 = vld [vmem:[#allocation7 + $0xb88] sm:$0xff]
    %v2689 = vld [vmem:[#allocation7 + $0xb90] sm:$0xff]
    %v2690 = vld [vmem:[#allocation7 + $0xb98] sm:$0xff]
    %v2691 = vld [vmem:[#allocation7 + $0xba0] sm:$0xff]
    %v2692 = vld [vmem:[#allocation7 + $0xba8] sm:$0xff]
    %v2693 = vld [vmem:[#allocation7 + $0xbb0] sm:$0xff]
    %v2694 = vld [vmem:[#allocation7 + $0xbb8] sm:$0xff]
    %v2695 = vld [vmem:[#allocation7 + $0xbc0] sm:$0xff]
    %v2696 = vld [vmem:[#allocation7 + $0xbc8] sm:$0xff]
    %v2697 = vld [vmem:[#allocation7 + $0xbd0] sm:$0xff]
    %v2698 = vld [vmem:[#allocation7 + $0xbd8] sm:$0xff]
    %v2699 = vld [vmem:[#allocation7 + $0xbe0] sm:$0xff]
    %v2700 = vld [vmem:[#allocation7 + $0xbe8] sm:$0xff]
    %v2701 = vld [vmem:[#allocation7 + $0xbf0] sm:$0xff]
    %v2702 = vld [vmem:[#allocation7 + $0xbf8] sm:$0xff]
    %v2703 = vld [vmem:[#allocation7 + $0xc00] sm:$0xff]
    %v2704 = vld [vmem:[#allocation7 + $0xc08] sm:$0xff]
    %v2705 = vld [vmem:[#allocation7 + $0xc10] sm:$0xff]
    %v2706 = vld [vmem:[#allocation7 + $0xc18] sm:$0xff]
    %v2707 = vld [vmem:[#allocation7 + $0xc20] sm:$0xff]
    %v2708 = vld [vmem:[#allocation7 + $0xc28] sm:$0xff]
    %v2709 = vld [vmem:[#allocation7 + $0xc30] sm:$0xff]
    %v2710 = vld [vmem:[#allocation7 + $0xc38] sm:$0xff]
    %v2711 = vld [vmem:[#allocation7 + $0xc40] sm:$0xff]
    %v2712 = vld [vmem:[#allocation7 + $0xc48] sm:$0xff]
    %v2713 = vld [vmem:[#allocation7 + $0xc50] sm:$0xff]
    %v2714 = vld [vmem:[#allocation7 + $0xc58] sm:$0xff]
    %v2715 = vld [vmem:[#allocation7 + $0xc60] sm:$0xff]
    %v2716 = vld [vmem:[#allocation7 + $0xc68] sm:$0xff]
    %v2717 = vld [vmem:[#allocation7 + $0xc70] sm:$0xff]
    %v2718 = vld [vmem:[#allocation7 + $0xc78] sm:$0xff]
    %v2719 = vld [vmem:[#allocation8] sm:$0xff]
    %v2720 = vld [vmem:[#allocation8 + $0x8] sm:$0x3]
    %v2723 = vlaneseq
    %v2724 = vshrl.u32 %v2723, 7
    %v2725 = vsub.s32 0, %v2724
    %v2726 = vrot.slane %v2719, %v2725
    %v2727 = vlaneseq
    %v2728 = vshrl.u32 %v2727, 7
    %v2729 = vsub.s32 1, %v2728
    %v2730 = vrot.slane %v2719, %v2729
    %v2731 = vlaneseq
    %v2732 = vshrl.u32 %v2731, 7
    %v2733 = vsub.s32 2, %v2732
    %v2734 = vrot.slane %v2719, %v2733
    %v2735 = vlaneseq
    %v2736 = vshrl.u32 %v2735, 7
    %v2737 = vsub.s32 3, %v2736
    %v2738 = vrot.slane %v2719, %v2737
    %v2739 = vlaneseq
    %v2740 = vshrl.u32 %v2739, 7
    %v2741 = vsub.s32 4, %v2740
    %v2742 = vrot.slane %v2719, %v2741
    %v2743 = vlaneseq
    %v2744 = vshrl.u32 %v2743, 7
    %v2745 = vsub.s32 5, %v2744
    %v2746 = vrot.slane %v2719, %v2745
    %v2747 = vlaneseq
    %v2748 = vshrl.u32 %v2747, 7
    %v2749 = vsub.s32 6, %v2748
    %v2750 = vrot.slane %v2719, %v2749
    %v2751 = vlaneseq
    %v2752 = vshrl.u32 %v2751, 7
    %v2753 = vsub.s32 7, %v2752
    %v2754 = vrot.slane %v2719, %v2753
    %v2755 = vlaneseq
    %v2756 = vshrl.u32 %v2755, 7
    %v2757 = vsub.s32 0, %v2756
    %v2758 = vrot.slane %v2720, %v2757
    %v2759 = vlaneseq
    %v2760 = vshrl.u32 %v2759, 7
    %v2761 = vsub.s32 1, %v2760
    %v2762 = vrot.slane %v2720, %v2761
    %v3173 = vunpack.c.l.b16 %v2319
    %v3174 = vunpack.c.h.b16 %v2319
    %v3175 = vunpack.c.l.b16 %v2320
    %v3176 = vunpack.c.h.b16 %v2320
    %v3177 = vunpack.c.l.b16 %v2321
    %v3178 = vunpack.c.h.b16 %v2321
    %v3179 = vunpack.c.l.b16 %v2322
    %v3180 = vunpack.c.h.b16 %v2322
    %v3181 = vunpack.c.l.b16 %v2323
    %v3182 = vunpack.c.h.b16 %v2323
    %v3183 = vunpack.c.l.b16 %v2324
    %v3184 = vunpack.c.h.b16 %v2324
    %v3185 = vunpack.c.l.b16 %v2325
    %v3186 = vunpack.c.h.b16 %v2325
    %v3187 = vunpack.c.l.b16 %v2326
    %v3188 = vunpack.c.h.b16 %v2326
    %v3189 = vunpack.c.l.b16 %v2327
    %v3190 = vunpack.c.h.b16 %v2327
    %v3191 = vunpack.c.l.b16 %v2328
    %v3192 = vunpack.c.h.b16 %v2328
    %v3193 = vunpack.c.l.b16 %v2329
    %v3194 = vunpack.c.h.b16 %v2329
    %v3195 = vunpack.c.l.b16 %v2330
    %v3196 = vunpack.c.h.b16 %v2330
    %v3197 = vunpack.c.l.b16 %v2331
    %v3198 = vunpack.c.h.b16 %v2331
    %v3199 = vunpack.c.l.b16 %v2332
    %v3200 = vunpack.c.h.b16 %v2332
    %v3201 = vunpack.c.l.b16 %v2333
    %v3202 = vunpack.c.h.b16 %v2333
    %v3203 = vunpack.c.l.b16 %v2334
    %v3204 = vunpack.c.h.b16 %v2334
    %v3205 = vunpack.c.l.b16 %v2335
    %v3206 = vunpack.c.h.b16 %v2335
    %v3207 = vunpack.c.l.b16 %v2336
    %v3208 = vunpack.c.h.b16 %v2336
    %v3209 = vunpack.c.l.b16 %v2337
    %v3210 = vunpack.c.h.b16 %v2337
    %v3211 = vunpack.c.l.b16 %v2338
    %v3212 = vunpack.c.h.b16 %v2338
    %v3213 = vunpack.c.l.b16 %v2339
    %v3214 = vunpack.c.h.b16 %v2339
    %v3215 = vunpack.c.l.b16 %v2340
    %v3216 = vunpack.c.h.b16 %v2340
    %v3217 = vunpack.c.l.b16 %v2341
    %v3218 = vunpack.c.h.b16 %v2341
    %v3219 = vunpack.c.l.b16 %v2342
    %v3220 = vunpack.c.h.b16 %v2342
    %v3221 = vunpack.c.l.b16 %v2343
    %v3222 = vunpack.c.h.b16 %v2343
    %v3223 = vunpack.c.l.b16 %v2344
    %v3224 = vunpack.c.h.b16 %v2344
    %v3225 = vunpack.c.l.b16 %v2345
    %v3226 = vunpack.c.h.b16 %v2345
    %v3227 = vunpack.c.l.b16 %v2346
    %v3228 = vunpack.c.h.b16 %v2346
    %v3229 = vunpack.c.l.b16 %v2347
    %v3230 = vunpack.c.h.b16 %v2347
    %v3231 = vunpack.c.l.b16 %v2348
    %v3232 = vunpack.c.h.b16 %v2348
    %v3233 = vunpack.c.l.b16 %v2349
    %v3234 = vunpack.c.h.b16 %v2349
    %v3235 = vunpack.c.l.b16 %v2350
    %v3236 = vunpack.c.h.b16 %v2350
    %v3237 = vunpack.c.l.b16 %v2351
    %v3238 = vunpack.c.h.b16 %v2351
    %v3239 = vunpack.c.l.b16 %v2352
    %v3240 = vunpack.c.h.b16 %v2352
    %v3241 = vunpack.c.l.b16 %v2353
    %v3242 = vunpack.c.h.b16 %v2353
    %v3243 = vunpack.c.l.b16 %v2354
    %v3244 = vunpack.c.h.b16 %v2354
    %v3245 = vunpack.c.l.b16 %v2355
    %v3246 = vunpack.c.h.b16 %v2355
    %v3247 = vunpack.c.l.b16 %v2356
    %v3248 = vunpack.c.h.b16 %v2356
    %v3249 = vunpack.c.l.b16 %v2357
    %v3250 = vunpack.c.h.b16 %v2357
    %v3251 = vunpack.c.l.b16 %v2358
    %v3252 = vunpack.c.h.b16 %v2358
    %v3253 = vunpack.c.l.b16 %v2359
    %v3254 = vunpack.c.h.b16 %v2359
    %v3255 = vunpack.c.l.b16 %v2360
    %v3256 = vunpack.c.h.b16 %v2360
    %v3257 = vunpack.c.l.b16 %v2361
    %v3258 = vunpack.c.h.b16 %v2361
    %v3259 = vunpack.c.l.b16 %v2362
    %v3260 = vunpack.c.h.b16 %v2362
    %v3261 = vunpack.c.l.b16 %v2363
    %v3262 = vunpack.c.h.b16 %v2363
    %v3263 = vunpack.c.l.b16 %v2364
    %v3264 = vunpack.c.h.b16 %v2364
    %v3265 = vunpack.c.l.b16 %v2365
    %v3266 = vunpack.c.h.b16 %v2365
    %v3267 = vunpack.c.l.b16 %v2366
    %v3268 = vunpack.c.h.b16 %v2366
    %v3269 = vunpack.c.l.b16 %v2367
    %v3270 = vunpack.c.h.b16 %v2367
    %v3271 = vunpack.c.l.b16 %v2368
    %v3272 = vunpack.c.h.b16 %v2368
    %v3273 = vunpack.c.l.b16 %v2369
    %v3274 = vunpack.c.h.b16 %v2369
    %v3275 = vunpack.c.l.b16 %v2370
    %v3276 = vunpack.c.h.b16 %v2370
    %v3277 = vunpack.c.l.b16 %v2371
    %v3278 = vunpack.c.h.b16 %v2371
    %v3279 = vunpack.c.l.b16 %v2372
    %v3280 = vunpack.c.h.b16 %v2372
    %v3281 = vunpack.c.l.b16 %v2373
    %v3282 = vunpack.c.h.b16 %v2373
    %v3283 = vunpack.c.l.b16 %v2374
    %v3284 = vunpack.c.h.b16 %v2374
    %v3285 = vunpack.c.l.b16 %v2375
    %v3286 = vunpack.c.h.b16 %v2375
    %v3287 = vunpack.c.l.b16 %v2376
    %v3288 = vunpack.c.h.b16 %v2376
    %v3289 = vunpack.c.l.b16 %v2377
    %v3290 = vunpack.c.h.b16 %v2377
    %v3291 = vunpack.c.l.b16 %v2378
    %v3292 = vunpack.c.h.b16 %v2378
    %v3293 = vunpack.c.l.b16 %v2379
    %v3294 = vunpack.c.h.b16 %v2379
    %v3295 = vunpack.c.l.b16 %v2380
    %v3296 = vunpack.c.h.b16 %v2380
    %v3297 = vunpack.c.l.b16 %v2381
    %v3298 = vunpack.c.h.b16 %v2381
    %v3299 = vunpack.c.l.b16 %v2382
    %v3300 = vunpack.c.h.b16 %v2382
    %v3301 = vunpack.c.l.b16 %v2383
    %v3302 = vunpack.c.h.b16 %v2383
    %v3303 = vunpack.c.l.b16 %v2384
    %v3304 = vunpack.c.h.b16 %v2384
    %v3305 = vunpack.c.l.b16 %v2385
    %v3306 = vunpack.c.h.b16 %v2385
    %v3307 = vunpack.c.l.b16 %v2386
    %v3308 = vunpack.c.h.b16 %v2386
    %v3309 = vunpack.c.l.b16 %v2387
    %v3310 = vunpack.c.h.b16 %v2387
    %v3311 = vunpack.c.l.b16 %v2388
    %v3312 = vunpack.c.h.b16 %v2388
    %v3313 = vunpack.c.l.b16 %v2389
    %v3314 = vunpack.c.h.b16 %v2389
    %v3315 = vunpack.c.l.b16 %v2390
    %v3316 = vunpack.c.h.b16 %v2390
    %v3317 = vunpack.c.l.b16 %v2391
    %v3318 = vunpack.c.h.b16 %v2391
    %v3319 = vunpack.c.l.b16 %v2392
    %v3320 = vunpack.c.h.b16 %v2392
    %v3321 = vunpack.c.l.b16 %v2393
    %v3322 = vunpack.c.h.b16 %v2393
    %v3323 = vunpack.c.l.b16 %v2394
    %v3324 = vunpack.c.h.b16 %v2394
    %v3325 = vunpack.c.l.b16 %v2395
    %v3326 = vunpack.c.h.b16 %v2395
    %v3327 = vunpack.c.l.b16 %v2396
    %v3328 = vunpack.c.h.b16 %v2396
    %v3329 = vunpack.c.l.b16 %v2397
    %v3330 = vunpack.c.h.b16 %v2397
    %v3331 = vunpack.c.l.b16 %v2398
    %v3332 = vunpack.c.h.b16 %v2398
    %v3333 = vunpack.c.l.b16 %v2399
    %v3334 = vunpack.c.h.b16 %v2399
    %v3335 = vunpack.c.l.b16 %v2400
    %v3336 = vunpack.c.h.b16 %v2400
    %v3337 = vunpack.c.l.b16 %v2401
    %v3338 = vunpack.c.h.b16 %v2401
    %v3339 = vunpack.c.l.b16 %v2402
    %v3340 = vunpack.c.h.b16 %v2402
    %v3341 = vunpack.c.l.b16 %v2403
    %v3342 = vunpack.c.h.b16 %v2403
    %v3343 = vunpack.c.l.b16 %v2404
    %v3344 = vunpack.c.h.b16 %v2404
    %v3345 = vunpack.c.l.b16 %v2405
    %v3346 = vunpack.c.h.b16 %v2405
    %v3347 = vunpack.c.l.b16 %v2406
    %v3348 = vunpack.c.h.b16 %v2406
    %v3349 = vunpack.c.l.b16 %v2407
    %v3350 = vunpack.c.h.b16 %v2407
    %v3351 = vunpack.c.l.b16 %v2408
    %v3352 = vunpack.c.h.b16 %v2408
    %v3353 = vunpack.c.l.b16 %v2409
    %v3354 = vunpack.c.h.b16 %v2409
    %v3355 = vunpack.c.l.b16 %v2410
    %v3356 = vunpack.c.h.b16 %v2410
    %v3357 = vunpack.c.l.b16 %v2411
    %v3358 = vunpack.c.h.b16 %v2411
    %v3359 = vunpack.c.l.b16 %v2412
    %v3360 = vunpack.c.h.b16 %v2412
    %v3361 = vunpack.c.l.b16 %v2413
    %v3362 = vunpack.c.h.b16 %v2413
    %v3363 = vunpack.c.l.b16 %v2414
    %v3364 = vunpack.c.h.b16 %v2414
    %v3365 = vunpack.c.l.b16 %v2415
    %v3366 = vunpack.c.h.b16 %v2415
    %v3367 = vunpack.c.l.b16 %v2416
    %v3368 = vunpack.c.h.b16 %v2416
    %v3369 = vunpack.c.l.b16 %v2417
    %v3370 = vunpack.c.h.b16 %v2417
    %v3371 = vunpack.c.l.b16 %v2418
    %v3372 = vunpack.c.h.b16 %v2418
    %v3373 = vunpack.c.l.b16 %v2419
    %v3374 = vunpack.c.h.b16 %v2419
    %v3375 = vunpack.c.l.b16 %v2420
    %v3376 = vunpack.c.h.b16 %v2420
    %v3377 = vunpack.c.l.b16 %v2421
    %v3378 = vunpack.c.h.b16 %v2421
    %v3379 = vunpack.c.l.b16 %v2422
    %v3380 = vunpack.c.h.b16 %v2422
    %v3381 = vunpack.c.l.b16 %v2423
    %v3382 = vunpack.c.h.b16 %v2423
    %v3383 = vunpack.c.l.b16 %v2424
    %v3384 = vunpack.c.h.b16 %v2424
    %v3385 = vunpack.c.l.b16 %v2425
    %v3386 = vunpack.c.h.b16 %v2425
    %v3387 = vunpack.c.l.b16 %v2426
    %v3388 = vunpack.c.h.b16 %v2426
    %v3389 = vunpack.c.l.b16 %v2427
    %v3390 = vunpack.c.h.b16 %v2427
    %v3391 = vunpack.c.l.b16 %v2428
    %v3392 = vunpack.c.h.b16 %v2428
    %v3393 = vunpack.c.l.b16 %v2429
    %v3394 = vunpack.c.h.b16 %v2429
    %v3395 = vunpack.c.l.b16 %v2430
    %v3396 = vunpack.c.h.b16 %v2430
    %v3397 = vunpack.c.l.b16 %v2431
    %v3398 = vunpack.c.h.b16 %v2431
    %v3399 = vunpack.c.l.b16 %v2432
    %v3400 = vunpack.c.h.b16 %v2432
    %v3401 = vunpack.c.l.b16 %v2433
    %v3402 = vunpack.c.h.b16 %v2433
    %v3403 = vunpack.c.l.b16 %v2434
    %v3404 = vunpack.c.h.b16 %v2434
    %v3405 = vunpack.c.l.b16 %v2435
    %v3406 = vunpack.c.h.b16 %v2435
    %v3407 = vunpack.c.l.b16 %v2436
    %v3408 = vunpack.c.h.b16 %v2436
    %v3409 = vunpack.c.l.b16 %v2437
    %v3410 = vunpack.c.h.b16 %v2437
    %v3411 = vunpack.c.l.b16 %v2438
    %v3412 = vunpack.c.h.b16 %v2438
    %v3413 = vunpack.c.l.b16 %v2439
    %v3414 = vunpack.c.h.b16 %v2439
    %v3415 = vunpack.c.l.b16 %v2440
    %v3416 = vunpack.c.h.b16 %v2440
    %v3417 = vunpack.c.l.b16 %v2441
    %v3418 = vunpack.c.h.b16 %v2441
    %v3419 = vunpack.c.l.b16 %v2442
    %v3420 = vunpack.c.h.b16 %v2442
    %v3421 = vunpack.c.l.b16 %v2443
    %v3422 = vunpack.c.h.b16 %v2443
    %v3423 = vunpack.c.l.b16 %v2444
    %v3424 = vunpack.c.h.b16 %v2444
    %v3425 = vunpack.c.l.b16 %v2445
    %v3426 = vunpack.c.h.b16 %v2445
    %v3427 = vunpack.c.l.b16 %v2446
    %v3428 = vunpack.c.h.b16 %v2446
    %v3429 = vunpack.c.l.b16 %v2447
    %v3430 = vunpack.c.h.b16 %v2447
    %v3431 = vunpack.c.l.b16 %v2448
    %v3432 = vunpack.c.h.b16 %v2448
    %v3433 = vunpack.c.l.b16 %v2449
    %v3434 = vunpack.c.h.b16 %v2449
    %v3435 = vunpack.c.l.b16 %v2450
    %v3436 = vunpack.c.h.b16 %v2450
    %v3437 = vunpack.c.l.b16 %v2451
    %v3438 = vunpack.c.h.b16 %v2451
    %v3439 = vunpack.c.l.b16 %v2452
    %v3440 = vunpack.c.h.b16 %v2452
    %v3441 = vunpack.c.l.b16 %v2453
    %v3442 = vunpack.c.h.b16 %v2453
    %v3443 = vunpack.c.l.b16 %v2454
    %v3444 = vunpack.c.h.b16 %v2454
    %v3445 = vunpack.c.l.b16 %v2455
    %v3446 = vunpack.c.h.b16 %v2455
    %v3447 = vunpack.c.l.b16 %v2456
    %v3448 = vunpack.c.h.b16 %v2456
    %v3449 = vunpack.c.l.b16 %v2457
    %v3450 = vunpack.c.h.b16 %v2457
    %v3451 = vunpack.c.l.b16 %v2458
    %v3452 = vunpack.c.h.b16 %v2458
    %v3453 = vunpack.c.l.b16 %v2459
    %v3454 = vunpack.c.h.b16 %v2459
    %v3455 = vunpack.c.l.b16 %v2460
    %v3456 = vunpack.c.h.b16 %v2460
    %v3457 = vunpack.c.l.b16 %v2461
    %v3458 = vunpack.c.h.b16 %v2461
    %v3459 = vunpack.c.l.b16 %v2462
    %v3460 = vunpack.c.h.b16 %v2462
    %v3461 = vunpack.c.l.b16 %v2463
    %v3462 = vunpack.c.h.b16 %v2463
    %v3463 = vunpack.c.l.b16 %v2464
    %v3464 = vunpack.c.h.b16 %v2464
    %v3465 = vunpack.c.l.b16 %v2465
    %v3466 = vunpack.c.h.b16 %v2465
    %v3467 = vunpack.c.l.b16 %v2466
    %v3468 = vunpack.c.h.b16 %v2466
    %v3469 = vunpack.c.l.b16 %v2467
    %v3470 = vunpack.c.h.b16 %v2467
    %v3471 = vunpack.c.l.b16 %v2468
    %v3472 = vunpack.c.h.b16 %v2468
    %v3473 = vunpack.c.l.b16 %v2469
    %v3474 = vunpack.c.h.b16 %v2469
    %v3475 = vunpack.c.l.b16 %v2470
    %v3476 = vunpack.c.h.b16 %v2470
    %v3477 = vunpack.c.l.b16 %v2471
    %v3478 = vunpack.c.h.b16 %v2471
    %v3479 = vunpack.c.l.b16 %v2472
    %v3480 = vunpack.c.h.b16 %v2472
    %v3481 = vunpack.c.l.b16 %v2473
    %v3482 = vunpack.c.h.b16 %v2473
    %v3483 = vunpack.c.l.b16 %v2474
    %v3484 = vunpack.c.h.b16 %v2474
    %v3485 = vunpack.c.l.b16 %v2475
    %v3486 = vunpack.c.h.b16 %v2475
    %v3487 = vunpack.c.l.b16 %v2476
    %v3488 = vunpack.c.h.b16 %v2476
    %v3489 = vunpack.c.l.b16 %v2477
    %v3490 = vunpack.c.h.b16 %v2477
    %v3491 = vunpack.c.l.b16 %v2478
    %v3492 = vunpack.c.h.b16 %v2478
    %v3493 = vunpack.c.l.b16 %v2479
    %v3494 = vunpack.c.h.b16 %v2479
    %v3495 = vunpack.c.l.b16 %v2480
    %v3496 = vunpack.c.h.b16 %v2480
    %v3497 = vunpack.c.l.b16 %v2481
    %v3498 = vunpack.c.h.b16 %v2481
    %v3499 = vunpack.c.l.b16 %v2482
    %v3500 = vunpack.c.h.b16 %v2482
    %v3501 = vunpack.c.l.b16 %v2483
    %v3502 = vunpack.c.h.b16 %v2483
    %v3503 = vunpack.c.l.b16 %v2484
    %v3504 = vunpack.c.h.b16 %v2484
    %v3505 = vunpack.c.l.b16 %v2485
    %v3506 = vunpack.c.h.b16 %v2485
    %v3507 = vunpack.c.l.b16 %v2486
    %v3508 = vunpack.c.h.b16 %v2486
    %v3509 = vunpack.c.l.b16 %v2487
    %v3510 = vunpack.c.h.b16 %v2487
    %v3511 = vunpack.c.l.b16 %v2488
    %v3512 = vunpack.c.h.b16 %v2488
    %v3513 = vunpack.c.l.b16 %v2489
    %v3514 = vunpack.c.h.b16 %v2489
    %v3515 = vunpack.c.l.b16 %v2490
    %v3516 = vunpack.c.h.b16 %v2490
    %v3517 = vunpack.c.l.b16 %v2491
    %v3518 = vunpack.c.h.b16 %v2491
    %v3519 = vunpack.c.l.b16 %v2492
    %v3520 = vunpack.c.h.b16 %v2492
    %v3521 = vunpack.c.l.b16 %v2493
    %v3522 = vunpack.c.h.b16 %v2493
    %v3523 = vunpack.c.l.b16 %v2494
    %v3524 = vunpack.c.h.b16 %v2494
    %v3525 = vunpack.c.l.b16 %v2495
    %v3526 = vunpack.c.h.b16 %v2495
    %v3527 = vunpack.c.l.b16 %v2496
    %v3528 = vunpack.c.h.b16 %v2496
    %v3529 = vunpack.c.l.b16 %v2497
    %v3530 = vunpack.c.h.b16 %v2497
    %v3531 = vunpack.c.l.b16 %v2498
    %v3532 = vunpack.c.h.b16 %v2498
    %v3533 = vunpack.c.l.b16 %v2499
    %v3534 = vunpack.c.h.b16 %v2499
    %v3535 = vunpack.c.l.b16 %v2500
    %v3536 = vunpack.c.h.b16 %v2500
    %v3537 = vunpack.c.l.b16 %v2501
    %v3538 = vunpack.c.h.b16 %v2501
    %v3539 = vunpack.c.l.b16 %v2502
    %v3540 = vunpack.c.h.b16 %v2502
    %v3541 = vunpack.c.l.b16 %v2503
    %v3542 = vunpack.c.h.b16 %v2503
    %v3543 = vunpack.c.l.b16 %v2504
    %v3544 = vunpack.c.h.b16 %v2504
    %v3545 = vunpack.c.l.b16 %v2505
    %v3546 = vunpack.c.h.b16 %v2505
    %v3547 = vunpack.c.l.b16 %v2506
    %v3548 = vunpack.c.h.b16 %v2506
    %v3549 = vunpack.c.l.b16 %v2507
    %v3550 = vunpack.c.h.b16 %v2507
    %v3551 = vunpack.c.l.b16 %v2508
    %v3552 = vunpack.c.h.b16 %v2508
    %v3553 = vunpack.c.l.b16 %v2509
    %v3554 = vunpack.c.h.b16 %v2509
    %v3555 = vunpack.c.l.b16 %v2510
    %v3556 = vunpack.c.h.b16 %v2510
    %v3557 = vunpack.c.l.b16 %v2511
    %v3558 = vunpack.c.h.b16 %v2511
    %v3559 = vunpack.c.l.b16 %v2512
    %v3560 = vunpack.c.h.b16 %v2512
    %v3561 = vunpack.c.l.b16 %v2513
    %v3562 = vunpack.c.h.b16 %v2513
    %v3563 = vunpack.c.l.b16 %v2514
    %v3564 = vunpack.c.h.b16 %v2514
    %v3565 = vunpack.c.l.b16 %v2515
    %v3566 = vunpack.c.h.b16 %v2515
    %v3567 = vunpack.c.l.b16 %v2516
    %v3568 = vunpack.c.h.b16 %v2516
    %v3569 = vunpack.c.l.b16 %v2517
    %v3570 = vunpack.c.h.b16 %v2517
    %v3571 = vunpack.c.l.b16 %v2518
    %v3572 = vunpack.c.h.b16 %v2518
    %v3573 = vunpack.c.l.b16 %v2519
    %v3574 = vunpack.c.h.b16 %v2519
    %v3575 = vunpack.c.l.b16 %v2520
    %v3576 = vunpack.c.h.b16 %v2520
    %v3577 = vunpack.c.l.b16 %v2521
    %v3578 = vunpack.c.h.b16 %v2521
    %v3579 = vunpack.c.l.b16 %v2522
    %v3580 = vunpack.c.h.b16 %v2522
    %v3581 = vunpack.c.l.b16 %v2523
    %v3582 = vunpack.c.h.b16 %v2523
    %v3583 = vunpack.c.l.b16 %v2524
    %v3584 = vunpack.c.h.b16 %v2524
    %v3585 = vunpack.c.l.b16 %v2525
    %v3586 = vunpack.c.h.b16 %v2525
    %v3587 = vunpack.c.l.b16 %v2526
    %v3588 = vunpack.c.h.b16 %v2526
    %v3589 = vunpack.c.l.b16 %v2527
    %v3590 = vunpack.c.h.b16 %v2527
    %v3591 = vunpack.c.l.b16 %v2528
    %v3592 = vunpack.c.h.b16 %v2528
    %v3593 = vunpack.c.l.b16 %v2529
    %v3594 = vunpack.c.h.b16 %v2529
    %v3595 = vunpack.c.l.b16 %v2530
    %v3596 = vunpack.c.h.b16 %v2530
    %v3597 = vunpack.c.l.b16 %v2531
    %v3598 = vunpack.c.h.b16 %v2531
    %v3599 = vunpack.c.l.b16 %v2532
    %v3600 = vunpack.c.h.b16 %v2532
    %v3601 = vunpack.c.l.b16 %v2533
    %v3602 = vunpack.c.h.b16 %v2533
    %v3603 = vunpack.c.l.b16 %v2534
    %v3604 = vunpack.c.h.b16 %v2534
    %v3605 = vunpack.c.l.b16 %v2535
    %v3606 = vunpack.c.h.b16 %v2535
    %v3607 = vunpack.c.l.b16 %v2536
    %v3608 = vunpack.c.h.b16 %v2536
    %v3609 = vunpack.c.l.b16 %v2537
    %v3610 = vunpack.c.h.b16 %v2537
    %v3611 = vunpack.c.l.b16 %v2538
    %v3612 = vunpack.c.h.b16 %v2538
    %v3613 = vunpack.c.l.b16 %v2539
    %v3614 = vunpack.c.h.b16 %v2539
    %v3615 = vunpack.c.l.b16 %v2540
    %v3616 = vunpack.c.h.b16 %v2540
    %v3617 = vunpack.c.l.b16 %v2541
    %v3618 = vunpack.c.h.b16 %v2541
    %v3619 = vunpack.c.l.b16 %v2542
    %v3620 = vunpack.c.h.b16 %v2542
    %v3621 = vunpack.c.l.b16 %v2543
    %v3622 = vunpack.c.h.b16 %v2543
    %v3623 = vunpack.c.l.b16 %v2544
    %v3624 = vunpack.c.h.b16 %v2544
    %v3625 = vunpack.c.l.b16 %v2545
    %v3626 = vunpack.c.h.b16 %v2545
    %v3627 = vunpack.c.l.b16 %v2546
    %v3628 = vunpack.c.h.b16 %v2546
    %v3629 = vunpack.c.l.b16 %v2547
    %v3630 = vunpack.c.h.b16 %v2547
    %v3631 = vunpack.c.l.b16 %v2548
    %v3632 = vunpack.c.h.b16 %v2548
    %v3633 = vunpack.c.l.b16 %v2549
    %v3634 = vunpack.c.h.b16 %v2549
    %v3635 = vunpack.c.l.b16 %v2550
    %v3636 = vunpack.c.h.b16 %v2550
    %v3637 = vunpack.c.l.b16 %v2551
    %v3638 = vunpack.c.h.b16 %v2551
    %v3639 = vunpack.c.l.b16 %v2552
    %v3640 = vunpack.c.h.b16 %v2552
    %v3641 = vunpack.c.l.b16 %v2553
    %v3642 = vunpack.c.h.b16 %v2553
    %v3643 = vunpack.c.l.b16 %v2554
    %v3644 = vunpack.c.h.b16 %v2554
    %v3645 = vunpack.c.l.b16 %v2555
    %v3646 = vunpack.c.h.b16 %v2555
    %v3647 = vunpack.c.l.b16 %v2556
    %v3648 = vunpack.c.h.b16 %v2556
    %v3649 = vunpack.c.l.b16 %v2557
    %v3650 = vunpack.c.h.b16 %v2557
    %v3651 = vunpack.c.l.b16 %v2558
    %v3652 = vunpack.c.h.b16 %v2558
    %v3653 = vunpack.c.l.b16 %v2559
    %v3654 = vunpack.c.h.b16 %v2559
    %v3655 = vunpack.c.l.b16 %v2560
    %v3656 = vunpack.c.h.b16 %v2560
    %v3657 = vunpack.c.l.b16 %v2561
    %v3658 = vunpack.c.h.b16 %v2561
    %v3659 = vunpack.c.l.b16 %v2562
    %v3660 = vunpack.c.h.b16 %v2562
    %v3661 = vunpack.c.l.b16 %v2563
    %v3662 = vunpack.c.h.b16 %v2563
    %v3663 = vunpack.c.l.b16 %v2564
    %v3664 = vunpack.c.h.b16 %v2564
    %v3665 = vunpack.c.l.b16 %v2565
    %v3666 = vunpack.c.h.b16 %v2565
    %v3667 = vunpack.c.l.b16 %v2566
    %v3668 = vunpack.c.h.b16 %v2566
    %v3669 = vunpack.c.l.b16 %v2567
    %v3670 = vunpack.c.h.b16 %v2567
    %v3671 = vunpack.c.l.b16 %v2568
    %v3672 = vunpack.c.h.b16 %v2568
    %v3673 = vunpack.c.l.b16 %v2569
    %v3674 = vunpack.c.h.b16 %v2569
    %v3675 = vunpack.c.l.b16 %v2570
    %v3676 = vunpack.c.h.b16 %v2570
    %v3677 = vunpack.c.l.b16 %v2571
    %v3678 = vunpack.c.h.b16 %v2571
    %v3679 = vunpack.c.l.b16 %v2572
    %v3680 = vunpack.c.h.b16 %v2572
    %v3681 = vunpack.c.l.b16 %v2573
    %v3682 = vunpack.c.h.b16 %v2573
    %v3683 = vunpack.c.l.b16 %v2574
    %v3684 = vunpack.c.h.b16 %v2574
    %v3685 = vunpack.c.l.b16 %v2575
    %v3686 = vunpack.c.h.b16 %v2575
    %v3687 = vunpack.c.l.b16 %v2576
    %v3688 = vunpack.c.h.b16 %v2576
    %v3689 = vunpack.c.l.b16 %v2577
    %v3690 = vunpack.c.h.b16 %v2577
    %v3691 = vunpack.c.l.b16 %v2578
    %v3692 = vunpack.c.h.b16 %v2578
    %v3693 = vunpack.c.l.b16 %v2579
    %v3694 = vunpack.c.h.b16 %v2579
    %v3695 = vunpack.c.l.b16 %v2580
    %v3696 = vunpack.c.h.b16 %v2580
    %v3697 = vunpack.c.l.b16 %v2581
    %v3698 = vunpack.c.h.b16 %v2581
    %v3699 = vunpack.c.l.b16 %v2582
    %v3700 = vunpack.c.h.b16 %v2582
    %v3701 = vunpack.c.l.b16 %v2583
    %v3702 = vunpack.c.h.b16 %v2583
    %v3703 = vunpack.c.l.b16 %v2584
    %v3704 = vunpack.c.h.b16 %v2584
    %v3705 = vunpack.c.l.b16 %v2585
    %v3706 = vunpack.c.h.b16 %v2585
    %v3707 = vunpack.c.l.b16 %v2586
    %v3708 = vunpack.c.h.b16 %v2586
    %v3709 = vunpack.c.l.b16 %v2587
    %v3710 = vunpack.c.h.b16 %v2587
    %v3711 = vunpack.c.l.b16 %v2588
    %v3712 = vunpack.c.h.b16 %v2588
    %v3713 = vunpack.c.l.b16 %v2589
    %v3714 = vunpack.c.h.b16 %v2589
    %v3715 = vunpack.c.l.b16 %v2590
    %v3716 = vunpack.c.h.b16 %v2590
    %v3717 = vunpack.c.l.b16 %v2591
    %v3718 = vunpack.c.h.b16 %v2591
    %v3719 = vunpack.c.l.b16 %v2592
    %v3720 = vunpack.c.h.b16 %v2592
    %v3721 = vunpack.c.l.b16 %v2593
    %v3722 = vunpack.c.h.b16 %v2593
    %v3723 = vunpack.c.l.b16 %v2594
    %v3724 = vunpack.c.h.b16 %v2594
    %v3725 = vunpack.c.l.b16 %v2595
    %v3726 = vunpack.c.h.b16 %v2595
    %v3727 = vunpack.c.l.b16 %v2596
    %v3728 = vunpack.c.h.b16 %v2596
    %v3729 = vunpack.c.l.b16 %v2597
    %v3730 = vunpack.c.h.b16 %v2597
    %v3731 = vunpack.c.l.b16 %v2598
    %v3732 = vunpack.c.h.b16 %v2598
    %v3733 = vunpack.c.l.b16 %v2599
    %v3734 = vunpack.c.h.b16 %v2599
    %v3735 = vunpack.c.l.b16 %v2600
    %v3736 = vunpack.c.h.b16 %v2600
    %v3737 = vunpack.c.l.b16 %v2601
    %v3738 = vunpack.c.h.b16 %v2601
    %v3739 = vunpack.c.l.b16 %v2602
    %v3740 = vunpack.c.h.b16 %v2602
    %v3741 = vunpack.c.l.b16 %v2603
    %v3742 = vunpack.c.h.b16 %v2603
    %v3743 = vunpack.c.l.b16 %v2604
    %v3744 = vunpack.c.h.b16 %v2604
    %v3745 = vunpack.c.l.b16 %v2605
    %v3746 = vunpack.c.h.b16 %v2605
    %v3747 = vunpack.c.l.b16 %v2606
    %v3748 = vunpack.c.h.b16 %v2606
    %v3749 = vunpack.c.l.b16 %v2607
    %v3750 = vunpack.c.h.b16 %v2607
    %v3751 = vunpack.c.l.b16 %v2608
    %v3752 = vunpack.c.h.b16 %v2608
    %v3753 = vunpack.c.l.b16 %v2609
    %v3754 = vunpack.c.h.b16 %v2609
    %v3755 = vunpack.c.l.b16 %v2610
    %v3756 = vunpack.c.h.b16 %v2610
    %v3757 = vunpack.c.l.b16 %v2611
    %v3758 = vunpack.c.h.b16 %v2611
    %v3759 = vunpack.c.l.b16 %v2612
    %v3760 = vunpack.c.h.b16 %v2612
    %v3761 = vunpack.c.l.b16 %v2613
    %v3762 = vunpack.c.h.b16 %v2613
    %v3763 = vunpack.c.l.b16 %v2614
    %v3764 = vunpack.c.h.b16 %v2614
    %v3765 = vunpack.c.l.b16 %v2615
    %v3766 = vunpack.c.h.b16 %v2615
    %v3767 = vunpack.c.l.b16 %v2616
    %v3768 = vunpack.c.h.b16 %v2616
    %v3769 = vunpack.c.l.b16 %v2617
    %v3770 = vunpack.c.h.b16 %v2617
    %v3771 = vunpack.c.l.b16 %v2618
    %v3772 = vunpack.c.h.b16 %v2618
    %v3773 = vunpack.c.l.b16 %v2619
    %v3774 = vunpack.c.h.b16 %v2619
    %v3775 = vunpack.c.l.b16 %v2620
    %v3776 = vunpack.c.h.b16 %v2620
    %v3777 = vunpack.c.l.b16 %v2621
    %v3778 = vunpack.c.h.b16 %v2621
    %v3779 = vunpack.c.l.b16 %v2622
    %v3780 = vunpack.c.h.b16 %v2622
    %v3781 = vunpack.c.l.b16 %v2623
    %v3782 = vunpack.c.h.b16 %v2623
    %v3783 = vunpack.c.l.b16 %v2624
    %v3784 = vunpack.c.h.b16 %v2624
    %v3785 = vunpack.c.l.b16 %v2625
    %v3786 = vunpack.c.h.b16 %v2625
    %v3787 = vunpack.c.l.b16 %v2626
    %v3788 = vunpack.c.h.b16 %v2626
    %v3789 = vunpack.c.l.b16 %v2627
    %v3790 = vunpack.c.h.b16 %v2627
    %v3791 = vunpack.c.l.b16 %v2628
    %v3792 = vunpack.c.h.b16 %v2628
    %v3793 = vunpack.c.l.b16 %v2629
    %v3794 = vunpack.c.h.b16 %v2629
    %v3795 = vunpack.c.l.b16 %v2630
    %v3796 = vunpack.c.h.b16 %v2630
    %v3797 = vunpack.c.l.b16 %v2631
    %v3798 = vunpack.c.h.b16 %v2631
    %v3799 = vunpack.c.l.b16 %v2632
    %v3800 = vunpack.c.h.b16 %v2632
    %v3801 = vunpack.c.l.b16 %v2633
    %v3802 = vunpack.c.h.b16 %v2633
    %v3803 = vunpack.c.l.b16 %v2634
    %v3804 = vunpack.c.h.b16 %v2634
    %v3805 = vunpack.c.l.b16 %v2635
    %v3806 = vunpack.c.h.b16 %v2635
    %v3807 = vunpack.c.l.b16 %v2636
    %v3808 = vunpack.c.h.b16 %v2636
    %v3809 = vunpack.c.l.b16 %v2637
    %v3810 = vunpack.c.h.b16 %v2637
    %v3811 = vunpack.c.l.b16 %v2638
    %v3812 = vunpack.c.h.b16 %v2638
    %v3813 = vunpack.c.l.b16 %v2639
    %v3814 = vunpack.c.h.b16 %v2639
    %v3815 = vunpack.c.l.b16 %v2640
    %v3816 = vunpack.c.h.b16 %v2640
    %v3817 = vunpack.c.l.b16 %v2641
    %v3818 = vunpack.c.h.b16 %v2641
    %v3819 = vunpack.c.l.b16 %v2642
    %v3820 = vunpack.c.h.b16 %v2642
    %v3821 = vunpack.c.l.b16 %v2643
    %v3822 = vunpack.c.h.b16 %v2643
    %v3823 = vunpack.c.l.b16 %v2644
    %v3824 = vunpack.c.h.b16 %v2644
    %v3825 = vunpack.c.l.b16 %v2645
    %v3826 = vunpack.c.h.b16 %v2645
    %v3827 = vunpack.c.l.b16 %v2646
    %v3828 = vunpack.c.h.b16 %v2646
    %v3829 = vunpack.c.l.b16 %v2647
    %v3830 = vunpack.c.h.b16 %v2647
    %v3831 = vunpack.c.l.b16 %v2648
    %v3832 = vunpack.c.h.b16 %v2648
    %v3833 = vunpack.c.l.b16 %v2649
    %v3834 = vunpack.c.h.b16 %v2649
    %v3835 = vunpack.c.l.b16 %v2650
    %v3836 = vunpack.c.h.b16 %v2650
    %v3837 = vunpack.c.l.b16 %v2651
    %v3838 = vunpack.c.h.b16 %v2651
    %v3839 = vunpack.c.l.b16 %v2652
    %v3840 = vunpack.c.h.b16 %v2652
    %v3841 = vunpack.c.l.b16 %v2653
    %v3842 = vunpack.c.h.b16 %v2653
    %v3843 = vunpack.c.l.b16 %v2654
    %v3844 = vunpack.c.h.b16 %v2654
    %v3845 = vunpack.c.l.b16 %v2655
    %v3846 = vunpack.c.h.b16 %v2655
    %v3847 = vunpack.c.l.b16 %v2656
    %v3848 = vunpack.c.h.b16 %v2656
    %v3849 = vunpack.c.l.b16 %v2657
    %v3850 = vunpack.c.h.b16 %v2657
    %v3851 = vunpack.c.l.b16 %v2658
    %v3852 = vunpack.c.h.b16 %v2658
    %v3853 = vunpack.c.l.b16 %v2659
    %v3854 = vunpack.c.h.b16 %v2659
    %v3855 = vunpack.c.l.b16 %v2660
    %v3856 = vunpack.c.h.b16 %v2660
    %v3857 = vunpack.c.l.b16 %v2661
    %v3858 = vunpack.c.h.b16 %v2661
    %v3859 = vunpack.c.l.b16 %v2662
    %v3860 = vunpack.c.h.b16 %v2662
    %v3861 = vunpack.c.l.b16 %v2663
    %v3862 = vunpack.c.h.b16 %v2663
    %v3863 = vunpack.c.l.b16 %v2664
    %v3864 = vunpack.c.h.b16 %v2664
    %v3865 = vunpack.c.l.b16 %v2665
    %v3866 = vunpack.c.h.b16 %v2665
    %v3867 = vunpack.c.l.b16 %v2666
    %v3868 = vunpack.c.h.b16 %v2666
    %v3869 = vunpack.c.l.b16 %v2667
    %v3870 = vunpack.c.h.b16 %v2667
    %v3871 = vunpack.c.l.b16 %v2668
    %v3872 = vunpack.c.h.b16 %v2668
    %v3873 = vunpack.c.l.b16 %v2669
    %v3874 = vunpack.c.h.b16 %v2669
    %v3875 = vunpack.c.l.b16 %v2670
    %v3876 = vunpack.c.h.b16 %v2670
    %v3877 = vunpack.c.l.b16 %v2671
    %v3878 = vunpack.c.h.b16 %v2671
    %v3879 = vunpack.c.l.b16 %v2672
    %v3880 = vunpack.c.h.b16 %v2672
    %v3881 = vunpack.c.l.b16 %v2673
    %v3882 = vunpack.c.h.b16 %v2673
    %v3883 = vunpack.c.l.b16 %v2674
    %v3884 = vunpack.c.h.b16 %v2674
    %v3885 = vunpack.c.l.b16 %v2675
    %v3886 = vunpack.c.h.b16 %v2675
    %v3887 = vunpack.c.l.b16 %v2676
    %v3888 = vunpack.c.h.b16 %v2676
    %v3889 = vunpack.c.l.b16 %v2677
    %v3890 = vunpack.c.h.b16 %v2677
    %v3891 = vunpack.c.l.b16 %v2678
    %v3892 = vunpack.c.h.b16 %v2678
    %v3893 = vunpack.c.l.b16 %v2679
    %v3894 = vunpack.c.h.b16 %v2679
    %v3895 = vunpack.c.l.b16 %v2680
    %v3896 = vunpack.c.h.b16 %v2680
    %v3897 = vunpack.c.l.b16 %v2681
    %v3898 = vunpack.c.h.b16 %v2681
    %v3899 = vunpack.c.l.b16 %v2682
    %v3900 = vunpack.c.h.b16 %v2682
    %v3901 = vunpack.c.l.b16 %v2683
    %v3902 = vunpack.c.h.b16 %v2683
    %v3903 = vunpack.c.l.b16 %v2684
    %v3904 = vunpack.c.h.b16 %v2684
    %v3905 = vunpack.c.l.b16 %v2685
    %v3906 = vunpack.c.h.b16 %v2685
    %v3907 = vunpack.c.l.b16 %v2686
    %v3908 = vunpack.c.h.b16 %v2686
    %v3909 = vunpack.c.l.b16 %v2687
    %v3910 = vunpack.c.h.b16 %v2687
    %v3911 = vunpack.c.l.b16 %v2688
    %v3912 = vunpack.c.h.b16 %v2688
    %v3913 = vunpack.c.l.b16 %v2689
    %v3914 = vunpack.c.h.b16 %v2689
    %v3915 = vunpack.c.l.b16 %v2690
    %v3916 = vunpack.c.h.b16 %v2690
    %v3917 = vunpack.c.l.b16 %v2691
    %v3918 = vunpack.c.h.b16 %v2691
    %v3919 = vunpack.c.l.b16 %v2692
    %v3920 = vunpack.c.h.b16 %v2692
    %v3921 = vunpack.c.l.b16 %v2693
    %v3922 = vunpack.c.h.b16 %v2693
    %v3923 = vunpack.c.l.b16 %v2694
    %v3924 = vunpack.c.h.b16 %v2694
    %v3925 = vunpack.c.l.b16 %v2695
    %v3926 = vunpack.c.h.b16 %v2695
    %v3927 = vunpack.c.l.b16 %v2696
    %v3928 = vunpack.c.h.b16 %v2696
    %v3929 = vunpack.c.l.b16 %v2697
    %v3930 = vunpack.c.h.b16 %v2697
    %v3931 = vunpack.c.l.b16 %v2698
    %v3932 = vunpack.c.h.b16 %v2698
    %v3933 = vunpack.c.l.b16 %v2699
    %v3934 = vunpack.c.h.b16 %v2699
    %v3935 = vunpack.c.l.b16 %v2700
    %v3936 = vunpack.c.h.b16 %v2700
    %v3937 = vunpack.c.l.b16 %v2701
    %v3938 = vunpack.c.h.b16 %v2701
    %v3939 = vunpack.c.l.b16 %v2702
    %v3940 = vunpack.c.h.b16 %v2702
    %v3941 = vunpack.c.l.b16 %v2703
    %v3942 = vunpack.c.h.b16 %v2703
    %v3943 = vunpack.c.l.b16 %v2704
    %v3944 = vunpack.c.h.b16 %v2704
    %v3945 = vunpack.c.l.b16 %v2705
    %v3946 = vunpack.c.h.b16 %v2705
    %v3947 = vunpack.c.l.b16 %v2706
    %v3948 = vunpack.c.h.b16 %v2706
    %v3949 = vunpack.c.l.b16 %v2707
    %v3950 = vunpack.c.h.b16 %v2707
    %v3951 = vunpack.c.l.b16 %v2708
    %v3952 = vunpack.c.h.b16 %v2708
    %v3953 = vunpack.c.l.b16 %v2709
    %v3954 = vunpack.c.h.b16 %v2709
    %v3955 = vunpack.c.l.b16 %v2710
    %v3956 = vunpack.c.h.b16 %v2710
    %v3957 = vunpack.c.l.b16 %v2711
    %v3958 = vunpack.c.h.b16 %v2711
    %v3959 = vunpack.c.l.b16 %v2712
    %v3960 = vunpack.c.h.b16 %v2712
    %v3961 = vunpack.c.l.b16 %v2713
    %v3962 = vunpack.c.h.b16 %v2713
    %v3963 = vunpack.c.l.b16 %v2714
    %v3964 = vunpack.c.h.b16 %v2714
    %v3965 = vunpack.c.l.b16 %v2715
    %v3966 = vunpack.c.h.b16 %v2715
    %v3967 = vunpack.c.l.b16 %v2716
    %v3968 = vunpack.c.h.b16 %v2716
    %v3969 = vunpack.c.l.b16 %v2717
    %v3970 = vunpack.c.h.b16 %v2717
    %v3971 = vunpack.c.l.b16 %v2718
    %v3972 = vunpack.c.h.b16 %v2718
    %v3973 = vpack.c.b16 %v3183, %v3173
    %v3974 = vpack.c.b16 %v3184, %v3174
    %v3975 = vpack.c.b16 %v3185, %v3175
    %v3976 = vpack.c.b16 %v3186, %v3176
    %v3977 = vpack.c.b16 %v3187, %v3177
    %v3978 = vpack.c.b16 %v3188, %v3178
    %v3979 = vpack.c.b16 %v3189, %v3179
    %v3980 = vpack.c.b16 %v3190, %v3180
    %v3981 = vpack.c.b16 %v3191, %v3181
    %v3982 = vpack.c.b16 %v3192, %v3182
    %v3983 = vpack.c.b16 %v3203, %v3193
    %v3984 = vpack.c.b16 %v3204, %v3194
    %v3985 = vpack.c.b16 %v3205, %v3195
    %v3986 = vpack.c.b16 %v3206, %v3196
    %v3987 = vpack.c.b16 %v3207, %v3197
    %v3988 = vpack.c.b16 %v3208, %v3198
    %v3989 = vpack.c.b16 %v3209, %v3199
    %v3990 = vpack.c.b16 %v3210, %v3200
    %v3991 = vpack.c.b16 %v3211, %v3201
    %v3992 = vpack.c.b16 %v3212, %v3202
    %v3993 = vpack.c.b16 %v3223, %v3213
    %v3994 = vpack.c.b16 %v3224, %v3214
    %v3995 = vpack.c.b16 %v3225, %v3215
    %v3996 = vpack.c.b16 %v3226, %v3216
    %v3997 = vpack.c.b16 %v3227, %v3217
    %v3998 = vpack.c.b16 %v3228, %v3218
    %v3999 = vpack.c.b16 %v3229, %v3219
    %v4000 = vpack.c.b16 %v3230, %v3220
    %v4001 = vpack.c.b16 %v3231, %v3221
    %v4002 = vpack.c.b16 %v3232, %v3222
    %v4003 = vpack.c.b16 %v3243, %v3233
    %v4004 = vpack.c.b16 %v3244, %v3234
    %v4005 = vpack.c.b16 %v3245, %v3235
    %v4006 = vpack.c.b16 %v3246, %v3236
    %v4007 = vpack.c.b16 %v3247, %v3237
    %v4008 = vpack.c.b16 %v3248, %v3238
    %v4009 = vpack.c.b16 %v3249, %v3239
    %v4010 = vpack.c.b16 %v3250, %v3240
    %v4011 = vpack.c.b16 %v3251, %v3241
    %v4012 = vpack.c.b16 %v3252, %v3242
    %v4013 = vpack.c.b16 %v3263, %v3253
    %v4014 = vpack.c.b16 %v3264, %v3254
    %v4015 = vpack.c.b16 %v3265, %v3255
    %v4016 = vpack.c.b16 %v3266, %v3256
    %v4017 = vpack.c.b16 %v3267, %v3257
    %v4018 = vpack.c.b16 %v3268, %v3258
    %v4019 = vpack.c.b16 %v3269, %v3259
    %v4020 = vpack.c.b16 %v3270, %v3260
    %v4021 = vpack.c.b16 %v3271, %v3261
    %v4022 = vpack.c.b16 %v3272, %v3262
    %v4023 = vpack.c.b16 %v3283, %v3273
    %v4024 = vpack.c.b16 %v3284, %v3274
    %v4025 = vpack.c.b16 %v3285, %v3275
    %v4026 = vpack.c.b16 %v3286, %v3276
    %v4027 = vpack.c.b16 %v3287, %v3277
    %v4028 = vpack.c.b16 %v3288, %v3278
    %v4029 = vpack.c.b16 %v3289, %v3279
    %v4030 = vpack.c.b16 %v3290, %v3280
    %v4031 = vpack.c.b16 %v3291, %v3281
    %v4032 = vpack.c.b16 %v3292, %v3282
    %v4033 = vpack.c.b16 %v3303, %v3293
    %v4034 = vpack.c.b16 %v3304, %v3294
    %v4035 = vpack.c.b16 %v3305, %v3295
    %v4036 = vpack.c.b16 %v3306, %v3296
    %v4037 = vpack.c.b16 %v3307, %v3297
    %v4038 = vpack.c.b16 %v3308, %v3298
    %v4039 = vpack.c.b16 %v3309, %v3299
    %v4040 = vpack.c.b16 %v3310, %v3300
    %v4041 = vpack.c.b16 %v3311, %v3301
    %v4042 = vpack.c.b16 %v3312, %v3302
    %v4043 = vpack.c.b16 %v3323, %v3313
    %v4044 = vpack.c.b16 %v3324, %v3314
    %v4045 = vpack.c.b16 %v3325, %v3315
    %v4046 = vpack.c.b16 %v3326, %v3316
    %v4047 = vpack.c.b16 %v3327, %v3317
    %v4048 = vpack.c.b16 %v3328, %v3318
    %v4049 = vpack.c.b16 %v3329, %v3319
    %v4050 = vpack.c.b16 %v3330, %v3320
    %v4051 = vpack.c.b16 %v3331, %v3321
    %v4052 = vpack.c.b16 %v3332, %v3322
    %v4053 = vpack.c.b16 %v3343, %v3333
    %v4054 = vpack.c.b16 %v3344, %v3334
    %v4055 = vpack.c.b16 %v3345, %v3335
    %v4056 = vpack.c.b16 %v3346, %v3336
    %v4057 = vpack.c.b16 %v3347, %v3337
    %v4058 = vpack.c.b16 %v3348, %v3338
    %v4059 = vpack.c.b16 %v3349, %v3339
    %v4060 = vpack.c.b16 %v3350, %v3340
    %v4061 = vpack.c.b16 %v3351, %v3341
    %v4062 = vpack.c.b16 %v3352, %v3342
    %v4063 = vpack.c.b16 %v3363, %v3353
    %v4064 = vpack.c.b16 %v3364, %v3354
    %v4065 = vpack.c.b16 %v3365, %v3355
    %v4066 = vpack.c.b16 %v3366, %v3356
    %v4067 = vpack.c.b16 %v3367, %v3357
    %v4068 = vpack.c.b16 %v3368, %v3358
    %v4069 = vpack.c.b16 %v3369, %v3359
    %v4070 = vpack.c.b16 %v3370, %v3360
    %v4071 = vpack.c.b16 %v3371, %v3361
    %v4072 = vpack.c.b16 %v3372, %v3362
    %v4073 = vpack.c.b16 %v3383, %v3373
    %v4074 = vpack.c.b16 %v3384, %v3374
    %v4075 = vpack.c.b16 %v3385, %v3375
    %v4076 = vpack.c.b16 %v3386, %v3376
    %v4077 = vpack.c.b16 %v3387, %v3377
    %v4078 = vpack.c.b16 %v3388, %v3378
    %v4079 = vpack.c.b16 %v3389, %v3379
    %v4080 = vpack.c.b16 %v3390, %v3380
    %v4081 = vpack.c.b16 %v3391, %v3381
    %v4082 = vpack.c.b16 %v3392, %v3382
    %v4083 = vpack.c.b16 %v3403, %v3393
    %v4084 = vpack.c.b16 %v3404, %v3394
    %v4085 = vpack.c.b16 %v3405, %v3395
    %v4086 = vpack.c.b16 %v3406, %v3396
    %v4087 = vpack.c.b16 %v3407, %v3397
    %v4088 = vpack.c.b16 %v3408, %v3398
    %v4089 = vpack.c.b16 %v3409, %v3399
    %v4090 = vpack.c.b16 %v3410, %v3400
    %v4091 = vpack.c.b16 %v3411, %v3401
    %v4092 = vpack.c.b16 %v3412, %v3402
    %v4093 = vpack.c.b16 %v3423, %v3413
    %v4094 = vpack.c.b16 %v3424, %v3414
    %v4095 = vpack.c.b16 %v3425, %v3415
    %v4096 = vpack.c.b16 %v3426, %v3416
    %v4097 = vpack.c.b16 %v3427, %v3417
    %v4098 = vpack.c.b16 %v3428, %v3418
    %v4099 = vpack.c.b16 %v3429, %v3419
    %v4100 = vpack.c.b16 %v3430, %v3420
    %v4101 = vpack.c.b16 %v3431, %v3421
    %v4102 = vpack.c.b16 %v3432, %v3422
    %v4103 = vpack.c.b16 %v3443, %v3433
    %v4104 = vpack.c.b16 %v3444, %v3434
    %v4105 = vpack.c.b16 %v3445, %v3435
    %v4106 = vpack.c.b16 %v3446, %v3436
    %v4107 = vpack.c.b16 %v3447, %v3437
    %v4108 = vpack.c.b16 %v3448, %v3438
    %v4109 = vpack.c.b16 %v3449, %v3439
    %v4110 = vpack.c.b16 %v3450, %v3440
    %v4111 = vpack.c.b16 %v3451, %v3441
    %v4112 = vpack.c.b16 %v3452, %v3442
    %v4113 = vpack.c.b16 %v3463, %v3453
    %v4114 = vpack.c.b16 %v3464, %v3454
    %v4115 = vpack.c.b16 %v3465, %v3455
    %v4116 = vpack.c.b16 %v3466, %v3456
    %v4117 = vpack.c.b16 %v3467, %v3457
    %v4118 = vpack.c.b16 %v3468, %v3458
    %v4119 = vpack.c.b16 %v3469, %v3459
    %v4120 = vpack.c.b16 %v3470, %v3460
    %v4121 = vpack.c.b16 %v3471, %v3461
    %v4122 = vpack.c.b16 %v3472, %v3462
    %v4123 = vpack.c.b16 %v3483, %v3473
    %v4124 = vpack.c.b16 %v3484, %v3474
    %v4125 = vpack.c.b16 %v3485, %v3475
    %v4126 = vpack.c.b16 %v3486, %v3476
    %v4127 = vpack.c.b16 %v3487, %v3477
    %v4128 = vpack.c.b16 %v3488, %v3478
    %v4129 = vpack.c.b16 %v3489, %v3479
    %v4130 = vpack.c.b16 %v3490, %v3480
    %v4131 = vpack.c.b16 %v3491, %v3481
    %v4132 = vpack.c.b16 %v3492, %v3482
    %v4133 = vpack.c.b16 %v3503, %v3493
    %v4134 = vpack.c.b16 %v3504, %v3494
    %v4135 = vpack.c.b16 %v3505, %v3495
    %v4136 = vpack.c.b16 %v3506, %v3496
    %v4137 = vpack.c.b16 %v3507, %v3497
    %v4138 = vpack.c.b16 %v3508, %v3498
    %v4139 = vpack.c.b16 %v3509, %v3499
    %v4140 = vpack.c.b16 %v3510, %v3500
    %v4141 = vpack.c.b16 %v3511, %v3501
    %v4142 = vpack.c.b16 %v3512, %v3502
    %v4143 = vpack.c.b16 %v3523, %v3513
    %v4144 = vpack.c.b16 %v3524, %v3514
    %v4145 = vpack.c.b16 %v3525, %v3515
    %v4146 = vpack.c.b16 %v3526, %v3516
    %v4147 = vpack.c.b16 %v3527, %v3517
    %v4148 = vpack.c.b16 %v3528, %v3518
    %v4149 = vpack.c.b16 %v3529, %v3519
    %v4150 = vpack.c.b16 %v3530, %v3520
    %v4151 = vpack.c.b16 %v3531, %v3521
    %v4152 = vpack.c.b16 %v3532, %v3522
    %v4153 = vpack.c.b16 %v3543, %v3533
    %v4154 = vpack.c.b16 %v3544, %v3534
    %v4155 = vpack.c.b16 %v3545, %v3535
    %v4156 = vpack.c.b16 %v3546, %v3536
    %v4157 = vpack.c.b16 %v3547, %v3537
    %v4158 = vpack.c.b16 %v3548, %v3538
    %v4159 = vpack.c.b16 %v3549, %v3539
    %v4160 = vpack.c.b16 %v3550, %v3540
    %v4161 = vpack.c.b16 %v3551, %v3541
    %v4162 = vpack.c.b16 %v3552, %v3542
    %v4163 = vpack.c.b16 %v3563, %v3553
    %v4164 = vpack.c.b16 %v3564, %v3554
    %v4165 = vpack.c.b16 %v3565, %v3555
    %v4166 = vpack.c.b16 %v3566, %v3556
    %v4167 = vpack.c.b16 %v3567, %v3557
    %v4168 = vpack.c.b16 %v3568, %v3558
    %v4169 = vpack.c.b16 %v3569, %v3559
    %v4170 = vpack.c.b16 %v3570, %v3560
    %v4171 = vpack.c.b16 %v3571, %v3561
    %v4172 = vpack.c.b16 %v3572, %v3562
    %v4173 = vpack.c.b16 %v3583, %v3573
    %v4174 = vpack.c.b16 %v3584, %v3574
    %v4175 = vpack.c.b16 %v3585, %v3575
    %v4176 = vpack.c.b16 %v3586, %v3576
    %v4177 = vpack.c.b16 %v3587, %v3577
    %v4178 = vpack.c.b16 %v3588, %v3578
    %v4179 = vpack.c.b16 %v3589, %v3579
    %v4180 = vpack.c.b16 %v3590, %v3580
    %v4181 = vpack.c.b16 %v3591, %v3581
    %v4182 = vpack.c.b16 %v3592, %v3582
    %v4183 = vpack.c.b16 %v3603, %v3593
    %v4184 = vpack.c.b16 %v3604, %v3594
    %v4185 = vpack.c.b16 %v3605, %v3595
    %v4186 = vpack.c.b16 %v3606, %v3596
    %v4187 = vpack.c.b16 %v3607, %v3597
    %v4188 = vpack.c.b16 %v3608, %v3598
    %v4189 = vpack.c.b16 %v3609, %v3599
    %v4190 = vpack.c.b16 %v3610, %v3600
    %v4191 = vpack.c.b16 %v3611, %v3601
    %v4192 = vpack.c.b16 %v3612, %v3602
    %v4193 = vpack.c.b16 %v3623, %v3613
    %v4194 = vpack.c.b16 %v3624, %v3614
    %v4195 = vpack.c.b16 %v3625, %v3615
    %v4196 = vpack.c.b16 %v3626, %v3616
    %v4197 = vpack.c.b16 %v3627, %v3617
    %v4198 = vpack.c.b16 %v3628, %v3618
    %v4199 = vpack.c.b16 %v3629, %v3619
    %v4200 = vpack.c.b16 %v3630, %v3620
    %v4201 = vpack.c.b16 %v3631, %v3621
    %v4202 = vpack.c.b16 %v3632, %v3622
    %v4203 = vpack.c.b16 %v3643, %v3633
    %v4204 = vpack.c.b16 %v3644, %v3634
    %v4205 = vpack.c.b16 %v3645, %v3635
    %v4206 = vpack.c.b16 %v3646, %v3636
    %v4207 = vpack.c.b16 %v3647, %v3637
    %v4208 = vpack.c.b16 %v3648, %v3638
    %v4209 = vpack.c.b16 %v3649, %v3639
    %v4210 = vpack.c.b16 %v3650, %v3640
    %v4211 = vpack.c.b16 %v3651, %v3641
    %v4212 = vpack.c.b16 %v3652, %v3642
    %v4213 = vpack.c.b16 %v3663, %v3653
    %v4214 = vpack.c.b16 %v3664, %v3654
    %v4215 = vpack.c.b16 %v3665, %v3655
    %v4216 = vpack.c.b16 %v3666, %v3656
    %v4217 = vpack.c.b16 %v3667, %v3657
    %v4218 = vpack.c.b16 %v3668, %v3658
    %v4219 = vpack.c.b16 %v3669, %v3659
    %v4220 = vpack.c.b16 %v3670, %v3660
    %v4221 = vpack.c.b16 %v3671, %v3661
    %v4222 = vpack.c.b16 %v3672, %v3662
    %v4223 = vpack.c.b16 %v3683, %v3673
    %v4224 = vpack.c.b16 %v3684, %v3674
    %v4225 = vpack.c.b16 %v3685, %v3675
    %v4226 = vpack.c.b16 %v3686, %v3676
    %v4227 = vpack.c.b16 %v3687, %v3677
    %v4228 = vpack.c.b16 %v3688, %v3678
    %v4229 = vpack.c.b16 %v3689, %v3679
    %v4230 = vpack.c.b16 %v3690, %v3680
    %v4231 = vpack.c.b16 %v3691, %v3681
    %v4232 = vpack.c.b16 %v3692, %v3682
    %v4233 = vpack.c.b16 %v3703, %v3693
    %v4234 = vpack.c.b16 %v3704, %v3694
    %v4235 = vpack.c.b16 %v3705, %v3695
    %v4236 = vpack.c.b16 %v3706, %v3696
    %v4237 = vpack.c.b16 %v3707, %v3697
    %v4238 = vpack.c.b16 %v3708, %v3698
    %v4239 = vpack.c.b16 %v3709, %v3699
    %v4240 = vpack.c.b16 %v3710, %v3700
    %v4241 = vpack.c.b16 %v3711, %v3701
    %v4242 = vpack.c.b16 %v3712, %v3702
    %v4243 = vpack.c.b16 %v3723, %v3713
    %v4244 = vpack.c.b16 %v3724, %v3714
    %v4245 = vpack.c.b16 %v3725, %v3715
    %v4246 = vpack.c.b16 %v3726, %v3716
    %v4247 = vpack.c.b16 %v3727, %v3717
    %v4248 = vpack.c.b16 %v3728, %v3718
    %v4249 = vpack.c.b16 %v3729, %v3719
    %v4250 = vpack.c.b16 %v3730, %v3720
    %v4251 = vpack.c.b16 %v3731, %v3721
    %v4252 = vpack.c.b16 %v3732, %v3722
    %v4253 = vpack.c.b16 %v3743, %v3733
    %v4254 = vpack.c.b16 %v3744, %v3734
    %v4255 = vpack.c.b16 %v3745, %v3735
    %v4256 = vpack.c.b16 %v3746, %v3736
    %v4257 = vpack.c.b16 %v3747, %v3737
    %v4258 = vpack.c.b16 %v3748, %v3738
    %v4259 = vpack.c.b16 %v3749, %v3739
    %v4260 = vpack.c.b16 %v3750, %v3740
    %v4261 = vpack.c.b16 %v3751, %v3741
    %v4262 = vpack.c.b16 %v3752, %v3742
    %v4263 = vpack.c.b16 %v3763, %v3753
    %v4264 = vpack.c.b16 %v3764, %v3754
    %v4265 = vpack.c.b16 %v3765, %v3755
    %v4266 = vpack.c.b16 %v3766, %v3756
    %v4267 = vpack.c.b16 %v3767, %v3757
    %v4268 = vpack.c.b16 %v3768, %v3758
    %v4269 = vpack.c.b16 %v3769, %v3759
    %v4270 = vpack.c.b16 %v3770, %v3760
    %v4271 = vpack.c.b16 %v3771, %v3761
    %v4272 = vpack.c.b16 %v3772, %v3762
    %v4273 = vpack.c.b16 %v3783, %v3773
    %v4274 = vpack.c.b16 %v3784, %v3774
    %v4275 = vpack.c.b16 %v3785, %v3775
    %v4276 = vpack.c.b16 %v3786, %v3776
    %v4277 = vpack.c.b16 %v3787, %v3777
    %v4278 = vpack.c.b16 %v3788, %v3778
    %v4279 = vpack.c.b16 %v3789, %v3779
    %v4280 = vpack.c.b16 %v3790, %v3780
    %v4281 = vpack.c.b16 %v3791, %v3781
    %v4282 = vpack.c.b16 %v3792, %v3782
    %v4283 = vpack.c.b16 %v3803, %v3793
    %v4284 = vpack.c.b16 %v3804, %v3794
    %v4285 = vpack.c.b16 %v3805, %v3795
    %v4286 = vpack.c.b16 %v3806, %v3796
    %v4287 = vpack.c.b16 %v3807, %v3797
    %v4288 = vpack.c.b16 %v3808, %v3798
    %v4289 = vpack.c.b16 %v3809, %v3799
    %v4290 = vpack.c.b16 %v3810, %v3800
    %v4291 = vpack.c.b16 %v3811, %v3801
    %v4292 = vpack.c.b16 %v3812, %v3802
    %v4293 = vpack.c.b16 %v3823, %v3813
    %v4294 = vpack.c.b16 %v3824, %v3814
    %v4295 = vpack.c.b16 %v3825, %v3815
    %v4296 = vpack.c.b16 %v3826, %v3816
    %v4297 = vpack.c.b16 %v3827, %v3817
    %v4298 = vpack.c.b16 %v3828, %v3818
    %v4299 = vpack.c.b16 %v3829, %v3819
    %v4300 = vpack.c.b16 %v3830, %v3820
    %v4301 = vpack.c.b16 %v3831, %v3821
    %v4302 = vpack.c.b16 %v3832, %v3822
    %v4303 = vpack.c.b16 %v3843, %v3833
    %v4304 = vpack.c.b16 %v3844, %v3834
    %v4305 = vpack.c.b16 %v3845, %v3835
    %v4306 = vpack.c.b16 %v3846, %v3836
    %v4307 = vpack.c.b16 %v3847, %v3837
    %v4308 = vpack.c.b16 %v3848, %v3838
    %v4309 = vpack.c.b16 %v3849, %v3839
    %v4310 = vpack.c.b16 %v3850, %v3840
    %v4311 = vpack.c.b16 %v3851, %v3841
    %v4312 = vpack.c.b16 %v3852, %v3842
    %v4313 = vpack.c.b16 %v3863, %v3853
    %v4314 = vpack.c.b16 %v3864, %v3854
    %v4315 = vpack.c.b16 %v3865, %v3855
    %v4316 = vpack.c.b16 %v3866, %v3856
    %v4317 = vpack.c.b16 %v3867, %v3857
    %v4318 = vpack.c.b16 %v3868, %v3858
    %v4319 = vpack.c.b16 %v3869, %v3859
    %v4320 = vpack.c.b16 %v3870, %v3860
    %v4321 = vpack.c.b16 %v3871, %v3861
    %v4322 = vpack.c.b16 %v3872, %v3862
    %v4323 = vpack.c.b16 %v3883, %v3873
    %v4324 = vpack.c.b16 %v3884, %v3874
    %v4325 = vpack.c.b16 %v3885, %v3875
    %v4326 = vpack.c.b16 %v3886, %v3876
    %v4327 = vpack.c.b16 %v3887, %v3877
    %v4328 = vpack.c.b16 %v3888, %v3878
    %v4329 = vpack.c.b16 %v3889, %v3879
    %v4330 = vpack.c.b16 %v3890, %v3880
    %v4331 = vpack.c.b16 %v3891, %v3881
    %v4332 = vpack.c.b16 %v3892, %v3882
    %v4333 = vpack.c.b16 %v3903, %v3893
    %v4334 = vpack.c.b16 %v3904, %v3894
    %v4335 = vpack.c.b16 %v3905, %v3895
    %v4336 = vpack.c.b16 %v3906, %v3896
    %v4337 = vpack.c.b16 %v3907, %v3897
    %v4338 = vpack.c.b16 %v3908, %v3898
    %v4339 = vpack.c.b16 %v3909, %v3899
    %v4340 = vpack.c.b16 %v3910, %v3900
    %v4341 = vpack.c.b16 %v3911, %v3901
    %v4342 = vpack.c.b16 %v3912, %v3902
    %v4343 = vpack.c.b16 %v3923, %v3913
    %v4344 = vpack.c.b16 %v3924, %v3914
    %v4345 = vpack.c.b16 %v3925, %v3915
    %v4346 = vpack.c.b16 %v3926, %v3916
    %v4347 = vpack.c.b16 %v3927, %v3917
    %v4348 = vpack.c.b16 %v3928, %v3918
    %v4349 = vpack.c.b16 %v3929, %v3919
    %v4350 = vpack.c.b16 %v3930, %v3920
    %v4351 = vpack.c.b16 %v3931, %v3921
    %v4352 = vpack.c.b16 %v3932, %v3922
    %v4353 = vpack.c.b16 %v3943, %v3933
    %v4354 = vpack.c.b16 %v3944, %v3934
    %v4355 = vpack.c.b16 %v3945, %v3935
    %v4356 = vpack.c.b16 %v3946, %v3936
    %v4357 = vpack.c.b16 %v3947, %v3937
    %v4358 = vpack.c.b16 %v3948, %v3938
    %v4359 = vpack.c.b16 %v3949, %v3939
    %v4360 = vpack.c.b16 %v3950, %v3940
    %v4361 = vpack.c.b16 %v3951, %v3941
    %v4362 = vpack.c.b16 %v3952, %v3942
    %v4363 = vpack.c.b16 %v3963, %v3953
    %v4364 = vpack.c.b16 %v3964, %v3954
    %v4365 = vpack.c.b16 %v3965, %v3955
    %v4366 = vpack.c.b16 %v3966, %v3956
    %v4367 = vpack.c.b16 %v3967, %v3957
    %v4368 = vpack.c.b16 %v3968, %v3958
    %v4369 = vpack.c.b16 %v3969, %v3959
    %v4370 = vpack.c.b16 %v3970, %v3960
    %v4371 = vpack.c.b16 %v3971, %v3961
    %v4372 = vpack.c.b16 %v3972, %v3962
    %4773 = vmatprep.subr.bf16.mxu0 %v3974
    %4774 = vmatpush1.bf16.msra.mxu0 %v3973
    %4775 = vmatprep.subr.bf16.mxu0 %v3984
    %4776 = vmatpush1.bf16.msra.mxu0 %v3983
    %4777 = vmatprep.subr.bf16.mxu0 %v3994
    %4778 = vmatpush1.bf16.msra.mxu0 %v3993
    %4779 = vmatprep.subr.bf16.mxu0 %v4004
    %4780 = vmatpush1.bf16.msra.mxu0 %v4003
    %4781 = vmatprep.subr.bf16.mxu0 %v4014
    %4782 = vmatpush1.bf16.msra.mxu0 %v4013
    %4783 = vmatprep.subr.bf16.mxu0 %v4024
    %4784 = vmatpush1.bf16.msra.mxu0 %v4023
    %4785 = vmatprep.subr.bf16.mxu0 %v4034
    %4786 = vmatpush1.bf16.msra.mxu0 %v4033
    %4787 = vmatprep.subr.bf16.mxu0 %v4044
    %4788 = vmatpush1.bf16.msra.mxu0 %v4043
    %4789 = vmatprep.subr.bf16.mxu0 %v4054
    %4790 = vmatpush1.bf16.msra.mxu0 %v4053
    %4791 = vmatprep.subr.bf16.mxu0 %v4064
    %4792 = vmatpush1.bf16.msra.mxu0 %v4063
    %4793 = vmatprep.subr.bf16.mxu0 %v4074
    %4794 = vmatpush1.bf16.msra.mxu0 %v4073
    %4795 = vmatprep.subr.bf16.mxu0 %v4084
    %4796 = vmatpush1.bf16.msra.mxu0 %v4083
    %4797 = vmatprep.subr.bf16.mxu0 %v4094
    %4798 = vmatpush1.bf16.msra.mxu0 %v4093
    %4799 = vmatprep.subr.bf16.mxu0 %v4104
    %4800 = vmatpush1.bf16.msra.mxu0 %v4103
    %4801 = vmatprep.subr.bf16.mxu0 %v4114
    %4802 = vmatpush1.bf16.msra.mxu0 %v4113
    %4803 = vmatprep.subr.bf16.mxu0 %v4124
    %4804 = vmatpush1.bf16.msra.mxu0 %v4123
    %4805 = vmatprep.mubr.bf16.mxu0 %v2315
    %4806 = vmatmul.mubr.bf16.gmra.mrb[0].mxu0 %v2314
    %v4807 = vpop.f32.mrb[0].mxu0
    %v4808 = vadd.f32 %v2726, %v4807
    %v4809 = vpop.f32.mrb[0].mxu0
    %v4810 = vadd.f32 %v2730, %v4809
    %v4811 = vpop.f32.mrb[0].mxu0
    %v4812 = vadd.f32 %v2726, %v4811
    %v4813 = vpop.f32.mrb[0].mxu0
    %v4814 = vadd.f32 %v2730, %v4813
    %4815 = vdwg.mxu0
    %4816 = vmatprep.subr.bf16.mxu0 %v4134
    %4817 = vmatpush1.bf16.msra.mxu0 %v4133
    %4818 = vmatprep.subr.bf16.mxu0 %v4144
    %4819 = vmatpush1.bf16.msra.mxu0 %v4143
    %4820 = vmatprep.subr.bf16.mxu0 %v4154
    %4821 = vmatpush1.bf16.msra.mxu0 %v4153
    %4822 = vmatprep.subr.bf16.mxu0 %v4164
    %4823 = vmatpush1.bf16.msra.mxu0 %v4163
    %4824 = vmatprep.subr.bf16.mxu0 %v4174
    %4825 = vmatpush1.bf16.msra.mxu0 %v4173
    %4826 = vmatprep.subr.bf16.mxu0 %v4184
    %4827 = vmatpush1.bf16.msra.mxu0 %v4183
    %4828 = vmatprep.subr.bf16.mxu0 %v4194
    %4829 = vmatpush1.bf16.msra.mxu0 %v4193
    %4830 = vmatprep.subr.bf16.mxu0 %v4204
    %4831 = vmatpush1.bf16.msra.mxu0 %v4203
    %4832 = vmatprep.subr.bf16.mxu0 %v4214
    %4833 = vmatpush1.bf16.msra.mxu0 %v4213
    %4834 = vmatprep.subr.bf16.mxu0 %v4224
    %4835 = vmatpush1.bf16.msra.mxu0 %v4223
    %4836 = vmatprep.subr.bf16.mxu0 %v4234
    %4837 = vmatpush1.bf16.msra.mxu0 %v4233
    %4838 = vmatprep.subr.bf16.mxu0 %v4244
    %4839 = vmatpush1.bf16.msra.mxu0 %v4243
    %4840 = vmatprep.subr.bf16.mxu0 %v4254
    %4841 = vmatpush1.bf16.msra.mxu0 %v4253
    %4842 = vmatprep.subr.bf16.mxu0 %v4264
    %4843 = vmatpush1.bf16.msra.mxu0 %v4263
    %4844 = vmatprep.subr.bf16.mxu0 %v4274
    %4845 = vmatpush1.bf16.msra.mxu0 %v4273
    %4846 = vmatprep.subr.bf16.mxu0 %v4284
    %4847 = vmatpush1.bf16.msra.mxu0 %v4283
    %4848 = vmatprep.mubr.bf16.mxu0 %v2317
    %4849 = vmatmul.mubr.bf16.gmra.mrb[0].mxu0 %v2316
    %v4850 = vpop.f32.mrb[0].mxu0
    %v4851 = vadd.f32 %v4808, %v4850
    %v4852 = vpop.f32.mrb[0].mxu0
    %v4853 = vadd.f32 %v4810, %v4852
    %v4854 = vpop.f32.mrb[0].mxu0
    %v4855 = vadd.f32 %v4812, %v4854
    %v4856 = vpop.f32.mrb[0].mxu0
    %v4857 = vadd.f32 %v4814, %v4856
    %4858 = vdwg.mxu0
    %4859 = vmatprep.subr.bf16.mxu0 %v4294
    %4860 = vmatpush1.bf16.msra.mxu0 %v4293
    %4861 = vmatprep.subr.bf16.mxu0 %v4304
    %4862 = vmatpush1.bf16.msra.mxu0 %v4303
    %4863 = vmatprep.subr.bf16.mxu0 %v4314
    %4864 = vmatpush1.bf16.msra.mxu0 %v4313
    %4865 = vmatprep.subr.bf16.mxu0 %v4324
    %4866 = vmatpush1.bf16.msra.mxu0 %v4323
    %4867 = vmatprep.subr.bf16.mxu0 %v4334
    %4868 = vmatpush1.bf16.msra.mxu0 %v4333
    %4869 = vmatprep.subr.bf16.mxu0 %v4344
    %4870 = vmatpush1.bf16.msra.mxu0 %v4343
    %4871 = vmatprep.subr.bf16.mxu0 %v4354
    %4872 = vmatpush1.bf16.msra.mxu0 %v4353
    %4873 = vmatprep.subr.bf16.mxu0 %v4364
    %4874 = vmatpush1.bf16.msra.mxu0 %v4363
    %4875 = vmatprep.subr.bf16.mxu0 0
    %4876 = vmatpush1.bf16.msra.mxu0 0
    %4877 = vmatprep.subr.bf16.mxu0 0
    %4878 = vmatpush1.bf16.msra.mxu0 0
    %4879 = vmatprep.subr.bf16.mxu0 0
    %4880 = vmatpush1.bf16.msra.mxu0 0
    %4881 = vmatprep.subr.bf16.mxu0 0
    %4882 = vmatpush1.bf16.msra.mxu0 0
    %4883 = vmatprep.subr.bf16.mxu0 0
    %4884 = vmatpush1.bf16.msra.mxu0 0
    %4885 = vmatprep.subr.bf16.mxu0 0
    %4886 = vmatpush1.bf16.msra.mxu0 0
    %4887 = vmatprep.subr.bf16.mxu0 0
    %4888 = vmatpush1.bf16.msra.mxu0 0
    %4889 = vmatprep.subr.bf16.mxu0 0
    %4890 = vmatpush1.bf16.msra.mxu0 0
    %4891 = vmatprep.mubr.bf16.mxu0 0
    %4892 = vmatmul.mubr.bf16.gmra.mrb[0].mxu0 %v2318
    %v4893 = vpop.f32.mrb[0].mxu0
    %v4894 = vadd.f32 %v4851, %v4893
    %v4895 = vpop.f32.mrb[0].mxu0
    %v4896 = vadd.f32 %v4853, %v4895
    %v4897 = vpop.f32.mrb[0].mxu0
    %v4898 = vadd.f32 %v4855, %v4897
    %v4899 = vpop.f32.mrb[0].mxu0
    %v4900 = vadd.f32 %v4857, %v4899
    %4901 = vdwg.mxu0
    %4902 = vmatprep.subr.bf16.mxu0 %v3976
    %4903 = vmatpush1.bf16.msra.mxu0 %v3975
    %4904 = vmatprep.subr.bf16.mxu0 %v3986
    %4905 = vmatpush1.bf16.msra.mxu0 %v3985
    %4906 = vmatprep.subr.bf16.mxu0 %v3996
    %4907 = vmatpush1.bf16.msra.mxu0 %v3995
    %4908 = vmatprep.subr.bf16.mxu0 %v4006
    %4909 = vmatpush1.bf16.msra.mxu0 %v4005
    %4910 = vmatprep.subr.bf16.mxu0 %v4016
    %4911 = vmatpush1.bf16.msra.mxu0 %v4015
    %4912 = vmatprep.subr.bf16.mxu0 %v4026
    %4913 = vmatpush1.bf16.msra.mxu0 %v4025
    %4914 = vmatprep.subr.bf16.mxu0 %v4036
    %4915 = vmatpush1.bf16.msra.mxu0 %v4035
    %4916 = vmatprep.subr.bf16.mxu0 %v4046
    %4917 = vmatpush1.bf16.msra.mxu0 %v4045
    %4918 = vmatprep.subr.bf16.mxu0 %v4056
    %4919 = vmatpush1.bf16.msra.mxu0 %v4055
    %4920 = vmatprep.subr.bf16.mxu0 %v4066
    %4921 = vmatpush1.bf16.msra.mxu0 %v4065
    %4922 = vmatprep.subr.bf16.mxu0 %v4076
    %4923 = vmatpush1.bf16.msra.mxu0 %v4075
    %4924 = vmatprep.subr.bf16.mxu0 %v4086
    %4925 = vmatpush1.bf16.msra.mxu0 %v4085
    %4926 = vmatprep.subr.bf16.mxu0 %v4096
    %4927 = vmatpush1.bf16.msra.mxu0 %v4095
    %4928 = vmatprep.subr.bf16.mxu0 %v4106
    %4929 = vmatpush1.bf16.msra.mxu0 %v4105
    %4930 = vmatprep.subr.bf16.mxu0 %v4116
    %4931 = vmatpush1.bf16.msra.mxu0 %v4115
    %4932 = vmatprep.subr.bf16.mxu0 %v4126
    %4933 = vmatpush1.bf16.msra.mxu0 %v4125
    %4934 = vmatprep.mubr.bf16.mxu0 %v2315
    %4935 = vmatmul.mubr.bf16.gmra.mrb[0].mxu0 %v2314
    %v4936 = vpop.f32.mrb[0].mxu0
    %v4937 = vadd.f32 %v2734, %v4936
    %v4938 = vpop.f32.mrb[0].mxu0
    %v4939 = vadd.f32 %v2738, %v4938
    %v4940 = vpop.f32.mrb[0].mxu0
    %v4941 = vadd.f32 %v2734, %v4940
    %v4942 = vpop.f32.mrb[0].mxu0
    %v4943 = vadd.f32 %v2738, %v4942
    %4944 = vdwg.mxu0
    %4945 = vmatprep.subr.bf16.mxu0 %v4136
    %4946 = vmatpush1.bf16.msra.mxu0 %v4135
    %4947 = vmatprep.subr.bf16.mxu0 %v4146
    %4948 = vmatpush1.bf16.msra.mxu0 %v4145
    %4949 = vmatprep.subr.bf16.mxu0 %v4156
    %4950 = vmatpush1.bf16.msra.mxu0 %v4155
    %4951 = vmatprep.subr.bf16.mxu0 %v4166
    %4952 = vmatpush1.bf16.msra.mxu0 %v4165
    %4953 = vmatprep.subr.bf16.mxu0 %v4176
    %4954 = vmatpush1.bf16.msra.mxu0 %v4175
    %4955 = vmatprep.subr.bf16.mxu0 %v4186
    %4956 = vmatpush1.bf16.msra.mxu0 %v4185
    %4957 = vmatprep.subr.bf16.mxu0 %v4196
    %4958 = vmatpush1.bf16.msra.mxu0 %v4195
    %4959 = vmatprep.subr.bf16.mxu0 %v4206
    %4960 = vmatpush1.bf16.msra.mxu0 %v4205
    %4961 = vmatprep.subr.bf16.mxu0 %v4216
    %4962 = vmatpush1.bf16.msra.mxu0 %v4215
    %4963 = vmatprep.subr.bf16.mxu0 %v4226
    %4964 = vmatpush1.bf16.msra.mxu0 %v4225
    %4965 = vmatprep.subr.bf16.mxu0 %v4236
    %4966 = vmatpush1.bf16.msra.mxu0 %v4235
    %4967 = vmatprep.subr.bf16.mxu0 %v4246
    %4968 = vmatpush1.bf16.msra.mxu0 %v4245
    %4969 = vmatprep.subr.bf16.mxu0 %v4256
    %4970 = vmatpush1.bf16.msra.mxu0 %v4255
    %4971 = vmatprep.subr.bf16.mxu0 %v4266
    %4972 = vmatpush1.bf16.msra.mxu0 %v4265
    %4973 = vmatprep.subr.bf16.mxu0 %v4276
    %4974 = vmatpush1.bf16.msra.mxu0 %v4275
    %4975 = vmatprep.subr.bf16.mxu0 %v4286
    %4976 = vmatpush1.bf16.msra.mxu0 %v4285
    %4977 = vmatprep.mubr.bf16.mxu0 %v2317
    %4978 = vmatmul.mubr.bf16.gmra.mrb[0].mxu0 %v2316
    %v4979 = vpop.f32.mrb[0].mxu0
    %v4980 = vadd.f32 %v4937, %v4979
    %v4981 = vpop.f32.mrb[0].mxu0
    %v4982 = vadd.f32 %v4939, %v4981
    %v4983 = vpop.f32.mrb[0].mxu0
    %v4984 = vadd.f32 %v4941, %v4983
    %v4985 = vpop.f32.mrb[0].mxu0
    %v4986 = vadd.f32 %v4943, %v4985
    %4987 = vdwg.mxu0
    %4988 = vmatprep.subr.bf16.mxu0 %v4296
    %4989 = vmatpush1.bf16.msra.mxu0 %v4295
    %4990 = vmatprep.subr.bf16.mxu0 %v4306
    %4991 = vmatpush1.bf16.msra.mxu0 %v4305
    %4992 = vmatprep.subr.bf16.mxu0 %v4316
    %4993 = vmatpush1.bf16.msra.mxu0 %v4315
    %4994 = vmatprep.subr.bf16.mxu0 %v4326
    %4995 = vmatpush1.bf16.msra.mxu0 %v4325
    %4996 = vmatprep.subr.bf16.mxu0 %v4336
    %4997 = vmatpush1.bf16.msra.mxu0 %v4335
    %4998 = vmatprep.subr.bf16.mxu0 %v4346
    %4999 = vmatpush1.bf16.msra.mxu0 %v4345
    %5000 = vmatprep.subr.bf16.mxu0 %v4356
    %5001 = vmatpush1.bf16.msra.mxu0 %v4355
    %5002 = vmatprep.subr.bf16.mxu0 %v4366
    %5003 = vmatpush1.bf16.msra.mxu0 %v4365
    %5004 = vmatprep.subr.bf16.mxu0 0
    %5005 = vmatpush1.bf16.msra.mxu0 0
    %5006 = vmatprep.subr.bf16.mxu0 0
    %5007 = vmatpush1.bf16.msra.mxu0 0
    %5008 = vmatprep.subr.bf16.mxu0 0
    %5009 = vmatpush1.bf16.msra.mxu0 0
    %5010 = vmatprep.subr.bf16.mxu0 0
    %5011 = vmatpush1.bf16.msra.mxu0 0
    %5012 = vmatprep.subr.bf16.mxu0 0
    %5013 = vmatpush1.bf16.msra.mxu0 0
    %5014 = vmatprep.subr.bf16.mxu0 0
    %5015 = vmatpush1.bf16.msra.mxu0 0
    %5016 = vmatprep.subr.bf16.mxu0 0
    %5017 = vmatpush1.bf16.msra.mxu0 0
    %5018 = vmatprep.subr.bf16.mxu0 0
    %5019 = vmatpush1.bf16.msra.mxu0 0
    %5020 = vmatprep.mubr.bf16.mxu0 0
    %5021 = vmatmul.mubr.bf16.gmra.mrb[0].mxu0 %v2318
    %v5022 = vpop.f32.mrb[0].mxu0
    %v5023 = vadd.f32 %v4980, %v5022
    %v5024 = vpop.f32.mrb[0].mxu0
    %v5025 = vadd.f32 %v4982, %v5024
    %v5026 = vpop.f32.mrb[0].mxu0
    %v5027 = vadd.f32 %v4984, %v5026
    %v5028 = vpop.f32.mrb[0].mxu0
    %v5029 = vadd.f32 %v4986, %v5028
    %5030 = vdwg.mxu0
    %5031 = vmatprep.subr.bf16.mxu0 %v3978
    %5032 = vmatpush1.bf16.msra.mxu0 %v3977
    %5033 = vmatprep.subr.bf16.mxu0 %v3988
    %5034 = vmatpush1.bf16.msra.mxu0 %v3987
    %5035 = vmatprep.subr.bf16.mxu0 %v3998
    %5036 = vmatpush1.bf16.msra.mxu0 %v3997
    %5037 = vmatprep.subr.bf16.mxu0 %v4008
    %5038 = vmatpush1.bf16.msra.mxu0 %v4007
    %5039 = vmatprep.subr.bf16.mxu0 %v4018
    %5040 = vmatpush1.bf16.msra.mxu0 %v4017
    %5041 = vmatprep.subr.bf16.mxu0 %v4028
    %5042 = vmatpush1.bf16.msra.mxu0 %v4027
    %5043 = vmatprep.subr.bf16.mxu0 %v4038
    %5044 = vmatpush1.bf16.msra.mxu0 %v4037
    %5045 = vmatprep.subr.bf16.mxu0 %v4048
    %5046 = vmatpush1.bf16.msra.mxu0 %v4047
    %5047 = vmatprep.subr.bf16.mxu0 %v4058
    %5048 = vmatpush1.bf16.msra.mxu0 %v4057
    %5049 = vmatprep.subr.bf16.mxu0 %v4068
    %5050 = vmatpush1.bf16.msra.mxu0 %v4067
    %5051 = vmatprep.subr.bf16.mxu0 %v4078
    %5052 = vmatpush1.bf16.msra.mxu0 %v4077
    %5053 = vmatprep.subr.bf16.mxu0 %v4088
    %5054 = vmatpush1.bf16.msra.mxu0 %v4087
    %5055 = vmatprep.subr.bf16.mxu0 %v4098
    %5056 = vmatpush1.bf16.msra.mxu0 %v4097
    %5057 = vmatprep.subr.bf16.mxu0 %v4108
    %5058 = vmatpush1.bf16.msra.mxu0 %v4107
    %5059 = vmatprep.subr.bf16.mxu0 %v4118
    %5060 = vmatpush1.bf16.msra.mxu0 %v4117
    %5061 = vmatprep.subr.bf16.mxu0 %v4128
    %5062 = vmatpush1.bf16.msra.mxu0 %v4127
    %5063 = vmatprep.mubr.bf16.mxu0 %v2315
    %5064 = vmatmul.mubr.bf16.gmra.mrb[0].mxu0 %v2314
    %v5065 = vpop.f32.mrb[0].mxu0
    %v5066 = vadd.f32 %v2742, %v5065
    %v5067 = vpop.f32.mrb[0].mxu0
    %v5068 = vadd.f32 %v2746, %v5067
    %v5069 = vpop.f32.mrb[0].mxu0
    %v5070 = vadd.f32 %v2742, %v5069
    %v5071 = vpop.f32.mrb[0].mxu0
    %v5072 = vadd.f32 %v2746, %v5071
    %5073 = vdwg.mxu0
    %5074 = vmatprep.subr.bf16.mxu0 %v4138
    %5075 = vmatpush1.bf16.msra.mxu0 %v4137
    %5076 = vmatprep.subr.bf16.mxu0 %v4148
    %5077 = vmatpush1.bf16.msra.mxu0 %v4147
    %5078 = vmatprep.subr.bf16.mxu0 %v4158
    %5079 = vmatpush1.bf16.msra.mxu0 %v4157
    %5080 = vmatprep.subr.bf16.mxu0 %v4168
    %5081 = vmatpush1.bf16.msra.mxu0 %v4167
    %5082 = vmatprep.subr.bf16.mxu0 %v4178
    %5083 = vmatpush1.bf16.msra.mxu0 %v4177
    %5084 = vmatprep.subr.bf16.mxu0 %v4188
    %5085 = vmatpush1.bf16.msra.mxu0 %v4187
    %5086 = vmatprep.subr.bf16.mxu0 %v4198
    %5087 = vmatpush1.bf16.msra.mxu0 %v4197
    %5088 = vmatprep.subr.bf16.mxu0 %v4208
    %5089 = vmatpush1.bf16.msra.mxu0 %v4207
    %5090 = vmatprep.subr.bf16.mxu0 %v4218
    %5091 = vmatpush1.bf16.msra.mxu0 %v4217
    %5092 = vmatprep.subr.bf16.mxu0 %v4228
    %5093 = vmatpush1.bf16.msra.mxu0 %v4227
    %5094 = vmatprep.subr.bf16.mxu0 %v4238
    %5095 = vmatpush1.bf16.msra.mxu0 %v4237
    %5096 = vmatprep.subr.bf16.mxu0 %v4248
    %5097 = vmatpush1.bf16.msra.mxu0 %v4247
    %5098 = vmatprep.subr.bf16.mxu0 %v4258
    %5099 = vmatpush1.bf16.msra.mxu0 %v4257
    %5100 = vmatprep.subr.bf16.mxu0 %v4268
    %5101 = vmatpush1.bf16.msra.mxu0 %v4267
    %5102 = vmatprep.subr.bf16.mxu0 %v4278
    %5103 = vmatpush1.bf16.msra.mxu0 %v4277
    %5104 = vmatprep.subr.bf16.mxu0 %v4288
    %5105 = vmatpush1.bf16.msra.mxu0 %v4287
    %5106 = vmatprep.mubr.bf16.mxu0 %v2317
    %5107 = vmatmul.mubr.bf16.gmra.mrb[0].mxu0 %v2316
    %v5108 = vpop.f32.mrb[0].mxu0
    %v5109 = vadd.f32 %v5066, %v5108
    %v5110 = vpop.f32.mrb[0].mxu0
    %v5111 = vadd.f32 %v5068, %v5110
    %v5112 = vpop.f32.mrb[0].mxu0
    %v5113 = vadd.f32 %v5070, %v5112
    %v5114 = vpop.f32.mrb[0].mxu0
    %v5115 = vadd.f32 %v5072, %v5114
    %5116 = vdwg.mxu0
    %5117 = vmatprep.subr.bf16.mxu0 %v4298
    %5118 = vmatpush1.bf16.msra.mxu0 %v4297
    %5119 = vmatprep.subr.bf16.mxu0 %v4308
    %5120 = vmatpush1.bf16.msra.mxu0 %v4307
    %5121 = vmatprep.subr.bf16.mxu0 %v4318
    %5122 = vmatpush1.bf16.msra.mxu0 %v4317
    %5123 = vmatprep.subr.bf16.mxu0 %v4328
    %5124 = vmatpush1.bf16.msra.mxu0 %v4327
    %5125 = vmatprep.subr.bf16.mxu0 %v4338
    %5126 = vmatpush1.bf16.msra.mxu0 %v4337
    %5127 = vmatprep.subr.bf16.mxu0 %v4348
    %5128 = vmatpush1.bf16.msra.mxu0 %v4347
    %5129 = vmatprep.subr.bf16.mxu0 %v4358
    %5130 = vmatpush1.bf16.msra.mxu0 %v4357
    %5131 = vmatprep.subr.bf16.mxu0 %v4368
    %5132 = vmatpush1.bf16.msra.mxu0 %v4367
    %5133 = vmatprep.subr.bf16.mxu0 0
    %5134 = vmatpush1.bf16.msra.mxu0 0
    %5135 = vmatprep.subr.bf16.mxu0 0
    %5136 = vmatpush1.bf16.msra.mxu0 0
    %5137 = vmatprep.subr.bf16.mxu0 0
    %5138 = vmatpush1.bf16.msra.mxu0 0
    %5139 = vmatprep.subr.bf16.mxu0 0
    %5140 = vmatpush1.bf16.msra.mxu0 0
    %5141 = vmatprep.subr.bf16.mxu0 0
    %5142 = vmatpush1.bf16.msra.mxu0 0
    %5143 = vmatprep.subr.bf16.mxu0 0
    %5144 = vmatpush1.bf16.msra.mxu0 0
    %5145 = vmatprep.subr.bf16.mxu0 0
    %5146 = vmatpush1.bf16.msra.mxu0 0
    %5147 = vmatprep.subr.bf16.mxu0 0
    %5148 = vmatpush1.bf16.msra.mxu0 0
    %5149 = vmatprep.mubr.bf16.mxu0 0
    %5150 = vmatmul.mubr.bf16.gmra.mrb[0].mxu0 %v2318
    %v5151 = vpop.f32.mrb[0].mxu0
    %v5152 = vadd.f32 %v5109, %v5151
    %v5153 = vpop.f32.mrb[0].mxu0
    %v5154 = vadd.f32 %v5111, %v5153
    %v5155 = vpop.f32.mrb[0].mxu0
    %v5156 = vadd.f32 %v5113, %v5155
    %v5157 = vpop.f32.mrb[0].mxu0
    %v5158 = vadd.f32 %v5115, %v5157
    %5159 = vdwg.mxu0
    %5160 = vmatprep.subr.bf16.mxu0 %v3980
    %5161 = vmatpush1.bf16.msra.mxu0 %v3979
    %5162 = vmatprep.subr.bf16.mxu0 %v3990
    %5163 = vmatpush1.bf16.msra.mxu0 %v3989
    %5164 = vmatprep.subr.bf16.mxu0 %v4000
    %5165 = vmatpush1.bf16.msra.mxu0 %v3999
    %5166 = vmatprep.subr.bf16.mxu0 %v4010
    %5167 = vmatpush1.bf16.msra.mxu0 %v4009
    %5168 = vmatprep.subr.bf16.mxu0 %v4020
    %5169 = vmatpush1.bf16.msra.mxu0 %v4019
    %5170 = vmatprep.subr.bf16.mxu0 %v4030
    %5171 = vmatpush1.bf16.msra.mxu0 %v4029
    %5172 = vmatprep.subr.bf16.mxu0 %v4040
    %5173 = vmatpush1.bf16.msra.mxu0 %v4039
    %5174 = vmatprep.subr.bf16.mxu0 %v4050
    %5175 = vmatpush1.bf16.msra.mxu0 %v4049
    %5176 = vmatprep.subr.bf16.mxu0 %v4060
    %5177 = vmatpush1.bf16.msra.mxu0 %v4059
    %5178 = vmatprep.subr.bf16.mxu0 %v4070
    %5179 = vmatpush1.bf16.msra.mxu0 %v4069
    %5180 = vmatprep.subr.bf16.mxu0 %v4080
    %5181 = vmatpush1.bf16.msra.mxu0 %v4079
    %5182 = vmatprep.subr.bf16.mxu0 %v4090
    %5183 = vmatpush1.bf16.msra.mxu0 %v4089
    %5184 = vmatprep.subr.bf16.mxu0 %v4100
    %5185 = vmatpush1.bf16.msra.mxu0 %v4099
    %5186 = vmatprep.subr.bf16.mxu0 %v4110
    %5187 = vmatpush1.bf16.msra.mxu0 %v4109
    %5188 = vmatprep.subr.bf16.mxu0 %v4120
    %5189 = vmatpush1.bf16.msra.mxu0 %v4119
    %5190 = vmatprep.subr.bf16.mxu0 %v4130
    %5191 = vmatpush1.bf16.msra.mxu0 %v4129
    %5192 = vmatprep.mubr.bf16.mxu0 %v2315
    %5193 = vmatmul.mubr.bf16.gmra.mrb[0].mxu0 %v2314
    %v5194 = vpop.f32.mrb[0].mxu0
    %v5195 = vadd.f32 %v2750, %v5194
    %v5196 = vpop.f32.mrb[0].mxu0
    %v5197 = vadd.f32 %v2754, %v5196
    %v5198 = vpop.f32.mrb[0].mxu0
    %v5199 = vadd.f32 %v2750, %v5198
    %v5200 = vpop.f32.mrb[0].mxu0
    %v5201 = vadd.f32 %v2754, %v5200
    %5202 = vdwg.mxu0
    %5203 = vmatprep.subr.bf16.mxu0 %v4140
    %5204 = vmatpush1.bf16.msra.mxu0 %v4139
    %5205 = vmatprep.subr.bf16.mxu0 %v4150
    %5206 = vmatpush1.bf16.msra.mxu0 %v4149
    %5207 = vmatprep.subr.bf16.mxu0 %v4160
    %5208 = vmatpush1.bf16.msra.mxu0 %v4159
    %5209 = vmatprep.subr.bf16.mxu0 %v4170
    %5210 = vmatpush1.bf16.msra.mxu0 %v4169
    %5211 = vmatprep.subr.bf16.mxu0 %v4180
    %5212 = vmatpush1.bf16.msra.mxu0 %v4179
    %5213 = vmatprep.subr.bf16.mxu0 %v4190
    %5214 = vmatpush1.bf16.msra.mxu0 %v4189
    %5215 = vmatprep.subr.bf16.mxu0 %v4200
    %5216 = vmatpush1.bf16.msra.mxu0 %v4199
    %5217 = vmatprep.subr.bf16.mxu0 %v4210
    %5218 = vmatpush1.bf16.msra.mxu0 %v4209
    %5219 = vmatprep.subr.bf16.mxu0 %v4220
    %5220 = vmatpush1.bf16.msra.mxu0 %v4219
    %5221 = vmatprep.subr.bf16.mxu0 %v4230
    %5222 = vmatpush1.bf16.msra.mxu0 %v4229
    %5223 = vmatprep.subr.bf16.mxu0 %v4240
    %5224 = vmatpush1.bf16.msra.mxu0 %v4239
    %5225 = vmatprep.subr.bf16.mxu0 %v4250
    %5226 = vmatpush1.bf16.msra.mxu0 %v4249
    %5227 = vmatprep.subr.bf16.mxu0 %v4260
    %5228 = vmatpush1.bf16.msra.mxu0 %v4259
    %5229 = vmatprep.subr.bf16.mxu0 %v4270
    %5230 = vmatpush1.bf16.msra.mxu0 %v4269
    %5231 = vmatprep.subr.bf16.mxu0 %v4280
    %5232 = vmatpush1.bf16.msra.mxu0 %v4279
    %5233 = vmatprep.subr.bf16.mxu0 %v4290
    %5234 = vmatpush1.bf16.msra.mxu0 %v4289
    %5235 = vmatprep.mubr.bf16.mxu0 %v2317
    %5236 = vmatmul.mubr.bf16.gmra.mrb[0].mxu0 %v2316
    %v5237 = vpop.f32.mrb[0].mxu0
    %v5238 = vadd.f32 %v5195, %v5237
    %v5239 = vpop.f32.mrb[0].mxu0
    %v5240 = vadd.f32 %v5197, %v5239
    %v5241 = vpop.f32.mrb[0].mxu0
    %v5242 = vadd.f32 %v5199, %v5241
    %v5243 = vpop.f32.mrb[0].mxu0
    %v5244 = vadd.f32 %v5201, %v5243
    %5245 = vdwg.mxu0
    %5246 = vmatprep.subr.bf16.mxu0 %v4300
    %5247 = vmatpush1.bf16.msra.mxu0 %v4299
    %5248 = vmatprep.subr.bf16.mxu0 %v4310
    %5249 = vmatpush1.bf16.msra.mxu0 %v4309
    %5250 = vmatprep.subr.bf16.mxu0 %v4320
    %5251 = vmatpush1.bf16.msra.mxu0 %v4319
    %5252 = vmatprep.subr.bf16.mxu0 %v4330
    %5253 = vmatpush1.bf16.msra.mxu0 %v4329
    %5254 = vmatprep.subr.bf16.mxu0 %v4340
    %5255 = vmatpush1.bf16.msra.mxu0 %v4339
    %5256 = vmatprep.subr.bf16.mxu0 %v4350
    %5257 = vmatpush1.bf16.msra.mxu0 %v4349
    %5258 = vmatprep.subr.bf16.mxu0 %v4360
    %5259 = vmatpush1.bf16.msra.mxu0 %v4359
    %5260 = vmatprep.subr.bf16.mxu0 %v4370
    %5261 = vmatpush1.bf16.msra.mxu0 %v4369
    %5262 = vmatprep.subr.bf16.mxu0 0
    %5263 = vmatpush1.bf16.msra.mxu0 0
    %5264 = vmatprep.subr.bf16.mxu0 0
    %5265 = vmatpush1.bf16.msra.mxu0 0
    %5266 = vmatprep.subr.bf16.mxu0 0
    %5267 = vmatpush1.bf16.msra.mxu0 0
    %5268 = vmatprep.subr.bf16.mxu0 0
    %5269 = vmatpush1.bf16.msra.mxu0 0
    %5270 = vmatprep.subr.bf16.mxu0 0
    %5271 = vmatpush1.bf16.msra.mxu0 0
    %5272 = vmatprep.subr.bf16.mxu0 0
    %5273 = vmatpush1.bf16.msra.mxu0 0
    %5274 = vmatprep.subr.bf16.mxu0 0
    %5275 = vmatpush1.bf16.msra.mxu0 0
    %5276 = vmatprep.subr.bf16.mxu0 0
    %5277 = vmatpush1.bf16.msra.mxu0 0
    %5278 = vmatprep.mubr.bf16.mxu0 0
    %5279 = vmatmul.mubr.bf16.gmra.mrb[0].mxu0 %v2318
    %v5280 = vpop.f32.mrb[0].mxu0
    %v5281 = vadd.f32 %v5238, %v5280
    %v5282 = vpop.f32.mrb[0].mxu0
    %v5283 = vadd.f32 %v5240, %v5282
    %v5284 = vpop.f32.mrb[0].mxu0
    %v5285 = vadd.f32 %v5242, %v5284
    %v5286 = vpop.f32.mrb[0].mxu0
    %v5287 = vadd.f32 %v5244, %v5286
    %5288 = vdwg.mxu0
    %5289 = vmatprep.subr.bf16.mxu0 %v3982
    %5290 = vmatpush1.bf16.msra.mxu0 %v3981
    %5291 = vmatprep.subr.bf16.mxu0 %v3992
    %5292 = vmatpush1.bf16.msra.mxu0 %v3991
    %5293 = vmatprep.subr.bf16.mxu0 %v4002
    %5294 = vmatpush1.bf16.msra.mxu0 %v4001
    %5295 = vmatprep.subr.bf16.mxu0 %v4012
    %5296 = vmatpush1.bf16.msra.mxu0 %v4011
    %5297 = vmatprep.subr.bf16.mxu0 %v4022
    %5298 = vmatpush1.bf16.msra.mxu0 %v4021
    %5299 = vmatprep.subr.bf16.mxu0 %v4032
    %5300 = vmatpush1.bf16.msra.mxu0 %v4031
    %5301 = vmatprep.subr.bf16.mxu0 %v4042
    %5302 = vmatpush1.bf16.msra.mxu0 %v4041
    %5303 = vmatprep.subr.bf16.mxu0 %v4052
    %5304 = vmatpush1.bf16.msra.mxu0 %v4051
    %5305 = vmatprep.subr.bf16.mxu0 %v4062
    %5306 = vmatpush1.bf16.msra.mxu0 %v4061
    %5307 = vmatprep.subr.bf16.mxu0 %v4072
    %5308 = vmatpush1.bf16.msra.mxu0 %v4071
    %5309 = vmatprep.subr.bf16.mxu0 %v4082
    %5310 = vmatpush1.bf16.msra.mxu0 %v4081
    %5311 = vmatprep.subr.bf16.mxu0 %v4092
    %5312 = vmatpush1.bf16.msra.mxu0 %v4091
    %5313 = vmatprep.subr.bf16.mxu0 %v4102
    %5314 = vmatpush1.bf16.msra.mxu0 %v4101
    %5315 = vmatprep.subr.bf16.mxu0 %v4112
    %5316 = vmatpush1.bf16.msra.mxu0 %v4111
    %5317 = vmatprep.subr.bf16.mxu0 %v4122
    %5318 = vmatpush1.bf16.msra.mxu0 %v4121
    %5319 = vmatprep.subr.bf16.mxu0 %v4132
    %5320 = vmatpush1.bf16.msra.mxu0 %v4131
    %5321 = vmatprep.mubr.bf16.mxu0 %v2315
    %5322 = vmatmul.mubr.bf16.gmra.mrb[0].mxu0 %v2314
    %v5323 = vpop.f32.mrb[0].mxu0
    %v5324 = vadd.f32 %v2758, %v5323
    %v5325 = vpop.f32.mrb[0].mxu0
    %v5326 = vadd.f32 %v2762, %v5325
    %v5327 = vpop.f32.mrb[0].mxu0
    %v5328 = vadd.f32 %v2758, %v5327
    %v5329 = vpop.f32.mrb[0].mxu0
    %v5330 = vadd.f32 %v2762, %v5329
    %5331 = vdwg.mxu0
    %5332 = vmatprep.subr.bf16.mxu0 %v4142
    %5333 = vmatpush1.bf16.msra.mxu0 %v4141
    %5334 = vmatprep.subr.bf16.mxu0 %v4152
    %5335 = vmatpush1.bf16.msra.mxu0 %v4151
    %5336 = vmatprep.subr.bf16.mxu0 %v4162
    %5337 = vmatpush1.bf16.msra.mxu0 %v4161
    %5338 = vmatprep.subr.bf16.mxu0 %v4172
    %5339 = vmatpush1.bf16.msra.mxu0 %v4171
    %5340 = vmatprep.subr.bf16.mxu0 %v4182
    %5341 = vmatpush1.bf16.msra.mxu0 %v4181
    %5342 = vmatprep.subr.bf16.mxu0 %v4192
    %5343 = vmatpush1.bf16.msra.mxu0 %v4191
    %5344 = vmatprep.subr.bf16.mxu0 %v4202
    %5345 = vmatpush1.bf16.msra.mxu0 %v4201
    %5346 = vmatprep.subr.bf16.mxu0 %v4212
    %5347 = vmatpush1.bf16.msra.mxu0 %v4211
    %5348 = vmatprep.subr.bf16.mxu0 %v4222
    %5349 = vmatpush1.bf16.msra.mxu0 %v4221
    %5350 = vmatprep.subr.bf16.mxu0 %v4232
    %5351 = vmatpush1.bf16.msra.mxu0 %v4231
    %5352 = vmatprep.subr.bf16.mxu0 %v4242
    %5353 = vmatpush1.bf16.msra.mxu0 %v4241
    %5354 = vmatprep.subr.bf16.mxu0 %v4252
    %5355 = vmatpush1.bf16.msra.mxu0 %v4251
    %5356 = vmatprep.subr.bf16.mxu0 %v4262
    %5357 = vmatpush1.bf16.msra.mxu0 %v4261
    %5358 = vmatprep.subr.bf16.mxu0 %v4272
    %5359 = vmatpush1.bf16.msra.mxu0 %v4271
    %5360 = vmatprep.subr.bf16.mxu0 %v4282
    %5361 = vmatpush1.bf16.msra.mxu0 %v4281
    %5362 = vmatprep.subr.bf16.mxu0 %v4292
    %5363 = vmatpush1.bf16.msra.mxu0 %v4291
    %5364 = vmatprep.mubr.bf16.mxu0 %v2317
    %5365 = vmatmul.mubr.bf16.gmra.mrb[0].mxu0 %v2316
    %v5366 = vpop.f32.mrb[0].mxu0
    %v5367 = vadd.f32 %v5324, %v5366
    %v5368 = vpop.f32.mrb[0].mxu0
    %v5369 = vadd.f32 %v5326, %v5368
    %v5370 = vpop.f32.mrb[0].mxu0
    %v5371 = vadd.f32 %v5328, %v5370
    %v5372 = vpop.f32.mrb[0].mxu0
    %v5373 = vadd.f32 %v5330, %v5372
    %5374 = vdwg.mxu0
    %5375 = vmatprep.subr.bf16.mxu0 %v4302
    %5376 = vmatpush1.bf16.msra.mxu0 %v4301
    %5377 = vmatprep.subr.bf16.mxu0 %v4312
    %5378 = vmatpush1.bf16.msra.mxu0 %v4311
    %5379 = vmatprep.subr.bf16.mxu0 %v4322
    %5380 = vmatpush1.bf16.msra.mxu0 %v4321
    %5381 = vmatprep.subr.bf16.mxu0 %v4332
    %5382 = vmatpush1.bf16.msra.mxu0 %v4331
    %5383 = vmatprep.subr.bf16.mxu0 %v4342
    %5384 = vmatpush1.bf16.msra.mxu0 %v4341
    %5385 = vmatprep.subr.bf16.mxu0 %v4352
    %5386 = vmatpush1.bf16.msra.mxu0 %v4351
    %5387 = vmatprep.subr.bf16.mxu0 %v4362
    %5388 = vmatpush1.bf16.msra.mxu0 %v4361
    %5389 = vmatprep.subr.bf16.mxu0 %v4372
    %5390 = vmatpush1.bf16.msra.mxu0 %v4371
    %5391 = vmatprep.subr.bf16.mxu0 0
    %5392 = vmatpush1.bf16.msra.mxu0 0
    %5393 = vmatprep.subr.bf16.mxu0 0
    %5394 = vmatpush1.bf16.msra.mxu0 0
    %5395 = vmatprep.subr.bf16.mxu0 0
    %5396 = vmatpush1.bf16.msra.mxu0 0
    %5397 = vmatprep.subr.bf16.mxu0 0
    %5398 = vmatpush1.bf16.msra.mxu0 0
    %5399 = vmatprep.subr.bf16.mxu0 0
    %5400 = vmatpush1.bf16.msra.mxu0 0
    %5401 = vmatprep.subr.bf16.mxu0 0
    %5402 = vmatpush1.bf16.msra.mxu0 0
    %5403 = vmatprep.subr.bf16.mxu0 0
    %5404 = vmatpush1.bf16.msra.mxu0 0
    %5405 = vmatprep.subr.bf16.mxu0 0
    %5406 = vmatpush1.bf16.msra.mxu0 0
    %5407 = vmatprep.mubr.bf16.mxu0 0
    %5408 = vmatmul.mubr.bf16.gmra.mrb[0].mxu0 %v2318
    %v5409 = vpop.f32.mrb[0].mxu0
    %v5410 = vadd.f32 %v5367, %v5409
    %v5411 = vpop.f32.mrb[0].mxu0
    %v5412 = vadd.f32 %v5369, %v5411
    %v5413 = vpop.f32.mrb[0].mxu0
    %v5414 = vadd.f32 %v5371, %v5413
    %v5415 = vpop.f32.mrb[0].mxu0
    %v5416 = vadd.f32 %v5373, %v5415
    %5417 = vdwg.mxu0
    %v5418 = vmax.f32 %v4894, 0.0
    %v5419 = vmax.f32 %v4896, 0.0
    %v5420 = vmax.f32 %v5023, 0.0
    %v5421 = vmax.f32 %v5025, 0.0
    %v5422 = vmax.f32 %v5152, 0.0
    %v5423 = vmax.f32 %v4898, 0.0
    %v5424 = vmax.f32 %v4900, 0.0
    %v5425 = vmax.f32 %v5027, 0.0
    %v5426 = vmax.f32 %v5029, 0.0
    %v5427 = vmax.f32 %v5156, 0.0
    %v5428 = vxor.u32 %v5154, 2147483648
    %v5429 = vxor.u32 %v5281, 2147483648
    %v5430 = vxor.u32 %v5283, 2147483648
    %v5431 = vxor.u32 %v5410, 2147483648
    %v5432 = vxor.u32 %v5412, 2147483648
    %v5433 = vxor.u32 %v5158, 2147483648
    %v5434 = vxor.u32 %v5285, 2147483648
    %v5435 = vxor.u32 %v5287, 2147483648
    %v5436 = vxor.u32 %v5414, 2147483648
    %v5437 = vxor.u32 %v5416, 2147483648
    %v5438 = vmul.f32 %v5428, 1.442695
    %v5439 = vpow.pop %v5438
    %v5440 = vmul.f32 %v5429, 1.442695
    %v5441 = vpow.pop %v5440
    %v5442 = vmul.f32 %v5430, 1.442695
    %v5443 = vpow.pop %v5442
    %v5444 = vmul.f32 %v5431, 1.442695
    %v5445 = vpow.pop %v5444
    %v5446 = vmul.f32 %v5432, 1.442695
    %v5447 = vpow.pop %v5446
    %v5448 = vmul.f32 %v5433, 1.442695
    %v5449 = vpow.pop %v5448
    %v5450 = vmul.f32 %v5434, 1.442695
    %v5451 = vpow.pop %v5450
    %v5452 = vmul.f32 %v5435, 1.442695
    %v5453 = vpow.pop %v5452
    %v5454 = vmul.f32 %v5436, 1.442695
    %v5455 = vpow.pop %v5454
    %v5456 = vmul.f32 %v5437, 1.442695
    %v5457 = vpow.pop %v5456
    %v5458 = vadd.f32 %v5439, 1.0
    %v5459 = vadd.f32 %v5441, 1.0
    %v5460 = vadd.f32 %v5443, 1.0
    %v5461 = vadd.f32 %v5445, 1.0
    %v5462 = vadd.f32 %v5447, 1.0
    %v5463 = vadd.f32 %v5449, 1.0
    %v5464 = vadd.f32 %v5451, 1.0
    %v5465 = vadd.f32 %v5453, 1.0
    %v5466 = vadd.f32 %v5455, 1.0
    %v5467 = vadd.f32 %v5457, 1.0
    %v5468 = vrcp.pop %v5458
    %v5469 = vmul.f32 1.0, %v5468
    %v5470 = vrcp.pop %v5459
    %v5471 = vmul.f32 1.0, %v5470
    %v5472 = vrcp.pop %v5460
    %v5473 = vmul.f32 1.0, %v5472
    %v5474 = vrcp.pop %v5461
    %v5475 = vmul.f32 1.0, %v5474
    %v5476 = vrcp.pop %v5462
    %v5477 = vmul.f32 1.0, %v5476
    %v5478 = vrcp.pop %v5463
    %v5479 = vmul.f32 1.0, %v5478
    %v5480 = vrcp.pop %v5464
    %v5481 = vmul.f32 1.0, %v5480
    %v5482 = vrcp.pop %v5465
    %v5483 = vmul.f32 1.0, %v5482
    %v5484 = vrcp.pop %v5466
    %v5485 = vmul.f32 1.0, %v5484
    %v5486 = vrcp.pop %v5467
    %v5487 = vmul.f32 1.0, %v5486
    %v5488 = vmul.f32 %v5469, %v2304
    %v5489 = vmul.f32 %v5471, %v2305
    %v5490 = vmul.f32 %v5473, %v2306
    %v5491 = vmul.f32 %v5475, %v2307
    %v5492 = vmul.f32 %v5477, %v2308
    %v5493 = vmul.f32 %v5479, %v2309
    %v5494 = vmul.f32 %v5481, %v2310
    %v5495 = vmul.f32 %v5483, %v2311
    %v5496 = vmul.f32 %v5485, %v2312
    %v5497 = vmul.f32 %v5487, %v2313
    %v5498 = vsub.f32 1.0, %v5469
    %v5499 = vsub.f32 1.0, %v5471
    %v5500 = vsub.f32 1.0, %v5473
    %v5501 = vsub.f32 1.0, %v5475
    %v5502 = vsub.f32 1.0, %v5477
    %v5503 = vsub.f32 1.0, %v5479
    %v5504 = vsub.f32 1.0, %v5481
    %v5505 = vsub.f32 1.0, %v5483
    %v5506 = vsub.f32 1.0, %v5485
    %v5507 = vsub.f32 1.0, %v5487
    %v5508 = vmul.f32 %v5498, %v5418
    %v5509 = vmul.f32 %v5499, %v5419
    %v5510 = vmul.f32 %v5500, %v5420
    %v5511 = vmul.f32 %v5501, %v5421
    %v5512 = vmul.f32 %v5502, %v5422
    %v5513 = vmul.f32 %v5503, %v5423
    %v5514 = vmul.f32 %v5504, %v5424
    %v5515 = vmul.f32 %v5505, %v5425
    %v5516 = vmul.f32 %v5506, %v5426
    %v5517 = vmul.f32 %v5507, %v5427
    %v5518 = vadd.f32 %v5488, %v5508
    %v5519 = vadd.f32 %v5489, %v5509
    %v5520 = vadd.f32 %v5490, %v5510
    %v5521 = vadd.f32 %v5491, %v5511
    %v5522 = vadd.f32 %v5492, %v5512
    %v5523 = vadd.f32 %v5493, %v5513
    %v5524 = vadd.f32 %v5494, %v5514
    %v5525 = vadd.f32 %v5495, %v5515
    %v5526 = vadd.f32 %v5496, %v5516
    %v5527 = vadd.f32 %v5497, %v5517
    %v5528 = vpack.c.bf16 %v5523, %v5518
    %v5529 = vpack.c.bf16 %v5524, %v5519
    %v5530 = vpack.c.bf16 %v5525, %v5520
    %v5531 = vpack.c.bf16 %v5526, %v5521
    %v5532 = vpack.c.bf16 %v5527, %v5522
    %v5533 = vld [vmem:[#allocation10] sm:$0xff]
    %v5534 = vld [vmem:[#allocation10 + $0x8] sm:$0xff]
    %v5535 = vld [vmem:[#allocation10 + $0x10] sm:$0xff]
    %v5536 = vld [vmem:[#allocation10 + $0x18] sm:$0xff]
    %v5537 = vld [vmem:[#allocation10 + $0x20] sm:$0xff]
    %v5538 = vld [vmem:[#allocation10 + $0x28] sm:$0xff]
    %v5539 = vld [vmem:[#allocation10 + $0x30] sm:$0xff]
    %v5540 = vld [vmem:[#allocation10 + $0x38] sm:$0xff]
    %v5541 = vld [vmem:[#allocation10 + $0x40] sm:$0xff]
    %v5542 = vld [vmem:[#allocation10 + $0x48] sm:$0xff]
    %v5543 = vld [vmem:[#allocation10 + $0x50] sm:$0xff]
    %v5544 = vld [vmem:[#allocation10 + $0x58] sm:$0xff]
    %v5545 = vld [vmem:[#allocation10 + $0x60] sm:$0xff]
    %v5546 = vld [vmem:[#allocation10 + $0x68] sm:$0xff]
    %v5547 = vld [vmem:[#allocation10 + $0x70] sm:$0xff]
    %v5548 = vld [vmem:[#allocation10 + $0x78] sm:$0xff]
    %v5549 = vld [vmem:[#allocation10 + $0x80] sm:$0xff]
    %v5550 = vld [vmem:[#allocation10 + $0x88] sm:$0xff]
    %v5551 = vld [vmem:[#allocation10 + $0x90] sm:$0xff]
    %v5552 = vld [vmem:[#allocation10 + $0x98] sm:$0xff]
    %v5553 = vld [vmem:[#allocation10 + $0xa0] sm:$0xff]
    %v5554 = vld [vmem:[#allocation10 + $0xa8] sm:$0xff]
    %v5555 = vld [vmem:[#allocation10 + $0xb0] sm:$0xff]
    %v5556 = vld [vmem:[#allocation10 + $0xb8] sm:$0xff]
    %v5557 = vld [vmem:[#allocation10 + $0xc0] sm:$0xff]
    %v5558 = vld [vmem:[#allocation10 + $0xc8] sm:$0xff]
    %v5559 = vld [vmem:[#allocation10 + $0xd0] sm:$0xff]
    %v5560 = vld [vmem:[#allocation10 + $0xd8] sm:$0xff]
    %v5561 = vld [vmem:[#allocation10 + $0xe0] sm:$0xff]
    %v5562 = vld [vmem:[#allocation10 + $0xe8] sm:$0xff]
    %v5563 = vld [vmem:[#allocation10 + $0xf0] sm:$0xff]
    %v5564 = vld [vmem:[#allocation10 + $0xf8] sm:$0xff]
    %v5565 = vld [vmem:[#allocation10 + $0x100] sm:$0xff]
    %v5566 = vld [vmem:[#allocation10 + $0x108] sm:$0xff]
    %v5567 = vld [vmem:[#allocation10 + $0x110] sm:$0xff]
    %v5568 = vld [vmem:[#allocation10 + $0x118] sm:$0xff]
    %v5569 = vld [vmem:[#allocation10 + $0x120] sm:$0xff]
    %v5570 = vld [vmem:[#allocation10 + $0x128] sm:$0xff]
    %v5571 = vld [vmem:[#allocation10 + $0x130] sm:$0xff]
    %v5572 = vld [vmem:[#allocation10 + $0x138] sm:$0xff]
    %v5573 = vld [vmem:[#allocation10 + $0x140] sm:$0xff]
    %v5574 = vld [vmem:[#allocation10 + $0x148] sm:$0xff]
    %v5575 = vld [vmem:[#allocation10 + $0x150] sm:$0xff]
    %v5576 = vld [vmem:[#allocation10 + $0x158] sm:$0xff]
    %v5577 = vld [vmem:[#allocation10 + $0x160] sm:$0xff]
    %v5578 = vld [vmem:[#allocation10 + $0x168] sm:$0xff]
    %v5579 = vld [vmem:[#allocation10 + $0x170] sm:$0xff]
    %v5580 = vld [vmem:[#allocation10 + $0x178] sm:$0xff]
    %v5581 = vld [vmem:[#allocation10 + $0x180] sm:$0xff]
    %v5582 = vld [vmem:[#allocation10 + $0x188] sm:$0xff]
    %v5583 = vld [vmem:[#allocation10 + $0x190] sm:$0xff]
    %v5584 = vld [vmem:[#allocation10 + $0x198] sm:$0xff]
    %v5585 = vld [vmem:[#allocation10 + $0x1a0] sm:$0xff]
    %v5586 = vld [vmem:[#allocation10 + $0x1a8] sm:$0xff]
    %v5587 = vld [vmem:[#allocation10 + $0x1b0] sm:$0xff]
    %v5588 = vld [vmem:[#allocation10 + $0x1b8] sm:$0xff]
    %v5589 = vld [vmem:[#allocation10 + $0x1c0] sm:$0xff]
    %v5590 = vld [vmem:[#allocation10 + $0x1c8] sm:$0xff]
    %v5591 = vld [vmem:[#allocation10 + $0x1d0] sm:$0xff]
    %v5592 = vld [vmem:[#allocation10 + $0x1d8] sm:$0xff]
    %v5593 = vld [vmem:[#allocation10 + $0x1e0] sm:$0xff]
    %v5594 = vld [vmem:[#allocation10 + $0x1e8] sm:$0xff]
    %v5595 = vld [vmem:[#allocation10 + $0x1f0] sm:$0xff]
    %v5596 = vld [vmem:[#allocation10 + $0x1f8] sm:$0xff]
    %v5597 = vld [vmem:[#allocation10 + $0x200] sm:$0xff]
    %v5598 = vld [vmem:[#allocation10 + $0x208] sm:$0xff]
    %v5599 = vld [vmem:[#allocation10 + $0x210] sm:$0xff]
    %v5600 = vld [vmem:[#allocation10 + $0x218] sm:$0xff]
    %v5601 = vld [vmem:[#allocation10 + $0x220] sm:$0xff]
    %v5602 = vld [vmem:[#allocation10 + $0x228] sm:$0xff]
    %v5603 = vld [vmem:[#allocation10 + $0x230] sm:$0xff]
    %v5604 = vld [vmem:[#allocation10 + $0x238] sm:$0xff]
    %v5605 = vld [vmem:[#allocation10 + $0x240] sm:$0xff]
    %v5606 = vld [vmem:[#allocation10 + $0x248] sm:$0xff]
    %v5607 = vld [vmem:[#allocation10 + $0x250] sm:$0xff]
    %v5608 = vld [vmem:[#allocation10 + $0x258] sm:$0xff]
    %v5609 = vld [vmem:[#allocation10 + $0x260] sm:$0xff]
    %v5610 = vld [vmem:[#allocation10 + $0x268] sm:$0xff]
    %v5611 = vld [vmem:[#allocation10 + $0x270] sm:$0xff]
    %v5612 = vld [vmem:[#allocation10 + $0x278] sm:$0xff]
    %v5613 = vld [vmem:[#allocation10 + $0x280] sm:$0xff]
    %v5614 = vld [vmem:[#allocation10 + $0x288] sm:$0xff]
    %v5615 = vld [vmem:[#allocation10 + $0x290] sm:$0xff]
    %v5616 = vld [vmem:[#allocation10 + $0x298] sm:$0xff]
    %v5617 = vld [vmem:[#allocation10 + $0x2a0] sm:$0xff]
    %v5618 = vld [vmem:[#allocation10 + $0x2a8] sm:$0xff]
    %v5619 = vld [vmem:[#allocation10 + $0x2b0] sm:$0xff]
    %v5620 = vld [vmem:[#allocation10 + $0x2b8] sm:$0xff]
    %v5621 = vld [vmem:[#allocation10 + $0x2c0] sm:$0xff]
    %v5622 = vld [vmem:[#allocation10 + $0x2c8] sm:$0xff]
    %v5623 = vld [vmem:[#allocation10 + $0x2d0] sm:$0xff]
    %v5624 = vld [vmem:[#allocation10 + $0x2d8] sm:$0xff]
    %v5625 = vld [vmem:[#allocation10 + $0x2e0] sm:$0xff]
    %v5626 = vld [vmem:[#allocation10 + $0x2e8] sm:$0xff]
    %v5627 = vld [vmem:[#allocation10 + $0x2f0] sm:$0xff]
    %v5628 = vld [vmem:[#allocation10 + $0x2f8] sm:$0xff]
    %v5629 = vld [vmem:[#allocation10 + $0x300] sm:$0xff]
    %v5630 = vld [vmem:[#allocation10 + $0x308] sm:$0xff]
    %v5631 = vld [vmem:[#allocation10 + $0x310] sm:$0xff]
    %v5632 = vld [vmem:[#allocation10 + $0x318] sm:$0xff]
    %v5633 = vld [vmem:[#allocation10 + $0x320] sm:$0xff]
    %v5634 = vld [vmem:[#allocation10 + $0x328] sm:$0xff]
    %v5635 = vld [vmem:[#allocation10 + $0x330] sm:$0xff]
    %v5636 = vld [vmem:[#allocation10 + $0x338] sm:$0xff]
    %v5637 = vld [vmem:[#allocation10 + $0x340] sm:$0xff]
    %v5638 = vld [vmem:[#allocation10 + $0x348] sm:$0xff]
    %v5639 = vld [vmem:[#allocation10 + $0x350] sm:$0xff]
    %v5640 = vld [vmem:[#allocation10 + $0x358] sm:$0xff]
    %v5641 = vld [vmem:[#allocation10 + $0x360] sm:$0xff]
    %v5642 = vld [vmem:[#allocation10 + $0x368] sm:$0xff]
    %v5643 = vld [vmem:[#allocation10 + $0x370] sm:$0xff]
    %v5644 = vld [vmem:[#allocation10 + $0x378] sm:$0xff]
    %v5645 = vld [vmem:[#allocation10 + $0x380] sm:$0xff]
    %v5646 = vld [vmem:[#allocation10 + $0x388] sm:$0xff]
    %v5647 = vld [vmem:[#allocation10 + $0x390] sm:$0xff]
    %v5648 = vld [vmem:[#allocation10 + $0x398] sm:$0xff]
    %v5649 = vld [vmem:[#allocation10 + $0x3a0] sm:$0xff]
    %v5650 = vld [vmem:[#allocation10 + $0x3a8] sm:$0xff]
    %v5651 = vld [vmem:[#allocation10 + $0x3b0] sm:$0xff]
    %v5652 = vld [vmem:[#allocation10 + $0x3b8] sm:$0xff]
    %v5653 = vld [vmem:[#allocation10 + $0x3c0] sm:$0xff]
    %v5654 = vld [vmem:[#allocation10 + $0x3c8] sm:$0xff]
    %v5655 = vld [vmem:[#allocation10 + $0x3d0] sm:$0xff]
    %v5656 = vld [vmem:[#allocation10 + $0x3d8] sm:$0xff]
    %v5657 = vld [vmem:[#allocation10 + $0x3e0] sm:$0xff]
    %v5658 = vld [vmem:[#allocation10 + $0x3e8] sm:$0xff]
    %v5659 = vld [vmem:[#allocation10 + $0x3f0] sm:$0xff]
    %v5660 = vld [vmem:[#allocation10 + $0x3f8] sm:$0xff]
    %v5661 = vld [vmem:[#allocation10 + $0x400] sm:$0xff]
    %v5662 = vld [vmem:[#allocation10 + $0x408] sm:$0xff]
    %v5663 = vld [vmem:[#allocation10 + $0x410] sm:$0xff]
    %v5664 = vld [vmem:[#allocation10 + $0x418] sm:$0xff]
    %v5665 = vld [vmem:[#allocation10 + $0x420] sm:$0xff]
    %v5666 = vld [vmem:[#allocation10 + $0x428] sm:$0xff]
    %v5667 = vld [vmem:[#allocation10 + $0x430] sm:$0xff]
    %v5668 = vld [vmem:[#allocation10 + $0x438] sm:$0xff]
    %v5669 = vld [vmem:[#allocation10 + $0x440] sm:$0xff]
    %v5670 = vld [vmem:[#allocation10 + $0x448] sm:$0xff]
    %v5671 = vld [vmem:[#allocation10 + $0x450] sm:$0xff]
    %v5672 = vld [vmem:[#allocation10 + $0x458] sm:$0xff]
    %v5673 = vld [vmem:[#allocation10 + $0x460] sm:$0xff]
    %v5674 = vld [vmem:[#allocation10 + $0x468] sm:$0xff]
    %v5675 = vld [vmem:[#allocation10 + $0x470] sm:$0xff]
    %v5676 = vld [vmem:[#allocation10 + $0x478] sm:$0xff]
    %v5677 = vld [vmem:[#allocation10 + $0x480] sm:$0xff]
    %v5678 = vld [vmem:[#allocation10 + $0x488] sm:$0xff]
    %v5679 = vld [vmem:[#allocation10 + $0x490] sm:$0xff]
    %v5680 = vld [vmem:[#allocation10 + $0x498] sm:$0xff]
    %v5681 = vld [vmem:[#allocation10 + $0x4a0] sm:$0xff]
    %v5682 = vld [vmem:[#allocation10 + $0x4a8] sm:$0xff]
    %v5683 = vld [vmem:[#allocation10 + $0x4b0] sm:$0xff]
    %v5684 = vld [vmem:[#allocation10 + $0x4b8] sm:$0xff]
    %v5685 = vld [vmem:[#allocation10 + $0x4c0] sm:$0xff]
    %v5686 = vld [vmem:[#allocation10 + $0x4c8] sm:$0xff]
    %v5687 = vld [vmem:[#allocation10 + $0x4d0] sm:$0xff]
    %v5688 = vld [vmem:[#allocation10 + $0x4d8] sm:$0xff]
    %v5689 = vld [vmem:[#allocation10 + $0x4e0] sm:$0xff]
    %v5690 = vld [vmem:[#allocation10 + $0x4e8] sm:$0xff]
    %v5691 = vld [vmem:[#allocation10 + $0x4f0] sm:$0xff]
    %v5692 = vld [vmem:[#allocation10 + $0x4f8] sm:$0xff]
    %v5693 = vld [vmem:[#allocation10 + $0x500] sm:$0xff]
    %v5694 = vld [vmem:[#allocation10 + $0x508] sm:$0xff]
    %v5695 = vld [vmem:[#allocation10 + $0x510] sm:$0xff]
    %v5696 = vld [vmem:[#allocation10 + $0x518] sm:$0xff]
    %v5697 = vld [vmem:[#allocation10 + $0x520] sm:$0xff]
    %v5698 = vld [vmem:[#allocation10 + $0x528] sm:$0xff]
    %v5699 = vld [vmem:[#allocation10 + $0x530] sm:$0xff]
    %v5700 = vld [vmem:[#allocation10 + $0x538] sm:$0xff]
    %v5701 = vld [vmem:[#allocation10 + $0x540] sm:$0xff]
    %v5702 = vld [vmem:[#allocation10 + $0x548] sm:$0xff]
    %v5703 = vld [vmem:[#allocation10 + $0x550] sm:$0xff]
    %v5704 = vld [vmem:[#allocation10 + $0x558] sm:$0xff]
    %v5705 = vld [vmem:[#allocation10 + $0x560] sm:$0xff]
    %v5706 = vld [vmem:[#allocation10 + $0x568] sm:$0xff]
    %v5707 = vld [vmem:[#allocation10 + $0x570] sm:$0xff]
    %v5708 = vld [vmem:[#allocation10 + $0x578] sm:$0xff]
    %v5709 = vld [vmem:[#allocation10 + $0x580] sm:$0xff]
    %v5710 = vld [vmem:[#allocation10 + $0x588] sm:$0xff]
    %v5711 = vld [vmem:[#allocation10 + $0x590] sm:$0xff]
    %v5712 = vld [vmem:[#allocation10 + $0x598] sm:$0xff]
    %v5713 = vld [vmem:[#allocation10 + $0x5a0] sm:$0xff]
    %v5714 = vld [vmem:[#allocation10 + $0x5a8] sm:$0xff]
    %v5715 = vld [vmem:[#allocation10 + $0x5b0] sm:$0xff]
    %v5716 = vld [vmem:[#allocation10 + $0x5b8] sm:$0xff]
    %v5717 = vld [vmem:[#allocation10 + $0x5c0] sm:$0xff]
    %v5718 = vld [vmem:[#allocation10 + $0x5c8] sm:$0xff]
    %v5719 = vld [vmem:[#allocation10 + $0x5d0] sm:$0xff]
    %v5720 = vld [vmem:[#allocation10 + $0x5d8] sm:$0xff]
    %v5721 = vld [vmem:[#allocation10 + $0x5e0] sm:$0xff]
    %v5722 = vld [vmem:[#allocation10 + $0x5e8] sm:$0xff]
    %v5723 = vld [vmem:[#allocation10 + $0x5f0] sm:$0xff]
    %v5724 = vld [vmem:[#allocation10 + $0x5f8] sm:$0xff]
    %v5725 = vld [vmem:[#allocation10 + $0x600] sm:$0xff]
    %v5726 = vld [vmem:[#allocation10 + $0x608] sm:$0xff]
    %v5727 = vld [vmem:[#allocation10 + $0x610] sm:$0xff]
    %v5728 = vld [vmem:[#allocation10 + $0x618] sm:$0xff]
    %v5729 = vld [vmem:[#allocation10 + $0x620] sm:$0xff]
    %v5730 = vld [vmem:[#allocation10 + $0x628] sm:$0xff]
    %v5731 = vld [vmem:[#allocation10 + $0x630] sm:$0xff]
    %v5732 = vld [vmem:[#allocation10 + $0x638] sm:$0xff]
    %v5733 = vld [vmem:[#allocation10 + $0x640] sm:$0xff]
    %v5734 = vld [vmem:[#allocation10 + $0x648] sm:$0xff]
    %v5735 = vld [vmem:[#allocation10 + $0x650] sm:$0xff]
    %v5736 = vld [vmem:[#allocation10 + $0x658] sm:$0xff]
    %v5737 = vld [vmem:[#allocation10 + $0x660] sm:$0xff]
    %v5738 = vld [vmem:[#allocation10 + $0x668] sm:$0xff]
    %v5739 = vld [vmem:[#allocation10 + $0x670] sm:$0xff]
    %v5740 = vld [vmem:[#allocation10 + $0x678] sm:$0xff]
    %v5741 = vld [vmem:[#allocation10 + $0x680] sm:$0xff]
    %v5742 = vld [vmem:[#allocation10 + $0x688] sm:$0xff]
    %v5743 = vld [vmem:[#allocation10 + $0x690] sm:$0xff]
    %v5744 = vld [vmem:[#allocation10 + $0x698] sm:$0xff]
    %v5745 = vld [vmem:[#allocation10 + $0x6a0] sm:$0xff]
    %v5746 = vld [vmem:[#allocation10 + $0x6a8] sm:$0xff]
    %v5747 = vld [vmem:[#allocation10 + $0x6b0] sm:$0xff]
    %v5748 = vld [vmem:[#allocation10 + $0x6b8] sm:$0xff]
    %v5749 = vld [vmem:[#allocation10 + $0x6c0] sm:$0xff]
    %v5750 = vld [vmem:[#allocation10 + $0x6c8] sm:$0xff]
    %v5751 = vld [vmem:[#allocation10 + $0x6d0] sm:$0xff]
    %v5752 = vld [vmem:[#allocation10 + $0x6d8] sm:$0xff]
    %v5753 = vld [vmem:[#allocation10 + $0x6e0] sm:$0xff]
    %v5754 = vld [vmem:[#allocation10 + $0x6e8] sm:$0xff]
    %v5755 = vld [vmem:[#allocation10 + $0x6f0] sm:$0xff]
    %v5756 = vld [vmem:[#allocation10 + $0x6f8] sm:$0xff]
    %v5757 = vld [vmem:[#allocation10 + $0x700] sm:$0xff]
    %v5758 = vld [vmem:[#allocation10 + $0x708] sm:$0xff]
    %v5759 = vld [vmem:[#allocation10 + $0x710] sm:$0xff]
    %v5760 = vld [vmem:[#allocation10 + $0x718] sm:$0xff]
    %v5761 = vld [vmem:[#allocation10 + $0x720] sm:$0xff]
    %v5762 = vld [vmem:[#allocation10 + $0x728] sm:$0xff]
    %v5763 = vld [vmem:[#allocation10 + $0x730] sm:$0xff]
    %v5764 = vld [vmem:[#allocation10 + $0x738] sm:$0xff]
    %v5765 = vld [vmem:[#allocation10 + $0x740] sm:$0xff]
    %v5766 = vld [vmem:[#allocation10 + $0x748] sm:$0xff]
    %v5767 = vld [vmem:[#allocation10 + $0x750] sm:$0xff]
    %v5768 = vld [vmem:[#allocation10 + $0x758] sm:$0xff]
    %v5769 = vld [vmem:[#allocation10 + $0x760] sm:$0xff]
    %v5770 = vld [vmem:[#allocation10 + $0x768] sm:$0xff]
    %v5771 = vld [vmem:[#allocation10 + $0x770] sm:$0xff]
    %v5772 = vld [vmem:[#allocation10 + $0x778] sm:$0xff]
    %v5773 = vld [vmem:[#allocation10 + $0x780] sm:$0xff]
    %v5774 = vld [vmem:[#allocation10 + $0x788] sm:$0xff]
    %v5775 = vld [vmem:[#allocation10 + $0x790] sm:$0xff]
    %v5776 = vld [vmem:[#allocation10 + $0x798] sm:$0xff]
    %v5777 = vld [vmem:[#allocation10 + $0x7a0] sm:$0xff]
    %v5778 = vld [vmem:[#allocation10 + $0x7a8] sm:$0xff]
    %v5779 = vld [vmem:[#allocation10 + $0x7b0] sm:$0xff]
    %v5780 = vld [vmem:[#allocation10 + $0x7b8] sm:$0xff]
    %v5781 = vld [vmem:[#allocation10 + $0x7c0] sm:$0xff]
    %v5782 = vld [vmem:[#allocation10 + $0x7c8] sm:$0xff]
    %v5783 = vld [vmem:[#allocation10 + $0x7d0] sm:$0xff]
    %v5784 = vld [vmem:[#allocation10 + $0x7d8] sm:$0xff]
    %v5785 = vld [vmem:[#allocation10 + $0x7e0] sm:$0xff]
    %v5786 = vld [vmem:[#allocation10 + $0x7e8] sm:$0xff]
    %v5787 = vld [vmem:[#allocation10 + $0x7f0] sm:$0xff]
    %v5788 = vld [vmem:[#allocation10 + $0x7f8] sm:$0xff]
    %v5789 = vld [vmem:[#allocation10 + $0x800] sm:$0xff]
    %v5790 = vld [vmem:[#allocation10 + $0x808] sm:$0xff]
    %v5791 = vld [vmem:[#allocation10 + $0x810] sm:$0xff]
    %v5792 = vld [vmem:[#allocation10 + $0x818] sm:$0xff]
    %v5793 = vld [vmem:[#allocation10 + $0x820] sm:$0xff]
    %v5794 = vld [vmem:[#allocation10 + $0x828] sm:$0xff]
    %v5795 = vld [vmem:[#allocation10 + $0x830] sm:$0xff]
    %v5796 = vld [vmem:[#allocation10 + $0x838] sm:$0xff]
    %v5797 = vld [vmem:[#allocation10 + $0x840] sm:$0xff]
    %v5798 = vld [vmem:[#allocation10 + $0x848] sm:$0xff]
    %v5799 = vld [vmem:[#allocation10 + $0x850] sm:$0xff]
    %v5800 = vld [vmem:[#allocation10 + $0x858] sm:$0xff]
    %v5801 = vld [vmem:[#allocation10 + $0x860] sm:$0xff]
    %v5802 = vld [vmem:[#allocation10 + $0x868] sm:$0xff]
    %v5803 = vld [vmem:[#allocation10 + $0x870] sm:$0xff]
    %v5804 = vld [vmem:[#allocation10 + $0x878] sm:$0xff]
    %v5805 = vld [vmem:[#allocation10 + $0x880] sm:$0xff]
    %v5806 = vld [vmem:[#allocation10 + $0x888] sm:$0xff]
    %v5807 = vld [vmem:[#allocation10 + $0x890] sm:$0xff]
    %v5808 = vld [vmem:[#allocation10 + $0x898] sm:$0xff]
    %v5809 = vld [vmem:[#allocation10 + $0x8a0] sm:$0xff]
    %v5810 = vld [vmem:[#allocation10 + $0x8a8] sm:$0xff]
    %v5811 = vld [vmem:[#allocation10 + $0x8b0] sm:$0xff]
    %v5812 = vld [vmem:[#allocation10 + $0x8b8] sm:$0xff]
    %v5813 = vld [vmem:[#allocation10 + $0x8c0] sm:$0xff]
    %v5814 = vld [vmem:[#allocation10 + $0x8c8] sm:$0xff]
    %v5815 = vld [vmem:[#allocation10 + $0x8d0] sm:$0xff]
    %v5816 = vld [vmem:[#allocation10 + $0x8d8] sm:$0xff]
    %v5817 = vld [vmem:[#allocation10 + $0x8e0] sm:$0xff]
    %v5818 = vld [vmem:[#allocation10 + $0x8e8] sm:$0xff]
    %v5819 = vld [vmem:[#allocation10 + $0x8f0] sm:$0xff]
    %v5820 = vld [vmem:[#allocation10 + $0x8f8] sm:$0xff]
    %v5821 = vld [vmem:[#allocation10 + $0x900] sm:$0xff]
    %v5822 = vld [vmem:[#allocation10 + $0x908] sm:$0xff]
    %v5823 = vld [vmem:[#allocation10 + $0x910] sm:$0xff]
    %v5824 = vld [vmem:[#allocation10 + $0x918] sm:$0xff]
    %v5825 = vld [vmem:[#allocation10 + $0x920] sm:$0xff]
    %v5826 = vld [vmem:[#allocation10 + $0x928] sm:$0xff]
    %v5827 = vld [vmem:[#allocation10 + $0x930] sm:$0xff]
    %v5828 = vld [vmem:[#allocation10 + $0x938] sm:$0xff]
    %v5829 = vld [vmem:[#allocation10 + $0x940] sm:$0xff]
    %v5830 = vld [vmem:[#allocation10 + $0x948] sm:$0xff]
    %v5831 = vld [vmem:[#allocation10 + $0x950] sm:$0xff]
    %v5832 = vld [vmem:[#allocation10 + $0x958] sm:$0xff]
    %v5833 = vld [vmem:[#allocation10 + $0x960] sm:$0xff]
    %v5834 = vld [vmem:[#allocation10 + $0x968] sm:$0xff]
    %v5835 = vld [vmem:[#allocation10 + $0x970] sm:$0xff]
    %v5836 = vld [vmem:[#allocation10 + $0x978] sm:$0xff]
    %v5837 = vld [vmem:[#allocation10 + $0x980] sm:$0xff]
    %v5838 = vld [vmem:[#allocation10 + $0x988] sm:$0xff]
    %v5839 = vld [vmem:[#allocation10 + $0x990] sm:$0xff]
    %v5840 = vld [vmem:[#allocation10 + $0x998] sm:$0xff]
    %v5841 = vld [vmem:[#allocation10 + $0x9a0] sm:$0xff]
    %v5842 = vld [vmem:[#allocation10 + $0x9a8] sm:$0xff]
    %v5843 = vld [vmem:[#allocation10 + $0x9b0] sm:$0xff]
    %v5844 = vld [vmem:[#allocation10 + $0x9b8] sm:$0xff]
    %v5845 = vld [vmem:[#allocation10 + $0x9c0] sm:$0xff]
    %v5846 = vld [vmem:[#allocation10 + $0x9c8] sm:$0xff]
    %v5847 = vld [vmem:[#allocation10 + $0x9d0] sm:$0xff]
    %v5848 = vld [vmem:[#allocation10 + $0x9d8] sm:$0xff]
    %v5849 = vld [vmem:[#allocation10 + $0x9e0] sm:$0xff]
    %v5850 = vld [vmem:[#allocation10 + $0x9e8] sm:$0xff]
    %v5851 = vld [vmem:[#allocation10 + $0x9f0] sm:$0xff]
    %v5852 = vld [vmem:[#allocation10 + $0x9f8] sm:$0xff]
    %v5853 = vld [vmem:[#allocation10 + $0xa00] sm:$0xff]
    %v5854 = vld [vmem:[#allocation10 + $0xa08] sm:$0xff]
    %v5855 = vld [vmem:[#allocation10 + $0xa10] sm:$0xff]
    %v5856 = vld [vmem:[#allocation10 + $0xa18] sm:$0xff]
    %v5857 = vld [vmem:[#allocation10 + $0xa20] sm:$0xff]
    %v5858 = vld [vmem:[#allocation10 + $0xa28] sm:$0xff]
    %v5859 = vld [vmem:[#allocation10 + $0xa30] sm:$0xff]
    %v5860 = vld [vmem:[#allocation10 + $0xa38] sm:$0xff]
    %v5861 = vld [vmem:[#allocation10 + $0xa40] sm:$0xff]
    %v5862 = vld [vmem:[#allocation10 + $0xa48] sm:$0xff]
    %v5863 = vld [vmem:[#allocation10 + $0xa50] sm:$0xff]
    %v5864 = vld [vmem:[#allocation10 + $0xa58] sm:$0xff]
    %v5865 = vld [vmem:[#allocation10 + $0xa60] sm:$0xff]
    %v5866 = vld [vmem:[#allocation10 + $0xa68] sm:$0xff]
    %v5867 = vld [vmem:[#allocation10 + $0xa70] sm:$0xff]
    %v5868 = vld [vmem:[#allocation10 + $0xa78] sm:$0xff]
    %v5869 = vld [vmem:[#allocation10 + $0xa80] sm:$0xff]
    %v5870 = vld [vmem:[#allocation10 + $0xa88] sm:$0xff]
    %v5871 = vld [vmem:[#allocation10 + $0xa90] sm:$0xff]
    %v5872 = vld [vmem:[#allocation10 + $0xa98] sm:$0xff]
    %v5873 = vld [vmem:[#allocation10 + $0xaa0] sm:$0xff]
    %v5874 = vld [vmem:[#allocation10 + $0xaa8] sm:$0xff]
    %v5875 = vld [vmem:[#allocation10 + $0xab0] sm:$0xff]
    %v5876 = vld [vmem:[#allocation10 + $0xab8] sm:$0xff]
    %v5877 = vld [vmem:[#allocation10 + $0xac0] sm:$0xff]
    %v5878 = vld [vmem:[#allocation10 + $0xac8] sm:$0xff]
    %v5879 = vld [vmem:[#allocation10 + $0xad0] sm:$0xff]
    %v5880 = vld [vmem:[#allocation10 + $0xad8] sm:$0xff]
    %v5881 = vld [vmem:[#allocation10 + $0xae0] sm:$0xff]
    %v5882 = vld [vmem:[#allocation10 + $0xae8] sm:$0xff]
    %v5883 = vld [vmem:[#allocation10 + $0xaf0] sm:$0xff]
    %v5884 = vld [vmem:[#allocation10 + $0xaf8] sm:$0xff]
    %v5885 = vld [vmem:[#allocation10 + $0xb00] sm:$0xff]
    %v5886 = vld [vmem:[#allocation10 + $0xb08] sm:$0xff]
    %v5887 = vld [vmem:[#allocation10 + $0xb10] sm:$0xff]
    %v5888 = vld [vmem:[#allocation10 + $0xb18] sm:$0xff]
    %v5889 = vld [vmem:[#allocation10 + $0xb20] sm:$0xff]
    %v5890 = vld [vmem:[#allocation10 + $0xb28] sm:$0xff]
    %v5891 = vld [vmem:[#allocation10 + $0xb30] sm:$0xff]
    %v5892 = vld [vmem:[#allocation10 + $0xb38] sm:$0xff]
    %v5893 = vld [vmem:[#allocation10 + $0xb40] sm:$0xff]
    %v5894 = vld [vmem:[#allocation10 + $0xb48] sm:$0xff]
    %v5895 = vld [vmem:[#allocation10 + $0xb50] sm:$0xff]
    %v5896 = vld [vmem:[#allocation10 + $0xb58] sm:$0xff]
    %v5897 = vld [vmem:[#allocation10 + $0xb60] sm:$0xff]
    %v5898 = vld [vmem:[#allocation10 + $0xb68] sm:$0xff]
    %v5899 = vld [vmem:[#allocation10 + $0xb70] sm:$0xff]
    %v5900 = vld [vmem:[#allocation10 + $0xb78] sm:$0xff]
    %v5901 = vld [vmem:[#allocation10 + $0xb80] sm:$0xff]
    %v5902 = vld [vmem:[#allocation10 + $0xb88] sm:$0xff]
    %v5903 = vld [vmem:[#allocation10 + $0xb90] sm:$0xff]
    %v5904 = vld [vmem:[#allocation10 + $0xb98] sm:$0xff]
    %v5905 = vld [vmem:[#allocation10 + $0xba0] sm:$0xff]
    %v5906 = vld [vmem:[#allocation10 + $0xba8] sm:$0xff]
    %v5907 = vld [vmem:[#allocation10 + $0xbb0] sm:$0xff]
    %v5908 = vld [vmem:[#allocation10 + $0xbb8] sm:$0xff]
    %v5909 = vld [vmem:[#allocation10 + $0xbc0] sm:$0xff]
    %v5910 = vld [vmem:[#allocation10 + $0xbc8] sm:$0xff]
    %v5911 = vld [vmem:[#allocation10 + $0xbd0] sm:$0xff]
    %v5912 = vld [vmem:[#allocation10 + $0xbd8] sm:$0xff]
    %v5913 = vld [vmem:[#allocation10 + $0xbe0] sm:$0xff]
    %v5914 = vld [vmem:[#allocation10 + $0xbe8] sm:$0xff]
    %v5915 = vld [vmem:[#allocation10 + $0xbf0] sm:$0xff]
    %v5916 = vld [vmem:[#allocation10 + $0xbf8] sm:$0xff]
    %v5917 = vld [vmem:[#allocation10 + $0xc00] sm:$0xff]
    %v5918 = vld [vmem:[#allocation10 + $0xc08] sm:$0xff]
    %v5919 = vld [vmem:[#allocation10 + $0xc10] sm:$0xff]
    %v5920 = vld [vmem:[#allocation10 + $0xc18] sm:$0xff]
    %v5921 = vld [vmem:[#allocation10 + $0xc20] sm:$0xff]
    %v5922 = vld [vmem:[#allocation10 + $0xc28] sm:$0xff]
    %v5923 = vld [vmem:[#allocation10 + $0xc30] sm:$0xff]
    %v5924 = vld [vmem:[#allocation10 + $0xc38] sm:$0xff]
    %v5925 = vld [vmem:[#allocation10 + $0xc40] sm:$0xff]
    %v5926 = vld [vmem:[#allocation10 + $0xc48] sm:$0xff]
    %v5927 = vld [vmem:[#allocation10 + $0xc50] sm:$0xff]
    %v5928 = vld [vmem:[#allocation10 + $0xc58] sm:$0xff]
    %v5929 = vld [vmem:[#allocation10 + $0xc60] sm:$0xff]
    %v5930 = vld [vmem:[#allocation10 + $0xc68] sm:$0xff]
    %v5931 = vld [vmem:[#allocation10 + $0xc70] sm:$0xff]
    %v5932 = vld [vmem:[#allocation10 + $0xc78] sm:$0xff]
    %v5933 = vld [vmem:[#allocation11] sm:$0xff]
    %v5934 = vld [vmem:[#allocation11 + $0x8] sm:$0x3]
    %v5937 = vlaneseq
    %v5938 = vshrl.u32 %v5937, 7
    %v5939 = vsub.s32 0, %v5938
    %v5940 = vrot.slane %v5933, %v5939
    %v5941 = vlaneseq
    %v5942 = vshrl.u32 %v5941, 7
    %v5943 = vsub.s32 1, %v5942
    %v5944 = vrot.slane %v5933, %v5943
    %v5945 = vlaneseq
    %v5946 = vshrl.u32 %v5945, 7
    %v5947 = vsub.s32 2, %v5946
    %v5948 = vrot.slane %v5933, %v5947
    %v5949 = vlaneseq
    %v5950 = vshrl.u32 %v5949, 7
    %v5951 = vsub.s32 3, %v5950
    %v5952 = vrot.slane %v5933, %v5951
    %v5953 = vlaneseq
    %v5954 = vshrl.u32 %v5953, 7
    %v5955 = vsub.s32 4, %v5954
    %v5956 = vrot.slane %v5933, %v5955
    %v5957 = vlaneseq
    %v5958 = vshrl.u32 %v5957, 7
    %v5959 = vsub.s32 5, %v5958
    %v5960 = vrot.slane %v5933, %v5959
    %v5961 = vlaneseq
    %v5962 = vshrl.u32 %v5961, 7
    %v5963 = vsub.s32 6, %v5962
    %v5964 = vrot.slane %v5933, %v5963
    %v5965 = vlaneseq
    %v5966 = vshrl.u32 %v5965, 7
    %v5967 = vsub.s32 7, %v5966
    %v5968 = vrot.slane %v5933, %v5967
    %v5969 = vlaneseq
    %v5970 = vshrl.u32 %v5969, 7
    %v5971 = vsub.s32 0, %v5970
    %v5972 = vrot.slane %v5934, %v5971
    %v5973 = vlaneseq
    %v5974 = vshrl.u32 %v5973, 7
    %v5975 = vsub.s32 1, %v5974
    %v5976 = vrot.slane %v5934, %v5975
    %v6387 = vunpack.c.l.b16 %v5533
    %v6388 = vunpack.c.h.b16 %v5533
    %v6389 = vunpack.c.l.b16 %v5534
    %v6390 = vunpack.c.h.b16 %v5534
    %v6391 = vunpack.c.l.b16 %v5535
    %v6392 = vunpack.c.h.b16 %v5535
    %v6393 = vunpack.c.l.b16 %v5536
    %v6394 = vunpack.c.h.b16 %v5536
    %v6395 = vunpack.c.l.b16 %v5537
    %v6396 = vunpack.c.h.b16 %v5537
    %v6397 = vunpack.c.l.b16 %v5538
    %v6398 = vunpack.c.h.b16 %v5538
    %v6399 = vunpack.c.l.b16 %v5539
    %v6400 = vunpack.c.h.b16 %v5539
    %v6401 = vunpack.c.l.b16 %v5540
    %v6402 = vunpack.c.h.b16 %v5540
    %v6403 = vunpack.c.l.b16 %v5541
    %v6404 = vunpack.c.h.b16 %v5541
    %v6405 = vunpack.c.l.b16 %v5542
    %v6406 = vunpack.c.h.b16 %v5542
    %v6407 = vunpack.c.l.b16 %v5543
    %v6408 = vunpack.c.h.b16 %v5543
    %v6409 = vunpack.c.l.b16 %v5544
    %v6410 = vunpack.c.h.b16 %v5544
    %v6411 = vunpack.c.l.b16 %v5545
    %v6412 = vunpack.c.h.b16 %v5545
    %v6413 = vunpack.c.l.b16 %v5546
    %v6414 = vunpack.c.h.b16 %v5546
    %v6415 = vunpack.c.l.b16 %v5547
    %v6416 = vunpack.c.h.b16 %v5547
    %v6417 = vunpack.c.l.b16 %v5548
    %v6418 = vunpack.c.h.b16 %v5548
    %v6419 = vunpack.c.l.b16 %v5549
    %v6420 = vunpack.c.h.b16 %v5549
    %v6421 = vunpack.c.l.b16 %v5550
    %v6422 = vunpack.c.h.b16 %v5550
    %v6423 = vunpack.c.l.b16 %v5551
    %v6424 = vunpack.c.h.b16 %v5551
    %v6425 = vunpack.c.l.b16 %v5552
    %v6426 = vunpack.c.h.b16 %v5552
    %v6427 = vunpack.c.l.b16 %v5553
    %v6428 = vunpack.c.h.b16 %v5553
    %v6429 = vunpack.c.l.b16 %v5554
    %v6430 = vunpack.c.h.b16 %v5554
    %v6431 = vunpack.c.l.b16 %v5555
    %v6432 = vunpack.c.h.b16 %v5555
    %v6433 = vunpack.c.l.b16 %v5556
    %v6434 = vunpack.c.h.b16 %v5556
    %v6435 = vunpack.c.l.b16 %v5557
    %v6436 = vunpack.c.h.b16 %v5557
    %v6437 = vunpack.c.l.b16 %v5558
    %v6438 = vunpack.c.h.b16 %v5558
    %v6439 = vunpack.c.l.b16 %v5559
    %v6440 = vunpack.c.h.b16 %v5559
    %v6441 = vunpack.c.l.b16 %v5560
    %v6442 = vunpack.c.h.b16 %v5560
    %v6443 = vunpack.c.l.b16 %v5561
    %v6444 = vunpack.c.h.b16 %v5561
    %v6445 = vunpack.c.l.b16 %v5562
    %v6446 = vunpack.c.h.b16 %v5562
    %v6447 = vunpack.c.l.b16 %v5563
    %v6448 = vunpack.c.h.b16 %v5563
    %v6449 = vunpack.c.l.b16 %v5564
    %v6450 = vunpack.c.h.b16 %v5564
    %v6451 = vunpack.c.l.b16 %v5565
    %v6452 = vunpack.c.h.b16 %v5565
    %v6453 = vunpack.c.l.b16 %v5566
    %v6454 = vunpack.c.h.b16 %v5566
    %v6455 = vunpack.c.l.b16 %v5567
    %v6456 = vunpack.c.h.b16 %v5567
    %v6457 = vunpack.c.l.b16 %v5568
    %v6458 = vunpack.c.h.b16 %v5568
    %v6459 = vunpack.c.l.b16 %v5569
    %v6460 = vunpack.c.h.b16 %v5569
    %v6461 = vunpack.c.l.b16 %v5570
    %v6462 = vunpack.c.h.b16 %v5570
    %v6463 = vunpack.c.l.b16 %v5571
    %v6464 = vunpack.c.h.b16 %v5571
    %v6465 = vunpack.c.l.b16 %v5572
    %v6466 = vunpack.c.h.b16 %v5572
    %v6467 = vunpack.c.l.b16 %v5573
    %v6468 = vunpack.c.h.b16 %v5573
    %v6469 = vunpack.c.l.b16 %v5574
    %v6470 = vunpack.c.h.b16 %v5574
    %v6471 = vunpack.c.l.b16 %v5575
    %v6472 = vunpack.c.h.b16 %v5575
    %v6473 = vunpack.c.l.b16 %v5576
    %v6474 = vunpack.c.h.b16 %v5576
    %v6475 = vunpack.c.l.b16 %v5577
    %v6476 = vunpack.c.h.b16 %v5577
    %v6477 = vunpack.c.l.b16 %v5578
    %v6478 = vunpack.c.h.b16 %v5578
    %v6479 = vunpack.c.l.b16 %v5579
    %v6480 = vunpack.c.h.b16 %v5579
    %v6481 = vunpack.c.l.b16 %v5580
    %v6482 = vunpack.c.h.b16 %v5580
    %v6483 = vunpack.c.l.b16 %v5581
    %v6484 = vunpack.c.h.b16 %v5581
    %v6485 = vunpack.c.l.b16 %v5582
    %v6486 = vunpack.c.h.b16 %v5582
    %v6487 = vunpack.c.l.b16 %v5583
    %v6488 = vunpack.c.h.b16 %v5583
    %v6489 = vunpack.c.l.b16 %v5584
    %v6490 = vunpack.c.h.b16 %v5584
    %v6491 = vunpack.c.l.b16 %v5585
    %v6492 = vunpack.c.h.b16 %v5585
    %v6493 = vunpack.c.l.b16 %v5586
    %v6494 = vunpack.c.h.b16 %v5586
    %v6495 = vunpack.c.l.b16 %v5587
    %v6496 = vunpack.c.h.b16 %v5587
    %v6497 = vunpack.c.l.b16 %v5588
    %v6498 = vunpack.c.h.b16 %v5588
    %v6499 = vunpack.c.l.b16 %v5589
    %v6500 = vunpack.c.h.b16 %v5589
    %v6501 = vunpack.c.l.b16 %v5590
    %v6502 = vunpack.c.h.b16 %v5590
    %v6503 = vunpack.c.l.b16 %v5591
    %v6504 = vunpack.c.h.b16 %v5591
    %v6505 = vunpack.c.l.b16 %v5592
    %v6506 = vunpack.c.h.b16 %v5592
    %v6507 = vunpack.c.l.b16 %v5593
    %v6508 = vunpack.c.h.b16 %v5593
    %v6509 = vunpack.c.l.b16 %v5594
    %v6510 = vunpack.c.h.b16 %v5594
    %v6511 = vunpack.c.l.b16 %v5595
    %v6512 = vunpack.c.h.b16 %v5595
    %v6513 = vunpack.c.l.b16 %v5596
    %v6514 = vunpack.c.h.b16 %v5596
    %v6515 = vunpack.c.l.b16 %v5597
    %v6516 = vunpack.c.h.b16 %v5597
    %v6517 = vunpack.c.l.b16 %v5598
    %v6518 = vunpack.c.h.b16 %v5598
    %v6519 = vunpack.c.l.b16 %v5599
    %v6520 = vunpack.c.h.b16 %v5599
    %v6521 = vunpack.c.l.b16 %v5600
    %v6522 = vunpack.c.h.b16 %v5600
    %v6523 = vunpack.c.l.b16 %v5601
    %v6524 = vunpack.c.h.b16 %v5601
    %v6525 = vunpack.c.l.b16 %v5602
    %v6526 = vunpack.c.h.b16 %v5602
    %v6527 = vunpack.c.l.b16 %v5603
    %v6528 = vunpack.c.h.b16 %v5603
    %v6529 = vunpack.c.l.b16 %v5604
    %v6530 = vunpack.c.h.b16 %v5604
    %v6531 = vunpack.c.l.b16 %v5605
    %v6532 = vunpack.c.h.b16 %v5605
    %v6533 = vunpack.c.l.b16 %v5606
    %v6534 = vunpack.c.h.b16 %v5606
    %v6535 = vunpack.c.l.b16 %v5607
    %v6536 = vunpack.c.h.b16 %v5607
    %v6537 = vunpack.c.l.b16 %v5608
    %v6538 = vunpack.c.h.b16 %v5608
    %v6539 = vunpack.c.l.b16 %v5609
    %v6540 = vunpack.c.h.b16 %v5609
    %v6541 = vunpack.c.l.b16 %v5610
    %v6542 = vunpack.c.h.b16 %v5610
    %v6543 = vunpack.c.l.b16 %v5611
    %v6544 = vunpack.c.h.b16 %v5611
    %v6545 = vunpack.c.l.b16 %v5612
    %v6546 = vunpack.c.h.b16 %v5612
    %v6547 = vunpack.c.l.b16 %v5613
    %v6548 = vunpack.c.h.b16 %v5613
    %v6549 = vunpack.c.l.b16 %v5614
    %v6550 = vunpack.c.h.b16 %v5614
    %v6551 = vunpack.c.l.b16 %v5615
    %v6552 = vunpack.c.h.b16 %v5615
    %v6553 = vunpack.c.l.b16 %v5616
    %v6554 = vunpack.c.h.b16 %v5616
    %v6555 = vunpack.c.l.b16 %v5617
    %v6556 = vunpack.c.h.b16 %v5617
    %v6557 = vunpack.c.l.b16 %v5618
    %v6558 = vunpack.c.h.b16 %v5618
    %v6559 = vunpack.c.l.b16 %v5619
    %v6560 = vunpack.c.h.b16 %v5619
    %v6561 = vunpack.c.l.b16 %v5620
    %v6562 = vunpack.c.h.b16 %v5620
    %v6563 = vunpack.c.l.b16 %v5621
    %v6564 = vunpack.c.h.b16 %v5621
    %v6565 = vunpack.c.l.b16 %v5622
    %v6566 = vunpack.c.h.b16 %v5622
    %v6567 = vunpack.c.l.b16 %v5623
    %v6568 = vunpack.c.h.b16 %v5623
    %v6569 = vunpack.c.l.b16 %v5624
    %v6570 = vunpack.c.h.b16 %v5624
    %v6571 = vunpack.c.l.b16 %v5625
    %v6572 = vunpack.c.h.b16 %v5625
    %v6573 = vunpack.c.l.b16 %v5626
    %v6574 = vunpack.c.h.b16 %v5626
    %v6575 = vunpack.c.l.b16 %v5627
    %v6576 = vunpack.c.h.b16 %v5627
    %v6577 = vunpack.c.l.b16 %v5628
    %v6578 = vunpack.c.h.b16 %v5628
    %v6579 = vunpack.c.l.b16 %v5629
    %v6580 = vunpack.c.h.b16 %v5629
    %v6581 = vunpack.c.l.b16 %v5630
    %v6582 = vunpack.c.h.b16 %v5630
    %v6583 = vunpack.c.l.b16 %v5631
    %v6584 = vunpack.c.h.b16 %v5631
    %v6585 = vunpack.c.l.b16 %v5632
    %v6586 = vunpack.c.h.b16 %v5632
    %v6587 = vunpack.c.l.b16 %v5633
    %v6588 = vunpack.c.h.b16 %v5633
    %v6589 = vunpack.c.l.b16 %v5634
    %v6590 = vunpack.c.h.b16 %v5634
    %v6591 = vunpack.c.l.b16 %v5635
    %v6592 = vunpack.c.h.b16 %v5635
    %v6593 = vunpack.c.l.b16 %v5636
    %v6594 = vunpack.c.h.b16 %v5636
    %v6595 = vunpack.c.l.b16 %v5637
    %v6596 = vunpack.c.h.b16 %v5637
    %v6597 = vunpack.c.l.b16 %v5638
    %v6598 = vunpack.c.h.b16 %v5638
    %v6599 = vunpack.c.l.b16 %v5639
    %v6600 = vunpack.c.h.b16 %v5639
    %v6601 = vunpack.c.l.b16 %v5640
    %v6602 = vunpack.c.h.b16 %v5640
    %v6603 = vunpack.c.l.b16 %v5641
    %v6604 = vunpack.c.h.b16 %v5641
    %v6605 = vunpack.c.l.b16 %v5642
    %v6606 = vunpack.c.h.b16 %v5642
    %v6607 = vunpack.c.l.b16 %v5643
    %v6608 = vunpack.c.h.b16 %v5643
    %v6609 = vunpack.c.l.b16 %v5644
    %v6610 = vunpack.c.h.b16 %v5644
    %v6611 = vunpack.c.l.b16 %v5645
    %v6612 = vunpack.c.h.b16 %v5645
    %v6613 = vunpack.c.l.b16 %v5646
    %v6614 = vunpack.c.h.b16 %v5646
    %v6615 = vunpack.c.l.b16 %v5647
    %v6616 = vunpack.c.h.b16 %v5647
    %v6617 = vunpack.c.l.b16 %v5648
    %v6618 = vunpack.c.h.b16 %v5648
    %v6619 = vunpack.c.l.b16 %v5649
    %v6620 = vunpack.c.h.b16 %v5649
    %v6621 = vunpack.c.l.b16 %v5650
    %v6622 = vunpack.c.h.b16 %v5650
    %v6623 = vunpack.c.l.b16 %v5651
    %v6624 = vunpack.c.h.b16 %v5651
    %v6625 = vunpack.c.l.b16 %v5652
    %v6626 = vunpack.c.h.b16 %v5652
    %v6627 = vunpack.c.l.b16 %v5653
    %v6628 = vunpack.c.h.b16 %v5653
    %v6629 = vunpack.c.l.b16 %v5654
    %v6630 = vunpack.c.h.b16 %v5654
    %v6631 = vunpack.c.l.b16 %v5655
    %v6632 = vunpack.c.h.b16 %v5655
    %v6633 = vunpack.c.l.b16 %v5656
    %v6634 = vunpack.c.h.b16 %v5656
    %v6635 = vunpack.c.l.b16 %v5657
    %v6636 = vunpack.c.h.b16 %v5657
    %v6637 = vunpack.c.l.b16 %v5658
    %v6638 = vunpack.c.h.b16 %v5658
    %v6639 = vunpack.c.l.b16 %v5659
    %v6640 = vunpack.c.h.b16 %v5659
    %v6641 = vunpack.c.l.b16 %v5660
    %v6642 = vunpack.c.h.b16 %v5660
    %v6643 = vunpack.c.l.b16 %v5661
    %v6644 = vunpack.c.h.b16 %v5661
    %v6645 = vunpack.c.l.b16 %v5662
    %v6646 = vunpack.c.h.b16 %v5662
    %v6647 = vunpack.c.l.b16 %v5663
    %v6648 = vunpack.c.h.b16 %v5663
    %v6649 = vunpack.c.l.b16 %v5664
    %v6650 = vunpack.c.h.b16 %v5664
    %v6651 = vunpack.c.l.b16 %v5665
    %v6652 = vunpack.c.h.b16 %v5665
    %v6653 = vunpack.c.l.b16 %v5666
    %v6654 = vunpack.c.h.b16 %v5666
    %v6655 = vunpack.c.l.b16 %v5667
    %v6656 = vunpack.c.h.b16 %v5667
    %v6657 = vunpack.c.l.b16 %v5668
    %v6658 = vunpack.c.h.b16 %v5668
    %v6659 = vunpack.c.l.b16 %v5669
    %v6660 = vunpack.c.h.b16 %v5669
    %v6661 = vunpack.c.l.b16 %v5670
    %v6662 = vunpack.c.h.b16 %v5670
    %v6663 = vunpack.c.l.b16 %v5671
    %v6664 = vunpack.c.h.b16 %v5671
    %v6665 = vunpack.c.l.b16 %v5672
    %v6666 = vunpack.c.h.b16 %v5672
    %v6667 = vunpack.c.l.b16 %v5673
    %v6668 = vunpack.c.h.b16 %v5673
    %v6669 = vunpack.c.l.b16 %v5674
    %v6670 = vunpack.c.h.b16 %v5674
    %v6671 = vunpack.c.l.b16 %v5675
    %v6672 = vunpack.c.h.b16 %v5675
    %v6673 = vunpack.c.l.b16 %v5676
    %v6674 = vunpack.c.h.b16 %v5676
    %v6675 = vunpack.c.l.b16 %v5677
    %v6676 = vunpack.c.h.b16 %v5677
    %v6677 = vunpack.c.l.b16 %v5678
    %v6678 = vunpack.c.h.b16 %v5678
    %v6679 = vunpack.c.l.b16 %v5679
    %v6680 = vunpack.c.h.b16 %v5679
    %v6681 = vunpack.c.l.b16 %v5680
    %v6682 = vunpack.c.h.b16 %v5680
    %v6683 = vunpack.c.l.b16 %v5681
    %v6684 = vunpack.c.h.b16 %v5681
    %v6685 = vunpack.c.l.b16 %v5682
    %v6686 = vunpack.c.h.b16 %v5682
    %v6687 = vunpack.c.l.b16 %v5683
    %v6688 = vunpack.c.h.b16 %v5683
    %v6689 = vunpack.c.l.b16 %v5684
    %v6690 = vunpack.c.h.b16 %v5684
    %v6691 = vunpack.c.l.b16 %v5685
    %v6692 = vunpack.c.h.b16 %v5685
    %v6693 = vunpack.c.l.b16 %v5686
    %v6694 = vunpack.c.h.b16 %v5686
    %v6695 = vunpack.c.l.b16 %v5687
    %v6696 = vunpack.c.h.b16 %v5687
    %v6697 = vunpack.c.l.b16 %v5688
    %v6698 = vunpack.c.h.b16 %v5688
    %v6699 = vunpack.c.l.b16 %v5689
    %v6700 = vunpack.c.h.b16 %v5689
    %v6701 = vunpack.c.l.b16 %v5690
    %v6702 = vunpack.c.h.b16 %v5690
    %v6703 = vunpack.c.l.b16 %v5691
    %v6704 = vunpack.c.h.b16 %v5691
    %v6705 = vunpack.c.l.b16 %v5692
    %v6706 = vunpack.c.h.b16 %v5692
    %v6707 = vunpack.c.l.b16 %v5693
    %v6708 = vunpack.c.h.b16 %v5693
    %v6709 = vunpack.c.l.b16 %v5694
    %v6710 = vunpack.c.h.b16 %v5694
    %v6711 = vunpack.c.l.b16 %v5695
    %v6712 = vunpack.c.h.b16 %v5695
    %v6713 = vunpack.c.l.b16 %v5696
    %v6714 = vunpack.c.h.b16 %v5696
    %v6715 = vunpack.c.l.b16 %v5697
    %v6716 = vunpack.c.h.b16 %v5697
    %v6717 = vunpack.c.l.b16 %v5698
    %v6718 = vunpack.c.h.b16 %v5698
    %v6719 = vunpack.c.l.b16 %v5699
    %v6720 = vunpack.c.h.b16 %v5699
    %v6721 = vunpack.c.l.b16 %v5700
    %v6722 = vunpack.c.h.b16 %v5700
    %v6723 = vunpack.c.l.b16 %v5701
    %v6724 = vunpack.c.h.b16 %v5701
    %v6725 = vunpack.c.l.b16 %v5702
    %v6726 = vunpack.c.h.b16 %v5702
    %v6727 = vunpack.c.l.b16 %v5703
    %v6728 = vunpack.c.h.b16 %v5703
    %v6729 = vunpack.c.l.b16 %v5704
    %v6730 = vunpack.c.h.b16 %v5704
    %v6731 = vunpack.c.l.b16 %v5705
    %v6732 = vunpack.c.h.b16 %v5705
    %v6733 = vunpack.c.l.b16 %v5706
    %v6734 = vunpack.c.h.b16 %v5706
    %v6735 = vunpack.c.l.b16 %v5707
    %v6736 = vunpack.c.h.b16 %v5707
    %v6737 = vunpack.c.l.b16 %v5708
    %v6738 = vunpack.c.h.b16 %v5708
    %v6739 = vunpack.c.l.b16 %v5709
    %v6740 = vunpack.c.h.b16 %v5709
    %v6741 = vunpack.c.l.b16 %v5710
    %v6742 = vunpack.c.h.b16 %v5710
    %v6743 = vunpack.c.l.b16 %v5711
    %v6744 = vunpack.c.h.b16 %v5711
    %v6745 = vunpack.c.l.b16 %v5712
    %v6746 = vunpack.c.h.b16 %v5712
    %v6747 = vunpack.c.l.b16 %v5713
    %v6748 = vunpack.c.h.b16 %v5713
    %v6749 = vunpack.c.l.b16 %v5714
    %v6750 = vunpack.c.h.b16 %v5714
    %v6751 = vunpack.c.l.b16 %v5715
    %v6752 = vunpack.c.h.b16 %v5715
    %v6753 = vunpack.c.l.b16 %v5716
    %v6754 = vunpack.c.h.b16 %v5716
    %v6755 = vunpack.c.l.b16 %v5717
    %v6756 = vunpack.c.h.b16 %v5717
    %v6757 = vunpack.c.l.b16 %v5718
    %v6758 = vunpack.c.h.b16 %v5718
    %v6759 = vunpack.c.l.b16 %v5719
    %v6760 = vunpack.c.h.b16 %v5719
    %v6761 = vunpack.c.l.b16 %v5720
    %v6762 = vunpack.c.h.b16 %v5720
    %v6763 = vunpack.c.l.b16 %v5721
    %v6764 = vunpack.c.h.b16 %v5721
    %v6765 = vunpack.c.l.b16 %v5722
    %v6766 = vunpack.c.h.b16 %v5722
    %v6767 = vunpack.c.l.b16 %v5723
    %v6768 = vunpack.c.h.b16 %v5723
    %v6769 = vunpack.c.l.b16 %v5724
    %v6770 = vunpack.c.h.b16 %v5724
    %v6771 = vunpack.c.l.b16 %v5725
    %v6772 = vunpack.c.h.b16 %v5725
    %v6773 = vunpack.c.l.b16 %v5726
    %v6774 = vunpack.c.h.b16 %v5726
    %v6775 = vunpack.c.l.b16 %v5727
    %v6776 = vunpack.c.h.b16 %v5727
    %v6777 = vunpack.c.l.b16 %v5728
    %v6778 = vunpack.c.h.b16 %v5728
    %v6779 = vunpack.c.l.b16 %v5729
    %v6780 = vunpack.c.h.b16 %v5729
    %v6781 = vunpack.c.l.b16 %v5730
    %v6782 = vunpack.c.h.b16 %v5730
    %v6783 = vunpack.c.l.b16 %v5731
    %v6784 = vunpack.c.h.b16 %v5731
    %v6785 = vunpack.c.l.b16 %v5732
    %v6786 = vunpack.c.h.b16 %v5732
    %v6787 = vunpack.c.l.b16 %v5733
    %v6788 = vunpack.c.h.b16 %v5733
    %v6789 = vunpack.c.l.b16 %v5734
    %v6790 = vunpack.c.h.b16 %v5734
    %v6791 = vunpack.c.l.b16 %v5735
    %v6792 = vunpack.c.h.b16 %v5735
    %v6793 = vunpack.c.l.b16 %v5736
    %v6794 = vunpack.c.h.b16 %v5736
    %v6795 = vunpack.c.l.b16 %v5737
    %v6796 = vunpack.c.h.b16 %v5737
    %v6797 = vunpack.c.l.b16 %v5738
    %v6798 = vunpack.c.h.b16 %v5738
    %v6799 = vunpack.c.l.b16 %v5739
    %v6800 = vunpack.c.h.b16 %v5739
    %v6801 = vunpack.c.l.b16 %v5740
    %v6802 = vunpack.c.h.b16 %v5740
    %v6803 = vunpack.c.l.b16 %v5741
    %v6804 = vunpack.c.h.b16 %v5741
    %v6805 = vunpack.c.l.b16 %v5742
    %v6806 = vunpack.c.h.b16 %v5742
    %v6807 = vunpack.c.l.b16 %v5743
    %v6808 = vunpack.c.h.b16 %v5743
    %v6809 = vunpack.c.l.b16 %v5744
    %v6810 = vunpack.c.h.b16 %v5744
    %v6811 = vunpack.c.l.b16 %v5745
    %v6812 = vunpack.c.h.b16 %v5745
    %v6813 = vunpack.c.l.b16 %v5746
    %v6814 = vunpack.c.h.b16 %v5746
    %v6815 = vunpack.c.l.b16 %v5747
    %v6816 = vunpack.c.h.b16 %v5747
    %v6817 = vunpack.c.l.b16 %v5748
    %v6818 = vunpack.c.h.b16 %v5748
    %v6819 = vunpack.c.l.b16 %v5749
    %v6820 = vunpack.c.h.b16 %v5749
    %v6821 = vunpack.c.l.b16 %v5750
    %v6822 = vunpack.c.h.b16 %v5750
    %v6823 = vunpack.c.l.b16 %v5751
    %v6824 = vunpack.c.h.b16 %v5751
    %v6825 = vunpack.c.l.b16 %v5752
    %v6826 = vunpack.c.h.b16 %v5752
    %v6827 = vunpack.c.l.b16 %v5753
    %v6828 = vunpack.c.h.b16 %v5753
    %v6829 = vunpack.c.l.b16 %v5754
    %v6830 = vunpack.c.h.b16 %v5754
    %v6831 = vunpack.c.l.b16 %v5755
    %v6832 = vunpack.c.h.b16 %v5755
    %v6833 = vunpack.c.l.b16 %v5756
    %v6834 = vunpack.c.h.b16 %v5756
    %v6835 = vunpack.c.l.b16 %v5757
    %v6836 = vunpack.c.h.b16 %v5757
    %v6837 = vunpack.c.l.b16 %v5758
    %v6838 = vunpack.c.h.b16 %v5758
    %v6839 = vunpack.c.l.b16 %v5759
    %v6840 = vunpack.c.h.b16 %v5759
    %v6841 = vunpack.c.l.b16 %v5760
    %v6842 = vunpack.c.h.b16 %v5760
    %v6843 = vunpack.c.l.b16 %v5761
    %v6844 = vunpack.c.h.b16 %v5761
    %v6845 = vunpack.c.l.b16 %v5762
    %v6846 = vunpack.c.h.b16 %v5762
    %v6847 = vunpack.c.l.b16 %v5763
    %v6848 = vunpack.c.h.b16 %v5763
    %v6849 = vunpack.c.l.b16 %v5764
    %v6850 = vunpack.c.h.b16 %v5764
    %v6851 = vunpack.c.l.b16 %v5765
    %v6852 = vunpack.c.h.b16 %v5765
    %v6853 = vunpack.c.l.b16 %v5766
    %v6854 = vunpack.c.h.b16 %v5766
    %v6855 = vunpack.c.l.b16 %v5767
    %v6856 = vunpack.c.h.b16 %v5767
    %v6857 = vunpack.c.l.b16 %v5768
    %v6858 = vunpack.c.h.b16 %v5768
    %v6859 = vunpack.c.l.b16 %v5769
    %v6860 = vunpack.c.h.b16 %v5769
    %v6861 = vunpack.c.l.b16 %v5770
    %v6862 = vunpack.c.h.b16 %v5770
    %v6863 = vunpack.c.l.b16 %v5771
    %v6864 = vunpack.c.h.b16 %v5771
    %v6865 = vunpack.c.l.b16 %v5772
    %v6866 = vunpack.c.h.b16 %v5772
    %v6867 = vunpack.c.l.b16 %v5773
    %v6868 = vunpack.c.h.b16 %v5773
    %v6869 = vunpack.c.l.b16 %v5774
    %v6870 = vunpack.c.h.b16 %v5774
    %v6871 = vunpack.c.l.b16 %v5775
    %v6872 = vunpack.c.h.b16 %v5775
    %v6873 = vunpack.c.l.b16 %v5776
    %v6874 = vunpack.c.h.b16 %v5776
    %v6875 = vunpack.c.l.b16 %v5777
    %v6876 = vunpack.c.h.b16 %v5777
    %v6877 = vunpack.c.l.b16 %v5778
    %v6878 = vunpack.c.h.b16 %v5778
    %v6879 = vunpack.c.l.b16 %v5779
    %v6880 = vunpack.c.h.b16 %v5779
    %v6881 = vunpack.c.l.b16 %v5780
    %v6882 = vunpack.c.h.b16 %v5780
    %v6883 = vunpack.c.l.b16 %v5781
    %v6884 = vunpack.c.h.b16 %v5781
    %v6885 = vunpack.c.l.b16 %v5782
    %v6886 = vunpack.c.h.b16 %v5782
    %v6887 = vunpack.c.l.b16 %v5783
    %v6888 = vunpack.c.h.b16 %v5783
    %v6889 = vunpack.c.l.b16 %v5784
    %v6890 = vunpack.c.h.b16 %v5784
    %v6891 = vunpack.c.l.b16 %v5785
    %v6892 = vunpack.c.h.b16 %v5785
    %v6893 = vunpack.c.l.b16 %v5786
    %v6894 = vunpack.c.h.b16 %v5786
    %v6895 = vunpack.c.l.b16 %v5787
    %v6896 = vunpack.c.h.b16 %v5787
    %v6897 = vunpack.c.l.b16 %v5788
    %v6898 = vunpack.c.h.b16 %v5788
    %v6899 = vunpack.c.l.b16 %v5789
    %v6900 = vunpack.c.h.b16 %v5789
    %v6901 = vunpack.c.l.b16 %v5790
    %v6902 = vunpack.c.h.b16 %v5790
    %v6903 = vunpack.c.l.b16 %v5791
    %v6904 = vunpack.c.h.b16 %v5791
    %v6905 = vunpack.c.l.b16 %v5792
    %v6906 = vunpack.c.h.b16 %v5792
    %v6907 = vunpack.c.l.b16 %v5793
    %v6908 = vunpack.c.h.b16 %v5793
    %v6909 = vunpack.c.l.b16 %v5794
    %v6910 = vunpack.c.h.b16 %v5794
    %v6911 = vunpack.c.l.b16 %v5795
    %v6912 = vunpack.c.h.b16 %v5795
    %v6913 = vunpack.c.l.b16 %v5796
    %v6914 = vunpack.c.h.b16 %v5796
    %v6915 = vunpack.c.l.b16 %v5797
    %v6916 = vunpack.c.h.b16 %v5797
    %v6917 = vunpack.c.l.b16 %v5798
    %v6918 = vunpack.c.h.b16 %v5798
    %v6919 = vunpack.c.l.b16 %v5799
    %v6920 = vunpack.c.h.b16 %v5799
    %v6921 = vunpack.c.l.b16 %v5800
    %v6922 = vunpack.c.h.b16 %v5800
    %v6923 = vunpack.c.l.b16 %v5801
    %v6924 = vunpack.c.h.b16 %v5801
    %v6925 = vunpack.c.l.b16 %v5802
    %v6926 = vunpack.c.h.b16 %v5802
    %v6927 = vunpack.c.l.b16 %v5803
    %v6928 = vunpack.c.h.b16 %v5803
    %v6929 = vunpack.c.l.b16 %v5804
    %v6930 = vunpack.c.h.b16 %v5804
    %v6931 = vunpack.c.l.b16 %v5805
    %v6932 = vunpack.c.h.b16 %v5805
    %v6933 = vunpack.c.l.b16 %v5806
    %v6934 = vunpack.c.h.b16 %v5806
    %v6935 = vunpack.c.l.b16 %v5807
    %v6936 = vunpack.c.h.b16 %v5807
    %v6937 = vunpack.c.l.b16 %v5808
    %v6938 = vunpack.c.h.b16 %v5808
    %v6939 = vunpack.c.l.b16 %v5809
    %v6940 = vunpack.c.h.b16 %v5809
    %v6941 = vunpack.c.l.b16 %v5810
    %v6942 = vunpack.c.h.b16 %v5810
    %v6943 = vunpack.c.l.b16 %v5811
    %v6944 = vunpack.c.h.b16 %v5811
    %v6945 = vunpack.c.l.b16 %v5812
    %v6946 = vunpack.c.h.b16 %v5812
    %v6947 = vunpack.c.l.b16 %v5813
    %v6948 = vunpack.c.h.b16 %v5813
    %v6949 = vunpack.c.l.b16 %v5814
    %v6950 = vunpack.c.h.b16 %v5814
    %v6951 = vunpack.c.l.b16 %v5815
    %v6952 = vunpack.c.h.b16 %v5815
    %v6953 = vunpack.c.l.b16 %v5816
    %v6954 = vunpack.c.h.b16 %v5816
    %v6955 = vunpack.c.l.b16 %v5817
    %v6956 = vunpack.c.h.b16 %v5817
    %v6957 = vunpack.c.l.b16 %v5818
    %v6958 = vunpack.c.h.b16 %v5818
    %v6959 = vunpack.c.l.b16 %v5819
    %v6960 = vunpack.c.h.b16 %v5819
    %v6961 = vunpack.c.l.b16 %v5820
    %v6962 = vunpack.c.h.b16 %v5820
    %v6963 = vunpack.c.l.b16 %v5821
    %v6964 = vunpack.c.h.b16 %v5821
    %v6965 = vunpack.c.l.b16 %v5822
    %v6966 = vunpack.c.h.b16 %v5822
    %v6967 = vunpack.c.l.b16 %v5823
    %v6968 = vunpack.c.h.b16 %v5823
    %v6969 = vunpack.c.l.b16 %v5824
    %v6970 = vunpack.c.h.b16 %v5824
    %v6971 = vunpack.c.l.b16 %v5825
    %v6972 = vunpack.c.h.b16 %v5825
    %v6973 = vunpack.c.l.b16 %v5826
    %v6974 = vunpack.c.h.b16 %v5826
    %v6975 = vunpack.c.l.b16 %v5827
    %v6976 = vunpack.c.h.b16 %v5827
    %v6977 = vunpack.c.l.b16 %v5828
    %v6978 = vunpack.c.h.b16 %v5828
    %v6979 = vunpack.c.l.b16 %v5829
    %v6980 = vunpack.c.h.b16 %v5829
    %v6981 = vunpack.c.l.b16 %v5830
    %v6982 = vunpack.c.h.b16 %v5830
    %v6983 = vunpack.c.l.b16 %v5831
    %v6984 = vunpack.c.h.b16 %v5831
    %v6985 = vunpack.c.l.b16 %v5832
    %v6986 = vunpack.c.h.b16 %v5832
    %v6987 = vunpack.c.l.b16 %v5833
    %v6988 = vunpack.c.h.b16 %v5833
    %v6989 = vunpack.c.l.b16 %v5834
    %v6990 = vunpack.c.h.b16 %v5834
    %v6991 = vunpack.c.l.b16 %v5835
    %v6992 = vunpack.c.h.b16 %v5835
    %v6993 = vunpack.c.l.b16 %v5836
    %v6994 = vunpack.c.h.b16 %v5836
    %v6995 = vunpack.c.l.b16 %v5837
    %v6996 = vunpack.c.h.b16 %v5837
    %v6997 = vunpack.c.l.b16 %v5838
    %v6998 = vunpack.c.h.b16 %v5838
    %v6999 = vunpack.c.l.b16 %v5839
    %v7000 = vunpack.c.h.b16 %v5839
    %v7001 = vunpack.c.l.b16 %v5840
    %v7002 = vunpack.c.h.b16 %v5840
    %v7003 = vunpack.c.l.b16 %v5841
    %v7004 = vunpack.c.h.b16 %v5841
    %v7005 = vunpack.c.l.b16 %v5842
    %v7006 = vunpack.c.h.b16 %v5842
    %v7007 = vunpack.c.l.b16 %v5843
    %v7008 = vunpack.c.h.b16 %v5843
    %v7009 = vunpack.c.l.b16 %v5844
    %v7010 = vunpack.c.h.b16 %v5844
    %v7011 = vunpack.c.l.b16 %v5845
    %v7012 = vunpack.c.h.b16 %v5845
    %v7013 = vunpack.c.l.b16 %v5846
    %v7014 = vunpack.c.h.b16 %v5846
    %v7015 = vunpack.c.l.b16 %v5847
    %v7016 = vunpack.c.h.b16 %v5847
    %v7017 = vunpack.c.l.b16 %v5848
    %v7018 = vunpack.c.h.b16 %v5848
    %v7019 = vunpack.c.l.b16 %v5849
    %v7020 = vunpack.c.h.b16 %v5849
    %v7021 = vunpack.c.l.b16 %v5850
    %v7022 = vunpack.c.h.b16 %v5850
    %v7023 = vunpack.c.l.b16 %v5851
    %v7024 = vunpack.c.h.b16 %v5851
    %v7025 = vunpack.c.l.b16 %v5852
    %v7026 = vunpack.c.h.b16 %v5852
    %v7027 = vunpack.c.l.b16 %v5853
    %v7028 = vunpack.c.h.b16 %v5853
    %v7029 = vunpack.c.l.b16 %v5854
    %v7030 = vunpack.c.h.b16 %v5854
    %v7031 = vunpack.c.l.b16 %v5855
    %v7032 = vunpack.c.h.b16 %v5855
    %v7033 = vunpack.c.l.b16 %v5856
    %v7034 = vunpack.c.h.b16 %v5856
    %v7035 = vunpack.c.l.b16 %v5857
    %v7036 = vunpack.c.h.b16 %v5857
    %v7037 = vunpack.c.l.b16 %v5858
    %v7038 = vunpack.c.h.b16 %v5858
    %v7039 = vunpack.c.l.b16 %v5859
    %v7040 = vunpack.c.h.b16 %v5859
    %v7041 = vunpack.c.l.b16 %v5860
    %v7042 = vunpack.c.h.b16 %v5860
    %v7043 = vunpack.c.l.b16 %v5861
    %v7044 = vunpack.c.h.b16 %v5861
    %v7045 = vunpack.c.l.b16 %v5862
    %v7046 = vunpack.c.h.b16 %v5862
    %v7047 = vunpack.c.l.b16 %v5863
    %v7048 = vunpack.c.h.b16 %v5863
    %v7049 = vunpack.c.l.b16 %v5864
    %v7050 = vunpack.c.h.b16 %v5864
    %v7051 = vunpack.c.l.b16 %v5865
    %v7052 = vunpack.c.h.b16 %v5865
    %v7053 = vunpack.c.l.b16 %v5866
    %v7054 = vunpack.c.h.b16 %v5866
    %v7055 = vunpack.c.l.b16 %v5867
    %v7056 = vunpack.c.h.b16 %v5867
    %v7057 = vunpack.c.l.b16 %v5868
    %v7058 = vunpack.c.h.b16 %v5868
    %v7059 = vunpack.c.l.b16 %v5869
    %v7060 = vunpack.c.h.b16 %v5869
    %v7061 = vunpack.c.l.b16 %v5870
    %v7062 = vunpack.c.h.b16 %v5870
    %v7063 = vunpack.c.l.b16 %v5871
    %v7064 = vunpack.c.h.b16 %v5871
    %v7065 = vunpack.c.l.b16 %v5872
    %v7066 = vunpack.c.h.b16 %v5872
    %v7067 = vunpack.c.l.b16 %v5873
    %v7068 = vunpack.c.h.b16 %v5873
    %v7069 = vunpack.c.l.b16 %v5874
    %v7070 = vunpack.c.h.b16 %v5874
    %v7071 = vunpack.c.l.b16 %v5875
    %v7072 = vunpack.c.h.b16 %v5875
    %v7073 = vunpack.c.l.b16 %v5876
    %v7074 = vunpack.c.h.b16 %v5876
    %v7075 = vunpack.c.l.b16 %v5877
    %v7076 = vunpack.c.h.b16 %v5877
    %v7077 = vunpack.c.l.b16 %v5878
    %v7078 = vunpack.c.h.b16 %v5878
    %v7079 = vunpack.c.l.b16 %v5879
    %v7080 = vunpack.c.h.b16 %v5879
    %v7081 = vunpack.c.l.b16 %v5880
    %v7082 = vunpack.c.h.b16 %v5880
    %v7083 = vunpack.c.l.b16 %v5881
    %v7084 = vunpack.c.h.b16 %v5881
    %v7085 = vunpack.c.l.b16 %v5882
    %v7086 = vunpack.c.h.b16 %v5882
    %v7087 = vunpack.c.l.b16 %v5883
    %v7088 = vunpack.c.h.b16 %v5883
    %v7089 = vunpack.c.l.b16 %v5884
    %v7090 = vunpack.c.h.b16 %v5884
    %v7091 = vunpack.c.l.b16 %v5885
    %v7092 = vunpack.c.h.b16 %v5885
    %v7093 = vunpack.c.l.b16 %v5886
    %v7094 = vunpack.c.h.b16 %v5886
    %v7095 = vunpack.c.l.b16 %v5887
    %v7096 = vunpack.c.h.b16 %v5887
    %v7097 = vunpack.c.l.b16 %v5888
    %v7098 = vunpack.c.h.b16 %v5888
    %v7099 = vunpack.c.l.b16 %v5889
    %v7100 = vunpack.c.h.b16 %v5889
    %v7101 = vunpack.c.l.b16 %v5890
    %v7102 = vunpack.c.h.b16 %v5890
    %v7103 = vunpack.c.l.b16 %v5891
    %v7104 = vunpack.c.h.b16 %v5891
    %v7105 = vunpack.c.l.b16 %v5892
    %v7106 = vunpack.c.h.b16 %v5892
    %v7107 = vunpack.c.l.b16 %v5893
    %v7108 = vunpack.c.h.b16 %v5893
    %v7109 = vunpack.c.l.b16 %v5894
    %v7110 = vunpack.c.h.b16 %v5894
    %v7111 = vunpack.c.l.b16 %v5895
    %v7112 = vunpack.c.h.b16 %v5895
    %v7113 = vunpack.c.l.b16 %v5896
    %v7114 = vunpack.c.h.b16 %v5896
    %v7115 = vunpack.c.l.b16 %v5897
    %v7116 = vunpack.c.h.b16 %v5897
    %v7117 = vunpack.c.l.b16 %v5898
    %v7118 = vunpack.c.h.b16 %v5898
    %v7119 = vunpack.c.l.b16 %v5899
    %v7120 = vunpack.c.h.b16 %v5899
    %v7121 = vunpack.c.l.b16 %v5900
    %v7122 = vunpack.c.h.b16 %v5900
    %v7123 = vunpack.c.l.b16 %v5901
    %v7124 = vunpack.c.h.b16 %v5901
    %v7125 = vunpack.c.l.b16 %v5902
    %v7126 = vunpack.c.h.b16 %v5902
    %v7127 = vunpack.c.l.b16 %v5903
    %v7128 = vunpack.c.h.b16 %v5903
    %v7129 = vunpack.c.l.b16 %v5904
    %v7130 = vunpack.c.h.b16 %v5904
    %v7131 = vunpack.c.l.b16 %v5905
    %v7132 = vunpack.c.h.b16 %v5905
    %v7133 = vunpack.c.l.b16 %v5906
    %v7134 = vunpack.c.h.b16 %v5906
    %v7135 = vunpack.c.l.b16 %v5907
    %v7136 = vunpack.c.h.b16 %v5907
    %v7137 = vunpack.c.l.b16 %v5908
    %v7138 = vunpack.c.h.b16 %v5908
    %v7139 = vunpack.c.l.b16 %v5909
    %v7140 = vunpack.c.h.b16 %v5909
    %v7141 = vunpack.c.l.b16 %v5910
    %v7142 = vunpack.c.h.b16 %v5910
    %v7143 = vunpack.c.l.b16 %v5911
    %v7144 = vunpack.c.h.b16 %v5911
    %v7145 = vunpack.c.l.b16 %v5912
    %v7146 = vunpack.c.h.b16 %v5912
    %v7147 = vunpack.c.l.b16 %v5913
    %v7148 = vunpack.c.h.b16 %v5913
    %v7149 = vunpack.c.l.b16 %v5914
    %v7150 = vunpack.c.h.b16 %v5914
    %v7151 = vunpack.c.l.b16 %v5915
    %v7152 = vunpack.c.h.b16 %v5915
    %v7153 = vunpack.c.l.b16 %v5916
    %v7154 = vunpack.c.h.b16 %v5916
    %v7155 = vunpack.c.l.b16 %v5917
    %v7156 = vunpack.c.h.b16 %v5917
    %v7157 = vunpack.c.l.b16 %v5918
    %v7158 = vunpack.c.h.b16 %v5918
    %v7159 = vunpack.c.l.b16 %v5919
    %v7160 = vunpack.c.h.b16 %v5919
    %v7161 = vunpack.c.l.b16 %v5920
    %v7162 = vunpack.c.h.b16 %v5920
    %v7163 = vunpack.c.l.b16 %v5921
    %v7164 = vunpack.c.h.b16 %v5921
    %v7165 = vunpack.c.l.b16 %v5922
    %v7166 = vunpack.c.h.b16 %v5922
    %v7167 = vunpack.c.l.b16 %v5923
    %v7168 = vunpack.c.h.b16 %v5923
    %v7169 = vunpack.c.l.b16 %v5924
    %v7170 = vunpack.c.h.b16 %v5924
    %v7171 = vunpack.c.l.b16 %v5925
    %v7172 = vunpack.c.h.b16 %v5925
    %v7173 = vunpack.c.l.b16 %v5926
    %v7174 = vunpack.c.h.b16 %v5926
    %v7175 = vunpack.c.l.b16 %v5927
    %v7176 = vunpack.c.h.b16 %v5927
    %v7177 = vunpack.c.l.b16 %v5928
    %v7178 = vunpack.c.h.b16 %v5928
    %v7179 = vunpack.c.l.b16 %v5929
    %v7180 = vunpack.c.h.b16 %v5929
    %v7181 = vunpack.c.l.b16 %v5930
    %v7182 = vunpack.c.h.b16 %v5930
    %v7183 = vunpack.c.l.b16 %v5931
    %v7184 = vunpack.c.h.b16 %v5931
    %v7185 = vunpack.c.l.b16 %v5932
    %v7186 = vunpack.c.h.b16 %v5932
    %v7187 = vpack.c.b16 %v6397, %v6387
    %v7188 = vpack.c.b16 %v6398, %v6388
    %v7189 = vpack.c.b16 %v6399, %v6389
    %v7190 = vpack.c.b16 %v6400, %v6390
    %v7191 = vpack.c.b16 %v6401, %v6391
    %v7192 = vpack.c.b16 %v6402, %v6392
    %v7193 = vpack.c.b16 %v6403, %v6393
    %v7194 = vpack.c.b16 %v6404, %v6394
    %v7195 = vpack.c.b16 %v6405, %v6395
    %v7196 = vpack.c.b16 %v6406, %v6396
    %v7197 = vpack.c.b16 %v6417, %v6407
    %v7198 = vpack.c.b16 %v6418, %v6408
    %v7199 = vpack.c.b16 %v6419, %v6409
    %v7200 = vpack.c.b16 %v6420, %v6410
    %v7201 = vpack.c.b16 %v6421, %v6411
    %v7202 = vpack.c.b16 %v6422, %v6412
    %v7203 = vpack.c.b16 %v6423, %v6413
    %v7204 = vpack.c.b16 %v6424, %v6414
    %v7205 = vpack.c.b16 %v6425, %v6415
    %v7206 = vpack.c.b16 %v6426, %v6416
    %v7207 = vpack.c.b16 %v6437, %v6427
    %v7208 = vpack.c.b16 %v6438, %v6428
    %v7209 = vpack.c.b16 %v6439, %v6429
    %v7210 = vpack.c.b16 %v6440, %v6430
    %v7211 = vpack.c.b16 %v6441, %v6431
    %v7212 = vpack.c.b16 %v6442, %v6432
    %v7213 = vpack.c.b16 %v6443, %v6433
    %v7214 = vpack.c.b16 %v6444, %v6434
    %v7215 = vpack.c.b16 %v6445, %v6435
    %v7216 = vpack.c.b16 %v6446, %v6436
    %v7217 = vpack.c.b16 %v6457, %v6447
    %v7218 = vpack.c.b16 %v6458, %v6448
    %v7219 = vpack.c.b16 %v6459, %v6449
    %v7220 = vpack.c.b16 %v6460, %v6450
    %v7221 = vpack.c.b16 %v6461, %v6451
    %v7222 = vpack.c.b16 %v6462, %v6452
    %v7223 = vpack.c.b16 %v6463, %v6453
    %v7224 = vpack.c.b16 %v6464, %v6454
    %v7225 = vpack.c.b16 %v6465, %v6455
    %v7226 = vpack.c.b16 %v6466, %v6456
    %v7227 = vpack.c.b16 %v6477, %v6467
    %v7228 = vpack.c.b16 %v6478, %v6468
    %v7229 = vpack.c.b16 %v6479, %v6469
    %v7230 = vpack.c.b16 %v6480, %v6470
    %v7231 = vpack.c.b16 %v6481, %v6471
    %v7232 = vpack.c.b16 %v6482, %v6472
    %v7233 = vpack.c.b16 %v6483, %v6473
    %v7234 = vpack.c.b16 %v6484, %v6474
    %v7235 = vpack.c.b16 %v6485, %v6475
    %v7236 = vpack.c.b16 %v6486, %v6476
    %v7237 = vpack.c.b16 %v6497, %v6487
    %v7238 = vpack.c.b16 %v6498, %v6488
    %v7239 = vpack.c.b16 %v6499, %v6489
    %v7240 = vpack.c.b16 %v6500, %v6490
    %v7241 = vpack.c.b16 %v6501, %v6491
    %v7242 = vpack.c.b16 %v6502, %v6492
    %v7243 = vpack.c.b16 %v6503, %v6493
    %v7244 = vpack.c.b16 %v6504, %v6494
    %v7245 = vpack.c.b16 %v6505, %v6495
    %v7246 = vpack.c.b16 %v6506, %v6496
    %v7247 = vpack.c.b16 %v6517, %v6507
    %v7248 = vpack.c.b16 %v6518, %v6508
    %v7249 = vpack.c.b16 %v6519, %v6509
    %v7250 = vpack.c.b16 %v6520, %v6510
    %v7251 = vpack.c.b16 %v6521, %v6511
    %v7252 = vpack.c.b16 %v6522, %v6512
    %v7253 = vpack.c.b16 %v6523, %v6513
    %v7254 = vpack.c.b16 %v6524, %v6514
    %v7255 = vpack.c.b16 %v6525, %v6515
    %v7256 = vpack.c.b16 %v6526, %v6516
    %v7257 = vpack.c.b16 %v6537, %v6527
    %v7258 = vpack.c.b16 %v6538, %v6528
    %v7259 = vpack.c.b16 %v6539, %v6529
    %v7260 = vpack.c.b16 %v6540, %v6530
    %v7261 = vpack.c.b16 %v6541, %v6531
    %v7262 = vpack.c.b16 %v6542, %v6532
    %v7263 = vpack.c.b16 %v6543, %v6533
    %v7264 = vpack.c.b16 %v6544, %v6534
    %v7265 = vpack.c.b16 %v6545, %v6535
    %v7266 = vpack.c.b16 %v6546, %v6536
    %v7267 = vpack.c.b16 %v6557, %v6547
    %v7268 = vpack.c.b16 %v6558, %v6548
    %v7269 = vpack.c.b16 %v6559, %v6549
    %v7270 = vpack.c.b16 %v6560, %v6550
    %v7271 = vpack.c.b16 %v6561, %v6551
    %v7272 = vpack.c.b16 %v6562, %v6552
    %v7273 = vpack.c.b16 %v6563, %v6553
    %v7274 = vpack.c.b16 %v6564, %v6554
    %v7275 = vpack.c.b16 %v6565, %v6555
    %v7276 = vpack.c.b16 %v6566, %v6556
    %v7277 = vpack.c.b16 %v6577, %v6567
    %v7278 = vpack.c.b16 %v6578, %v6568
    %v7279 = vpack.c.b16 %v6579, %v6569
    %v7280 = vpack.c.b16 %v6580, %v6570
    %v7281 = vpack.c.b16 %v6581, %v6571
    %v7282 = vpack.c.b16 %v6582, %v6572
    %v7283 = vpack.c.b16 %v6583, %v6573
    %v7284 = vpack.c.b16 %v6584, %v6574
    %v7285 = vpack.c.b16 %v6585, %v6575
    %v7286 = vpack.c.b16 %v6586, %v6576
    %v7287 = vpack.c.b16 %v6597, %v6587
    %v7288 = vpack.c.b16 %v6598, %v6588
    %v7289 = vpack.c.b16 %v6599, %v6589
    %v7290 = vpack.c.b16 %v6600, %v6590
    %v7291 = vpack.c.b16 %v6601, %v6591
    %v7292 = vpack.c.b16 %v6602, %v6592
    %v7293 = vpack.c.b16 %v6603, %v6593
    %v7294 = vpack.c.b16 %v6604, %v6594
    %v7295 = vpack.c.b16 %v6605, %v6595
    %v7296 = vpack.c.b16 %v6606, %v6596
    %v7297 = vpack.c.b16 %v6617, %v6607
    %v7298 = vpack.c.b16 %v6618, %v6608
    %v7299 = vpack.c.b16 %v6619, %v6609
    %v7300 = vpack.c.b16 %v6620, %v6610
    %v7301 = vpack.c.b16 %v6621, %v6611
    %v7302 = vpack.c.b16 %v6622, %v6612
    %v7303 = vpack.c.b16 %v6623, %v6613
    %v7304 = vpack.c.b16 %v6624, %v6614
    %v7305 = vpack.c.b16 %v6625, %v6615
    %v7306 = vpack.c.b16 %v6626, %v6616
    %v7307 = vpack.c.b16 %v6637, %v6627
    %v7308 = vpack.c.b16 %v6638, %v6628
    %v7309 = vpack.c.b16 %v6639, %v6629
    %v7310 = vpack.c.b16 %v6640, %v6630
    %v7311 = vpack.c.b16 %v6641, %v6631
    %v7312 = vpack.c.b16 %v6642, %v6632
    %v7313 = vpack.c.b16 %v6643, %v6633
    %v7314 = vpack.c.b16 %v6644, %v6634
    %v7315 = vpack.c.b16 %v6645, %v6635
    %v7316 = vpack.c.b16 %v6646, %v6636
    %v7317 = vpack.c.b16 %v6657, %v6647
    %v7318 = vpack.c.b16 %v6658, %v6648
    %v7319 = vpack.c.b16 %v6659, %v6649
    %v7320 = vpack.c.b16 %v6660, %v6650
    %v7321 = vpack.c.b16 %v6661, %v6651
    %v7322 = vpack.c.b16 %v6662, %v6652
    %v7323 = vpack.c.b16 %v6663, %v6653
    %v7324 = vpack.c.b16 %v6664, %v6654
    %v7325 = vpack.c.b16 %v6665, %v6655
    %v7326 = vpack.c.b16 %v6666, %v6656
    %v7327 = vpack.c.b16 %v6677, %v6667
    %v7328 = vpack.c.b16 %v6678, %v6668
    %v7329 = vpack.c.b16 %v6679, %v6669
    %v7330 = vpack.c.b16 %v6680, %v6670
    %v7331 = vpack.c.b16 %v6681, %v6671
    %v7332 = vpack.c.b16 %v6682, %v6672
    %v7333 = vpack.c.b16 %v6683, %v6673
    %v7334 = vpack.c.b16 %v6684, %v6674
    %v7335 = vpack.c.b16 %v6685, %v6675
    %v7336 = vpack.c.b16 %v6686, %v6676
    %v7337 = vpack.c.b16 %v6697, %v6687
    %v7338 = vpack.c.b16 %v6698, %v6688
    %v7339 = vpack.c.b16 %v6699, %v6689
    %v7340 = vpack.c.b16 %v6700, %v6690
    %v7341 = vpack.c.b16 %v6701, %v6691
    %v7342 = vpack.c.b16 %v6702, %v6692
    %v7343 = vpack.c.b16 %v6703, %v6693
    %v7344 = vpack.c.b16 %v6704, %v6694
    %v7345 = vpack.c.b16 %v6705, %v6695
    %v7346 = vpack.c.b16 %v6706, %v6696
    %v7347 = vpack.c.b16 %v6717, %v6707
    %v7348 = vpack.c.b16 %v6718, %v6708
    %v7349 = vpack.c.b16 %v6719, %v6709
    %v7350 = vpack.c.b16 %v6720, %v6710
    %v7351 = vpack.c.b16 %v6721, %v6711
    %v7352 = vpack.c.b16 %v6722, %v6712
    %v7353 = vpack.c.b16 %v6723, %v6713
    %v7354 = vpack.c.b16 %v6724, %v6714
    %v7355 = vpack.c.b16 %v6725, %v6715
    %v7356 = vpack.c.b16 %v6726, %v6716
    %v7357 = vpack.c.b16 %v6737, %v6727
    %v7358 = vpack.c.b16 %v6738, %v6728
    %v7359 = vpack.c.b16 %v6739, %v6729
    %v7360 = vpack.c.b16 %v6740, %v6730
    %v7361 = vpack.c.b16 %v6741, %v6731
    %v7362 = vpack.c.b16 %v6742, %v6732
    %v7363 = vpack.c.b16 %v6743, %v6733
    %v7364 = vpack.c.b16 %v6744, %v6734
    %v7365 = vpack.c.b16 %v6745, %v6735
    %v7366 = vpack.c.b16 %v6746, %v6736
    %v7367 = vpack.c.b16 %v6757, %v6747
    %v7368 = vpack.c.b16 %v6758, %v6748
    %v7369 = vpack.c.b16 %v6759, %v6749
    %v7370 = vpack.c.b16 %v6760, %v6750
    %v7371 = vpack.c.b16 %v6761, %v6751
    %v7372 = vpack.c.b16 %v6762, %v6752
    %v7373 = vpack.c.b16 %v6763, %v6753
    %v7374 = vpack.c.b16 %v6764, %v6754
    %v7375 = vpack.c.b16 %v6765, %v6755
    %v7376 = vpack.c.b16 %v6766, %v6756
    %v7377 = vpack.c.b16 %v6777, %v6767
    %v7378 = vpack.c.b16 %v6778, %v6768
    %v7379 = vpack.c.b16 %v6779, %v6769
    %v7380 = vpack.c.b16 %v6780, %v6770
    %v7381 = vpack.c.b16 %v6781, %v6771
    %v7382 = vpack.c.b16 %v6782, %v6772
    %v7383 = vpack.c.b16 %v6783, %v6773
    %v7384 = vpack.c.b16 %v6784, %v6774
    %v7385 = vpack.c.b16 %v6785, %v6775
    %v7386 = vpack.c.b16 %v6786, %v6776
    %v7387 = vpack.c.b16 %v6797, %v6787
    %v7388 = vpack.c.b16 %v6798, %v6788
    %v7389 = vpack.c.b16 %v6799, %v6789
    %v7390 = vpack.c.b16 %v6800, %v6790
    %v7391 = vpack.c.b16 %v6801, %v6791
    %v7392 = vpack.c.b16 %v6802, %v6792
    %v7393 = vpack.c.b16 %v6803, %v6793
    %v7394 = vpack.c.b16 %v6804, %v6794
    %v7395 = vpack.c.b16 %v6805, %v6795
    %v7396 = vpack.c.b16 %v6806, %v6796
    %v7397 = vpack.c.b16 %v6817, %v6807
    %v7398 = vpack.c.b16 %v6818, %v6808
    %v7399 = vpack.c.b16 %v6819, %v6809
    %v7400 = vpack.c.b16 %v6820, %v6810
    %v7401 = vpack.c.b16 %v6821, %v6811
    %v7402 = vpack.c.b16 %v6822, %v6812
    %v7403 = vpack.c.b16 %v6823, %v6813
    %v7404 = vpack.c.b16 %v6824, %v6814
    %v7405 = vpack.c.b16 %v6825, %v6815
    %v7406 = vpack.c.b16 %v6826, %v6816
    %v7407 = vpack.c.b16 %v6837, %v6827
    %v7408 = vpack.c.b16 %v6838, %v6828
    %v7409 = vpack.c.b16 %v6839, %v6829
    %v7410 = vpack.c.b16 %v6840, %v6830
    %v7411 = vpack.c.b16 %v6841, %v6831
    %v7412 = vpack.c.b16 %v6842, %v6832
    %v7413 = vpack.c.b16 %v6843, %v6833
    %v7414 = vpack.c.b16 %v6844, %v6834
    %v7415 = vpack.c.b16 %v6845, %v6835
    %v7416 = vpack.c.b16 %v6846, %v6836
    %v7417 = vpack.c.b16 %v6857, %v6847
    %v7418 = vpack.c.b16 %v6858, %v6848
    %v7419 = vpack.c.b16 %v6859, %v6849
    %v7420 = vpack.c.b16 %v6860, %v6850
    %v7421 = vpack.c.b16 %v6861, %v6851
    %v7422 = vpack.c.b16 %v6862, %v6852
    %v7423 = vpack.c.b16 %v6863, %v6853
    %v7424 = vpack.c.b16 %v6864, %v6854
    %v7425 = vpack.c.b16 %v6865, %v6855
    %v7426 = vpack.c.b16 %v6866, %v6856
    %v7427 = vpack.c.b16 %v6877, %v6867
    %v7428 = vpack.c.b16 %v6878, %v6868
    %v7429 = vpack.c.b16 %v6879, %v6869
    %v7430 = vpack.c.b16 %v6880, %v6870
    %v7431 = vpack.c.b16 %v6881, %v6871
    %v7432 = vpack.c.b16 %v6882, %v6872
    %v7433 = vpack.c.b16 %v6883, %v6873
    %v7434 = vpack.c.b16 %v6884, %v6874
    %v7435 = vpack.c.b16 %v6885, %v6875
    %v7436 = vpack.c.b16 %v6886, %v6876
    %v7437 = vpack.c.b16 %v6897, %v6887
    %v7438 = vpack.c.b16 %v6898, %v6888
    %v7439 = vpack.c.b16 %v6899, %v6889
    %v7440 = vpack.c.b16 %v6900, %v6890
    %v7441 = vpack.c.b16 %v6901, %v6891
    %v7442 = vpack.c.b16 %v6902, %v6892
    %v7443 = vpack.c.b16 %v6903, %v6893
    %v7444 = vpack.c.b16 %v6904, %v6894
    %v7445 = vpack.c.b16 %v6905, %v6895
    %v7446 = vpack.c.b16 %v6906, %v6896
    %v7447 = vpack.c.b16 %v6917, %v6907
    %v7448 = vpack.c.b16 %v6918, %v6908
    %v7449 = vpack.c.b16 %v6919, %v6909
    %v7450 = vpack.c.b16 %v6920, %v6910
    %v7451 = vpack.c.b16 %v6921, %v6911
    %v7452 = vpack.c.b16 %v6922, %v6912
    %v7453 = vpack.c.b16 %v6923, %v6913
    %v7454 = vpack.c.b16 %v6924, %v6914
    %v7455 = vpack.c.b16 %v6925, %v6915
    %v7456 = vpack.c.b16 %v6926, %v6916
    %v7457 = vpack.c.b16 %v6937, %v6927
    %v7458 = vpack.c.b16 %v6938, %v6928
    %v7459 = vpack.c.b16 %v6939, %v6929
    %v7460 = vpack.c.b16 %v6940, %v6930
    %v7461 = vpack.c.b16 %v6941, %v6931
    %v7462 = vpack.c.b16 %v6942, %v6932
    %v7463 = vpack.c.b16 %v6943, %v6933
    %v7464 = vpack.c.b16 %v6944, %v6934
    %v7465 = vpack.c.b16 %v6945, %v6935
    %v7466 = vpack.c.b16 %v6946, %v6936
    %v7467 = vpack.c.b16 %v6957, %v6947
    %v7468 = vpack.c.b16 %v6958, %v6948
    %v7469 = vpack.c.b16 %v6959, %v6949
    %v7470 = vpack.c.b16 %v6960, %v6950
    %v7471 = vpack.c.b16 %v6961, %v6951
    %v7472 = vpack.c.b16 %v6962, %v6952
    %v7473 = vpack.c.b16 %v6963, %v6953
    %v7474 = vpack.c.b16 %v6964, %v6954
    %v7475 = vpack.c.b16 %v6965, %v6955
    %v7476 = vpack.c.b16 %v6966, %v6956
    %v7477 = vpack.c.b16 %v6977, %v6967
    %v7478 = vpack.c.b16 %v6978, %v6968
    %v7479 = vpack.c.b16 %v6979, %v6969
    %v7480 = vpack.c.b16 %v6980, %v6970
    %v7481 = vpack.c.b16 %v6981, %v6971
    %v7482 = vpack.c.b16 %v6982, %v6972
    %v7483 = vpack.c.b16 %v6983, %v6973
    %v7484 = vpack.c.b16 %v6984, %v6974
    %v7485 = vpack.c.b16 %v6985, %v6975
    %v7486 = vpack.c.b16 %v6986, %v6976
    %v7487 = vpack.c.b16 %v6997, %v6987
    %v7488 = vpack.c.b16 %v6998, %v6988
    %v7489 = vpack.c.b16 %v6999, %v6989
    %v7490 = vpack.c.b16 %v7000, %v6990
    %v7491 = vpack.c.b16 %v7001, %v6991
    %v7492 = vpack.c.b16 %v7002, %v6992
    %v7493 = vpack.c.b16 %v7003, %v6993
    %v7494 = vpack.c.b16 %v7004, %v6994
    %v7495 = vpack.c.b16 %v7005, %v6995
    %v7496 = vpack.c.b16 %v7006, %v6996
    %v7497 = vpack.c.b16 %v7017, %v7007
    %v7498 = vpack.c.b16 %v7018, %v7008
    %v7499 = vpack.c.b16 %v7019, %v7009
    %v7500 = vpack.c.b16 %v7020, %v7010
    %v7501 = vpack.c.b16 %v7021, %v7011
    %v7502 = vpack.c.b16 %v7022, %v7012
    %v7503 = vpack.c.b16 %v7023, %v7013
    %v7504 = vpack.c.b16 %v7024, %v7014
    %v7505 = vpack.c.b16 %v7025, %v7015
    %v7506 = vpack.c.b16 %v7026, %v7016
    %v7507 = vpack.c.b16 %v7037, %v7027
    %v7508 = vpack.c.b16 %v7038, %v7028
    %v7509 = vpack.c.b16 %v7039, %v7029
    %v7510 = vpack.c.b16 %v7040, %v7030
    %v7511 = vpack.c.b16 %v7041, %v7031
    %v7512 = vpack.c.b16 %v7042, %v7032
    %v7513 = vpack.c.b16 %v7043, %v7033
    %v7514 = vpack.c.b16 %v7044, %v7034
    %v7515 = vpack.c.b16 %v7045, %v7035
    %v7516 = vpack.c.b16 %v7046, %v7036
    %v7517 = vpack.c.b16 %v7057, %v7047
    %v7518 = vpack.c.b16 %v7058, %v7048
    %v7519 = vpack.c.b16 %v7059, %v7049
    %v7520 = vpack.c.b16 %v7060, %v7050
    %v7521 = vpack.c.b16 %v7061, %v7051
    %v7522 = vpack.c.b16 %v7062, %v7052
    %v7523 = vpack.c.b16 %v7063, %v7053
    %v7524 = vpack.c.b16 %v7064, %v7054
    %v7525 = vpack.c.b16 %v7065, %v7055
    %v7526 = vpack.c.b16 %v7066, %v7056
    %v7527 = vpack.c.b16 %v7077, %v7067
    %v7528 = vpack.c.b16 %v7078, %v7068
    %v7529 = vpack.c.b16 %v7079, %v7069
    %v7530 = vpack.c.b16 %v7080, %v7070
    %v7531 = vpack.c.b16 %v7081, %v7071
    %v7532 = vpack.c.b16 %v7082, %v7072
    %v7533 = vpack.c.b16 %v7083, %v7073
    %v7534 = vpack.c.b16 %v7084, %v7074
    %v7535 = vpack.c.b16 %v7085, %v7075
    %v7536 = vpack.c.b16 %v7086, %v7076
    %v7537 = vpack.c.b16 %v7097, %v7087
    %v7538 = vpack.c.b16 %v7098, %v7088
    %v7539 = vpack.c.b16 %v7099, %v7089
    %v7540 = vpack.c.b16 %v7100, %v7090
    %v7541 = vpack.c.b16 %v7101, %v7091
    %v7542 = vpack.c.b16 %v7102, %v7092
    %v7543 = vpack.c.b16 %v7103, %v7093
    %v7544 = vpack.c.b16 %v7104, %v7094
    %v7545 = vpack.c.b16 %v7105, %v7095
    %v7546 = vpack.c.b16 %v7106, %v7096
    %v7547 = vpack.c.b16 %v7117, %v7107
    %v7548 = vpack.c.b16 %v7118, %v7108
    %v7549 = vpack.c.b16 %v7119, %v7109
    %v7550 = vpack.c.b16 %v7120, %v7110
    %v7551 = vpack.c.b16 %v7121, %v7111
    %v7552 = vpack.c.b16 %v7122, %v7112
    %v7553 = vpack.c.b16 %v7123, %v7113
    %v7554 = vpack.c.b16 %v7124, %v7114
    %v7555 = vpack.c.b16 %v7125, %v7115
    %v7556 = vpack.c.b16 %v7126, %v7116
    %v7557 = vpack.c.b16 %v7137, %v7127
    %v7558 = vpack.c.b16 %v7138, %v7128
    %v7559 = vpack.c.b16 %v7139, %v7129
    %v7560 = vpack.c.b16 %v7140, %v7130
    %v7561 = vpack.c.b16 %v7141, %v7131
    %v7562 = vpack.c.b16 %v7142, %v7132
    %v7563 = vpack.c.b16 %v7143, %v7133
    %v7564 = vpack.c.b16 %v7144, %v7134
    %v7565 = vpack.c.b16 %v7145, %v7135
    %v7566 = vpack.c.b16 %v7146, %v7136
    %v7567 = vpack.c.b16 %v7157, %v7147
    %v7568 = vpack.c.b16 %v7158, %v7148
    %v7569 = vpack.c.b16 %v7159, %v7149
    %v7570 = vpack.c.b16 %v7160, %v7150
    %v7571 = vpack.c.b16 %v7161, %v7151
    %v7572 = vpack.c.b16 %v7162, %v7152
    %v7573 = vpack.c.b16 %v7163, %v7153
    %v7574 = vpack.c.b16 %v7164, %v7154
    %v7575 = vpack.c.b16 %v7165, %v7155
    %v7576 = vpack.c.b16 %v7166, %v7156
    %v7577 = vpack.c.b16 %v7177, %v7167
    %v7578 = vpack.c.b16 %v7178, %v7168
    %v7579 = vpack.c.b16 %v7179, %v7169
    %v7580 = vpack.c.b16 %v7180, %v7170
    %v7581 = vpack.c.b16 %v7181, %v7171
    %v7582 = vpack.c.b16 %v7182, %v7172
    %v7583 = vpack.c.b16 %v7183, %v7173
    %v7584 = vpack.c.b16 %v7184, %v7174
    %v7585 = vpack.c.b16 %v7185, %v7175
    %v7586 = vpack.c.b16 %v7186, %v7176
    %7987 = vmatprep.subr.bf16.mxu0 %v7188
    %7988 = vmatpush1.bf16.msra.mxu0 %v7187
    %7989 = vmatprep.subr.bf16.mxu0 %v7198
    %7990 = vmatpush1.bf16.msra.mxu0 %v7197
    %7991 = vmatprep.subr.bf16.mxu0 %v7208
    %7992 = vmatpush1.bf16.msra.mxu0 %v7207
    %7993 = vmatprep.subr.bf16.mxu0 %v7218
    %7994 = vmatpush1.bf16.msra.mxu0 %v7217
    %7995 = vmatprep.subr.bf16.mxu0 %v7228
    %7996 = vmatpush1.bf16.msra.mxu0 %v7227
    %7997 = vmatprep.subr.bf16.mxu0 %v7238
    %7998 = vmatpush1.bf16.msra.mxu0 %v7237
    %7999 = vmatprep.subr.bf16.mxu0 %v7248
    %8000 = vmatpush1.bf16.msra.mxu0 %v7247
    %8001 = vmatprep.subr.bf16.mxu0 %v7258
    %8002 = vmatpush1.bf16.msra.mxu0 %v7257
    %8003 = vmatprep.subr.bf16.mxu0 %v7268
    %8004 = vmatpush1.bf16.msra.mxu0 %v7267
    %8005 = vmatprep.subr.bf16.mxu0 %v7278
    %8006 = vmatpush1.bf16.msra.mxu0 %v7277
    %8007 = vmatprep.subr.bf16.mxu0 %v7288
    %8008 = vmatpush1.bf16.msra.mxu0 %v7287
    %8009 = vmatprep.subr.bf16.mxu0 %v7298
    %8010 = vmatpush1.bf16.msra.mxu0 %v7297
    %8011 = vmatprep.subr.bf16.mxu0 %v7308
    %8012 = vmatpush1.bf16.msra.mxu0 %v7307
    %8013 = vmatprep.subr.bf16.mxu0 %v7318
    %8014 = vmatpush1.bf16.msra.mxu0 %v7317
    %8015 = vmatprep.subr.bf16.mxu0 %v7328
    %8016 = vmatpush1.bf16.msra.mxu0 %v7327
    %8017 = vmatprep.subr.bf16.mxu0 %v7338
    %8018 = vmatpush1.bf16.msra.mxu0 %v7337
    %8019 = vmatprep.mubr.bf16.mxu0 %v5529
    %8020 = vmatmul.mubr.bf16.gmra.mrb[0].mxu0 %v5528
    %v8021 = vpop.f32.mrb[0].mxu0
    %v8022 = vadd.f32 %v5940, %v8021
    %v8023 = vpop.f32.mrb[0].mxu0
    %v8024 = vadd.f32 %v5944, %v8023
    %v8025 = vpop.f32.mrb[0].mxu0
    %v8026 = vadd.f32 %v5940, %v8025
    %v8027 = vpop.f32.mrb[0].mxu0
    %v8028 = vadd.f32 %v5944, %v8027
    %8029 = vdwg.mxu0
    %8030 = vmatprep.subr.bf16.mxu0 %v7348
    %8031 = vmatpush1.bf16.msra.mxu0 %v7347
    %8032 = vmatprep.subr.bf16.mxu0 %v7358
    %8033 = vmatpush1.bf16.msra.mxu0 %v7357
    %8034 = vmatprep.subr.bf16.mxu0 %v7368
    %8035 = vmatpush1.bf16.msra.mxu0 %v7367
    %8036 = vmatprep.subr.bf16.mxu0 %v7378
    %8037 = vmatpush1.bf16.msra.mxu0 %v7377
    %8038 = vmatprep.subr.bf16.mxu0 %v7388
    %8039 = vmatpush1.bf16.msra.mxu0 %v7387
    %8040 = vmatprep.subr.bf16.mxu0 %v7398
    %8041 = vmatpush1.bf16.msra.mxu0 %v7397
    %8042 = vmatprep.subr.bf16.mxu0 %v7408
    %8043 = vmatpush1.bf16.msra.mxu0 %v7407
    %8044 = vmatprep.subr.bf16.mxu0 %v7418
    %8045 = vmatpush1.bf16.msra.mxu0 %v7417
    %8046 = vmatprep.subr.bf16.mxu0 %v7428
    %8047 = vmatpush1.bf16.msra.mxu0 %v7427
    %8048 = vmatprep.subr.bf16.mxu0 %v7438
    %8049 = vmatpush1.bf16.msra.mxu0 %v7437
    %8050 = vmatprep.subr.bf16.mxu0 %v7448
    %8051 = vmatpush1.bf16.msra.mxu0 %v7447
    %8052 = vmatprep.subr.bf16.mxu0 %v7458
    %8053 = vmatpush1.bf16.msra.mxu0 %v7457
    %8054 = vmatprep.subr.bf16.mxu0 %v7468
    %8055 = vmatpush1.bf16.msra.mxu0 %v7467
    %8056 = vmatprep.subr.bf16.mxu0 %v7478
    %8057 = vmatpush1.bf16.msra.mxu0 %v7477
    %8058 = vmatprep.subr.bf16.mxu0 %v7488
    %8059 = vmatpush1.bf16.msra.mxu0 %v7487
    %8060 = vmatprep.subr.bf16.mxu0 %v7498
    %8061 = vmatpush1.bf16.msra.mxu0 %v7497
    %8062 = vmatprep.mubr.bf16.mxu0 %v5531
    %8063 = vmatmul.mubr.bf16.gmra.mrb[0].mxu0 %v5530
    %v8064 = vpop.f32.mrb[0].mxu0
    %v8065 = vadd.f32 %v8022, %v8064
    %v8066 = vpop.f32.mrb[0].mxu0
    %v8067 = vadd.f32 %v8024, %v8066
    %v8068 = vpop.f32.mrb[0].mxu0
    %v8069 = vadd.f32 %v8026, %v8068
    %v8070 = vpop.f32.mrb[0].mxu0
    %v8071 = vadd.f32 %v8028, %v8070
    %8072 = vdwg.mxu0
    %8073 = vmatprep.subr.bf16.mxu0 %v7508
    %8074 = vmatpush1.bf16.msra.mxu0 %v7507
    %8075 = vmatprep.subr.bf16.mxu0 %v7518
    %8076 = vmatpush1.bf16.msra.mxu0 %v7517
    %8077 = vmatprep.subr.bf16.mxu0 %v7528
    %8078 = vmatpush1.bf16.msra.mxu0 %v7527
    %8079 = vmatprep.subr.bf16.mxu0 %v7538
    %8080 = vmatpush1.bf16.msra.mxu0 %v7537
    %8081 = vmatprep.subr.bf16.mxu0 %v7548
    %8082 = vmatpush1.bf16.msra.mxu0 %v7547
    %8083 = vmatprep.subr.bf16.mxu0 %v7558
    %8084 = vmatpush1.bf16.msra.mxu0 %v7557
    %8085 = vmatprep.subr.bf16.mxu0 %v7568
    %8086 = vmatpush1.bf16.msra.mxu0 %v7567
    %8087 = vmatprep.subr.bf16.mxu0 %v7578
    %8088 = vmatpush1.bf16.msra.mxu0 %v7577
    %8089 = vmatprep.subr.bf16.mxu0 0
    %8090 = vmatpush1.bf16.msra.mxu0 0
    %8091 = vmatprep.subr.bf16.mxu0 0
    %8092 = vmatpush1.bf16.msra.mxu0 0
    %8093 = vmatprep.subr.bf16.mxu0 0
    %8094 = vmatpush1.bf16.msra.mxu0 0
    %8095 = vmatprep.subr.bf16.mxu0 0
    %8096 = vmatpush1.bf16.msra.mxu0 0
    %8097 = vmatprep.subr.bf16.mxu0 0
    %8098 = vmatpush1.bf16.msra.mxu0 0
    %8099 = vmatprep.subr.bf16.mxu0 0
    %8100 = vmatpush1.bf16.msra.mxu0 0
    %8101 = vmatprep.subr.bf16.mxu0 0
    %8102 = vmatpush1.bf16.msra.mxu0 0
    %8103 = vmatprep.subr.bf16.mxu0 0
    %8104 = vmatpush1.bf16.msra.mxu0 0
    %8105 = vmatprep.mubr.bf16.mxu0 0
    %8106 = vmatmul.mubr.bf16.gmra.mrb[0].mxu0 %v5532
    %v8107 = vpop.f32.mrb[0].mxu0
    %v8108 = vadd.f32 %v8065, %v8107
    %v8109 = vpop.f32.mrb[0].mxu0
    %v8110 = vadd.f32 %v8067, %v8109
    %v8111 = vpop.f32.mrb[0].mxu0
    %v8112 = vadd.f32 %v8069, %v8111
    %v8113 = vpop.f32.mrb[0].mxu0
    %v8114 = vadd.f32 %v8071, %v8113
    %8115 = vdwg.mxu0
    %8116 = vmatprep.subr.bf16.mxu0 %v7190
    %8117 = vmatpush1.bf16.msra.mxu0 %v7189
    %8118 = vmatprep.subr.bf16.mxu0 %v7200
    %8119 = vmatpush1.bf16.msra.mxu0 %v7199
    %8120 = vmatprep.subr.bf16.mxu0 %v7210
    %8121 = vmatpush1.bf16.msra.mxu0 %v7209
    %8122 = vmatprep.subr.bf16.mxu0 %v7220
    %8123 = vmatpush1.bf16.msra.mxu0 %v7219
    %8124 = vmatprep.subr.bf16.mxu0 %v7230
    %8125 = vmatpush1.bf16.msra.mxu0 %v7229
    %8126 = vmatprep.subr.bf16.mxu0 %v7240
    %8127 = vmatpush1.bf16.msra.mxu0 %v7239
    %8128 = vmatprep.subr.bf16.mxu0 %v7250
    %8129 = vmatpush1.bf16.msra.mxu0 %v7249
    %8130 = vmatprep.subr.bf16.mxu0 %v7260
    %8131 = vmatpush1.bf16.msra.mxu0 %v7259
    %8132 = vmatprep.subr.bf16.mxu0 %v7270
    %8133 = vmatpush1.bf16.msra.mxu0 %v7269
    %8134 = vmatprep.subr.bf16.mxu0 %v7280
    %8135 = vmatpush1.bf16.msra.mxu0 %v7279
    %8136 = vmatprep.subr.bf16.mxu0 %v7290
    %8137 = vmatpush1.bf16.msra.mxu0 %v7289
    %8138 = vmatprep.subr.bf16.mxu0 %v7300
    %8139 = vmatpush1.bf16.msra.mxu0 %v7299
    %8140 = vmatprep.subr.bf16.mxu0 %v7310
    %8141 = vmatpush1.bf16.msra.mxu0 %v7309
    %8142 = vmatprep.subr.bf16.mxu0 %v7320
    %8143 = vmatpush1.bf16.msra.mxu0 %v7319
    %8144 = vmatprep.subr.bf16.mxu0 %v7330
    %8145 = vmatpush1.bf16.msra.mxu0 %v7329
    %8146 = vmatprep.subr.bf16.mxu0 %v7340
    %8147 = vmatpush1.bf16.msra.mxu0 %v7339
    %8148 = vmatprep.mubr.bf16.mxu0 %v5529
    %8149 = vmatmul.mubr.bf16.gmra.mrb[0].mxu0 %v5528
    %v8150 = vpop.f32.mrb[0].mxu0
    %v8151 = vadd.f32 %v5948, %v8150
    %v8152 = vpop.f32.mrb[0].mxu0
    %v8153 = vadd.f32 %v5952, %v8152
    %v8154 = vpop.f32.mrb[0].mxu0
    %v8155 = vadd.f32 %v5948, %v8154
    %v8156 = vpop.f32.mrb[0].mxu0
    %v8157 = vadd.f32 %v5952, %v8156
    %8158 = vdwg.mxu0
    %8159 = vmatprep.subr.bf16.mxu0 %v7350
    %8160 = vmatpush1.bf16.msra.mxu0 %v7349
    %8161 = vmatprep.subr.bf16.mxu0 %v7360
    %8162 = vmatpush1.bf16.msra.mxu0 %v7359
    %8163 = vmatprep.subr.bf16.mxu0 %v7370
    %8164 = vmatpush1.bf16.msra.mxu0 %v7369
    %8165 = vmatprep.subr.bf16.mxu0 %v7380
    %8166 = vmatpush1.bf16.msra.mxu0 %v7379
    %8167 = vmatprep.subr.bf16.mxu0 %v7390
    %8168 = vmatpush1.bf16.msra.mxu0 %v7389
    %8169 = vmatprep.subr.bf16.mxu0 %v7400
    %8170 = vmatpush1.bf16.msra.mxu0 %v7399
    %8171 = vmatprep.subr.bf16.mxu0 %v7410
    %8172 = vmatpush1.bf16.msra.mxu0 %v7409
    %8173 = vmatprep.subr.bf16.mxu0 %v7420
    %8174 = vmatpush1.bf16.msra.mxu0 %v7419
    %8175 = vmatprep.subr.bf16.mxu0 %v7430
    %8176 = vmatpush1.bf16.msra.mxu0 %v7429
    %8177 = vmatprep.subr.bf16.mxu0 %v7440
    %8178 = vmatpush1.bf16.msra.mxu0 %v7439
    %8179 = vmatprep.subr.bf16.mxu0 %v7450
    %8180 = vmatpush1.bf16.msra.mxu0 %v7449
    %8181 = vmatprep.subr.bf16.mxu0 %v7460
    %8182 = vmatpush1.bf16.msra.mxu0 %v7459
    %8183 = vmatprep.subr.bf16.mxu0 %v7470
    %8184 = vmatpush1.bf16.msra.mxu0 %v7469
    %8185 = vmatprep.subr.bf16.mxu0 %v7480
    %8186 = vmatpush1.bf16.msra.mxu0 %v7479
    %8187 = vmatprep.subr.bf16.mxu0 %v7490
    %8188 = vmatpush1.bf16.msra.mxu0 %v7489
    %8189 = vmatprep.subr.bf16.mxu0 %v7500
    %8190 = vmatpush1.bf16.msra.mxu0 %v7499
    %8191 = vmatprep.mubr.bf16.mxu0 %v5531
    %8192 = vmatmul.mubr.bf16.gmra.mrb[0].mxu0 %v5530
    %v8193 = vpop.f32.mrb[0].mxu0
    %v8194 = vadd.f32 %v8151, %v8193
    %v8195 = vpop.f32.mrb[0].mxu0
    %v8196 = vadd.f32 %v8153, %v8195
    %v8197 = vpop.f32.mrb[0].mxu0
    %v8198 = vadd.f32 %v8155, %v8197
    %v8199 = vpop.f32.mrb[0].mxu0
    %v8200 = vadd.f32 %v8157, %v8199
    %8201 = vdwg.mxu0
    %8202 = vmatprep.subr.bf16.mxu0 %v7510
    %8203 = vmatpush1.bf16.msra.mxu0 %v7509
    %8204 = vmatprep.subr.bf16.mxu0 %v7520
    %8205 = vmatpush1.bf16.msra.mxu0 %v7519
    %8206 = vmatprep.subr.bf16.mxu0 %v7530
    %8207 = vmatpush1.bf16.msra.mxu0 %v7529
    %8208 = vmatprep.subr.bf16.mxu0 %v7540
    %8209 = vmatpush1.bf16.msra.mxu0 %v7539
    %8210 = vmatprep.subr.bf16.mxu0 %v7550
    %8211 = vmatpush1.bf16.msra.mxu0 %v7549
    %8212 = vmatprep.subr.bf16.mxu0 %v7560
    %8213 = vmatpush1.bf16.msra.mxu0 %v7559
    %8214 = vmatprep.subr.bf16.mxu0 %v7570
    %8215 = vmatpush1.bf16.msra.mxu0 %v7569
    %8216 = vmatprep.subr.bf16.mxu0 %v7580
    %8217 = vmatpush1.bf16.msra.mxu0 %v7579
    %8218 = vmatprep.subr.bf16.mxu0 0
    %8219 = vmatpush1.bf16.msra.mxu0 0
    %8220 = vmatprep.subr.bf16.mxu0 0
    %8221 = vmatpush1.bf16.msra.mxu0 0
    %8222 = vmatprep.subr.bf16.mxu0 0
    %8223 = vmatpush1.bf16.msra.mxu0 0
    %8224 = vmatprep.subr.bf16.mxu0 0
    %8225 = vmatpush1.bf16.msra.mxu0 0
    %8226 = vmatprep.subr.bf16.mxu0 0
    %8227 = vmatpush1.bf16.msra.mxu0 0
    %8228 = vmatprep.subr.bf16.mxu0 0
    %8229 = vmatpush1.bf16.msra.mxu0 0
    %8230 = vmatprep.subr.bf16.mxu0 0
    %8231 = vmatpush1.bf16.msra.mxu0 0
    %8232 = vmatprep.subr.bf16.mxu0 0
    %8233 = vmatpush1.bf16.msra.mxu0 0
    %8234 = vmatprep.mubr.bf16.mxu0 0
    %8235 = vmatmul.mubr.bf16.gmra.mrb[0].mxu0 %v5532
    %v8236 = vpop.f32.mrb[0].mxu0
    %v8237 = vadd.f32 %v8194, %v8236
    %v8238 = vpop.f32.mrb[0].mxu0
    %v8239 = vadd.f32 %v8196, %v8238
    %v8240 = vpop.f32.mrb[0].mxu0
    %v8241 = vadd.f32 %v8198, %v8240
    %v8242 = vpop.f32.mrb[0].mxu0
    %v8243 = vadd.f32 %v8200, %v8242
    %8244 = vdwg.mxu0
    %8245 = vmatprep.subr.bf16.mxu0 %v7192
    %8246 = vmatpush1.bf16.msra.mxu0 %v7191
    %8247 = vmatprep.subr.bf16.mxu0 %v7202
    %8248 = vmatpush1.bf16.msra.mxu0 %v7201
    %8249 = vmatprep.subr.bf16.mxu0 %v7212
    %8250 = vmatpush1.bf16.msra.mxu0 %v7211
    %8251 = vmatprep.subr.bf16.mxu0 %v7222
    %8252 = vmatpush1.bf16.msra.mxu0 %v7221
    %8253 = vmatprep.subr.bf16.mxu0 %v7232
    %8254 = vmatpush1.bf16.msra.mxu0 %v7231
    %8255 = vmatprep.subr.bf16.mxu0 %v7242
    %8256 = vmatpush1.bf16.msra.mxu0 %v7241
    %8257 = vmatprep.subr.bf16.mxu0 %v7252
    %8258 = vmatpush1.bf16.msra.mxu0 %v7251
    %8259 = vmatprep.subr.bf16.mxu0 %v7262
    %8260 = vmatpush1.bf16.msra.mxu0 %v7261
    %8261 = vmatprep.subr.bf16.mxu0 %v7272
    %8262 = vmatpush1.bf16.msra.mxu0 %v7271
    %8263 = vmatprep.subr.bf16.mxu0 %v7282
    %8264 = vmatpush1.bf16.msra.mxu0 %v7281
    %8265 = vmatprep.subr.bf16.mxu0 %v7292
    %8266 = vmatpush1.bf16.msra.mxu0 %v7291
    %8267 = vmatprep.subr.bf16.mxu0 %v7302
    %8268 = vmatpush1.bf16.msra.mxu0 %v7301
    %8269 = vmatprep.subr.bf16.mxu0 %v7312
    %8270 = vmatpush1.bf16.msra.mxu0 %v7311
    %8271 = vmatprep.subr.bf16.mxu0 %v7322
    %8272 = vmatpush1.bf16.msra.mxu0 %v7321
    %8273 = vmatprep.subr.bf16.mxu0 %v7332
    %8274 = vmatpush1.bf16.msra.mxu0 %v7331
    %8275 = vmatprep.subr.bf16.mxu0 %v7342
    %8276 = vmatpush1.bf16.msra.mxu0 %v7341
    %8277 = vmatprep.mubr.bf16.mxu0 %v5529
    %8278 = vmatmul.mubr.bf16.gmra.mrb[0].mxu0 %v5528
    %v8279 = vpop.f32.mrb[0].mxu0
    %v8280 = vadd.f32 %v5956, %v8279
    %v8281 = vpop.f32.mrb[0].mxu0
    %v8282 = vadd.f32 %v5960, %v8281
    %v8283 = vpop.f32.mrb[0].mxu0
    %v8284 = vadd.f32 %v5956, %v8283
    %v8285 = vpop.f32.mrb[0].mxu0
    %v8286 = vadd.f32 %v5960, %v8285
    %8287 = vdwg.mxu0
    %8288 = vmatprep.subr.bf16.mxu0 %v7352
    %8289 = vmatpush1.bf16.msra.mxu0 %v7351
    %8290 = vmatprep.subr.bf16.mxu0 %v7362
    %8291 = vmatpush1.bf16.msra.mxu0 %v7361
    %8292 = vmatprep.subr.bf16.mxu0 %v7372
    %8293 = vmatpush1.bf16.msra.mxu0 %v7371
    %8294 = vmatprep.subr.bf16.mxu0 %v7382
    %8295 = vmatpush1.bf16.msra.mxu0 %v7381
    %8296 = vmatprep.subr.bf16.mxu0 %v7392
    %8297 = vmatpush1.bf16.msra.mxu0 %v7391
    %8298 = vmatprep.subr.bf16.mxu0 %v7402
    %8299 = vmatpush1.bf16.msra.mxu0 %v7401
    %8300 = vmatprep.subr.bf16.mxu0 %v7412
    %8301 = vmatpush1.bf16.msra.mxu0 %v7411
    %8302 = vmatprep.subr.bf16.mxu0 %v7422
    %8303 = vmatpush1.bf16.msra.mxu0 %v7421
    %8304 = vmatprep.subr.bf16.mxu0 %v7432
    %8305 = vmatpush1.bf16.msra.mxu0 %v7431
    %8306 = vmatprep.subr.bf16.mxu0 %v7442
    %8307 = vmatpush1.bf16.msra.mxu0 %v7441
    %8308 = vmatprep.subr.bf16.mxu0 %v7452
    %8309 = vmatpush1.bf16.msra.mxu0 %v7451
    %8310 = vmatprep.subr.bf16.mxu0 %v7462
    %8311 = vmatpush1.bf16.msra.mxu0 %v7461
    %8312 = vmatprep.subr.bf16.mxu0 %v7472
    %8313 = vmatpush1.bf16.msra.mxu0 %v7471
    %8314 = vmatprep.subr.bf16.mxu0 %v7482
    %8315 = vmatpush1.bf16.msra.mxu0 %v7481
    %8316 = vmatprep.subr.bf16.mxu0 %v7492
    %8317 = vmatpush1.bf16.msra.mxu0 %v7491
    %8318 = vmatprep.subr.bf16.mxu0 %v7502
    %8319 = vmatpush1.bf16.msra.mxu0 %v7501
    %8320 = vmatprep.mubr.bf16.mxu0 %v5531
    %8321 = vmatmul.mubr.bf16.gmra.mrb[0].mxu0 %v5530
    %v8322 = vpop.f32.mrb[0].mxu0
    %v8323 = vadd.f32 %v8280, %v8322
    %v8324 = vpop.f32.mrb[0].mxu0
    %v8325 = vadd.f32 %v8282, %v8324
    %v8326 = vpop.f32.mrb[0].mxu0
    %v8327 = vadd.f32 %v8284, %v8326
    %v8328 = vpop.f32.mrb[0].mxu0
    %v8329 = vadd.f32 %v8286, %v8328
    %8330 = vdwg.mxu0
    %8331 = vmatprep.subr.bf16.mxu0 %v7512
    %8332 = vmatpush1.bf16.msra.mxu0 %v7511
    %8333 = vmatprep.subr.bf16.mxu0 %v7522
    %8334 = vmatpush1.bf16.msra.mxu0 %v7521
    %8335 = vmatprep.subr.bf16.mxu0 %v7532
    %8336 = vmatpush1.bf16.msra.mxu0 %v7531
    %8337 = vmatprep.subr.bf16.mxu0 %v7542
    %8338 = vmatpush1.bf16.msra.mxu0 %v7541
    %8339 = vmatprep.subr.bf16.mxu0 %v7552
    %8340 = vmatpush1.bf16.msra.mxu0 %v7551
    %8341 = vmatprep.subr.bf16.mxu0 %v7562
    %8342 = vmatpush1.bf16.msra.mxu0 %v7561
    %8343 = vmatprep.subr.bf16.mxu0 %v7572
    %8344 = vmatpush1.bf16.msra.mxu0 %v7571
    %8345 = vmatprep.subr.bf16.mxu0 %v7582
    %8346 = vmatpush1.bf16.msra.mxu0 %v7581
    %8347 = vmatprep.subr.bf16.mxu0 0
    %8348 = vmatpush1.bf16.msra.mxu0 0
    %8349 = vmatprep.subr.bf16.mxu0 0
    %8350 = vmatpush1.bf16.msra.mxu0 0
    %8351 = vmatprep.subr.bf16.mxu0 0
    %8352 = vmatpush1.bf16.msra.mxu0 0
    %8353 = vmatprep.subr.bf16.mxu0 0
    %8354 = vmatpush1.bf16.msra.mxu0 0
    %8355 = vmatprep.subr.bf16.mxu0 0
    %8356 = vmatpush1.bf16.msra.mxu0 0
    %8357 = vmatprep.subr.bf16.mxu0 0
    %8358 = vmatpush1.bf16.msra.mxu0 0
    %8359 = vmatprep.subr.bf16.mxu0 0
    %8360 = vmatpush1.bf16.msra.mxu0 0
    %8361 = vmatprep.subr.bf16.mxu0 0
    %8362 = vmatpush1.bf16.msra.mxu0 0
    %8363 = vmatprep.mubr.bf16.mxu0 0
    %8364 = vmatmul.mubr.bf16.gmra.mrb[0].mxu0 %v5532
    %v8365 = vpop.f32.mrb[0].mxu0
    %v8366 = vadd.f32 %v8323, %v8365
    %v8367 = vpop.f32.mrb[0].mxu0
    %v8368 = vadd.f32 %v8325, %v8367
    %v8369 = vpop.f32.mrb[0].mxu0
    %v8370 = vadd.f32 %v8327, %v8369
    %v8371 = vpop.f32.mrb[0].mxu0
    %v8372 = vadd.f32 %v8329, %v8371
    %8373 = vdwg.mxu0
    %8374 = vmatprep.subr.bf16.mxu0 %v7194
    %8375 = vmatpush1.bf16.msra.mxu0 %v7193
    %8376 = vmatprep.subr.bf16.mxu0 %v7204
    %8377 = vmatpush1.bf16.msra.mxu0 %v7203
    %8378 = vmatprep.subr.bf16.mxu0 %v7214
    %8379 = vmatpush1.bf16.msra.mxu0 %v7213
    %8380 = vmatprep.subr.bf16.mxu0 %v7224
    %8381 = vmatpush1.bf16.msra.mxu0 %v7223
    %8382 = vmatprep.subr.bf16.mxu0 %v7234
    %8383 = vmatpush1.bf16.msra.mxu0 %v7233
    %8384 = vmatprep.subr.bf16.mxu0 %v7244
    %8385 = vmatpush1.bf16.msra.mxu0 %v7243
    %8386 = vmatprep.subr.bf16.mxu0 %v7254
    %8387 = vmatpush1.bf16.msra.mxu0 %v7253
    %8388 = vmatprep.subr.bf16.mxu0 %v7264
    %8389 = vmatpush1.bf16.msra.mxu0 %v7263
    %8390 = vmatprep.subr.bf16.mxu0 %v7274
    %8391 = vmatpush1.bf16.msra.mxu0 %v7273
    %8392 = vmatprep.subr.bf16.mxu0 %v7284
    %8393 = vmatpush1.bf16.msra.mxu0 %v7283
    %8394 = vmatprep.subr.bf16.mxu0 %v7294
    %8395 = vmatpush1.bf16.msra.mxu0 %v7293
    %8396 = vmatprep.subr.bf16.mxu0 %v7304
    %8397 = vmatpush1.bf16.msra.mxu0 %v7303
    %8398 = vmatprep.subr.bf16.mxu0 %v7314
    %8399 = vmatpush1.bf16.msra.mxu0 %v7313
    %8400 = vmatprep.subr.bf16.mxu0 %v7324
    %8401 = vmatpush1.bf16.msra.mxu0 %v7323
    %8402 = vmatprep.subr.bf16.mxu0 %v7334
    %8403 = vmatpush1.bf16.msra.mxu0 %v7333
    %8404 = vmatprep.subr.bf16.mxu0 %v7344
    %8405 = vmatpush1.bf16.msra.mxu0 %v7343
    %8406 = vmatprep.mubr.bf16.mxu0 %v5529
    %8407 = vmatmul.mubr.bf16.gmra.mrb[0].mxu0 %v5528
    %v8408 = vpop.f32.mrb[0].mxu0
    %v8409 = vadd.f32 %v5964, %v8408
    %v8410 = vpop.f32.mrb[0].mxu0
    %v8411 = vadd.f32 %v5968, %v8410
    %v8412 = vpop.f32.mrb[0].mxu0
    %v8413 = vadd.f32 %v5964, %v8412
    %v8414 = vpop.f32.mrb[0].mxu0
    %v8415 = vadd.f32 %v5968, %v8414
    %8416 = vdwg.mxu0
    %8417 = vmatprep.subr.bf16.mxu0 %v7354
    %8418 = vmatpush1.bf16.msra.mxu0 %v7353
    %8419 = vmatprep.subr.bf16.mxu0 %v7364
    %8420 = vmatpush1.bf16.msra.mxu0 %v7363
    %8421 = vmatprep.subr.bf16.mxu0 %v7374
    %8422 = vmatpush1.bf16.msra.mxu0 %v7373
    %8423 = vmatprep.subr.bf16.mxu0 %v7384
    %8424 = vmatpush1.bf16.msra.mxu0 %v7383
    %8425 = vmatprep.subr.bf16.mxu0 %v7394
    %8426 = vmatpush1.bf16.msra.mxu0 %v7393
    %8427 = vmatprep.subr.bf16.mxu0 %v7404
    %8428 = vmatpush1.bf16.msra.mxu0 %v7403
    %8429 = vmatprep.subr.bf16.mxu0 %v7414
    %8430 = vmatpush1.bf16.msra.mxu0 %v7413
    %8431 = vmatprep.subr.bf16.mxu0 %v7424
    %8432 = vmatpush1.bf16.msra.mxu0 %v7423
    %8433 = vmatprep.subr.bf16.mxu0 %v7434
    %8434 = vmatpush1.bf16.msra.mxu0 %v7433
    %8435 = vmatprep.subr.bf16.mxu0 %v7444
    %8436 = vmatpush1.bf16.msra.mxu0 %v7443
    %8437 = vmatprep.subr.bf16.mxu0 %v7454
    %8438 = vmatpush1.bf16.msra.mxu0 %v7453
    %8439 = vmatprep.subr.bf16.mxu0 %v7464
    %8440 = vmatpush1.bf16.msra.mxu0 %v7463
    %8441 = vmatprep.subr.bf16.mxu0 %v7474
    %8442 = vmatpush1.bf16.msra.mxu0 %v7473
    %8443 = vmatprep.subr.bf16.mxu0 %v7484
    %8444 = vmatpush1.bf16.msra.mxu0 %v7483
    %8445 = vmatprep.subr.bf16.mxu0 %v7494
    %8446 = vmatpush1.bf16.msra.mxu0 %v7493
    %8447 = vmatprep.subr.bf16.mxu0 %v7504
    %8448 = vmatpush1.bf16.msra.mxu0 %v7503
    %8449 = vmatprep.mubr.bf16.mxu0 %v5531
    %8450 = vmatmul.mubr.bf16.gmra.mrb[0].mxu0 %v5530
    %v8451 = vpop.f32.mrb[0].mxu0
    %v8452 = vadd.f32 %v8409, %v8451
    %v8453 = vpop.f32.mrb[0].mxu0
    %v8454 = vadd.f32 %v8411, %v8453
    %v8455 = vpop.f32.mrb[0].mxu0
    %v8456 = vadd.f32 %v8413, %v8455
    %v8457 = vpop.f32.mrb[0].mxu0
    %v8458 = vadd.f32 %v8415, %v8457
    %8459 = vdwg.mxu0
    %8460 = vmatprep.subr.bf16.mxu0 %v7514
    %8461 = vmatpush1.bf16.msra.mxu0 %v7513
    %8462 = vmatprep.subr.bf16.mxu0 %v7524
    %8463 = vmatpush1.bf16.msra.mxu0 %v7523
    %8464 = vmatprep.subr.bf16.mxu0 %v7534
    %8465 = vmatpush1.bf16.msra.mxu0 %v7533
    %8466 = vmatprep.subr.bf16.mxu0 %v7544
    %8467 = vmatpush1.bf16.msra.mxu0 %v7543
    %8468 = vmatprep.subr.bf16.mxu0 %v7554
    %8469 = vmatpush1.bf16.msra.mxu0 %v7553
    %8470 = vmatprep.subr.bf16.mxu0 %v7564
    %8471 = vmatpush1.bf16.msra.mxu0 %v7563
    %8472 = vmatprep.subr.bf16.mxu0 %v7574
    %8473 = vmatpush1.bf16.msra.mxu0 %v7573
    %8474 = vmatprep.subr.bf16.mxu0 %v7584
    %8475 = vmatpush1.bf16.msra.mxu0 %v7583
    %8476 = vmatprep.subr.bf16.mxu0 0
    %8477 = vmatpush1.bf16.msra.mxu0 0
    %8478 = vmatprep.subr.bf16.mxu0 0
    %8479 = vmatpush1.bf16.msra.mxu0 0
    %8480 = vmatprep.subr.bf16.mxu0 0
    %8481 = vmatpush1.bf16.msra.mxu0 0
    %8482 = vmatprep.subr.bf16.mxu0 0
    %8483 = vmatpush1.bf16.msra.mxu0 0
    %8484 = vmatprep.subr.bf16.mxu0 0
    %8485 = vmatpush1.bf16.msra.mxu0 0
    %8486 = vmatprep.subr.bf16.mxu0 0
    %8487 = vmatpush1.bf16.msra.mxu0 0
    %8488 = vmatprep.subr.bf16.mxu0 0
    %8489 = vmatpush1.bf16.msra.mxu0 0
    %8490 = vmatprep.subr.bf16.mxu0 0
    %8491 = vmatpush1.bf16.msra.mxu0 0
    %8492 = vmatprep.mubr.bf16.mxu0 0
    %8493 = vmatmul.mubr.bf16.gmra.mrb[0].mxu0 %v5532
    %v8494 = vpop.f32.mrb[0].mxu0
    %v8495 = vadd.f32 %v8452, %v8494
    %v8496 = vpop.f32.mrb[0].mxu0
    %v8497 = vadd.f32 %v8454, %v8496
    %v8498 = vpop.f32.mrb[0].mxu0
    %v8499 = vadd.f32 %v8456, %v8498
    %v8500 = vpop.f32.mrb[0].mxu0
    %v8501 = vadd.f32 %v8458, %v8500
    %8502 = vdwg.mxu0
    %8503 = vmatprep.subr.bf16.mxu0 %v7196
    %8504 = vmatpush1.bf16.msra.mxu0 %v7195
    %8505 = vmatprep.subr.bf16.mxu0 %v7206
    %8506 = vmatpush1.bf16.msra.mxu0 %v7205
    %8507 = vmatprep.subr.bf16.mxu0 %v7216
    %8508 = vmatpush1.bf16.msra.mxu0 %v7215
    %8509 = vmatprep.subr.bf16.mxu0 %v7226
    %8510 = vmatpush1.bf16.msra.mxu0 %v7225
    %8511 = vmatprep.subr.bf16.mxu0 %v7236
    %8512 = vmatpush1.bf16.msra.mxu0 %v7235
    %8513 = vmatprep.subr.bf16.mxu0 %v7246
    %8514 = vmatpush1.bf16.msra.mxu0 %v7245
    %8515 = vmatprep.subr.bf16.mxu0 %v7256
    %8516 = vmatpush1.bf16.msra.mxu0 %v7255
    %8517 = vmatprep.subr.bf16.mxu0 %v7266
    %8518 = vmatpush1.bf16.msra.mxu0 %v7265
    %8519 = vmatprep.subr.bf16.mxu0 %v7276
    %8520 = vmatpush1.bf16.msra.mxu0 %v7275
    %8521 = vmatprep.subr.bf16.mxu0 %v7286
    %8522 = vmatpush1.bf16.msra.mxu0 %v7285
    %8523 = vmatprep.subr.bf16.mxu0 %v7296
    %8524 = vmatpush1.bf16.msra.mxu0 %v7295
    %8525 = vmatprep.subr.bf16.mxu0 %v7306
    %8526 = vmatpush1.bf16.msra.mxu0 %v7305
    %8527 = vmatprep.subr.bf16.mxu0 %v7316
    %8528 = vmatpush1.bf16.msra.mxu0 %v7315
    %8529 = vmatprep.subr.bf16.mxu0 %v7326
    %8530 = vmatpush1.bf16.msra.mxu0 %v7325
    %8531 = vmatprep.subr.bf16.mxu0 %v7336
    %8532 = vmatpush1.bf16.msra.mxu0 %v7335
    %8533 = vmatprep.subr.bf16.mxu0 %v7346
    %8534 = vmatpush1.bf16.msra.mxu0 %v7345
    %8535 = vmatprep.mubr.bf16.mxu0 %v5529
    %8536 = vmatmul.mubr.bf16.gmra.mrb[0].mxu0 %v5528
    %v8537 = vpop.f32.mrb[0].mxu0
    %v8538 = vadd.f32 %v5972, %v8537
    %v8539 = vpop.f32.mrb[0].mxu0
    %v8540 = vadd.f32 %v5976, %v8539
    %v8541 = vpop.f32.mrb[0].mxu0
    %v8542 = vadd.f32 %v5972, %v8541
    %v8543 = vpop.f32.mrb[0].mxu0
    %v8544 = vadd.f32 %v5976, %v8543
    %8545 = vdwg.mxu0
    %8546 = vmatprep.subr.bf16.mxu0 %v7356
    %8547 = vmatpush1.bf16.msra.mxu0 %v7355
    %8548 = vmatprep.subr.bf16.mxu0 %v7366
    %8549 = vmatpush1.bf16.msra.mxu0 %v7365
    %8550 = vmatprep.subr.bf16.mxu0 %v7376
    %8551 = vmatpush1.bf16.msra.mxu0 %v7375
    %8552 = vmatprep.subr.bf16.mxu0 %v7386
    %8553 = vmatpush1.bf16.msra.mxu0 %v7385
    %8554 = vmatprep.subr.bf16.mxu0 %v7396
    %8555 = vmatpush1.bf16.msra.mxu0 %v7395
    %8556 = vmatprep.subr.bf16.mxu0 %v7406
    %8557 = vmatpush1.bf16.msra.mxu0 %v7405
    %8558 = vmatprep.subr.bf16.mxu0 %v7416
    %8559 = vmatpush1.bf16.msra.mxu0 %v7415
    %8560 = vmatprep.subr.bf16.mxu0 %v7426
    %8561 = vmatpush1.bf16.msra.mxu0 %v7425
    %8562 = vmatprep.subr.bf16.mxu0 %v7436
    %8563 = vmatpush1.bf16.msra.mxu0 %v7435
    %8564 = vmatprep.subr.bf16.mxu0 %v7446
    %8565 = vmatpush1.bf16.msra.mxu0 %v7445
    %8566 = vmatprep.subr.bf16.mxu0 %v7456
    %8567 = vmatpush1.bf16.msra.mxu0 %v7455
    %8568 = vmatprep.subr.bf16.mxu0 %v7466
    %8569 = vmatpush1.bf16.msra.mxu0 %v7465
    %8570 = vmatprep.subr.bf16.mxu0 %v7476
    %8571 = vmatpush1.bf16.msra.mxu0 %v7475
    %8572 = vmatprep.subr.bf16.mxu0 %v7486
    %8573 = vmatpush1.bf16.msra.mxu0 %v7485
    %8574 = vmatprep.subr.bf16.mxu0 %v7496
    %8575 = vmatpush1.bf16.msra.mxu0 %v7495
    %8576 = vmatprep.subr.bf16.mxu0 %v7506
    %8577 = vmatpush1.bf16.msra.mxu0 %v7505
    %8578 = vmatprep.mubr.bf16.mxu0 %v5531
    %8579 = vmatmul.mubr.bf16.gmra.mrb[0].mxu0 %v5530
    %v8580 = vpop.f32.mrb[0].mxu0
    %v8581 = vadd.f32 %v8538, %v8580
    %v8582 = vpop.f32.mrb[0].mxu0
    %v8583 = vadd.f32 %v8540, %v8582
    %v8584 = vpop.f32.mrb[0].mxu0
    %v8585 = vadd.f32 %v8542, %v8584
    %v8586 = vpop.f32.mrb[0].mxu0
    %v8587 = vadd.f32 %v8544, %v8586
    %8588 = vdwg.mxu0
    %8589 = vmatprep.subr.bf16.mxu0 %v7516
    %8590 = vmatpush1.bf16.msra.mxu0 %v7515
    %8591 = vmatprep.subr.bf16.mxu0 %v7526
    %8592 = vmatpush1.bf16.msra.mxu0 %v7525
    %8593 = vmatprep.subr.bf16.mxu0 %v7536
    %8594 = vmatpush1.bf16.msra.mxu0 %v7535
    %8595 = vmatprep.subr.bf16.mxu0 %v7546
    %8596 = vmatpush1.bf16.msra.mxu0 %v7545
    %8597 = vmatprep.subr.bf16.mxu0 %v7556
    %8598 = vmatpush1.bf16.msra.mxu0 %v7555
    %8599 = vmatprep.subr.bf16.mxu0 %v7566
    %8600 = vmatpush1.bf16.msra.mxu0 %v7565
    %8601 = vmatprep.subr.bf16.mxu0 %v7576
    %8602 = vmatpush1.bf16.msra.mxu0 %v7575
    %8603 = vmatprep.subr.bf16.mxu0 %v7586
    %8604 = vmatpush1.bf16.msra.mxu0 %v7585
    %8605 = vmatprep.subr.bf16.mxu0 0
    %8606 = vmatpush1.bf16.msra.mxu0 0
    %8607 = vmatprep.subr.bf16.mxu0 0
    %8608 = vmatpush1.bf16.msra.mxu0 0
    %8609 = vmatprep.subr.bf16.mxu0 0
    %8610 = vmatpush1.bf16.msra.mxu0 0
    %8611 = vmatprep.subr.bf16.mxu0 0
    %8612 = vmatpush1.bf16.msra.mxu0 0
    %8613 = vmatprep.subr.bf16.mxu0 0
    %8614 = vmatpush1.bf16.msra.mxu0 0
    %8615 = vmatprep.subr.bf16.mxu0 0
    %8616 = vmatpush1.bf16.msra.mxu0 0
    %8617 = vmatprep.subr.bf16.mxu0 0
    %8618 = vmatpush1.bf16.msra.mxu0 0
    %8619 = vmatprep.subr.bf16.mxu0 0
    %8620 = vmatpush1.bf16.msra.mxu0 0
    %8621 = vmatprep.mubr.bf16.mxu0 0
    %8622 = vmatmul.mubr.bf16.gmra.mrb[0].mxu0 %v5532
    %v8623 = vpop.f32.mrb[0].mxu0
    %v8624 = vadd.f32 %v8581, %v8623
    %v8625 = vpop.f32.mrb[0].mxu0
    %v8626 = vadd.f32 %v8583, %v8625
    %v8627 = vpop.f32.mrb[0].mxu0
    %v8628 = vadd.f32 %v8585, %v8627
    %v8629 = vpop.f32.mrb[0].mxu0
    %v8630 = vadd.f32 %v8587, %v8629
    %8631 = vdwg.mxu0
    %v8632 = vmax.f32 %v8108, 0.0
    %v8633 = vmax.f32 %v8110, 0.0
    %v8634 = vmax.f32 %v8237, 0.0
    %v8635 = vmax.f32 %v8239, 0.0
    %v8636 = vmax.f32 %v8366, 0.0
    %v8637 = vmax.f32 %v8112, 0.0
    %v8638 = vmax.f32 %v8114, 0.0
    %v8639 = vmax.f32 %v8241, 0.0
    %v8640 = vmax.f32 %v8243, 0.0
    %v8641 = vmax.f32 %v8370, 0.0
    %v8642 = vxor.u32 %v8368, 2147483648
    %v8643 = vxor.u32 %v8495, 2147483648
    %v8644 = vxor.u32 %v8497, 2147483648
    %v8645 = vxor.u32 %v8624, 2147483648
    %v8646 = vxor.u32 %v8626, 2147483648
    %v8647 = vxor.u32 %v8372, 2147483648
    %v8648 = vxor.u32 %v8499, 2147483648
    %v8649 = vxor.u32 %v8501, 2147483648
    %v8650 = vxor.u32 %v8628, 2147483648
    %v8651 = vxor.u32 %v8630, 2147483648
    %v8652 = vmul.f32 %v8642, 1.442695
    %v8653 = vpow.pop %v8652
    %v8654 = vmul.f32 %v8643, 1.442695
    %v8655 = vpow.pop %v8654
    %v8656 = vmul.f32 %v8644, 1.442695
    %v8657 = vpow.pop %v8656
    %v8658 = vmul.f32 %v8645, 1.442695
    %v8659 = vpow.pop %v8658
    %v8660 = vmul.f32 %v8646, 1.442695
    %v8661 = vpow.pop %v8660
    %v8662 = vmul.f32 %v8647, 1.442695
    %v8663 = vpow.pop %v8662
    %v8664 = vmul.f32 %v8648, 1.442695
    %v8665 = vpow.pop %v8664
    %v8666 = vmul.f32 %v8649, 1.442695
    %v8667 = vpow.pop %v8666
    %v8668 = vmul.f32 %v8650, 1.442695
    %v8669 = vpow.pop %v8668
    %v8670 = vmul.f32 %v8651, 1.442695
    %v8671 = vpow.pop %v8670
    %v8672 = vadd.f32 %v8653, 1.0
    %v8673 = vadd.f32 %v8655, 1.0
    %v8674 = vadd.f32 %v8657, 1.0
    %v8675 = vadd.f32 %v8659, 1.0
    %v8676 = vadd.f32 %v8661, 1.0
    %v8677 = vadd.f32 %v8663, 1.0
    %v8678 = vadd.f32 %v8665, 1.0
    %v8679 = vadd.f32 %v8667, 1.0
    %v8680 = vadd.f32 %v8669, 1.0
    %v8681 = vadd.f32 %v8671, 1.0
    %v8682 = vrcp.pop %v8672
    %v8683 = vmul.f32 1.0, %v8682
    %v8684 = vrcp.pop %v8673
    %v8685 = vmul.f32 1.0, %v8684
    %v8686 = vrcp.pop %v8674
    %v8687 = vmul.f32 1.0, %v8686
    %v8688 = vrcp.pop %v8675
    %v8689 = vmul.f32 1.0, %v8688
    %v8690 = vrcp.pop %v8676
    %v8691 = vmul.f32 1.0, %v8690
    %v8692 = vrcp.pop %v8677
    %v8693 = vmul.f32 1.0, %v8692
    %v8694 = vrcp.pop %v8678
    %v8695 = vmul.f32 1.0, %v8694
    %v8696 = vrcp.pop %v8679
    %v8697 = vmul.f32 1.0, %v8696
    %v8698 = vrcp.pop %v8680
    %v8699 = vmul.f32 1.0, %v8698
    %v8700 = vrcp.pop %v8681
    %v8701 = vmul.f32 1.0, %v8700
    %v8702 = vmul.f32 %v8683, %v5518
    %v8703 = vmul.f32 %v8685, %v5519
    %v8704 = vmul.f32 %v8687, %v5520
    %v8705 = vmul.f32 %v8689, %v5521
    %v8706 = vmul.f32 %v8691, %v5522
    %v8707 = vmul.f32 %v8693, %v5523
    %v8708 = vmul.f32 %v8695, %v5524
    %v8709 = vmul.f32 %v8697, %v5525
    %v8710 = vmul.f32 %v8699, %v5526
    %v8711 = vmul.f32 %v8701, %v5527
    %v8712 = vsub.f32 1.0, %v8683
    %v8713 = vsub.f32 1.0, %v8685
    %v8714 = vsub.f32 1.0, %v8687
    %v8715 = vsub.f32 1.0, %v8689
    %v8716 = vsub.f32 1.0, %v8691
    %v8717 = vsub.f32 1.0, %v8693
    %v8718 = vsub.f32 1.0, %v8695
    %v8719 = vsub.f32 1.0, %v8697
    %v8720 = vsub.f32 1.0, %v8699
    %v8721 = vsub.f32 1.0, %v8701
    %v8722 = vmul.f32 %v8712, %v8632
    %v8723 = vmul.f32 %v8713, %v8633
    %v8724 = vmul.f32 %v8714, %v8634
    %v8725 = vmul.f32 %v8715, %v8635
    %v8726 = vmul.f32 %v8716, %v8636
    %v8727 = vmul.f32 %v8717, %v8637
    %v8728 = vmul.f32 %v8718, %v8638
    %v8729 = vmul.f32 %v8719, %v8639
    %v8730 = vmul.f32 %v8720, %v8640
    %v8731 = vmul.f32 %v8721, %v8641
    %v8732 = vadd.f32 %v8702, %v8722
    %v8733 = vadd.f32 %v8703, %v8723
    %v8734 = vadd.f32 %v8704, %v8724
    %v8735 = vadd.f32 %v8705, %v8725
    %v8736 = vadd.f32 %v8706, %v8726
    %v8737 = vadd.f32 %v8707, %v8727
    %v8738 = vadd.f32 %v8708, %v8728
    %v8739 = vadd.f32 %v8709, %v8729
    %v8740 = vadd.f32 %v8710, %v8730
    %v8741 = vadd.f32 %v8711, %v8731
    %v8742 = vpack.c.bf16 %v8737, %v8732
    %v8743 = vpack.c.bf16 %v8738, %v8733
    %v8744 = vpack.c.bf16 %v8739, %v8734
    %v8745 = vpack.c.bf16 %v8740, %v8735
    %v8746 = vpack.c.bf16 %v8741, %v8736
    %v8747 = vld [vmem:[#allocation13] sm:$0xf]
    %v8748 = vld [vmem:[#allocation13 + $0x4] sm:$0xf]
    %v8749 = vld [vmem:[#allocation13 + $0x8] sm:$0xf]
    %v8750 = vld [vmem:[#allocation13 + $0xc] sm:$0xf]
    %v8751 = vld [vmem:[#allocation13 + $0x10] sm:$0xf]
    %v8752 = vld [vmem:[#allocation13 + $0x14] sm:$0xf]
    %v8753 = vld [vmem:[#allocation13 + $0x18] sm:$0xf]
    %v8754 = vld [vmem:[#allocation13 + $0x1c] sm:$0xf]
    %v8755 = vld [vmem:[#allocation13 + $0x20] sm:$0xf]
    %v8756 = vld [vmem:[#allocation13 + $0x24] sm:$0xf]
    %v8757 = vld [vmem:[#allocation13 + $0x28] sm:$0xf]
    %v8758 = vld [vmem:[#allocation13 + $0x2c] sm:$0xf]
    %v8759 = vld [vmem:[#allocation13 + $0x30] sm:$0xf]
    %v8760 = vld [vmem:[#allocation13 + $0x34] sm:$0xf]
    %v8761 = vld [vmem:[#allocation13 + $0x38] sm:$0xf]
    %v8762 = vld [vmem:[#allocation13 + $0x3c] sm:$0xf]
    %v8763 = vld [vmem:[#allocation13 + $0x40] sm:$0xf]
    %v8764 = vld [vmem:[#allocation13 + $0x44] sm:$0xf]
    %v8765 = vld [vmem:[#allocation13 + $0x48] sm:$0xf]
    %v8766 = vld [vmem:[#allocation13 + $0x4c] sm:$0xf]
    %v8767 = vld [vmem:[#allocation13 + $0x50] sm:$0xf]
    %v8768 = vld [vmem:[#allocation13 + $0x54] sm:$0xf]
    %v8769 = vld [vmem:[#allocation13 + $0x58] sm:$0xf]
    %v8770 = vld [vmem:[#allocation13 + $0x5c] sm:$0xf]
    %v8771 = vld [vmem:[#allocation13 + $0x60] sm:$0xf]
    %v8772 = vld [vmem:[#allocation13 + $0x64] sm:$0xf]
    %v8773 = vld [vmem:[#allocation13 + $0x68] sm:$0xf]
    %v8774 = vld [vmem:[#allocation13 + $0x6c] sm:$0xf]
    %v8775 = vld [vmem:[#allocation13 + $0x70] sm:$0xf]
    %v8776 = vld [vmem:[#allocation13 + $0x74] sm:$0xf]
    %v8777 = vld [vmem:[#allocation13 + $0x78] sm:$0xf]
    %v8778 = vld [vmem:[#allocation13 + $0x7c] sm:$0xf]
    %v8779 = vld [vmem:[#allocation13 + $0x80] sm:$0xf]
    %v8780 = vld [vmem:[#allocation13 + $0x84] sm:$0xf]
    %v8781 = vld [vmem:[#allocation13 + $0x88] sm:$0xf]
    %v8782 = vld [vmem:[#allocation13 + $0x8c] sm:$0xf]
    %v8783 = vld [vmem:[#allocation13 + $0x90] sm:$0xf]
    %v8784 = vld [vmem:[#allocation13 + $0x94] sm:$0xf]
    %v8785 = vld [vmem:[#allocation13 + $0x98] sm:$0xf]
    %v8786 = vld [vmem:[#allocation13 + $0x9c] sm:$0xf]
    %v8787 = vld [vmem:[#allocation13 + $0xa0] sm:$0xf]
    %v8788 = vld [vmem:[#allocation13 + $0xa4] sm:$0xf]
    %v8789 = vld [vmem:[#allocation13 + $0xa8] sm:$0xf]
    %v8790 = vld [vmem:[#allocation13 + $0xac] sm:$0xf]
    %v8791 = vld [vmem:[#allocation13 + $0xb0] sm:$0xf]
    %v8792 = vld [vmem:[#allocation13 + $0xb4] sm:$0xf]
    %v8793 = vld [vmem:[#allocation13 + $0xb8] sm:$0xf]
    %v8794 = vld [vmem:[#allocation13 + $0xbc] sm:$0xf]
    %v8795 = vld [vmem:[#allocation13 + $0xc0] sm:$0xf]
    %v8796 = vld [vmem:[#allocation13 + $0xc4] sm:$0xf]
    %v8797 = vld [vmem:[#allocation13 + $0xc8] sm:$0xf]
    %v8798 = vld [vmem:[#allocation13 + $0xcc] sm:$0xf]
    %v8799 = vld [vmem:[#allocation13 + $0xd0] sm:$0xf]
    %v8800 = vld [vmem:[#allocation13 + $0xd4] sm:$0xf]
    %v8801 = vld [vmem:[#allocation13 + $0xd8] sm:$0xf]
    %v8802 = vld [vmem:[#allocation13 + $0xdc] sm:$0xf]
    %v8803 = vld [vmem:[#allocation13 + $0xe0] sm:$0xf]
    %v8804 = vld [vmem:[#allocation13 + $0xe4] sm:$0xf]
    %v8805 = vld [vmem:[#allocation13 + $0xe8] sm:$0xf]
    %v8806 = vld [vmem:[#allocation13 + $0xec] sm:$0xf]
    %v8807 = vld [vmem:[#allocation13 + $0xf0] sm:$0xf]
    %v8808 = vld [vmem:[#allocation13 + $0xf4] sm:$0xf]
    %v8809 = vld [vmem:[#allocation13 + $0xf8] sm:$0xf]
    %v8810 = vld [vmem:[#allocation13 + $0xfc] sm:$0xf]
    %v8811 = vld [vmem:[#allocation13 + $0x100] sm:$0xf]
    %v8812 = vld [vmem:[#allocation13 + $0x104] sm:$0xf]
    %v8813 = vld [vmem:[#allocation13 + $0x108] sm:$0xf]
    %v8814 = vld [vmem:[#allocation13 + $0x10c] sm:$0xf]
    %v8815 = vld [vmem:[#allocation13 + $0x110] sm:$0xf]
    %v8816 = vld [vmem:[#allocation13 + $0x114] sm:$0xf]
    %v8817 = vld [vmem:[#allocation13 + $0x118] sm:$0xf]
    %v8818 = vld [vmem:[#allocation13 + $0x11c] sm:$0xf]
    %v8819 = vld [vmem:[#allocation13 + $0x120] sm:$0xf]
    %v8820 = vld [vmem:[#allocation13 + $0x124] sm:$0xf]
    %v8821 = vld [vmem:[#allocation13 + $0x128] sm:$0xf]
    %v8822 = vld [vmem:[#allocation13 + $0x12c] sm:$0xf]
    %v8823 = vld [vmem:[#allocation13 + $0x130] sm:$0xf]
    %v8824 = vld [vmem:[#allocation13 + $0x134] sm:$0xf]
    %v8825 = vld [vmem:[#allocation13 + $0x138] sm:$0xf]
    %v8826 = vld [vmem:[#allocation13 + $0x13c] sm:$0xf]
    %v8827 = vld [vmem:[#allocation14] sm:$0x1]
    %v8829 = vlaneseq
    %v8830 = vshrl.u32 %v8829, 7
    %v8831 = vsub.s32 0, %v8830
    %v8832 = vrot.slane %v8827, %v8831
    %v8914 = vunpack.c.l.b16 %v8747
    %v8915 = vunpack.c.l.b16 %v8748
    %v8916 = vunpack.c.l.b16 %v8749
    %v8917 = vunpack.c.l.b16 %v8750
    %v8918 = vunpack.c.l.b16 %v8751
    %v8919 = vunpack.c.l.b16 %v8752
    %v8920 = vunpack.c.l.b16 %v8753
    %v8921 = vunpack.c.l.b16 %v8754
    %v8922 = vunpack.c.l.b16 %v8755
    %v8923 = vunpack.c.l.b16 %v8756
    %v8924 = vunpack.c.l.b16 %v8757
    %v8925 = vunpack.c.l.b16 %v8758
    %v8926 = vunpack.c.l.b16 %v8759
    %v8927 = vunpack.c.l.b16 %v8760
    %v8928 = vunpack.c.l.b16 %v8761
    %v8929 = vunpack.c.l.b16 %v8762
    %v8930 = vunpack.c.l.b16 %v8763
    %v8931 = vunpack.c.l.b16 %v8764
    %v8932 = vunpack.c.l.b16 %v8765
    %v8933 = vunpack.c.l.b16 %v8766
    %v8934 = vunpack.c.l.b16 %v8767
    %v8935 = vunpack.c.l.b16 %v8768
    %v8936 = vunpack.c.l.b16 %v8769
    %v8937 = vunpack.c.l.b16 %v8770
    %v8938 = vunpack.c.l.b16 %v8771
    %v8939 = vunpack.c.l.b16 %v8772
    %v8940 = vunpack.c.l.b16 %v8773
    %v8941 = vunpack.c.l.b16 %v8774
    %v8942 = vunpack.c.l.b16 %v8775
    %v8943 = vunpack.c.l.b16 %v8776
    %v8944 = vunpack.c.l.b16 %v8777
    %v8945 = vunpack.c.l.b16 %v8778
    %v8946 = vunpack.c.l.b16 %v8779
    %v8947 = vunpack.c.l.b16 %v8780
    %v8948 = vunpack.c.l.b16 %v8781
    %v8949 = vunpack.c.l.b16 %v8782
    %v8950 = vunpack.c.l.b16 %v8783
    %v8951 = vunpack.c.l.b16 %v8784
    %v8952 = vunpack.c.l.b16 %v8785
    %v8953 = vunpack.c.l.b16 %v8786
    %v8954 = vunpack.c.l.b16 %v8787
    %v8955 = vunpack.c.l.b16 %v8788
    %v8956 = vunpack.c.l.b16 %v8789
    %v8957 = vunpack.c.l.b16 %v8790
    %v8958 = vunpack.c.l.b16 %v8791
    %v8959 = vunpack.c.l.b16 %v8792
    %v8960 = vunpack.c.l.b16 %v8793
    %v8961 = vunpack.c.l.b16 %v8794
    %v8962 = vunpack.c.l.b16 %v8795
    %v8963 = vunpack.c.l.b16 %v8796
    %v8964 = vunpack.c.l.b16 %v8797
    %v8965 = vunpack.c.l.b16 %v8798
    %v8966 = vunpack.c.l.b16 %v8799
    %v8967 = vunpack.c.l.b16 %v8800
    %v8968 = vunpack.c.l.b16 %v8801
    %v8969 = vunpack.c.l.b16 %v8802
    %v8970 = vunpack.c.l.b16 %v8803
    %v8971 = vunpack.c.l.b16 %v8804
    %v8972 = vunpack.c.l.b16 %v8805
    %v8973 = vunpack.c.l.b16 %v8806
    %v8974 = vunpack.c.l.b16 %v8807
    %v8975 = vunpack.c.l.b16 %v8808
    %v8976 = vunpack.c.l.b16 %v8809
    %v8977 = vunpack.c.l.b16 %v8810
    %v8978 = vunpack.c.l.b16 %v8811
    %v8979 = vunpack.c.l.b16 %v8812
    %v8980 = vunpack.c.l.b16 %v8813
    %v8981 = vunpack.c.l.b16 %v8814
    %v8982 = vunpack.c.l.b16 %v8815
    %v8983 = vunpack.c.l.b16 %v8816
    %v8984 = vunpack.c.l.b16 %v8817
    %v8985 = vunpack.c.l.b16 %v8818
    %v8986 = vunpack.c.l.b16 %v8819
    %v8987 = vunpack.c.l.b16 %v8820
    %v8988 = vunpack.c.l.b16 %v8821
    %v8989 = vunpack.c.l.b16 %v8822
    %v8990 = vunpack.c.l.b16 %v8823
    %v8991 = vunpack.c.l.b16 %v8824
    %v8992 = vunpack.c.l.b16 %v8825
    %v8993 = vunpack.c.l.b16 %v8826
    %v8994 = vpack.c.b16 %v8915, %v8914
    %v8995 = vpack.c.b16 %v8917, %v8916
    %v8996 = vpack.c.b16 %v8919, %v8918
    %v8997 = vpack.c.b16 %v8921, %v8920
    %v8998 = vpack.c.b16 %v8923, %v8922
    %v8999 = vpack.c.b16 %v8925, %v8924
    %v9000 = vpack.c.b16 %v8927, %v8926
    %v9001 = vpack.c.b16 %v8929, %v8928
    %v9002 = vpack.c.b16 %v8931, %v8930
    %v9003 = vpack.c.b16 %v8933, %v8932
    %v9004 = vpack.c.b16 %v8935, %v8934
    %v9005 = vpack.c.b16 %v8937, %v8936
    %v9006 = vpack.c.b16 %v8939, %v8938
    %v9007 = vpack.c.b16 %v8941, %v8940
    %v9008 = vpack.c.b16 %v8943, %v8942
    %v9009 = vpack.c.b16 %v8945, %v8944
    %v9010 = vpack.c.b16 %v8947, %v8946
    %v9011 = vpack.c.b16 %v8949, %v8948
    %v9012 = vpack.c.b16 %v8951, %v8950
    %v9013 = vpack.c.b16 %v8953, %v8952
    %v9014 = vpack.c.b16 %v8955, %v8954
    %v9015 = vpack.c.b16 %v8957, %v8956
    %v9016 = vpack.c.b16 %v8959, %v8958
    %v9017 = vpack.c.b16 %v8961, %v8960
    %v9018 = vpack.c.b16 %v8963, %v8962
    %v9019 = vpack.c.b16 %v8965, %v8964
    %v9020 = vpack.c.b16 %v8967, %v8966
    %v9021 = vpack.c.b16 %v8969, %v8968
    %v9022 = vpack.c.b16 %v8971, %v8970
    %v9023 = vpack.c.b16 %v8973, %v8972
    %v9024 = vpack.c.b16 %v8975, %v8974
    %v9025 = vpack.c.b16 %v8977, %v8976
    %v9026 = vpack.c.b16 %v8979, %v8978
    %v9027 = vpack.c.b16 %v8981, %v8980
    %v9028 = vpack.c.b16 %v8983, %v8982
    %v9029 = vpack.c.b16 %v8985, %v8984
    %v9030 = vpack.c.b16 %v8987, %v8986
    %v9031 = vpack.c.b16 %v8989, %v8988
    %v9032 = vpack.c.b16 %v8991, %v8990
    %v9033 = vpack.c.b16 %v8993, %v8992
    %9074 = vmatprep.subr.bf16.mxu0 0
    %9075 = vmatpush1.bf16.msra.mxu0 %v8994
    %9076 = vmatprep.subr.bf16.mxu0 0
    %9077 = vmatpush1.bf16.msra.mxu0 %v8995
    %9078 = vmatprep.subr.bf16.mxu0 0
    %9079 = vmatpush1.bf16.msra.mxu0 %v8996
    %9080 = vmatprep.subr.bf16.mxu0 0
    %9081 = vmatpush1.bf16.msra.mxu0 %v8997
    %9082 = vmatprep.subr.bf16.mxu0 0
    %9083 = vmatpush1.bf16.msra.mxu0 %v8998
    %9084 = vmatprep.subr.bf16.mxu0 0
    %9085 = vmatpush1.bf16.msra.mxu0 %v8999
    %9086 = vmatprep.subr.bf16.mxu0 0
    %9087 = vmatpush1.bf16.msra.mxu0 %v9000
    %9088 = vmatprep.subr.bf16.mxu0 0
    %9089 = vmatpush1.bf16.msra.mxu0 %v9001
    %9090 = vmatprep.subr.bf16.mxu0 0
    %9091 = vmatpush1.bf16.msra.mxu0 %v9002
    %9092 = vmatprep.subr.bf16.mxu0 0
    %9093 = vmatpush1.bf16.msra.mxu0 %v9003
    %9094 = vmatprep.subr.bf16.mxu0 0
    %9095 = vmatpush1.bf16.msra.mxu0 %v9004
    %9096 = vmatprep.subr.bf16.mxu0 0
    %9097 = vmatpush1.bf16.msra.mxu0 %v9005
    %9098 = vmatprep.subr.bf16.mxu0 0
    %9099 = vmatpush1.bf16.msra.mxu0 %v9006
    %9100 = vmatprep.subr.bf16.mxu0 0
    %9101 = vmatpush1.bf16.msra.mxu0 %v9007
    %9102 = vmatprep.subr.bf16.mxu0 0
    %9103 = vmatpush1.bf16.msra.mxu0 %v9008
    %9104 = vmatprep.subr.bf16.mxu0 0
    %9105 = vmatpush1.bf16.msra.mxu0 %v9009
    %9106 = vmatprep.mubr.bf16.mxu0 %v8743
    %9107 = vmatmul.mubr.bf16.gmra.mrb[0].mxu0 %v8742
    %v9108 = vpop.f32.mrb[0].mxu0
    %v9109 = vadd.f32 %v8832, %v9108
    %v9110 = vpop.f32.mrb[0].mxu0
    %v9111 = vpop.f32.mrb[0].mxu0
    %v9112 = vadd.f32 %v8832, %v9111
    %v9113 = vpop.f32.mrb[0].mxu0
    %9114 = vdwg.mxu0
    %9115 = vmatprep.subr.bf16.mxu0 0
    %9116 = vmatpush1.bf16.msra.mxu0 %v9010
    %9117 = vmatprep.subr.bf16.mxu0 0
    %9118 = vmatpush1.bf16.msra.mxu0 %v9011
    %9119 = vmatprep.subr.bf16.mxu0 0
    %9120 = vmatpush1.bf16.msra.mxu0 %v9012
    %9121 = vmatprep.subr.bf16.mxu0 0
    %9122 = vmatpush1.bf16.msra.mxu0 %v9013
    %9123 = vmatprep.subr.bf16.mxu0 0
    %9124 = vmatpush1.bf16.msra.mxu0 %v9014
    %9125 = vmatprep.subr.bf16.mxu0 0
    %9126 = vmatpush1.bf16.msra.mxu0 %v9015
    %9127 = vmatprep.subr.bf16.mxu0 0
    %9128 = vmatpush1.bf16.msra.mxu0 %v9016
    %9129 = vmatprep.subr.bf16.mxu0 0
    %9130 = vmatpush1.bf16.msra.mxu0 %v9017
    %9131 = vmatprep.subr.bf16.mxu0 0
    %9132 = vmatpush1.bf16.msra.mxu0 %v9018
    %9133 = vmatprep.subr.bf16.mxu0 0
    %9134 = vmatpush1.bf16.msra.mxu0 %v9019
    %9135 = vmatprep.subr.bf16.mxu0 0
    %9136 = vmatpush1.bf16.msra.mxu0 %v9020
    %9137 = vmatprep.subr.bf16.mxu0 0
    %9138 = vmatpush1.bf16.msra.mxu0 %v9021
    %9139 = vmatprep.subr.bf16.mxu0 0
    %9140 = vmatpush1.bf16.msra.mxu0 %v9022
    %9141 = vmatprep.subr.bf16.mxu0 0
    %9142 = vmatpush1.bf16.msra.mxu0 %v9023
    %9143 = vmatprep.subr.bf16.mxu0 0
    %9144 = vmatpush1.bf16.msra.mxu0 %v9024
    %9145 = vmatprep.subr.bf16.mxu0 0
    %9146 = vmatpush1.bf16.msra.mxu0 %v9025
    %9147 = vmatprep.mubr.bf16.mxu0 %v8745
    %9148 = vmatmul.mubr.bf16.gmra.mrb[0].mxu0 %v8744
    %v9149 = vpop.f32.mrb[0].mxu0
    %v9150 = vadd.f32 %v9109, %v9149
    %v9151 = vpop.f32.mrb[0].mxu0
    %v9152 = vpop.f32.mrb[0].mxu0
    %v9153 = vadd.f32 %v9112, %v9152
    %v9154 = vpop.f32.mrb[0].mxu0
    %9155 = vdwg.mxu0
    %9156 = vmatprep.subr.bf16.mxu0 0
    %9157 = vmatpush1.bf16.msra.mxu0 %v9026
    %9158 = vmatprep.subr.bf16.mxu0 0
    %9159 = vmatpush1.bf16.msra.mxu0 %v9027
    %9160 = vmatprep.subr.bf16.mxu0 0
    %9161 = vmatpush1.bf16.msra.mxu0 %v9028
    %9162 = vmatprep.subr.bf16.mxu0 0
    %9163 = vmatpush1.bf16.msra.mxu0 %v9029
    %9164 = vmatprep.subr.bf16.mxu0 0
    %9165 = vmatpush1.bf16.msra.mxu0 %v9030
    %9166 = vmatprep.subr.bf16.mxu0 0
    %9167 = vmatpush1.bf16.msra.mxu0 %v9031
    %9168 = vmatprep.subr.bf16.mxu0 0
    %9169 = vmatpush1.bf16.msra.mxu0 %v9032
    %9170 = vmatprep.subr.bf16.mxu0 0
    %9171 = vmatpush1.bf16.msra.mxu0 %v9033
    %9172 = vmatprep.subr.bf16.mxu0 0
    %9173 = vmatpush1.bf16.msra.mxu0 0
    %9174 = vmatprep.subr.bf16.mxu0 0
    %9175 = vmatpush1.bf16.msra.mxu0 0
    %9176 = vmatprep.subr.bf16.mxu0 0
    %9177 = vmatpush1.bf16.msra.mxu0 0
    %9178 = vmatprep.subr.bf16.mxu0 0
    %9179 = vmatpush1.bf16.msra.mxu0 0
    %9180 = vmatprep.subr.bf16.mxu0 0
    %9181 = vmatpush1.bf16.msra.mxu0 0
    %9182 = vmatprep.subr.bf16.mxu0 0
    %9183 = vmatpush1.bf16.msra.mxu0 0
    %9184 = vmatprep.subr.bf16.mxu0 0
    %9185 = vmatpush1.bf16.msra.mxu0 0
    %9186 = vmatprep.subr.bf16.mxu0 0
    %9187 = vmatpush1.bf16.msra.mxu0 0
    %9188 = vmatprep.mubr.bf16.mxu0 0
    %9189 = vmatmul.mubr.bf16.gmra.mrb[0].mxu0 %v8746
    %v9190 = vpop.f32.mrb[0].mxu0
    %v9191 = vadd.f32 %v9150, %v9190
    %v9192 = vpop.f32.mrb[0].mxu0
    %v9193 = vpop.f32.mrb[0].mxu0
    %v9194 = vadd.f32 %v9153, %v9193
    %v9195 = vpop.f32.mrb[0].mxu0
    %9196 = vdwg.mxu0
    %9197 = vst [vmem:[#allocation16] sm:$0xff] %v9191
    %9198 = vst [vmem:[#allocation16 + $0x8] sm:$0xff] %v9194
    // Predicated region
    $region70: #{byte_combine_cnn.1} parent=1 // pred_check
      _
    $region71: #{byte_combine_cnn.1} parent=1 // pred_check_branch
      %9200 = sbr.rel (0) target = $region73
    $region72: #{byte_combine_cnn.1} parent=1 // pred_region
      %s9202 = ssub.s32 256, 256
      %9203 = vsyncadd [#allocation4], %s9202
      %s9204 = sshll.u32 [#allocation16], 4
      %s9205 = int_to_ptr.vmem [resolvable:$true] %s9204
      %9210 = dma.vmem_to_hbm [thread:$0]  %s9205, 256, %s9, [#allocation4], 128, 128, 8
    $region73: #{byte_combine_cnn.1} parent=1 // pred_fallthru
      _
    // Predicated region
    $region74: #{byte_combine_cnn.1} parent=1 // pred_check
      _
    $region75: #{byte_combine_cnn.1} parent=1 // pred_check_branch
      %9212 = sbr.rel (0) target = $region77
    $region76: #{byte_combine_cnn.1} parent=1 // pred_region
      %9213 = dma.done [#allocation4], 256
    $region77: #{byte_combine_cnn.1} parent=1 // pred_fallthru
      _
    %9214 = vsyncpa [#allocation3], 1
    %9215 = vsyncpa [#allocation6], 1
    %9216 = vsyncpa [#allocation9], 1
    %9217 = vsyncpa [#allocation12], 1
    %9218 = vsyncpa [#allocation15], 1
    %9219 = vsyncpa [#allocation4], 1

</llo_original>
